<compile_context>
chip_gen: v7x
topology: tpu7x:2x2x1
jax: 0.10.0
libtpu: 0.0.40
codegen_flags: <defaults>
</compile_context>

<pallas_src>
import functools

import jax
import jax.numpy as jnp
from jax import lax
from jax.experimental import pallas as pl
from jax.experimental.pallas import tpu as pltpu


# ----------------------------------------------------------------------------
# Kernel 1: fused conv1 (block-diag im2col matmul) + 2x2 max-pool + bias + ReLU
# ----------------------------------------------------------------------------
def _conv_pool_kernel(x_ref, w_ref, b_ref, o_ref):
    # x_ref: (tmc, 128) bf16 -- tmc = bb*196 pooled pixels, K = 4 corners x 32 taps
    # w_ref: (128, 128) bf16 block-diagonal (4 copies of the (32,32) im2col weight)
    # b_ref: (1, 32) f32 ; o_ref: (tmc, 32) bf16 pooled activations
    acc = jnp.dot(x_ref[...], w_ref[...], preferred_element_type=jnp.float32)
    # 2x2 max-pool = max over the four 32-lane corner groups.
    pooled = jnp.maximum(jnp.maximum(acc[:, 0:32], acc[:, 32:64]),
                         jnp.maximum(acc[:, 64:96], acc[:, 96:128]))
    # bias + ReLU hoisted after the max (bit-exact: fp add is monotone).
    o_ref[...] = jnp.maximum(pooled + b_ref[...], 0.0).astype(o_ref.dtype)


def conv_relu_pool_pallas(corners2d, w_blk, b_conv, *, bb):
    """corners2d: (Bp*196, 128) bf16 -> pooled activations (Bp*196, 32) bf16."""
    Mc = corners2d.shape[0]
    tmc = bb * 196                      # bb is even -> tmc divisible by 8
    assert Mc % tmc == 0
    return pl.pallas_call(
        _conv_pool_kernel,
        out_shape=jax.ShapeDtypeStruct((Mc, 32), jnp.bfloat16),
        grid=(Mc // tmc,),
        in_specs=[
            pl.BlockSpec((tmc, 128), lambda i: (i, 0)),
            pl.BlockSpec((128, 128), lambda i: (0, 0)),
            pl.BlockSpec((1, 32), lambda i: (0, 0)),
        ],
        out_specs=pl.BlockSpec((tmc, 32), lambda i: (i, 0)),
        compiler_params=pltpu.CompilerParams(
            dimension_semantics=("parallel",)),
    )(corners2d, w_blk, b_conv)


# ----------------------------------------------------------------------------
# Kernel 2: fused fc1 + ReLU + fc2 + ReLU + fc3 (fc1 weight streamed in N tiles)
# ----------------------------------------------------------------------------
def _fc_stack_kernel(x_ref, w1_ref, b1_ref, w2_ref, b2_ref, w3_ref, b3_ref,
                     o_ref, h1_scr, *, tn1):
    # grid = (M tiles [parallel], fc1 N tiles [arbitrary])
    j = pl.program_id(1)

    # fc1 partial: (tm, 6272) @ (6272, tn1) -> bf16 hidden scratch slice.
    h1 = jnp.dot(x_ref[...], w1_ref[...], preferred_element_type=jnp.float32)
    h1 = jnp.maximum(h1 + b1_ref[...], 0.0)
    col = pl.multiple_of(j * tn1, tn1)
    h1_scr[:, pl.ds(col, tn1)] = h1.astype(h1_scr.dtype)

    @pl.when(j == pl.num_programs(1) - 1)
    def _():
        a1 = h1_scr[...]                                      # (tm, 1024) bf16
        h2 = jnp.dot(a1, w2_ref[...], preferred_element_type=jnp.float32)
        h2 = jnp.maximum(h2 + b2_ref[...], 0.0)               # (tm, 512)
        h3 = jnp.dot(h2.astype(w3_ref.dtype), w3_ref[...],
                     preferred_element_type=jnp.float32)      # (tm, 128)
        o_ref[...] = (h3 + b3_ref[...]).astype(o_ref.dtype)


def fc_stack_pallas(flat, w1, b1, w2, b2, w3, b3, *, tn1=256):
    M, K1 = flat.shape            # (B, 6272)
    N1 = w1.shape[1]              # 1024
    N2 = w2.shape[1]              # 512
    N3 = w3.shape[1]              # 128 (fc3 padded)
    assert N1 % tn1 == 0

    # Chip-dependent tiling: big-VMEM chips (v5e/v6e, 128 MiB) take tm=512 so
    # the 12.25 MB fc1 weight is re-streamed less often; v7x (64 MiB) caps at 256.
    try:
        vmem_cap = pltpu.get_tpu_info().vmem_capacity_bytes
    except Exception:
        vmem_cap = 64 * 1024 * 1024
    big_vmem = vmem_cap >= 100 * 1024 * 1024
    tm_max = 512 if big_vmem else 256
    vmem_limit = (72 if big_vmem else 40) * 1024 * 1024

    if M <= tm_max:
        tm, Mp = M, M                         # block == full dim -> always legal
    else:
        tm = tm_max
        Mp = pl.cdiv(M, tm) * tm
        if Mp != M:                           # pad batch, slice logits after
            flat = jnp.pad(flat, ((0, Mp - M), (0, 0)))

    grid = (Mp // tm, N1 // tn1)
    kernel = functools.partial(_fc_stack_kernel, tn1=tn1)
    out = pl.pallas_call(
        kernel,
        out_shape=jax.ShapeDtypeStruct((Mp, N3), jnp.float32),
        grid=grid,
        in_specs=[
            pl.BlockSpec((tm, K1), lambda i, j: (i, 0)),     # activations
            pl.BlockSpec((K1, tn1), lambda i, j: (0, j)),    # fc1 weight tile
            pl.BlockSpec((1, tn1), lambda i, j: (0, j)),     # fc1 bias tile
            pl.BlockSpec((N1, N2), lambda i, j: (0, 0)),     # fc2 weight
            pl.BlockSpec((1, N2), lambda i, j: (0, 0)),      # fc2 bias
            pl.BlockSpec((N2, N3), lambda i, j: (0, 0)),     # fc3 weight (padded)
            pl.BlockSpec((1, N3), lambda i, j: (0, 0)),      # fc3 bias (padded)
        ],
        out_specs=pl.BlockSpec((tm, N3), lambda i, j: (i, 0)),
        scratch_shapes=[pltpu.VMEM((tm, N1), jnp.bfloat16)],
        compiler_params=pltpu.CompilerParams(
            dimension_semantics=("parallel", "arbitrary"),
            vmem_limit_bytes=vmem_limit),
    )(flat, w1, b1, w2, b2, w3, b3)
    return out[:M]


# ----------------------------------------------------------------------------
# Parameters
# ----------------------------------------------------------------------------
def init_params(key):
    ks = jax.random.split(key, 8)

    def u(k, shape, fan_in):
        bound = 1.0 / jnp.sqrt(jnp.float32(fan_in))
        return jax.random.uniform(k, shape, jnp.float32, -bound, bound)

    return {
        "conv1_w": u(ks[0], (32, 1, 5, 5), 25),      # OIHW, like PyTorch
        "conv1_b": u(ks[1], (32,), 25),
        "fc1_w": u(ks[2], (6272, 1024), 6272),       # (in, out)
        "fc1_b": u(ks[3], (1024,), 6272),
        "fc2_w": u(ks[4], (1024, 512), 1024),
        "fc2_b": u(ks[5], (512,), 1024),
        "fc3_w": u(ks[6], (512, 10), 512),
        "fc3_b": u(ks[7], (10,), 512),
    }


def prepare_params(params):
    """One-time layout prep: bf16 cast, block-diag conv weight, fold NCHW
    flatten into fc1, pad fc3 to 128 lanes."""
    wc = params["conv1_w"].reshape(32, 25).T                       # (25, 32)
    wc = jnp.pad(wc, ((0, 7), (0, 0)))                             # (32, 32)
    # Block-diagonal (128,128): one im2col weight copy per 2x2 pool corner.
    w_blk = jnp.kron(jnp.eye(4, dtype=wc.dtype), wc).astype(jnp.bfloat16)
    bc = params["conv1_b"].reshape(1, 32).astype(jnp.float32)

    # PyTorch flat index = c*196 + p ; kernel produces index = p*32 + c.
    w1 = (params["fc1_w"].reshape(32, 196, 1024)
          .transpose(1, 0, 2).reshape(6272, 1024).astype(jnp.bfloat16))
    b1 = params["fc1_b"].reshape(1, 1024).astype(jnp.float32)
    w2 = params["fc2_w"].astype(jnp.bfloat16)
    b2 = params["fc2_b"].reshape(1, 512).astype(jnp.float32)
    w3 = jnp.pad(params["fc3_w"], ((0, 0), (0, 118))).astype(jnp.bfloat16)
    b3 = jnp.pad(params["fc3_b"], (0, 118)).reshape(1, 128).astype(jnp.float32)
    return dict(conv_w=w_blk, conv_b=bc, w1=w1, b1=b1, w2=w2, b2=b2, w3=w3, b3=b3)


# ----------------------------------------------------------------------------
# Model
# ----------------------------------------------------------------------------
def mnist_2nn_pallas(prep, inputs):
    x = inputs.reshape(-1, 1, 28, 28).astype(jnp.float32)      # like .view()
    B = x.shape[0]

    # im2col patches, corner-major along K: corners[b, p, q*32 + t] with
    # p = pooled pixel, q = 2x2 pool corner, t = 5x5 tap (padded 25 -> 32).
    # Built with stride-2 slices only (no big transpose relayout pass).
    xpad = jnp.pad(x[:, 0], ((0, 0), (2, 2), (2, 2)))           # (B, 32, 32)
    groups = []
    for ci in range(2):
        for cj in range(2):
            taps = [xpad[:, ci + di:ci + di + 27:2, cj + dj:cj + dj + 27:2]
                    for di in range(5) for dj in range(5)]      # 25 x (B,14,14)
            g = jnp.stack(taps, axis=-1)                        # (B, 14, 14, 25)
            groups.append(jnp.pad(g, ((0, 0), (0, 0), (0, 0), (0, 7))))
    corners = jnp.concatenate(groups, axis=-1).reshape(B, 196, 128)

    # Multiple images per conv grid step (bb even so bb*196 is 8-aligned).
    bb = 8 if B > 8 else (B if B % 2 == 0 else B + 1)
    Bp = pl.cdiv(B, bb) * bb
    if Bp != B:
        corners = jnp.pad(corners, ((0, Bp - B), (0, 0), (0, 0)))
    corners2d = corners.reshape(Bp * 196, 128).astype(jnp.bfloat16)

    # Fused conv + 2x2 max-pool + bias + ReLU (Pallas).
    pooled = conv_relu_pool_pallas(corners2d, prep["conv_w"], prep["conv_b"],
                                   bb=bb)                       # (Bp*196, 32)
    flat = pooled[:B * 196].reshape(B, 6272)

    # Fused fc1/fc2/fc3 (Pallas); NCHW flatten permutation already in w1.
    logits = fc_stack_pallas(flat, prep["w1"], prep["b1"], prep["w2"],
                             prep["b2"], prep["w3"], prep["b3"])
    return logits[:, :10]


def mnist_2nn_reference(params, inputs):
    """Pure-JAX f32 reference mirroring the PyTorch semantics."""
    x = inputs.reshape(-1, 1, 28, 28).astype(jnp.float32)
    conv = lax.conv_general_dilated(
        x, params["conv1_w"], window_strides=(1, 1),
        padding=((2, 2), (2, 2)),
        dimension_numbers=("NCHW", "OIHW", "NCHW"),
    ) + params["conv1_b"].reshape(1, 32, 1, 1)
    conv = jnp.maximum(conv, 0.0)                               # (B, 32, 28, 28)
    B = conv.shape[0]
    pooled = conv.reshape(B, 32, 14, 2, 14, 2).max(axis=(3, 5))
    flat = pooled.reshape(B, 6272)
    h = jnp.maximum(flat @ params["fc1_w"] + params["fc1_b"], 0.0)
    h = jnp.maximum(h @ params["fc2_w"] + params["fc2_b"], 0.0)
    return h @ params["fc3_w"] + params["fc3_b"]


if __name__ == "__main__":
    key = jax.random.PRNGKey(0)
    pkey, xkey = jax.random.split(key)
    params = init_params(pkey)
    prep = prepare_params(params)   # one-time bf16 / block-diag / permute / pad

    # Small batch; spatial size is fixed at 28x28 by the module's fc1 layer.
    x = jax.random.normal(xkey, (2, 1, 28, 28), dtype=jnp.float32)

    fwd = jax.jit(mnist_2nn_pallas)
    out = jax.block_until_ready(fwd(prep, x))

    ref = mnist_2nn_reference(params, x)
    assert out.shape == (2, 10)
    # bf16 weight/activation streaming (f32 accumulation) -> loosened tolerance.
    assert jnp.allclose(out, ref, atol=5e-2, rtol=5e-2), (
        "mismatch vs reference, max abs diff = "
        f"{float(jnp.max(jnp.abs(out - ref)))}")

    print("KERNEL_OK")
</pallas_src>

<mosaic_0001>
module attributes {stable_mosaic.version = 11 : i64} {
  func.func @_conv_pool_kernel(%arg0: i32, %arg1: memref<392x128xbf16, #tpu.memory_space<vmem>>, %arg2: memref<128x128xbf16, #tpu.memory_space<vmem>>, %arg3: memref<1x32xf32, #tpu.memory_space<vmem>>, %arg4: memref<392x32xbf16, #tpu.memory_space<vmem>>) attributes {dimension_semantics = [#tpu.dimension_semantics<parallel>], iteration_bounds = array<i64: 1>, scalar_prefetch = 0 : i64, scratch_operands = 0 : i64, tpu.core_type = #tpu.core_type<tc>, window_params = [{transform_indices = @transform_0, window_bounds = array<i64: 392, 128>}, {pipeline_mode = #tpu.pipeline_mode<synchronous>, transform_indices = @transform_1, window_bounds = array<i64: 128, 128>}, {pipeline_mode = #tpu.pipeline_mode<synchronous>, transform_indices = @transform_2, window_bounds = array<i64: 1, 32>}, {transform_indices = @transform_3, window_bounds = array<i64: 392, 32>}]} {
    %c0 = arith.constant 0 : index
    %c0_0 = arith.constant 0 : index
    %0 = vector.load %arg1[%c0, %c0_0] : memref<392x128xbf16, #tpu.memory_space<vmem>>, vector<392x128xbf16>
    %c0_1 = arith.constant 0 : index
    %c0_2 = arith.constant 0 : index
    %1 = vector.load %arg2[%c0_1, %c0_2] : memref<128x128xbf16, #tpu.memory_space<vmem>>, vector<128x128xbf16>
    %cst = arith.constant dense<0.000000e+00> : vector<392x128xf32>
    %2 = tpu.matmul %0, %1, %cst {dimension_numbers = #tpu.dot_dimension_numbers<[1], [0], [0], [1], [0, 0, 1, 1], [], []>} : vector<392x128xbf16>, vector<128x128xbf16>, vector<392x128xf32> -> vector<392x128xf32>
    %3 = vector.extract_strided_slice %2 {offsets = [0, 0], sizes = [392, 32], strides = [1, 1]} : vector<392x128xf32> to vector<392x32xf32>
    %4 = vector.extract_strided_slice %2 {offsets = [0, 32], sizes = [392, 32], strides = [1, 1]} : vector<392x128xf32> to vector<392x32xf32>
    %5 = arith.maximumf %3, %4 : vector<392x32xf32>
    %6 = vector.extract_strided_slice %2 {offsets = [0, 64], sizes = [392, 32], strides = [1, 1]} : vector<392x128xf32> to vector<392x32xf32>
    %7 = vector.extract_strided_slice %2 {offsets = [0, 96], sizes = [392, 32], strides = [1, 1]} : vector<392x128xf32> to vector<392x32xf32>
    %8 = arith.maximumf %6, %7 : vector<392x32xf32>
    %9 = arith.maximumf %5, %8 : vector<392x32xf32>
    %c0_3 = arith.constant 0 : index
    %c0_4 = arith.constant 0 : index
    %10 = vector.load %arg3[%c0_3, %c0_4] : memref<1x32xf32, #tpu.memory_space<vmem>>, vector<1x32xf32>
    %11 = vector.broadcast %10 : vector<1x32xf32> to vector<392x32xf32>
    %12 = arith.addf %9, %11 : vector<392x32xf32>
    %cst_5 = arith.constant 0.000000e+00 : f32
    %13 = vector.broadcast %cst_5 : f32 to vector<392x32xf32>
    %14 = arith.maximumf %12, %13 : vector<392x32xf32>
    %15 = arith.truncf %14 : vector<392x32xf32> to vector<392x32xbf16>
    %c0_6 = arith.constant 0 : index
    %c0_7 = arith.constant 0 : index
    %16 = vector.load %arg4[%c0_6, %c0_7] : memref<392x32xbf16, #tpu.memory_space<vmem>>, vector<392x32xbf16>
    tpu.vector_store %arg4[%c0_6, %c0_7], %15 {strides = array<i32>} : memref<392x32xbf16, #tpu.memory_space<vmem>>, vector<392x32xbf16>,
    return
  }
  func.func @transform_0(%arg0: i32) -> (i32, i32) {
    %c0_i32 = arith.constant 0 : i32
    %c0_i32_0 = arith.constant 0 : i32
    return %arg0, %c0_i32 : i32, i32
  }
  func.func @transform_1(%arg0: i32) -> (i32, i32) {
    %c0_i32 = arith.constant 0 : i32
    %c0_i32_0 = arith.constant 0 : i32
    %c0_i32_1 = arith.constant 0 : i32
    return %c0_i32, %c0_i32_0 : i32, i32
  }
  func.func @transform_2(%arg0: i32) -> (i32, i32) {
    %c0_i32 = arith.constant 0 : i32
    %c0_i32_0 = arith.constant 0 : i32
    %c0_i32_1 = arith.constant 0 : i32
    return %c0_i32, %c0_i32_0 : i32, i32
  }
  func.func @transform_3(%arg0: i32) -> (i32, i32) {
    %c0_i32 = arith.constant 0 : i32
    %c0_i32_0 = arith.constant 0 : i32
    return %arg0, %c0_i32 : i32, i32
  }
}

module attributes {stable_mosaic.version = 11 : i64} {
  func.func @_fc_stack_kernel(%arg0: i32, %arg1: i32, %arg2: memref<2x6272xbf16, #tpu.memory_space<vmem>>, %arg3: memref<6272x256xbf16, #tpu.memory_space<vmem>>, %arg4: memref<1x256xf32, #tpu.memory_space<vmem>>, %arg5: memref<1024x512xbf16, #tpu.memory_space<vmem>>, %arg6: memref<1x512xf32, #tpu.memory_space<vmem>>, %arg7: memref<512x128xbf16, #tpu.memory_space<vmem>>, %arg8: memref<1x128xf32, #tpu.memory_space<vmem>>, %arg9: memref<2x128xf32, #tpu.memory_space<vmem>>, %arg10: memref<2x1024xbf16, #tpu.memory_space<vmem>>) attributes {dimension_semantics = [#tpu.dimension_semantics<parallel>, #tpu.dimension_semantics<arbitrary>], iteration_bounds = array<i64: 1, 4>, scalar_prefetch = 0 : i64, scratch_operands = 1 : i64, tpu.core_type = #tpu.core_type<tc>, window_params = [{transform_indices = @transform_0, window_bounds = array<i64: 2, 6272>}, {transform_indices = @transform_1, window_bounds = array<i64: 6272, 256>}, {transform_indices = @transform_2, window_bounds = array<i64: 1, 256>}, {pipeline_mode = #tpu.pipeline_mode<synchronous>, transform_indices = @transform_3, window_bounds = array<i64: 1024, 512>}, {pipeline_mode = #tpu.pipeline_mode<synchronous>, transform_indices = @transform_4, window_bounds = array<i64: 1, 512>}, {pipeline_mode = #tpu.pipeline_mode<synchronous>, transform_indices = @transform_5, window_bounds = array<i64: 512, 128>}, {pipeline_mode = #tpu.pipeline_mode<synchronous>, transform_indices = @transform_6, window_bounds = array<i64: 1, 128>}, {transform_indices = @transform_7, window_bounds = array<i64: 2, 128>}]} {
    %c0 = arith.constant 0 : index
    %c0_0 = arith.constant 0 : index
    %0 = vector.load %arg2[%c0, %c0_0] : memref<2x6272xbf16, #tpu.memory_space<vmem>>, vector<2x6272xbf16>
    %c0_1 = arith.constant 0 : index
    %c0_2 = arith.constant 0 : index
    %1 = vector.load %arg3[%c0_1, %c0_2] : memref<6272x256xbf16, #tpu.memory_space<vmem>>, vector<6272x256xbf16>
    %cst = arith.constant dense<0.000000e+00> : vector<2x256xf32>
    %2 = tpu.matmul %0, %1, %cst {dimension_numbers = #tpu.dot_dimension_numbers<[1], [0], [0], [1], [0, 0, 1, 1], [], []>} : vector<2x6272xbf16>, vector<6272x256xbf16>, vector<2x256xf32> -> vector<2x256xf32>
    %c0_3 = arith.constant 0 : index
    %c0_4 = arith.constant 0 : index
    %3 = vector.load %arg4[%c0_3, %c0_4] : memref<1x256xf32, #tpu.memory_space<vmem>>, vector<1x256xf32>
    %4 = vector.broadcast %3 : vector<1x256xf32> to vector<2x256xf32>
    %5 = arith.addf %2, %4 : vector<2x256xf32>
    %cst_5 = arith.constant 0.000000e+00 : f32
    %6 = vector.broadcast %cst_5 : f32 to vector<2x256xf32>
    %7 = arith.maximumf %5, %6 : vector<2x256xf32>
    %c256_i32 = arith.constant 256 : i32
    %8 = arith.muli %arg1, %c256_i32 : i32
    %9 = tpu.assume_multiple %8, 256 : i32
    %10 = arith.truncf %7 : vector<2x256xf32> to vector<2x256xbf16>
    %c0_6 = arith.constant 0 : index
    %11 = arith.index_cast %9 : i32 to index
    %12 = vector.load %arg10[%c0_6, %11] : memref<2x1024xbf16, #tpu.memory_space<vmem>>, vector<2x256xbf16>
    tpu.vector_store %arg10[%c0_6, %11], %10 {strides = array<i32>} : memref<2x1024xbf16, #tpu.memory_space<vmem>>, vector<2x256xbf16>,
    %c3_i32 = arith.constant 3 : i32
    %13 = arith.cmpi eq, %arg1, %c3_i32 : i32
    %14 = arith.extui %13 : i1 to i32
    %c0_i32 = arith.constant 0 : i32
    %15 = arith.cmpi ne, %14, %c0_i32 : i32
    scf.if %15 {
      %c0_7 = arith.constant 0 : index
      %c0_8 = arith.constant 0 : index
      %16 = vector.load %arg10[%c0_7, %c0_8] : memref<2x1024xbf16, #tpu.memory_space<vmem>>, vector<2x1024xbf16>
      %c0_9 = arith.constant 0 : index
      %c0_10 = arith.constant 0 : index
      %17 = vector.load %arg5[%c0_9, %c0_10] : memref<1024x512xbf16, #tpu.memory_space<vmem>>, vector<1024x512xbf16>
      %cst_11 = arith.constant dense<0.000000e+00> : vector<2x512xf32>
      %18 = tpu.matmul %16, %17, %cst_11 {dimension_numbers = #tpu.dot_dimension_numbers<[1], [0], [0], [1], [0, 0, 1, 1], [], []>} : vector<2x1024xbf16>, vector<1024x512xbf16>, vector<2x512xf32> -> vector<2x512xf32>
      %c0_12 = arith.constant 0 : index
      %c0_13 = arith.constant 0 : index
      %19 = vector.load %arg6[%c0_12, %c0_13] : memref<1x512xf32, #tpu.memory_space<vmem>>, vector<1x512xf32>
      %20 = vector.broadcast %19 : vector<1x512xf32> to vector<2x512xf32>
      %21 = arith.addf %18, %20 : vector<2x512xf32>
      %cst_14 = arith.constant 0.000000e+00 : f32
      %22 = vector.broadcast %cst_14 : f32 to vector<2x512xf32>
      %23 = arith.maximumf %21, %22 : vector<2x512xf32>
      %24 = arith.truncf %23 : vector<2x512xf32> to vector<2x512xbf16>
      %c0_15 = arith.constant 0 : index
      %c0_16 = arith.constant 0 : index
      %25 = vector.load %arg7[%c0_15, %c0_16] : memref<512x128xbf16, #tpu.memory_space<vmem>>, vector<512x128xbf16>
      %cst_17 = arith.constant dense<0.000000e+00> : vector<2x128xf32>
      %26 = tpu.matmul %24, %25, %cst_17 {dimension_numbers = #tpu.dot_dimension_numbers<[1], [0], [0], [1], [0, 0, 1, 1], [], []>} : vector<2x512xbf16>, vector<512x128xbf16>, vector<2x128xf32> -> vector<2x128xf32>
      %c0_18 = arith.constant 0 : index
      %c0_19 = arith.constant 0 : index
      %27 = vector.load %arg8[%c0_18, %c0_19] : memref<1x128xf32, #tpu.memory_space<vmem>>, vector<1x128xf32>
      %28 = vector.broadcast %27 : vector<1x128xf32> to vector<2x128xf32>
      %29 = arith.addf %26, %28 : vector<2x128xf32>
      %c0_20 = arith.constant 0 : index
      %c0_21 = arith.constant 0 : index
      %30 = vector.load %arg9[%c0_20, %c0_21] : memref<2x128xf32, #tpu.memory_space<vmem>>, vector<2x128xf32>
      tpu.vector_store %arg9[%c0_20, %c0_21], %29 {strides = array<i32>} : memref<2x128xf32, #tpu.memory_space<vmem>>, vector<2x128xf32>,
    } else {
    }
    return
  }
  func.func @transform_0(%arg0: i32, %arg1: i32) -> (i32, i32) {
    %c0_i32 = arith.constant 0 : i32
    %c0_i32_0 = arith.constant 0 : i32
    return %arg0, %c0_i32 : i32, i32
  }
  func.func @transform_1(%arg0: i32, %arg1: i32) -> (i32, i32) {
    %c0_i32 = arith.constant 0 : i32
    %c0_i32_0 = arith.constant 0 : i32
    return %c0_i32, %arg1 : i32, i32
  }
  func.func @transform_2(%arg0: i32, %arg1: i32) -> (i32, i32) {
    %c0_i32 = arith.constant 0 : i32
    %c0_i32_0 = arith.constant 0 : i32
    return %c0_i32, %arg1 : i32, i32
  }
  func.func @transform_3(%arg0: i32, %arg1: i32) -> (i32, i32) {
    %c0_i32 = arith.constant 0 : i32
    %c0_i32_0 = arith.constant 0 : i32
    %c0_i32_1 = arith.constant 0 : i32
    return %c0_i32, %c0_i32_0 : i32, i32
  }
  func.func @transform_4(%arg0: i32, %arg1: i32) -> (i32, i32) {
    %c0_i32 = arith.constant 0 : i32
    %c0_i32_0 = arith.constant 0 : i32
    %c0_i32_1 = arith.constant 0 : i32
    return %c0_i32, %c0_i32_0 : i32, i32
  }
  func.func @transform_5(%arg0: i32, %arg1: i32) -> (i32, i32) {
    %c0_i32 = arith.constant 0 : i32
    %c0_i32_0 = arith.constant 0 : i32
    %c0_i32_1 = arith.constant 0 : i32
    return %c0_i32, %c0_i32_0 : i32, i32
  }
  func.func @transform_6(%arg0: i32, %arg1: i32) -> (i32, i32) {
    %c0_i32 = arith.constant 0 : i32
    %c0_i32_0 = arith.constant 0 : i32
    %c0_i32_1 = arith.constant 0 : i32
    return %c0_i32, %c0_i32_0 : i32, i32
  }
  func.func @transform_7(%arg0: i32, %arg1: i32) -> (i32, i32) {
    %c0_i32 = arith.constant 0 : i32
    %c0_i32_0 = arith.constant 0 : i32
    return %arg0, %c0_i32 : i32, i32
  }
}

</mosaic_0001>

<llo_original>
// kernel: mnist_2nn_pallas.2
$region0: #{mnist_2nn_pallas.2}
  #allocation0 [shape = 'u32[]', space=smem, size = 0x4, offset = 0x4, fixed_abs, tag = 'smem constant byte address 0x4 - core index']
  #allocation1 [shape = 'u32[144,128]{1,0:T(1,128)}', space=vmem, size = 0x12000, scoped, tag = 'internal scratch']
  %s0 = inlined_call_operand.vmem [shape: bf16[392,128], index: 0, kind: input, shape index: {}]
  %s1 = inlined_call_operand.vmem [shape: bf16[128,128], index: 1, kind: input, shape index: {}]
  %s2 = inlined_call_operand.vmem [shape: f32[1,32], index: 2, kind: input, shape index: {}]
  %s3 = inlined_call_operand.vmem [shape: bf16[392,32], index: 3, kind: output, shape index: {}]
  %s4 = sld [smem:[#allocation0]]
  $region22: #{mnist_2nn_pallas.2} parent=0
    _
  %s6 = ssub.s32 1, %s4
  %s7 = scalar_select 0, %s6, %s4
  // Predicated region
  $region2: #{mnist_2nn_pallas.2} parent=0 // pred_check
    _
  $region3: #{mnist_2nn_pallas.2} parent=0 // pred_check_branch
    %9 = sbr.rel (0) target = $region5
  $region4: #{mnist_2nn_pallas.2} parent=0 // pred_region
    _
  $region5: #{mnist_2nn_pallas.2} parent=0 // pred_fallthru
    _
  // Predicated region
  $region6: #{mnist_2nn_pallas.2} parent=0 // pred_check
    _
  $region7: #{mnist_2nn_pallas.2} parent=0 // pred_check_branch
    %11 = sbr.rel (0) target = $region9
  $region8: #{mnist_2nn_pallas.2} parent=0 // pred_region
    _
  $region9: #{mnist_2nn_pallas.2} parent=0 // pred_fallthru
    _
  // Predicated region
  $region10: #{mnist_2nn_pallas.2} parent=0 // pred_check
    _
  $region11: #{mnist_2nn_pallas.2} parent=0 // pred_check_branch
    %13 = sbr.rel (0) target = $region13
  $region12: #{mnist_2nn_pallas.2} parent=0 // pred_region
    _
  $region13: #{mnist_2nn_pallas.2} parent=0 // pred_fallthru
    _
  %v15 = vld [vmem:[%s0] sm:$0xf]
  %v16 = vld [vmem:[%s0 + $0x4] sm:$0xf]
  %v17 = vld [vmem:[%s0 + $0x8] sm:$0xf]
  %v18 = vld [vmem:[%s0 + $0xc] sm:$0xf]
  %v19 = vld [vmem:[%s0 + $0x10] sm:$0xf]
  %v20 = vld [vmem:[%s0 + $0x14] sm:$0xf]
  %v21 = vld [vmem:[%s0 + $0x18] sm:$0xf]
  %v22 = vld [vmem:[%s0 + $0x1c] sm:$0xf]
  %v23 = vld [vmem:[%s0 + $0x20] sm:$0xf]
  %v24 = vld [vmem:[%s0 + $0x24] sm:$0xf]
  %v25 = vld [vmem:[%s0 + $0x28] sm:$0xf]
  %v26 = vld [vmem:[%s0 + $0x2c] sm:$0xf]
  %v27 = vld [vmem:[%s0 + $0x30] sm:$0xf]
  %v28 = vld [vmem:[%s0 + $0x34] sm:$0xf]
  %v29 = vld [vmem:[%s0 + $0x38] sm:$0xf]
  %v30 = vld [vmem:[%s0 + $0x3c] sm:$0xf]
  %v31 = vld [vmem:[%s0 + $0x40] sm:$0xf]
  %v32 = vld [vmem:[%s0 + $0x44] sm:$0xf]
  %v33 = vld [vmem:[%s0 + $0x48] sm:$0xf]
  %v34 = vld [vmem:[%s0 + $0x4c] sm:$0xf]
  %v35 = vld [vmem:[%s0 + $0x50] sm:$0xf]
  %v36 = vld [vmem:[%s0 + $0x54] sm:$0xf]
  %v37 = vld [vmem:[%s0 + $0x58] sm:$0xf]
  %v38 = vld [vmem:[%s0 + $0x5c] sm:$0xf]
  %v39 = vld [vmem:[%s0 + $0x60] sm:$0xf]
  %v40 = vld [vmem:[%s0 + $0x64] sm:$0xf]
  %v41 = vld [vmem:[%s0 + $0x68] sm:$0xf]
  %v42 = vld [vmem:[%s0 + $0x6c] sm:$0xf]
  %v43 = vld [vmem:[%s0 + $0x70] sm:$0xf]
  %v44 = vld [vmem:[%s0 + $0x74] sm:$0xf]
  %v45 = vld [vmem:[%s0 + $0x78] sm:$0xf]
  %v46 = vld [vmem:[%s0 + $0x7c] sm:$0xf]
  %v47 = vld [vmem:[%s0 + $0x80] sm:$0xf]
  %v48 = vld [vmem:[%s0 + $0x84] sm:$0xf]
  %v49 = vld [vmem:[%s0 + $0x88] sm:$0xf]
  %v50 = vld [vmem:[%s0 + $0x8c] sm:$0xf]
  %v51 = vld [vmem:[%s0 + $0x90] sm:$0xf]
  %v52 = vld [vmem:[%s0 + $0x94] sm:$0xf]
  %v53 = vld [vmem:[%s0 + $0x98] sm:$0xf]
  %v54 = vld [vmem:[%s0 + $0x9c] sm:$0xf]
  %v55 = vld [vmem:[%s0 + $0xa0] sm:$0xf]
  %v56 = vld [vmem:[%s0 + $0xa4] sm:$0xf]
  %v57 = vld [vmem:[%s0 + $0xa8] sm:$0xf]
  %v58 = vld [vmem:[%s0 + $0xac] sm:$0xf]
  %v59 = vld [vmem:[%s0 + $0xb0] sm:$0xf]
  %v60 = vld [vmem:[%s0 + $0xb4] sm:$0xf]
  %v61 = vld [vmem:[%s0 + $0xb8] sm:$0xf]
  %v62 = vld [vmem:[%s0 + $0xbc] sm:$0xf]
  %v63 = vld [vmem:[%s0 + $0xc0] sm:$0xf]
  %v64 = vld [vmem:[%s1] sm:$0xf]
  %v65 = vld [vmem:[%s1 + $0x4] sm:$0xf]
  %v66 = vld [vmem:[%s1 + $0x8] sm:$0xf]
  %v67 = vld [vmem:[%s1 + $0xc] sm:$0xf]
  %v68 = vld [vmem:[%s1 + $0x10] sm:$0xf]
  %v69 = vld [vmem:[%s1 + $0x14] sm:$0xf]
  %v70 = vld [vmem:[%s1 + $0x18] sm:$0xf]
  %v71 = vld [vmem:[%s1 + $0x1c] sm:$0xf]
  %v72 = vld [vmem:[%s1 + $0x20] sm:$0xf]
  %v73 = vld [vmem:[%s1 + $0x24] sm:$0xf]
  %v74 = vld [vmem:[%s1 + $0x28] sm:$0xf]
  %v75 = vld [vmem:[%s1 + $0x2c] sm:$0xf]
  %v76 = vld [vmem:[%s1 + $0x30] sm:$0xf]
  %v77 = vld [vmem:[%s1 + $0x34] sm:$0xf]
  %v78 = vld [vmem:[%s1 + $0x38] sm:$0xf]
  %v79 = vld [vmem:[%s1 + $0x3c] sm:$0xf]
  %v129 = vunpack.c.l.b16 %v15
  %v130 = vunpack.c.l.b16 %v16
  %v131 = vunpack.c.l.b16 %v17
  %v132 = vunpack.c.l.b16 %v18
  %v133 = vunpack.c.l.b16 %v19
  %v134 = vunpack.c.l.b16 %v20
  %v135 = vunpack.c.l.b16 %v21
  %v136 = vunpack.c.l.b16 %v22
  %v137 = vunpack.c.l.b16 %v23
  %v138 = vunpack.c.l.b16 %v24
  %v139 = vunpack.c.l.b16 %v25
  %v140 = vunpack.c.l.b16 %v26
  %v141 = vunpack.c.l.b16 %v27
  %v142 = vunpack.c.l.b16 %v28
  %v143 = vunpack.c.l.b16 %v29
  %v144 = vunpack.c.l.b16 %v30
  %v145 = vunpack.c.l.b16 %v31
  %v146 = vunpack.c.l.b16 %v32
  %v147 = vunpack.c.l.b16 %v33
  %v148 = vunpack.c.l.b16 %v34
  %v149 = vunpack.c.l.b16 %v35
  %v150 = vunpack.c.l.b16 %v36
  %v151 = vunpack.c.l.b16 %v37
  %v152 = vunpack.c.l.b16 %v38
  %v153 = vunpack.c.l.b16 %v39
  %v154 = vunpack.c.l.b16 %v40
  %v155 = vunpack.c.l.b16 %v41
  %v156 = vunpack.c.l.b16 %v42
  %v157 = vunpack.c.l.b16 %v43
  %v158 = vunpack.c.l.b16 %v44
  %v159 = vunpack.c.l.b16 %v45
  %v160 = vunpack.c.l.b16 %v46
  %v161 = vunpack.c.l.b16 %v47
  %v162 = vunpack.c.l.b16 %v48
  %v163 = vunpack.c.l.b16 %v49
  %v164 = vunpack.c.l.b16 %v50
  %v165 = vunpack.c.l.b16 %v51
  %v166 = vunpack.c.l.b16 %v52
  %v167 = vunpack.c.l.b16 %v53
  %v168 = vunpack.c.l.b16 %v54
  %v169 = vunpack.c.l.b16 %v55
  %v170 = vunpack.c.l.b16 %v56
  %v171 = vunpack.c.l.b16 %v57
  %v172 = vunpack.c.l.b16 %v58
  %v173 = vunpack.c.l.b16 %v59
  %v174 = vunpack.c.l.b16 %v60
  %v175 = vunpack.c.l.b16 %v61
  %v176 = vunpack.c.l.b16 %v62
  %v177 = vunpack.c.l.b16 %v63
  %v178 = vpack.c.b16 %v130, %v129
  %v179 = vpack.c.b16 %v132, %v131
  %v180 = vpack.c.b16 %v134, %v133
  %v181 = vpack.c.b16 %v136, %v135
  %v182 = vpack.c.b16 %v138, %v137
  %v183 = vpack.c.b16 %v140, %v139
  %v184 = vpack.c.b16 %v142, %v141
  %v185 = vpack.c.b16 %v144, %v143
  %v186 = vpack.c.b16 %v146, %v145
  %v187 = vpack.c.b16 %v148, %v147
  %v188 = vpack.c.b16 %v150, %v149
  %v189 = vpack.c.b16 %v152, %v151
  %v190 = vpack.c.b16 %v154, %v153
  %v191 = vpack.c.b16 %v156, %v155
  %v192 = vpack.c.b16 %v158, %v157
  %v193 = vpack.c.b16 %v160, %v159
  %v194 = vpack.c.b16 %v162, %v161
  %v195 = vpack.c.b16 %v164, %v163
  %v196 = vpack.c.b16 %v166, %v165
  %v197 = vpack.c.b16 %v168, %v167
  %v198 = vpack.c.b16 %v170, %v169
  %v199 = vpack.c.b16 %v172, %v171
  %v200 = vpack.c.b16 %v174, %v173
  %v201 = vpack.c.b16 %v176, %v175
  %v202 = vpack.c.b16 %v177, %v177
  %v244 = vunpack.c.l.b16 %v64
  %v245 = vunpack.c.l.b16 %v65
  %v246 = vunpack.c.l.b16 %v66
  %v247 = vunpack.c.l.b16 %v67
  %v248 = vunpack.c.l.b16 %v68
  %v249 = vunpack.c.l.b16 %v69
  %v250 = vunpack.c.l.b16 %v70
  %v251 = vunpack.c.l.b16 %v71
  %v252 = vunpack.c.l.b16 %v72
  %v253 = vunpack.c.l.b16 %v73
  %v254 = vunpack.c.l.b16 %v74
  %v255 = vunpack.c.l.b16 %v75
  %v256 = vunpack.c.l.b16 %v76
  %v257 = vunpack.c.l.b16 %v77
  %v258 = vunpack.c.l.b16 %v78
  %v259 = vunpack.c.l.b16 %v79
  %v260 = vpack.c.b16 %v245, %v244
  %v261 = vpack.c.b16 %v247, %v246
  %v262 = vpack.c.b16 %v249, %v248
  %v263 = vpack.c.b16 %v251, %v250
  %v264 = vpack.c.b16 %v253, %v252
  %v265 = vpack.c.b16 %v255, %v254
  %v266 = vpack.c.b16 %v257, %v256
  %v267 = vpack.c.b16 %v259, %v258
  %276 = vmatprep.subr.bf16.mxu0 0
  %277 = vmatpush1.bf16.msra.mxu0 %v260
  %278 = vmatprep.subr.bf16.mxu0 0
  %279 = vmatpush1.bf16.msra.mxu0 %v261
  %280 = vmatprep.subr.bf16.mxu0 0
  %281 = vmatpush1.bf16.msra.mxu0 %v262
  %282 = vmatprep.subr.bf16.mxu0 0
  %283 = vmatpush1.bf16.msra.mxu0 %v263
  %284 = vmatprep.subr.bf16.mxu0 0
  %285 = vmatpush1.bf16.msra.mxu0 %v264
  %286 = vmatprep.subr.bf16.mxu0 0
  %287 = vmatpush1.bf16.msra.mxu0 %v265
  %288 = vmatprep.subr.bf16.mxu0 0
  %289 = vmatpush1.bf16.msra.mxu0 %v266
  %290 = vmatprep.subr.bf16.mxu0 0
  %291 = vmatpush1.bf16.msra.mxu0 %v267
  %292 = vmatprep.subr.bf16.mxu0 0
  %293 = vmatpush1.bf16.msra.mxu0 0
  %294 = vmatprep.subr.bf16.mxu0 0
  %295 = vmatpush1.bf16.msra.mxu0 0
  %296 = vmatprep.subr.bf16.mxu0 0
  %297 = vmatpush1.bf16.msra.mxu0 0
  %298 = vmatprep.subr.bf16.mxu0 0
  %299 = vmatpush1.bf16.msra.mxu0 0
  %300 = vmatprep.subr.bf16.mxu0 0
  %301 = vmatpush1.bf16.msra.mxu0 0
  %302 = vmatprep.subr.bf16.mxu0 0
  %303 = vmatpush1.bf16.msra.mxu0 0
  %304 = vmatprep.subr.bf16.mxu0 0
  %305 = vmatpush1.bf16.msra.mxu0 0
  %306 = vmatprep.subr.bf16.mxu0 0
  %307 = vmatpush1.bf16.msra.mxu0 0
  %308 = vmatprep.mubr.bf16.mxu0 0
  %309 = vmatmul.mubr.bf16.gmra.mrb[0].mxu0 %v178
  %v310 = vpop.f32.mrb[0].mxu0
  %v311 = vadd.f32 0.0, %v310
  %v312 = vpop.f32.mrb[0].mxu0
  %v313 = vpop.f32.mrb[0].mxu0
  %v314 = vadd.f32 0.0, %v313
  %v315 = vpop.f32.mrb[0].mxu0
  %316 = vmatprep.mubr.bf16.mxu0 0
  %317 = vmatmul.mubr.bf16.gmra.mrb[0].mxu0 %v179
  %v318 = vpop.f32.mrb[0].mxu0
  %v319 = vadd.f32 0.0, %v318
  %v320 = vpop.f32.mrb[0].mxu0
  %v321 = vpop.f32.mrb[0].mxu0
  %v322 = vadd.f32 0.0, %v321
  %v323 = vpop.f32.mrb[0].mxu0
  %324 = vmatprep.mubr.bf16.mxu0 0
  %325 = vmatmul.mubr.bf16.gmra.mrb[0].mxu0 %v180
  %v326 = vpop.f32.mrb[0].mxu0
  %v327 = vadd.f32 0.0, %v326
  %v328 = vpop.f32.mrb[0].mxu0
  %v329 = vpop.f32.mrb[0].mxu0
  %v330 = vadd.f32 0.0, %v329
  %v331 = vpop.f32.mrb[0].mxu0
  %332 = vmatprep.mubr.bf16.mxu0 0
  %333 = vmatmul.mubr.bf16.gmra.mrb[0].mxu0 %v181
  %v334 = vpop.f32.mrb[0].mxu0
  %v335 = vadd.f32 0.0, %v334
  %v336 = vpop.f32.mrb[0].mxu0
  %v337 = vpop.f32.mrb[0].mxu0
  %v338 = vadd.f32 0.0, %v337
  %v339 = vpop.f32.mrb[0].mxu0
  %340 = vmatprep.mubr.bf16.mxu0 0
  %341 = vmatmul.mubr.bf16.gmra.mrb[0].mxu0 %v182
  %v342 = vpop.f32.mrb[0].mxu0
  %v343 = vadd.f32 0.0, %v342
  %v344 = vpop.f32.mrb[0].mxu0
  %v345 = vpop.f32.mrb[0].mxu0
  %v346 = vadd.f32 0.0, %v345
  %v347 = vpop.f32.mrb[0].mxu0
  %348 = vmatprep.mubr.bf16.mxu0 0
  %349 = vmatmul.mubr.bf16.gmra.mrb[0].mxu0 %v183
  %v350 = vpop.f32.mrb[0].mxu0
  %v351 = vadd.f32 0.0, %v350
  %v352 = vpop.f32.mrb[0].mxu0
  %v353 = vpop.f32.mrb[0].mxu0
  %v354 = vadd.f32 0.0, %v353
  %v355 = vpop.f32.mrb[0].mxu0
  %356 = vmatprep.mubr.bf16.mxu0 0
  %357 = vmatmul.mubr.bf16.gmra.mrb[0].mxu0 %v184
  %v358 = vpop.f32.mrb[0].mxu0
  %v359 = vadd.f32 0.0, %v358
  %v360 = vpop.f32.mrb[0].mxu0
  %v361 = vpop.f32.mrb[0].mxu0
  %v362 = vadd.f32 0.0, %v361
  %v363 = vpop.f32.mrb[0].mxu0
  %364 = vmatprep.mubr.bf16.mxu0 0
  %365 = vmatmul.mubr.bf16.gmra.mrb[0].mxu0 %v185
  %v366 = vpop.f32.mrb[0].mxu0
  %v367 = vadd.f32 0.0, %v366
  %v368 = vpop.f32.mrb[0].mxu0
  %v369 = vpop.f32.mrb[0].mxu0
  %v370 = vadd.f32 0.0, %v369
  %v371 = vpop.f32.mrb[0].mxu0
  %372 = vmatprep.mubr.bf16.mxu0 0
  %373 = vmatmul.mubr.bf16.gmra.mrb[0].mxu0 %v186
  %v374 = vpop.f32.mrb[0].mxu0
  %v375 = vadd.f32 0.0, %v374
  %v376 = vpop.f32.mrb[0].mxu0
  %v377 = vpop.f32.mrb[0].mxu0
  %v378 = vadd.f32 0.0, %v377
  %v379 = vpop.f32.mrb[0].mxu0
  %380 = vmatprep.mubr.bf16.mxu0 0
  %381 = vmatmul.mubr.bf16.gmra.mrb[0].mxu0 %v187
  %v382 = vpop.f32.mrb[0].mxu0
  %v383 = vadd.f32 0.0, %v382
  %v384 = vpop.f32.mrb[0].mxu0
  %v385 = vpop.f32.mrb[0].mxu0
  %v386 = vadd.f32 0.0, %v385
  %v387 = vpop.f32.mrb[0].mxu0
  %388 = vmatprep.mubr.bf16.mxu0 0
  %389 = vmatmul.mubr.bf16.gmra.mrb[0].mxu0 %v188
  %v390 = vpop.f32.mrb[0].mxu0
  %v391 = vadd.f32 0.0, %v390
  %v392 = vpop.f32.mrb[0].mxu0
  %v393 = vpop.f32.mrb[0].mxu0
  %v394 = vadd.f32 0.0, %v393
  %v395 = vpop.f32.mrb[0].mxu0
  %396 = vmatprep.mubr.bf16.mxu0 0
  %397 = vmatmul.mubr.bf16.gmra.mrb[0].mxu0 %v189
  %v398 = vpop.f32.mrb[0].mxu0
  %v399 = vadd.f32 0.0, %v398
  %v400 = vpop.f32.mrb[0].mxu0
  %v401 = vpop.f32.mrb[0].mxu0
  %v402 = vadd.f32 0.0, %v401
  %v403 = vpop.f32.mrb[0].mxu0
  %404 = vmatprep.mubr.bf16.mxu0 0
  %405 = vmatmul.mubr.bf16.gmra.mrb[0].mxu0 %v190
  %v406 = vpop.f32.mrb[0].mxu0
  %v407 = vadd.f32 0.0, %v406
  %v408 = vpop.f32.mrb[0].mxu0
  %v409 = vpop.f32.mrb[0].mxu0
  %v410 = vadd.f32 0.0, %v409
  %v411 = vpop.f32.mrb[0].mxu0
  %412 = vmatprep.mubr.bf16.mxu0 0
  %413 = vmatmul.mubr.bf16.gmra.mrb[0].mxu0 %v191
  %v414 = vpop.f32.mrb[0].mxu0
  %v415 = vadd.f32 0.0, %v414
  %v416 = vpop.f32.mrb[0].mxu0
  %v417 = vpop.f32.mrb[0].mxu0
  %v418 = vadd.f32 0.0, %v417
  %v419 = vpop.f32.mrb[0].mxu0
  %420 = vmatprep.mubr.bf16.mxu0 0
  %421 = vmatmul.mubr.bf16.gmra.mrb[0].mxu0 %v192
  %v422 = vpop.f32.mrb[0].mxu0
  %v423 = vadd.f32 0.0, %v422
  %v424 = vpop.f32.mrb[0].mxu0
  %v425 = vpop.f32.mrb[0].mxu0
  %v426 = vadd.f32 0.0, %v425
  %v427 = vpop.f32.mrb[0].mxu0
  %428 = vmatprep.mubr.bf16.mxu0 0
  %429 = vmatmul.mubr.bf16.gmra.mrb[0].mxu0 %v193
  %v430 = vpop.f32.mrb[0].mxu0
  %v431 = vadd.f32 0.0, %v430
  %v432 = vpop.f32.mrb[0].mxu0
  %v433 = vpop.f32.mrb[0].mxu0
  %v434 = vadd.f32 0.0, %v433
  %v435 = vpop.f32.mrb[0].mxu0
  %436 = vmatprep.mubr.bf16.mxu0 0
  %437 = vmatmul.mubr.bf16.gmra.mrb[0].mxu0 %v194
  %v438 = vpop.f32.mrb[0].mxu0
  %v439 = vadd.f32 0.0, %v438
  %v440 = vpop.f32.mrb[0].mxu0
  %v441 = vpop.f32.mrb[0].mxu0
  %v442 = vadd.f32 0.0, %v441
  %v443 = vpop.f32.mrb[0].mxu0
  %444 = vmatprep.mubr.bf16.mxu0 0
  %445 = vmatmul.mubr.bf16.gmra.mrb[0].mxu0 %v195
  %v446 = vpop.f32.mrb[0].mxu0
  %v447 = vadd.f32 0.0, %v446
  %v448 = vpop.f32.mrb[0].mxu0
  %v449 = vpop.f32.mrb[0].mxu0
  %v450 = vadd.f32 0.0, %v449
  %v451 = vpop.f32.mrb[0].mxu0
  %452 = vmatprep.mubr.bf16.mxu0 0
  %453 = vmatmul.mubr.bf16.gmra.mrb[0].mxu0 %v196
  %v454 = vpop.f32.mrb[0].mxu0
  %v455 = vadd.f32 0.0, %v454
  %v456 = vpop.f32.mrb[0].mxu0
  %v457 = vpop.f32.mrb[0].mxu0
  %v458 = vadd.f32 0.0, %v457
  %v459 = vpop.f32.mrb[0].mxu0
  %460 = vmatprep.mubr.bf16.mxu0 0
  %461 = vmatmul.mubr.bf16.gmra.mrb[0].mxu0 %v197
  %v462 = vpop.f32.mrb[0].mxu0
  %v463 = vadd.f32 0.0, %v462
  %v464 = vpop.f32.mrb[0].mxu0
  %v465 = vpop.f32.mrb[0].mxu0
  %v466 = vadd.f32 0.0, %v465
  %v467 = vpop.f32.mrb[0].mxu0
  %468 = vmatprep.mubr.bf16.mxu0 0
  %469 = vmatmul.mubr.bf16.gmra.mrb[0].mxu0 %v198
  %v470 = vpop.f32.mrb[0].mxu0
  %v471 = vadd.f32 0.0, %v470
  %v472 = vpop.f32.mrb[0].mxu0
  %v473 = vpop.f32.mrb[0].mxu0
  %v474 = vadd.f32 0.0, %v473
  %v475 = vpop.f32.mrb[0].mxu0
  %476 = vmatprep.mubr.bf16.mxu0 0
  %477 = vmatmul.mubr.bf16.gmra.mrb[0].mxu0 %v199
  %v478 = vpop.f32.mrb[0].mxu0
  %v479 = vadd.f32 0.0, %v478
  %v480 = vpop.f32.mrb[0].mxu0
  %v481 = vpop.f32.mrb[0].mxu0
  %v482 = vadd.f32 0.0, %v481
  %v483 = vpop.f32.mrb[0].mxu0
  %484 = vmatprep.mubr.bf16.mxu0 0
  %485 = vmatmul.mubr.bf16.gmra.mrb[0].mxu0 %v200
  %v486 = vpop.f32.mrb[0].mxu0
  %v487 = vadd.f32 0.0, %v486
  %v488 = vpop.f32.mrb[0].mxu0
  %v489 = vpop.f32.mrb[0].mxu0
  %v490 = vadd.f32 0.0, %v489
  %v491 = vpop.f32.mrb[0].mxu0
  %492 = vmatprep.mubr.bf16.mxu0 0
  %493 = vmatmul.mubr.bf16.gmra.mrb[0].mxu0 %v201
  %v494 = vpop.f32.mrb[0].mxu0
  %v495 = vadd.f32 0.0, %v494
  %v496 = vpop.f32.mrb[0].mxu0
  %v497 = vpop.f32.mrb[0].mxu0
  %v498 = vadd.f32 0.0, %v497
  %v499 = vpop.f32.mrb[0].mxu0
  %500 = vmatprep.mubr.bf16.mxu0 0
  %501 = vmatmul.mubr.bf16.gmra.mrb[0].mxu0 %v202
  %v502 = vpop.f32.mrb[0].mxu0
  %v503 = vadd.f32 0.0, %v502
  %v504 = vpop.f32.mrb[0].mxu0
  %v505 = vpop.f32.mrb[0].mxu0
  %v506 = vpop.f32.mrb[0].mxu0
  %507 = vdwg.mxu0
  %557 = vrot.lane.b32.xlu0 %v311, 96
  %v558 = vpop.permute.xlu0 %557
  %559 = vrot.lane.b32.xlu0 %v314, 96
  %v560 = vpop.permute.xlu0 %559
  %561 = vrot.lane.b32.xlu0 %v319, 96
  %v562 = vpop.permute.xlu0 %561
  %563 = vrot.lane.b32.xlu0 %v322, 96
  %v564 = vpop.permute.xlu0 %563
  %565 = vrot.lane.b32.xlu0 %v327, 96
  %v566 = vpop.permute.xlu0 %565
  %567 = vrot.lane.b32.xlu0 %v330, 96
  %v568 = vpop.permute.xlu0 %567
  %569 = vrot.lane.b32.xlu0 %v335, 96
  %v570 = vpop.permute.xlu0 %569
  %571 = vrot.lane.b32.xlu0 %v338, 96
  %v572 = vpop.permute.xlu0 %571
  %573 = vrot.lane.b32.xlu0 %v343, 96
  %v574 = vpop.permute.xlu0 %573
  %575 = vrot.lane.b32.xlu0 %v346, 96
  %v576 = vpop.permute.xlu0 %575
  %577 = vrot.lane.b32.xlu0 %v351, 96
  %v578 = vpop.permute.xlu0 %577
  %579 = vrot.lane.b32.xlu0 %v354, 96
  %v580 = vpop.permute.xlu0 %579
  %581 = vrot.lane.b32.xlu0 %v359, 96
  %v582 = vpop.permute.xlu0 %581
  %583 = vrot.lane.b32.xlu0 %v362, 96
  %v584 = vpop.permute.xlu0 %583
  %585 = vrot.lane.b32.xlu0 %v367, 96
  %v586 = vpop.permute.xlu0 %585
  %587 = vrot.lane.b32.xlu0 %v370, 96
  %v588 = vpop.permute.xlu0 %587
  %589 = vrot.lane.b32.xlu0 %v375, 96
  %v590 = vpop.permute.xlu0 %589
  %591 = vrot.lane.b32.xlu0 %v378, 96
  %v592 = vpop.permute.xlu0 %591
  %593 = vrot.lane.b32.xlu0 %v383, 96
  %v594 = vpop.permute.xlu0 %593
  %595 = vrot.lane.b32.xlu0 %v386, 96
  %v596 = vpop.permute.xlu0 %595
  %597 = vrot.lane.b32.xlu0 %v391, 96
  %v598 = vpop.permute.xlu0 %597
  %599 = vrot.lane.b32.xlu0 %v394, 96
  %v600 = vpop.permute.xlu0 %599
  %601 = vrot.lane.b32.xlu0 %v399, 96
  %v602 = vpop.permute.xlu0 %601
  %603 = vrot.lane.b32.xlu0 %v402, 96
  %v604 = vpop.permute.xlu0 %603
  %605 = vrot.lane.b32.xlu0 %v407, 96
  %v606 = vpop.permute.xlu0 %605
  %607 = vrot.lane.b32.xlu0 %v410, 96
  %v608 = vpop.permute.xlu0 %607
  %609 = vrot.lane.b32.xlu0 %v415, 96
  %v610 = vpop.permute.xlu0 %609
  %611 = vrot.lane.b32.xlu0 %v418, 96
  %v612 = vpop.permute.xlu0 %611
  %613 = vrot.lane.b32.xlu0 %v423, 96
  %v614 = vpop.permute.xlu0 %613
  %615 = vrot.lane.b32.xlu0 %v426, 96
  %v616 = vpop.permute.xlu0 %615
  %617 = vrot.lane.b32.xlu0 %v431, 96
  %v618 = vpop.permute.xlu0 %617
  %619 = vrot.lane.b32.xlu0 %v434, 96
  %v620 = vpop.permute.xlu0 %619
  %621 = vrot.lane.b32.xlu0 %v439, 96
  %v622 = vpop.permute.xlu0 %621
  %623 = vrot.lane.b32.xlu0 %v442, 96
  %v624 = vpop.permute.xlu0 %623
  %625 = vrot.lane.b32.xlu0 %v447, 96
  %v626 = vpop.permute.xlu0 %625
  %627 = vrot.lane.b32.xlu0 %v450, 96
  %v628 = vpop.permute.xlu0 %627
  %629 = vrot.lane.b32.xlu0 %v455, 96
  %v630 = vpop.permute.xlu0 %629
  %631 = vrot.lane.b32.xlu0 %v458, 96
  %v632 = vpop.permute.xlu0 %631
  %633 = vrot.lane.b32.xlu0 %v463, 96
  %v634 = vpop.permute.xlu0 %633
  %635 = vrot.lane.b32.xlu0 %v466, 96
  %v636 = vpop.permute.xlu0 %635
  %637 = vrot.lane.b32.xlu0 %v471, 96
  %v638 = vpop.permute.xlu0 %637
  %639 = vrot.lane.b32.xlu0 %v474, 96
  %v640 = vpop.permute.xlu0 %639
  %641 = vrot.lane.b32.xlu0 %v479, 96
  %v642 = vpop.permute.xlu0 %641
  %643 = vrot.lane.b32.xlu0 %v482, 96
  %v644 = vpop.permute.xlu0 %643
  %645 = vrot.lane.b32.xlu0 %v487, 96
  %v646 = vpop.permute.xlu0 %645
  %647 = vrot.lane.b32.xlu0 %v490, 96
  %v648 = vpop.permute.xlu0 %647
  %649 = vrot.lane.b32.xlu0 %v495, 96
  %v650 = vpop.permute.xlu0 %649
  %651 = vrot.lane.b32.xlu0 %v498, 96
  %v652 = vpop.permute.xlu0 %651
  %653 = vrot.lane.b32.xlu0 %v503, 96
  %v654 = vpop.permute.xlu0 %653
  %v704 = vmax.f32 %v311, %v558
  %v705 = vmax.f32 %v314, %v560
  %v706 = vmax.f32 %v319, %v562
  %v707 = vmax.f32 %v322, %v564
  %v708 = vmax.f32 %v327, %v566
  %v709 = vmax.f32 %v330, %v568
  %v710 = vmax.f32 %v335, %v570
  %v711 = vmax.f32 %v338, %v572
  %v712 = vmax.f32 %v343, %v574
  %v713 = vmax.f32 %v346, %v576
  %v714 = vmax.f32 %v351, %v578
  %v715 = vmax.f32 %v354, %v580
  %v716 = vmax.f32 %v359, %v582
  %v717 = vmax.f32 %v362, %v584
  %v718 = vmax.f32 %v367, %v586
  %v719 = vmax.f32 %v370, %v588
  %v720 = vmax.f32 %v375, %v590
  %v721 = vmax.f32 %v378, %v592
  %v722 = vmax.f32 %v383, %v594
  %v723 = vmax.f32 %v386, %v596
  %v724 = vmax.f32 %v391, %v598
  %v725 = vmax.f32 %v394, %v600
  %v726 = vmax.f32 %v399, %v602
  %v727 = vmax.f32 %v402, %v604
  %v728 = vmax.f32 %v407, %v606
  %v729 = vmax.f32 %v410, %v608
  %v730 = vmax.f32 %v415, %v610
  %v731 = vmax.f32 %v418, %v612
  %v732 = vmax.f32 %v423, %v614
  %v733 = vmax.f32 %v426, %v616
  %v734 = vmax.f32 %v431, %v618
  %v735 = vmax.f32 %v434, %v620
  %v736 = vmax.f32 %v439, %v622
  %v737 = vmax.f32 %v442, %v624
  %v738 = vmax.f32 %v447, %v626
  %v739 = vmax.f32 %v450, %v628
  %v740 = vmax.f32 %v455, %v630
  %v741 = vmax.f32 %v458, %v632
  %v742 = vmax.f32 %v463, %v634
  %v743 = vmax.f32 %v466, %v636
  %v744 = vmax.f32 %v471, %v638
  %v745 = vmax.f32 %v474, %v640
  %v746 = vmax.f32 %v479, %v642
  %v747 = vmax.f32 %v482, %v644
  %v748 = vmax.f32 %v487, %v646
  %v749 = vmax.f32 %v490, %v648
  %v750 = vmax.f32 %v495, %v650
  %v751 = vmax.f32 %v498, %v652
  %v752 = vmax.f32 %v503, %v654
  %802 = vrot.lane.b32.xlu0 %v704, 64
  %v803 = vpop.permute.xlu0 %802
  %804 = vrot.lane.b32.xlu0 %v705, 64
  %v805 = vpop.permute.xlu0 %804
  %806 = vrot.lane.b32.xlu0 %v706, 64
  %v807 = vpop.permute.xlu0 %806
  %808 = vrot.lane.b32.xlu0 %v707, 64
  %v809 = vpop.permute.xlu0 %808
  %810 = vrot.lane.b32.xlu0 %v708, 64
  %v811 = vpop.permute.xlu0 %810
  %812 = vrot.lane.b32.xlu0 %v709, 64
  %v813 = vpop.permute.xlu0 %812
  %814 = vrot.lane.b32.xlu0 %v710, 64
  %v815 = vpop.permute.xlu0 %814
  %816 = vrot.lane.b32.xlu0 %v711, 64
  %v817 = vpop.permute.xlu0 %816
  %818 = vrot.lane.b32.xlu0 %v712, 64
  %v819 = vpop.permute.xlu0 %818
  %820 = vrot.lane.b32.xlu0 %v713, 64
  %v821 = vpop.permute.xlu0 %820
  %822 = vrot.lane.b32.xlu0 %v714, 64
  %v823 = vpop.permute.xlu0 %822
  %824 = vrot.lane.b32.xlu0 %v715, 64
  %v825 = vpop.permute.xlu0 %824
  %826 = vrot.lane.b32.xlu0 %v716, 64
  %v827 = vpop.permute.xlu0 %826
  %828 = vrot.lane.b32.xlu0 %v717, 64
  %v829 = vpop.permute.xlu0 %828
  %830 = vrot.lane.b32.xlu0 %v718, 64
  %v831 = vpop.permute.xlu0 %830
  %832 = vrot.lane.b32.xlu0 %v719, 64
  %v833 = vpop.permute.xlu0 %832
  %834 = vrot.lane.b32.xlu0 %v720, 64
  %v835 = vpop.permute.xlu0 %834
  %836 = vrot.lane.b32.xlu0 %v721, 64
  %v837 = vpop.permute.xlu0 %836
  %838 = vrot.lane.b32.xlu0 %v722, 64
  %v839 = vpop.permute.xlu0 %838
  %840 = vrot.lane.b32.xlu0 %v723, 64
  %v841 = vpop.permute.xlu0 %840
  %842 = vrot.lane.b32.xlu0 %v724, 64
  %v843 = vpop.permute.xlu0 %842
  %844 = vrot.lane.b32.xlu0 %v725, 64
  %v845 = vpop.permute.xlu0 %844
  %846 = vrot.lane.b32.xlu0 %v726, 64
  %v847 = vpop.permute.xlu0 %846
  %848 = vrot.lane.b32.xlu0 %v727, 64
  %v849 = vpop.permute.xlu0 %848
  %850 = vrot.lane.b32.xlu0 %v728, 64
  %v851 = vpop.permute.xlu0 %850
  %852 = vrot.lane.b32.xlu0 %v729, 64
  %v853 = vpop.permute.xlu0 %852
  %854 = vrot.lane.b32.xlu0 %v730, 64
  %v855 = vpop.permute.xlu0 %854
  %856 = vrot.lane.b32.xlu0 %v731, 64
  %v857 = vpop.permute.xlu0 %856
  %858 = vrot.lane.b32.xlu0 %v732, 64
  %v859 = vpop.permute.xlu0 %858
  %860 = vrot.lane.b32.xlu0 %v733, 64
  %v861 = vpop.permute.xlu0 %860
  %862 = vrot.lane.b32.xlu0 %v734, 64
  %v863 = vpop.permute.xlu0 %862
  %864 = vrot.lane.b32.xlu0 %v735, 64
  %v865 = vpop.permute.xlu0 %864
  %866 = vrot.lane.b32.xlu0 %v736, 64
  %v867 = vpop.permute.xlu0 %866
  %868 = vrot.lane.b32.xlu0 %v737, 64
  %v869 = vpop.permute.xlu0 %868
  %870 = vrot.lane.b32.xlu0 %v738, 64
  %v871 = vpop.permute.xlu0 %870
  %872 = vrot.lane.b32.xlu0 %v739, 64
  %v873 = vpop.permute.xlu0 %872
  %874 = vrot.lane.b32.xlu0 %v740, 64
  %v875 = vpop.permute.xlu0 %874
  %876 = vrot.lane.b32.xlu0 %v741, 64
  %v877 = vpop.permute.xlu0 %876
  %878 = vrot.lane.b32.xlu0 %v742, 64
  %v879 = vpop.permute.xlu0 %878
  %880 = vrot.lane.b32.xlu0 %v743, 64
  %v881 = vpop.permute.xlu0 %880
  %882 = vrot.lane.b32.xlu0 %v744, 64
  %v883 = vpop.permute.xlu0 %882
  %884 = vrot.lane.b32.xlu0 %v745, 64
  %v885 = vpop.permute.xlu0 %884
  %886 = vrot.lane.b32.xlu0 %v746, 64
  %v887 = vpop.permute.xlu0 %886
  %888 = vrot.lane.b32.xlu0 %v747, 64
  %v889 = vpop.permute.xlu0 %888
  %890 = vrot.lane.b32.xlu0 %v748, 64
  %v891 = vpop.permute.xlu0 %890
  %892 = vrot.lane.b32.xlu0 %v749, 64
  %v893 = vpop.permute.xlu0 %892
  %894 = vrot.lane.b32.xlu0 %v750, 64
  %v895 = vpop.permute.xlu0 %894
  %896 = vrot.lane.b32.xlu0 %v751, 64
  %v897 = vpop.permute.xlu0 %896
  %898 = vrot.lane.b32.xlu0 %v752, 64
  %v899 = vpop.permute.xlu0 %898
  %v949 = vmax.f32 %v704, %v803
  %v950 = vmax.f32 %v705, %v805
  %v951 = vmax.f32 %v706, %v807
  %v952 = vmax.f32 %v707, %v809
  %v953 = vmax.f32 %v708, %v811
  %v954 = vmax.f32 %v709, %v813
  %v955 = vmax.f32 %v710, %v815
  %v956 = vmax.f32 %v711, %v817
  %v957 = vmax.f32 %v712, %v819
  %v958 = vmax.f32 %v713, %v821
  %v959 = vmax.f32 %v714, %v823
  %v960 = vmax.f32 %v715, %v825
  %v961 = vmax.f32 %v716, %v827
  %v962 = vmax.f32 %v717, %v829
  %v963 = vmax.f32 %v718, %v831
  %v964 = vmax.f32 %v719, %v833
  %v965 = vmax.f32 %v720, %v835
  %v966 = vmax.f32 %v721, %v837
  %v967 = vmax.f32 %v722, %v839
  %v968 = vmax.f32 %v723, %v841
  %v969 = vmax.f32 %v724, %v843
  %v970 = vmax.f32 %v725, %v845
  %v971 = vmax.f32 %v726, %v847
  %v972 = vmax.f32 %v727, %v849
  %v973 = vmax.f32 %v728, %v851
  %v974 = vmax.f32 %v729, %v853
  %v975 = vmax.f32 %v730, %v855
  %v976 = vmax.f32 %v731, %v857
  %v977 = vmax.f32 %v732, %v859
  %v978 = vmax.f32 %v733, %v861
  %v979 = vmax.f32 %v734, %v863
  %v980 = vmax.f32 %v735, %v865
  %v981 = vmax.f32 %v736, %v867
  %v982 = vmax.f32 %v737, %v869
  %v983 = vmax.f32 %v738, %v871
  %v984 = vmax.f32 %v739, %v873
  %v985 = vmax.f32 %v740, %v875
  %v986 = vmax.f32 %v741, %v877
  %v987 = vmax.f32 %v742, %v879
  %v988 = vmax.f32 %v743, %v881
  %v989 = vmax.f32 %v744, %v883
  %v990 = vmax.f32 %v745, %v885
  %v991 = vmax.f32 %v746, %v887
  %v992 = vmax.f32 %v747, %v889
  %v993 = vmax.f32 %v748, %v891
  %v994 = vmax.f32 %v749, %v893
  %v995 = vmax.f32 %v750, %v895
  %v996 = vmax.f32 %v751, %v897
  %v997 = vmax.f32 %v752, %v899
  %v998 = vld [vmem:[%s2] sm:$0x1]
  %v1000 = vlaneseq
  %v1001 = vshrl.u32 %v1000, 7
  %v1002 = vsub.s32 0, %v1001
  %v1003 = vrot.slane %v998, %v1002
  %v1005 = vadd.f32 %v949, %v1003
  %v1006 = vadd.f32 %v950, %v1003
  %v1007 = vadd.f32 %v951, %v1003
  %v1008 = vadd.f32 %v952, %v1003
  %v1009 = vadd.f32 %v953, %v1003
  %v1010 = vadd.f32 %v954, %v1003
  %v1011 = vadd.f32 %v955, %v1003
  %v1012 = vadd.f32 %v956, %v1003
  %v1013 = vadd.f32 %v957, %v1003
  %v1014 = vadd.f32 %v958, %v1003
  %v1015 = vadd.f32 %v959, %v1003
  %v1016 = vadd.f32 %v960, %v1003
  %v1017 = vadd.f32 %v961, %v1003
  %v1018 = vadd.f32 %v962, %v1003
  %v1019 = vadd.f32 %v963, %v1003
  %v1020 = vadd.f32 %v964, %v1003
  %v1021 = vadd.f32 %v965, %v1003
  %v1022 = vadd.f32 %v966, %v1003
  %v1023 = vadd.f32 %v967, %v1003
  %v1024 = vadd.f32 %v968, %v1003
  %v1025 = vadd.f32 %v969, %v1003
  %v1026 = vadd.f32 %v970, %v1003
  %v1027 = vadd.f32 %v971, %v1003
  %v1028 = vadd.f32 %v972, %v1003
  %v1029 = vadd.f32 %v973, %v1003
  %v1030 = vadd.f32 %v974, %v1003
  %v1031 = vadd.f32 %v975, %v1003
  %v1032 = vadd.f32 %v976, %v1003
  %v1033 = vadd.f32 %v977, %v1003
  %v1034 = vadd.f32 %v978, %v1003
  %v1035 = vadd.f32 %v979, %v1003
  %v1036 = vadd.f32 %v980, %v1003
  %v1037 = vadd.f32 %v981, %v1003
  %v1038 = vadd.f32 %v982, %v1003
  %v1039 = vadd.f32 %v983, %v1003
  %v1040 = vadd.f32 %v984, %v1003
  %v1041 = vadd.f32 %v985, %v1003
  %v1042 = vadd.f32 %v986, %v1003
  %v1043 = vadd.f32 %v987, %v1003
  %v1044 = vadd.f32 %v988, %v1003
  %v1045 = vadd.f32 %v989, %v1003
  %v1046 = vadd.f32 %v990, %v1003
  %v1047 = vadd.f32 %v991, %v1003
  %v1048 = vadd.f32 %v992, %v1003
  %v1049 = vadd.f32 %v993, %v1003
  %v1050 = vadd.f32 %v994, %v1003
  %v1051 = vadd.f32 %v995, %v1003
  %v1052 = vadd.f32 %v996, %v1003
  %v1053 = vadd.f32 %v997, %v1003
  %v1054 = vmax.f32 %v1005, 0.0
  %v1055 = vmax.f32 %v1006, 0.0
  %v1056 = vmax.f32 %v1007, 0.0
  %v1057 = vmax.f32 %v1008, 0.0
  %v1058 = vmax.f32 %v1009, 0.0
  %v1059 = vmax.f32 %v1010, 0.0
  %v1060 = vmax.f32 %v1011, 0.0
  %v1061 = vmax.f32 %v1012, 0.0
  %v1062 = vmax.f32 %v1013, 0.0
  %v1063 = vmax.f32 %v1014, 0.0
  %v1064 = vmax.f32 %v1015, 0.0
  %v1065 = vmax.f32 %v1016, 0.0
  %v1066 = vmax.f32 %v1017, 0.0
  %v1067 = vmax.f32 %v1018, 0.0
  %v1068 = vmax.f32 %v1019, 0.0
  %v1069 = vmax.f32 %v1020, 0.0
  %v1070 = vmax.f32 %v1021, 0.0
  %v1071 = vmax.f32 %v1022, 0.0
  %v1072 = vmax.f32 %v1023, 0.0
  %v1073 = vmax.f32 %v1024, 0.0
  %v1074 = vmax.f32 %v1025, 0.0
  %v1075 = vmax.f32 %v1026, 0.0
  %v1076 = vmax.f32 %v1027, 0.0
  %v1077 = vmax.f32 %v1028, 0.0
  %v1078 = vmax.f32 %v1029, 0.0
  %v1079 = vmax.f32 %v1030, 0.0
  %v1080 = vmax.f32 %v1031, 0.0
  %v1081 = vmax.f32 %v1032, 0.0
  %v1082 = vmax.f32 %v1033, 0.0
  %v1083 = vmax.f32 %v1034, 0.0
  %v1084 = vmax.f32 %v1035, 0.0
  %v1085 = vmax.f32 %v1036, 0.0
  %v1086 = vmax.f32 %v1037, 0.0
  %v1087 = vmax.f32 %v1038, 0.0
  %v1088 = vmax.f32 %v1039, 0.0
  %v1089 = vmax.f32 %v1040, 0.0
  %v1090 = vmax.f32 %v1041, 0.0
  %v1091 = vmax.f32 %v1042, 0.0
  %v1092 = vmax.f32 %v1043, 0.0
  %v1093 = vmax.f32 %v1044, 0.0
  %v1094 = vmax.f32 %v1045, 0.0
  %v1095 = vmax.f32 %v1046, 0.0
  %v1096 = vmax.f32 %v1047, 0.0
  %v1097 = vmax.f32 %v1048, 0.0
  %v1098 = vmax.f32 %v1049, 0.0
  %v1099 = vmax.f32 %v1050, 0.0
  %v1100 = vmax.f32 %v1051, 0.0
  %v1101 = vmax.f32 %v1052, 0.0
  %v1102 = vmax.f32 %v1053, 0.0
  %v1103 = vpack.c.bf16 %v1055, %v1054
  %v1104 = vpack.c.bf16 %v1057, %v1056
  %v1105 = vpack.c.bf16 %v1059, %v1058
  %v1106 = vpack.c.bf16 %v1061, %v1060
  %v1107 = vpack.c.bf16 %v1063, %v1062
  %v1108 = vpack.c.bf16 %v1065, %v1064
  %v1109 = vpack.c.bf16 %v1067, %v1066
  %v1110 = vpack.c.bf16 %v1069, %v1068
  %v1111 = vpack.c.bf16 %v1071, %v1070
  %v1112 = vpack.c.bf16 %v1073, %v1072
  %v1113 = vpack.c.bf16 %v1075, %v1074
  %v1114 = vpack.c.bf16 %v1077, %v1076
  %v1115 = vpack.c.bf16 %v1079, %v1078
  %v1116 = vpack.c.bf16 %v1081, %v1080
  %v1117 = vpack.c.bf16 %v1083, %v1082
  %v1118 = vpack.c.bf16 %v1085, %v1084
  %v1119 = vpack.c.bf16 %v1087, %v1086
  %v1120 = vpack.c.bf16 %v1089, %v1088
  %v1121 = vpack.c.bf16 %v1091, %v1090
  %v1122 = vpack.c.bf16 %v1093, %v1092
  %v1123 = vpack.c.bf16 %v1095, %v1094
  %v1124 = vpack.c.bf16 %v1097, %v1096
  %v1125 = vpack.c.bf16 %v1099, %v1098
  %v1126 = vpack.c.bf16 %v1101, %v1100
  %v1127 = vpack.c.bf16 %v1102, %v1102
  %v1153 = vunpack.c.l.b16 %v1103
  %v1154 = vunpack.c.h.b16 %v1103
  %v1155 = vunpack.c.l.b16 %v1104
  %v1156 = vunpack.c.h.b16 %v1104
  %v1157 = vunpack.c.l.b16 %v1105
  %v1158 = vunpack.c.h.b16 %v1105
  %v1159 = vunpack.c.l.b16 %v1106
  %v1160 = vunpack.c.h.b16 %v1106
  %v1161 = vunpack.c.l.b16 %v1107
  %v1162 = vunpack.c.h.b16 %v1107
  %v1163 = vunpack.c.l.b16 %v1108
  %v1164 = vunpack.c.h.b16 %v1108
  %v1165 = vunpack.c.l.b16 %v1109
  %v1166 = vunpack.c.h.b16 %v1109
  %v1167 = vunpack.c.l.b16 %v1110
  %v1168 = vunpack.c.h.b16 %v1110
  %v1169 = vunpack.c.l.b16 %v1111
  %v1170 = vunpack.c.h.b16 %v1111
  %v1171 = vunpack.c.l.b16 %v1112
  %v1172 = vunpack.c.h.b16 %v1112
  %v1173 = vunpack.c.l.b16 %v1113
  %v1174 = vunpack.c.h.b16 %v1113
  %v1175 = vunpack.c.l.b16 %v1114
  %v1176 = vunpack.c.h.b16 %v1114
  %v1177 = vunpack.c.l.b16 %v1115
  %v1178 = vunpack.c.h.b16 %v1115
  %v1179 = vunpack.c.l.b16 %v1116
  %v1180 = vunpack.c.h.b16 %v1116
  %v1181 = vunpack.c.l.b16 %v1117
  %v1182 = vunpack.c.h.b16 %v1117
  %v1183 = vunpack.c.l.b16 %v1118
  %v1184 = vunpack.c.h.b16 %v1118
  %v1185 = vunpack.c.l.b16 %v1119
  %v1186 = vunpack.c.h.b16 %v1119
  %v1187 = vunpack.c.l.b16 %v1120
  %v1188 = vunpack.c.h.b16 %v1120
  %v1189 = vunpack.c.l.b16 %v1121
  %v1190 = vunpack.c.h.b16 %v1121
  %v1191 = vunpack.c.l.b16 %v1122
  %v1192 = vunpack.c.h.b16 %v1122
  %v1193 = vunpack.c.l.b16 %v1123
  %v1194 = vunpack.c.h.b16 %v1123
  %v1195 = vunpack.c.l.b16 %v1124
  %v1196 = vunpack.c.h.b16 %v1124
  %v1197 = vunpack.c.l.b16 %v1125
  %v1198 = vunpack.c.h.b16 %v1125
  %v1199 = vunpack.c.l.b16 %v1126
  %v1200 = vunpack.c.h.b16 %v1126
  %v1201 = vunpack.c.l.b16 %v1127
  %v1202 = vpack.c.b16 %v1153, %v1153
  %v1203 = vpack.c.b16 %v1154, %v1154
  %v1204 = vpack.c.b16 %v1155, %v1155
  %v1205 = vpack.c.b16 %v1156, %v1156
  %v1206 = vpack.c.b16 %v1157, %v1157
  %v1207 = vpack.c.b16 %v1158, %v1158
  %v1208 = vpack.c.b16 %v1159, %v1159
  %v1209 = vpack.c.b16 %v1160, %v1160
  %v1210 = vpack.c.b16 %v1161, %v1161
  %v1211 = vpack.c.b16 %v1162, %v1162
  %v1212 = vpack.c.b16 %v1163, %v1163
  %v1213 = vpack.c.b16 %v1164, %v1164
  %v1214 = vpack.c.b16 %v1165, %v1165
  %v1215 = vpack.c.b16 %v1166, %v1166
  %v1216 = vpack.c.b16 %v1167, %v1167
  %v1217 = vpack.c.b16 %v1168, %v1168
  %v1218 = vpack.c.b16 %v1169, %v1169
  %v1219 = vpack.c.b16 %v1170, %v1170
  %v1220 = vpack.c.b16 %v1171, %v1171
  %v1221 = vpack.c.b16 %v1172, %v1172
  %v1222 = vpack.c.b16 %v1173, %v1173
  %v1223 = vpack.c.b16 %v1174, %v1174
  %v1224 = vpack.c.b16 %v1175, %v1175
  %v1225 = vpack.c.b16 %v1176, %v1176
  %v1226 = vpack.c.b16 %v1177, %v1177
  %v1227 = vpack.c.b16 %v1178, %v1178
  %v1228 = vpack.c.b16 %v1179, %v1179
  %v1229 = vpack.c.b16 %v1180, %v1180
  %v1230 = vpack.c.b16 %v1181, %v1181
  %v1231 = vpack.c.b16 %v1182, %v1182
  %v1232 = vpack.c.b16 %v1183, %v1183
  %v1233 = vpack.c.b16 %v1184, %v1184
  %v1234 = vpack.c.b16 %v1185, %v1185
  %v1235 = vpack.c.b16 %v1186, %v1186
  %v1236 = vpack.c.b16 %v1187, %v1187
  %v1237 = vpack.c.b16 %v1188, %v1188
  %v1238 = vpack.c.b16 %v1189, %v1189
  %v1239 = vpack.c.b16 %v1190, %v1190
  %v1240 = vpack.c.b16 %v1191, %v1191
  %v1241 = vpack.c.b16 %v1192, %v1192
  %v1242 = vpack.c.b16 %v1193, %v1193
  %v1243 = vpack.c.b16 %v1194, %v1194
  %v1244 = vpack.c.b16 %v1195, %v1195
  %v1245 = vpack.c.b16 %v1196, %v1196
  %v1246 = vpack.c.b16 %v1197, %v1197
  %v1247 = vpack.c.b16 %v1198, %v1198
  %v1248 = vpack.c.b16 %v1199, %v1199
  %v1249 = vpack.c.b16 %v1200, %v1200
  %v1250 = vpack.c.b16 %v1201, %v1201
  %vm1300 = vcmask 257024
  %1301 = vst.msk [vmem:[%s3] sm:$0xf] %vm1300, %v1202
  %1302 = vst.msk [vmem:[%s3 + $0x4] sm:$0xf] %vm1300, %v1203
  %1303 = vst.msk [vmem:[%s3 + $0x8] sm:$0xf] %vm1300, %v1204
  %1304 = vst.msk [vmem:[%s3 + $0xc] sm:$0xf] %vm1300, %v1205
  %1305 = vst.msk [vmem:[%s3 + $0x10] sm:$0xf] %vm1300, %v1206
  %1306 = vst.msk [vmem:[%s3 + $0x14] sm:$0xf] %vm1300, %v1207
  %1307 = vst.msk [vmem:[%s3 + $0x18] sm:$0xf] %vm1300, %v1208
  %1308 = vst.msk [vmem:[%s3 + $0x1c] sm:$0xf] %vm1300, %v1209
  %1309 = vst.msk [vmem:[%s3 + $0x20] sm:$0xf] %vm1300, %v1210
  %1310 = vst.msk [vmem:[%s3 + $0x24] sm:$0xf] %vm1300, %v1211
  %1311 = vst.msk [vmem:[%s3 + $0x28] sm:$0xf] %vm1300, %v1212
  %1312 = vst.msk [vmem:[%s3 + $0x2c] sm:$0xf] %vm1300, %v1213
  %1313 = vst.msk [vmem:[%s3 + $0x30] sm:$0xf] %vm1300, %v1214
  %1314 = vst.msk [vmem:[%s3 + $0x34] sm:$0xf] %vm1300, %v1215
  %1315 = vst.msk [vmem:[%s3 + $0x38] sm:$0xf] %vm1300, %v1216
  %1316 = vst.msk [vmem:[%s3 + $0x3c] sm:$0xf] %vm1300, %v1217
  %1317 = vst.msk [vmem:[%s3 + $0x40] sm:$0xf] %vm1300, %v1218
  %1318 = vst.msk [vmem:[%s3 + $0x44] sm:$0xf] %vm1300, %v1219
  %1319 = vst.msk [vmem:[%s3 + $0x48] sm:$0xf] %vm1300, %v1220
  %1320 = vst.msk [vmem:[%s3 + $0x4c] sm:$0xf] %vm1300, %v1221
  %1321 = vst.msk [vmem:[%s3 + $0x50] sm:$0xf] %vm1300, %v1222
  %1322 = vst.msk [vmem:[%s3 + $0x54] sm:$0xf] %vm1300, %v1223
  %1323 = vst.msk [vmem:[%s3 + $0x58] sm:$0xf] %vm1300, %v1224
  %1324 = vst.msk [vmem:[%s3 + $0x5c] sm:$0xf] %vm1300, %v1225
  %1325 = vst.msk [vmem:[%s3 + $0x60] sm:$0xf] %vm1300, %v1226
  %1326 = vst.msk [vmem:[%s3 + $0x64] sm:$0xf] %vm1300, %v1227
  %1327 = vst.msk [vmem:[%s3 + $0x68] sm:$0xf] %vm1300, %v1228
  %1328 = vst.msk [vmem:[%s3 + $0x6c] sm:$0xf] %vm1300, %v1229
  %1329 = vst.msk [vmem:[%s3 + $0x70] sm:$0xf] %vm1300, %v1230
  %1330 = vst.msk [vmem:[%s3 + $0x74] sm:$0xf] %vm1300, %v1231
  %1331 = vst.msk [vmem:[%s3 + $0x78] sm:$0xf] %vm1300, %v1232
  %1332 = vst.msk [vmem:[%s3 + $0x7c] sm:$0xf] %vm1300, %v1233
  %1333 = vst.msk [vmem:[%s3 + $0x80] sm:$0xf] %vm1300, %v1234
  %1334 = vst.msk [vmem:[%s3 + $0x84] sm:$0xf] %vm1300, %v1235
  %1335 = vst.msk [vmem:[%s3 + $0x88] sm:$0xf] %vm1300, %v1236
  %1336 = vst.msk [vmem:[%s3 + $0x8c] sm:$0xf] %vm1300, %v1237
  %1337 = vst.msk [vmem:[%s3 + $0x90] sm:$0xf] %vm1300, %v1238
  %1338 = vst.msk [vmem:[%s3 + $0x94] sm:$0xf] %vm1300, %v1239
  %1339 = vst.msk [vmem:[%s3 + $0x98] sm:$0xf] %vm1300, %v1240
  %1340 = vst.msk [vmem:[%s3 + $0x9c] sm:$0xf] %vm1300, %v1241
  %1341 = vst.msk [vmem:[%s3 + $0xa0] sm:$0xf] %vm1300, %v1242
  %1342 = vst.msk [vmem:[%s3 + $0xa4] sm:$0xf] %vm1300, %v1243
  %1343 = vst.msk [vmem:[%s3 + $0xa8] sm:$0xf] %vm1300, %v1244
  %1344 = vst.msk [vmem:[%s3 + $0xac] sm:$0xf] %vm1300, %v1245
  %1345 = vst.msk [vmem:[%s3 + $0xb0] sm:$0xf] %vm1300, %v1246
  %1346 = vst.msk [vmem:[%s3 + $0xb4] sm:$0xf] %vm1300, %v1247
  %1347 = vst.msk [vmem:[%s3 + $0xb8] sm:$0xf] %vm1300, %v1248
  %1348 = vst.msk [vmem:[%s3 + $0xbc] sm:$0xf] %vm1300, %v1249
  %1349 = vst.msk [vmem:[%s3 + $0xc0] sm:$0xf] %vm1300, %v1250
  // Predicated region
  $region14: #{mnist_2nn_pallas.2} parent=0 // pred_check
    _
  $region15: #{mnist_2nn_pallas.2} parent=0 // pred_check_branch
    %1351 = sbr.rel (0) target = $region17
  $region16: #{mnist_2nn_pallas.2} parent=0 // pred_region
    _
  $region17: #{mnist_2nn_pallas.2} parent=0 // pred_fallthru
    _
  // Predicated region
  $region18: #{mnist_2nn_pallas.2} parent=0 // pred_check
    _
  $region19: #{mnist_2nn_pallas.2} parent=0 // pred_check_branch
    %1353 = sbr.rel (0) target = $region21
  $region20: #{mnist_2nn_pallas.2} parent=0 // pred_region
    _
  $region21: #{mnist_2nn_pallas.2} parent=0 // pred_fallthru
    _

// kernel: mnist_2nn_pallas.3
$region0: #{mnist_2nn_pallas.3}
  #allocation0 [shape = 'u32[]', space=smem, size = 0x4, offset = 0x4, fixed_abs, tag = 'smem constant byte address 0x4 - core index']
  #allocation1 [shape = 'u32[144,128]{1,0:T(1,128)}', space=vmem, size = 0x12000, scoped, tag = 'internal scratch']
  #allocation2 [shape = 'bf16[2,1024]{1,0:T(2,128)(2,1)}', space=vmem, size = 0x1000, scoped, tag = 'scratch operand']
  %s0 = inlined_call_operand.vmem [shape: bf16[2,6272], index: 0, kind: input, shape index: {}]
  %s1 = inlined_call_operand.hbm [shape: bf16[6272,1024], index: 1, kind: input, shape index: {}]
  %s2 = inlined_call_operand.vmem [shape: f32[1,1024], index: 2, kind: input, shape index: {}]
  %s3 = inlined_call_operand.vmem [shape: bf16[1024,512], index: 3, kind: input, shape index: {}]
  %s4 = inlined_call_operand.vmem [shape: f32[1,512], index: 4, kind: input, shape index: {}]
  %s5 = inlined_call_operand.vmem [shape: bf16[512,128], index: 5, kind: input, shape index: {}]
  %s6 = inlined_call_operand.vmem [shape: f32[1,128], index: 6, kind: input, shape index: {}]
  %s7 = inlined_call_operand.hbm [shape: f32[2,128], index: 7, kind: output, shape index: {}]
  %s8 = sld [smem:[#allocation0]]
  $region69: #{mnist_2nn_pallas.3} parent=0
    _
  %s10 = ssub.s32 1, %s8
  %s11 = scalar_select 0, %s10, %s8
  $region1: #{mnist_2nn_pallas.3} parent=0
    #allocation3 [shape = 'u8[6422528]{0}', space=vmem, size = 0x620000, scoped, tag = 'input window, operand 1']
    #allocation4 [shape = 's32[2]{0}', space=sflag, size = 0x8, scoped, tag = 'scoped memory for mnist_2nn_pallas.3']
    #allocation5 [shape = 's32[2]{0}', space=sflag, size = 0x8, scoped, tag = 'scoped memory for mnist_2nn_pallas.3']
    #allocation6 [shape = 'u8[1024]{0}', space=vmem, size = 0x400, scoped, tag = 'output window, operand 0, single buffered']
    %12 = vsyncpa [#allocation4], 0
    %s13 = scalar_lea.sflag [#allocation4], 1
    %14 = vsyncpa %s13, 0
    %15 = vsyncpa [#allocation5], 0
    loop: start=0, step=1, limit=6
    $region2: #{mnist_2nn_pallas.3} parent=1 // loop_pre_header
      _
    $region3: #{mnist_2nn_pallas.3} parent=1 // loop_header
      %s17 = sphi 0, %s21
      %p18 = scmp.ge.s32.totalorder %s17, 6
      %s24 = sphi 0, %s36
      %s25 = sphi 0, %s32
      %s26 = sphi 0, %s24
      %s27 = sphi 0, %s25
      %s28 = sphi 0, %s26
      %s29 = sphi 0, %s27
      %s39 = sphi 0, %s41
      %s42 = sphi 0, %s39
      %s43 = sphi 0, %s42
      %s59 = sphi 0, %s43
      %s65 = sphi 0, %s67
      %s68 = sphi 0, %s65
      %s69 = sphi 0, %s68
      %s85 = sphi 0, %s69
      %s91 = sphi 0, %s93
      %s94 = sphi 0, %s91
      %s95 = sphi 0, %s94
      %s111 = sphi 0, %s95
      %s115 = sphi 0, %s115
      %s117 = sphi 0, %s115
      %s118 = sphi 0, %s117
      %s132 = sphi 0, %s118
      %s136 = sphi 0, %s136
      %s138 = sphi 0, %s136
      %s139 = sphi 0, %s138
      %s153 = sphi 0, %s139
      %s157 = sphi 0, %s157
      %s159 = sphi 0, %s157
      %s160 = sphi 0, %s159
      %s174 = sphi 0, %s160
      %s178 = sphi 0, %s178
      %s180 = sphi 0, %s178
      %s181 = sphi 0, %s180
      %s195 = sphi 0, %s181
      %s201 = sphi 0, %s203
      %s204 = sphi 0, %s201
      %s205 = sphi 0, %s204
      %s221 = sphi 0, %s205
    $region4: #{mnist_2nn_pallas.3} parent=1 // loop_header_branch
      %20 = sbr.rel (%p18) target = $region8
    $region5: #{mnist_2nn_pallas.3} parent=1 // loop_body
      %s22 = ssub.s32 %s17, 1
      %s23 = ssub.s32 %s17, 2
      %s30 = sadd.s32 1, %s25
      %p31 = scmp.ge.s32.totalorder %s30, 4
      %s32 = scalar_select %p31, 0, %s30
      %s33 = sadd.s32 1, %s24
      %s34 = scalar_select %p31, %s33, %s24
      %p35 = scmp.ge.s32.totalorder %s34, 1
      %s36 = scalar_select %p35, 0, %s34
      %s37 = ssub.s32 %s24, %s36
      %p38 = scmp.eq.s32.totalorder %s37, 0
      %s40 = sadd.s32 %s39, 1
      %s41 = scalar_select %p38, %s39, %s40
      %p44 = pneg %p38
      %p45 = scmp.eq.s32.totalorder %s17, 3
      %p46 = por %p44, %p45
      %p47 = scmp.ne.s32.totalorder %s39, %s42
      %p48 = scmp.eq.s32.totalorder %s17, 0
      %p49 = por %p47, %p48
      %p50 = scmp.ne.s32.totalorder %s39, %s42
      %p51 = scmp.eq.s32.totalorder %s22, 3
      %p52 = por %p50, %p51
      %p53 = scmp.ne.s32.totalorder %s42, %s43
      %p54 = scmp.eq.s32.totalorder %s22, 0
      %p55 = por %p53, %p54
      %p56 = scmp.ne.s32.totalorder %s42, %s43
      %p57 = scmp.eq.s32.totalorder %s23, 3
      %p58 = por %p56, %p57
      %p60 = scmp.ne.s32.totalorder %s43, %s59
      %p61 = scmp.eq.s32.totalorder %s23, 0
      %p62 = por %p60, %p61
      %s63 = ssub.s32 %s25, %s32
      %p64 = scmp.eq.s32.totalorder %s63, 0
      %s66 = sadd.s32 %s65, 1
      %s67 = scalar_select %p64, %s65, %s66
      %p70 = pneg %p64
      %p71 = scmp.eq.s32.totalorder %s17, 3
      %p72 = por %p70, %p71
      %p73 = scmp.ne.s32.totalorder %s65, %s68
      %p74 = scmp.eq.s32.totalorder %s17, 0
      %p75 = por %p73, %p74
      %p76 = scmp.ne.s32.totalorder %s65, %s68
      %p77 = scmp.eq.s32.totalorder %s22, 3
      %p78 = por %p76, %p77
      %p79 = scmp.ne.s32.totalorder %s68, %s69
      %p80 = scmp.eq.s32.totalorder %s22, 0
      %p81 = por %p79, %p80
      %p82 = scmp.ne.s32.totalorder %s68, %s69
      %p83 = scmp.eq.s32.totalorder %s23, 3
      %p84 = por %p82, %p83
      %p86 = scmp.ne.s32.totalorder %s69, %s85
      %p87 = scmp.eq.s32.totalorder %s23, 0
      %p88 = por %p86, %p87
      %s89 = ssub.s32 %s25, %s32
      %p90 = scmp.eq.s32.totalorder %s89, 0
      %s92 = sadd.s32 %s91, 1
      %s93 = scalar_select %p90, %s91, %s92
      %p96 = pneg %p90
      %p97 = scmp.eq.s32.totalorder %s17, 3
      %p98 = por %p96, %p97
      %p99 = scmp.ne.s32.totalorder %s91, %s94
      %p100 = scmp.eq.s32.totalorder %s17, 0
      %p101 = por %p99, %p100
      %p102 = scmp.ne.s32.totalorder %s91, %s94
      %p103 = scmp.eq.s32.totalorder %s22, 3
      %p104 = por %p102, %p103
      %p105 = scmp.ne.s32.totalorder %s94, %s95
      %p106 = scmp.eq.s32.totalorder %s22, 0
      %p107 = por %p105, %p106
      %p108 = scmp.ne.s32.totalorder %s94, %s95
      %p109 = scmp.eq.s32.totalorder %s23, 3
      %p110 = por %p108, %p109
      %p112 = scmp.ne.s32.totalorder %s95, %s111
      %p113 = scmp.eq.s32.totalorder %s23, 0
      %p114 = por %p112, %p113
      %s116 = sadd.s32 %s115, 1
      %p119 = scmp.eq.s32.totalorder %s17, 3
      %p120 = scmp.ne.s32.totalorder %s115, %s117
      %p121 = scmp.eq.s32.totalorder %s17, 0
      %p122 = por %p120, %p121
      %p123 = scmp.ne.s32.totalorder %s115, %s117
      %p124 = scmp.eq.s32.totalorder %s22, 3
      %p125 = por %p123, %p124
      %p126 = scmp.ne.s32.totalorder %s117, %s118
      %p127 = scmp.eq.s32.totalorder %s22, 0
      %p128 = por %p126, %p127
      %p129 = scmp.ne.s32.totalorder %s117, %s118
      %p130 = scmp.eq.s32.totalorder %s23, 3
      %p131 = por %p129, %p130
      %p133 = scmp.ne.s32.totalorder %s118, %s132
      %p134 = scmp.eq.s32.totalorder %s23, 0
      %p135 = por %p133, %p134
      %s137 = sadd.s32 %s136, 1
      %p140 = scmp.eq.s32.totalorder %s17, 3
      %p141 = scmp.ne.s32.totalorder %s136, %s138
      %p142 = scmp.eq.s32.totalorder %s17, 0
      %p143 = por %p141, %p142
      %p144 = scmp.ne.s32.totalorder %s136, %s138
      %p145 = scmp.eq.s32.totalorder %s22, 3
      %p146 = por %p144, %p145
      %p147 = scmp.ne.s32.totalorder %s138, %s139
      %p148 = scmp.eq.s32.totalorder %s22, 0
      %p149 = por %p147, %p148
      %p150 = scmp.ne.s32.totalorder %s138, %s139
      %p151 = scmp.eq.s32.totalorder %s23, 3
      %p152 = por %p150, %p151
      %p154 = scmp.ne.s32.totalorder %s139, %s153
      %p155 = scmp.eq.s32.totalorder %s23, 0
      %p156 = por %p154, %p155
      %s158 = sadd.s32 %s157, 1
      %p161 = scmp.eq.s32.totalorder %s17, 3
      %p162 = scmp.ne.s32.totalorder %s157, %s159
      %p163 = scmp.eq.s32.totalorder %s17, 0
      %p164 = por %p162, %p163
      %p165 = scmp.ne.s32.totalorder %s157, %s159
      %p166 = scmp.eq.s32.totalorder %s22, 3
      %p167 = por %p165, %p166
      %p168 = scmp.ne.s32.totalorder %s159, %s160
      %p169 = scmp.eq.s32.totalorder %s22, 0
      %p170 = por %p168, %p169
      %p171 = scmp.ne.s32.totalorder %s159, %s160
      %p172 = scmp.eq.s32.totalorder %s23, 3
      %p173 = por %p171, %p172
      %p175 = scmp.ne.s32.totalorder %s160, %s174
      %p176 = scmp.eq.s32.totalorder %s23, 0
      %p177 = por %p175, %p176
      %s179 = sadd.s32 %s178, 1
      %p182 = scmp.eq.s32.totalorder %s17, 3
      %p183 = scmp.ne.s32.totalorder %s178, %s180
      %p184 = scmp.eq.s32.totalorder %s17, 0
      %p185 = por %p183, %p184
      %p186 = scmp.ne.s32.totalorder %s178, %s180
      %p187 = scmp.eq.s32.totalorder %s22, 3
      %p188 = por %p186, %p187
      %p189 = scmp.ne.s32.totalorder %s180, %s181
      %p190 = scmp.eq.s32.totalorder %s22, 0
      %p191 = por %p189, %p190
      %p192 = scmp.ne.s32.totalorder %s180, %s181
      %p193 = scmp.eq.s32.totalorder %s23, 3
      %p194 = por %p192, %p193
      %p196 = scmp.ne.s32.totalorder %s181, %s195
      %p197 = scmp.eq.s32.totalorder %s23, 0
      %p198 = por %p196, %p197
      %s199 = ssub.s32 %s24, %s36
      %p200 = scmp.eq.s32.totalorder %s199, 0
      %s202 = sadd.s32 %s201, 1
      %s203 = scalar_select %p200, %s201, %s202
      %p206 = pneg %p200
      %p207 = scmp.eq.s32.totalorder %s17, 3
      %p208 = por %p206, %p207
      %p209 = scmp.ne.s32.totalorder %s201, %s204
      %p210 = scmp.eq.s32.totalorder %s17, 0
      %p211 = por %p209, %p210
      %p212 = scmp.ne.s32.totalorder %s201, %s204
      %p213 = scmp.eq.s32.totalorder %s22, 3
      %p214 = por %p212, %p213
      %p215 = scmp.ne.s32.totalorder %s204, %s205
      %p216 = scmp.eq.s32.totalorder %s22, 0
      %p217 = por %p215, %p216
      %p218 = scmp.ne.s32.totalorder %s204, %s205
      %p219 = scmp.eq.s32.totalorder %s23, 3
      %p220 = por %p218, %p219
      %p222 = scmp.ne.s32.totalorder %s205, %s221
      %p223 = scmp.eq.s32.totalorder %s23, 0
      %p224 = por %p222, %p223
      %p225 = scmp.le.s32.totalorder 1, %s17
      %p226 = scmp.lt.s32.totalorder %s17, 5
      %p227 = pnand %p225, %p226
      %p228 = pneg %p227
      // Predicated region
      $region9: #{mnist_2nn_pallas.3} parent=5 // pred_check
        _
      $region10: #{mnist_2nn_pallas.3} parent=5 // pred_check_branch
        %230 = sbr.rel (%p227) target = $region12
      $region11: #{mnist_2nn_pallas.3} parent=5 // pred_region
        %s231 = ssub.s32 %s17, 1
        // Predicated region
        $region13: #{mnist_2nn_pallas.3} parent=11 // pred_check
          %p232 = pneg %p55
        $region14: #{mnist_2nn_pallas.3} parent=11 // pred_check_branch
          %234 = sbr.rel (%p232) target = $region16
        $region15: #{mnist_2nn_pallas.3} parent=11 // pred_region
          %p235 = scmp.lt.s32.totalorder %s26, 0
          %s236 = scalar_select %p235, %s26, 0
          %s237 = smul.addr %s236, 49
          %s238 = scalar_lea.vmem %s0, %s237
        $region16: #{mnist_2nn_pallas.3} parent=11 // pred_fallthru
          _
        // Predicated region
        $region17: #{mnist_2nn_pallas.3} parent=11 // pred_check
          %p239 = pneg %p128
        $region18: #{mnist_2nn_pallas.3} parent=11 // pred_check_branch
          %241 = sbr.rel (%p239) target = $region20
        $region19: #{mnist_2nn_pallas.3} parent=11 // pred_region
          _
        $region20: #{mnist_2nn_pallas.3} parent=11 // pred_fallthru
          _
        // Predicated region
        $region21: #{mnist_2nn_pallas.3} parent=11 // pred_check
          %p242 = pneg %p149
        $region22: #{mnist_2nn_pallas.3} parent=11 // pred_check_branch
          %244 = sbr.rel (%p242) target = $region24
        $region23: #{mnist_2nn_pallas.3} parent=11 // pred_region
          _
        $region24: #{mnist_2nn_pallas.3} parent=11 // pred_fallthru
          _
        // Predicated region
        $region25: #{mnist_2nn_pallas.3} parent=11 // pred_check
          %p245 = pneg %p170
        $region26: #{mnist_2nn_pallas.3} parent=11 // pred_check_branch
          %247 = sbr.rel (%p245) target = $region28
        $region27: #{mnist_2nn_pallas.3} parent=11 // pred_region
          _
        $region28: #{mnist_2nn_pallas.3} parent=11 // pred_fallthru
          _
        // Predicated region
        $region29: #{mnist_2nn_pallas.3} parent=11 // pred_check
          %p248 = pneg %p191
        $region30: #{mnist_2nn_pallas.3} parent=11 // pred_check_branch
          %250 = sbr.rel (%p248) target = $region32
        $region31: #{mnist_2nn_pallas.3} parent=11 // pred_region
          _
        $region32: #{mnist_2nn_pallas.3} parent=11 // pred_fallthru
          _
      $region12: #{mnist_2nn_pallas.3} parent=5 // pred_fallthru
        _
      %p251 = scmp.lt.s32.totalorder %s17, 4
      // Predicated region
      $region33: #{mnist_2nn_pallas.3} parent=5 // pred_check
        %p252 = pneg %p251
      $region34: #{mnist_2nn_pallas.3} parent=5 // pred_check_branch
        %254 = sbr.rel (%p252) target = $region36
      $region35: #{mnist_2nn_pallas.3} parent=5 // pred_region
        // Predicated region
        $region37: #{mnist_2nn_pallas.3} parent=35 // pred_check
          %p255 = pneg %p75
        $region38: #{mnist_2nn_pallas.3} parent=35 // pred_check_branch
          %257 = sbr.rel (%p255) target = $region40
        $region39: #{mnist_2nn_pallas.3} parent=35 // pred_region
          %s258 = sand.u32 %s65, 1
          %s259 = scalar_lea.sflag [#allocation4], %s258
          %s260 = sand.u32 %s65, 1
          %s261 = smul.addr %s260, 6272
          %s262 = scalar_lea.vmem [#allocation3], %s261
          %s263 = smul.u32 2, %s25
          %s265 = ssub.s32 100352, 100352
          %266 = vsyncadd %s259, %s265
          %s267 = smul.addr %s263, 64
          %s268 = scalar_lea.hbm %s1, %s267
          %s269 = sshll.u32 %s262, 4
          %s270 = int_to_ptr.vmem [resolvable:$true] %s269
          %275 = dma.hbm_to_vmem [thread:$0]  %s268, 100352, %s270, %s259, 512, 128, 8
        $region40: #{mnist_2nn_pallas.3} parent=35 // pred_fallthru
          _
        // Predicated region
        $region41: #{mnist_2nn_pallas.3} parent=35 // pred_check
          %p276 = pneg %p101
        $region42: #{mnist_2nn_pallas.3} parent=35 // pred_check_branch
          %278 = sbr.rel (%p276) target = $region44
        $region43: #{mnist_2nn_pallas.3} parent=35 // pred_region
          %s279 = smul.u32 2, %s25
          %p280 = scmp.lt.s32.totalorder %s279, 7
          %s281 = scalar_select %p280, %s279, 7
          %s282 = scalar_lea.vmem %s2, %s281
          %s283 = smul.u32 2, %s25
        $region44: #{mnist_2nn_pallas.3} parent=35 // pred_fallthru
          _
      $region36: #{mnist_2nn_pallas.3} parent=5 // pred_fallthru
        _
      %p284 = scmp.le.s32.totalorder 1, %s17
      %p285 = scmp.lt.s32.totalorder %s17, 5
      %p286 = pnand %p284, %p285
      %p287 = pneg %p286
      // Predicated region
      $region45: #{mnist_2nn_pallas.3} parent=5 // pred_check
        _
      $region46: #{mnist_2nn_pallas.3} parent=5 // pred_check_branch
        %289 = sbr.rel (%p286) target = $region48
      $region47: #{mnist_2nn_pallas.3} parent=5 // pred_region
        %s290 = ssub.s32 %s17, 1
        %s291 = sand.u32 %s68, 1
        %s292 = scalar_lea.sflag [#allocation4], %s291
        %s293 = sand.u32 %s68, 1
        %s294 = smul.addr %s293, 6272
        %s295 = scalar_lea.vmem [#allocation3], %s294
        // Predicated region
        $region49: #{mnist_2nn_pallas.3} parent=47 // pred_check
          %p296 = pneg %p81
        $region50: #{mnist_2nn_pallas.3} parent=47 // pred_check_branch
          %298 = sbr.rel (%p296) target = $region52
        $region51: #{mnist_2nn_pallas.3} parent=47 // pred_region
          %299 = dma.done %s292, 100352
        $region52: #{mnist_2nn_pallas.3} parent=47 // pred_fallthru
          _
        %p300 = scmp.lt.s32.totalorder %s26, 0
        %s301 = scalar_select %p300, %s26, 0
        %s302 = smul.addr %s301, 49
        %s303 = scalar_lea.vmem %s0, %s302
        %p304 = pneg %p55
        %p305 = pneg %p52
        %s306 = sand.u32 %s68, 1
        %s307 = scalar_lea.sflag [#allocation4], %s306
        %s308 = sand.u32 %s68, 1
        %s309 = smul.addr %s308, 6272
        %s310 = scalar_lea.vmem [#allocation3], %s309
        %p311 = pneg %p81
        %p312 = pneg %p78
        %s313 = smul.u32 2, %s27
        %p314 = scmp.lt.s32.totalorder %s313, 7
        %s315 = scalar_select %p314, %s313, 7
        %s316 = scalar_lea.vmem %s2, %s315
        %p317 = pneg %p107
        %p318 = pneg %p104
        %p319 = pneg %p128
        %p320 = pneg %p125
        %p321 = pneg %p149
        %p322 = pneg %p146
        %p323 = pneg %p170
        %p324 = pneg %p167
        %p325 = pneg %p191
        %p326 = pneg %p188
        %p327 = pneg %p217
        %p328 = pneg %p214
        %p329 = scmp.lt.s32.totalorder %s26, 0
        %s330 = scalar_select %p329, %s26, 0
        %s331 = smul.addr %s330, 49
        %s332 = scalar_lea.vmem %s0, %s331
        %s333 = smul.u32 2, %s27
        %s334 = smul.u32 2, %s27
        %p335 = scmp.lt.s32.totalorder %s334, 7
        %s336 = scalar_select %p335, %s334, 7
        %s337 = scalar_lea.vmem %s2, %s336
        %s338 = smul.u32 2, %s27
        %v340 = vld [vmem:[%s332] sm:$0xff]
        %v341 = vld [vmem:[%s332 + $0x8] sm:$0xff]
        %v342 = vld [vmem:[%s332 + $0x10] sm:$0xff]
        %v343 = vld [vmem:[%s332 + $0x18] sm:$0xff]
        %v344 = vld [vmem:[%s332 + $0x20] sm:$0xff]
        %v345 = vld [vmem:[%s332 + $0x28] sm:$0xff]
        %v346 = vld [vmem:[%s332 + $0x30] sm:$0x1]
        %v347 = vld [vmem:[%s295] sm:$0xff]
        %v348 = vld [vmem:[%s295 + $0x8] sm:$0xff]
        %v349 = vld [vmem:[%s295 + $0x10] sm:$0xff]
        %v350 = vld [vmem:[%s295 + $0x18] sm:$0xff]
        %v351 = vld [vmem:[%s295 + $0x20] sm:$0xff]
        %v352 = vld [vmem:[%s295 + $0x28] sm:$0xff]
        %v353 = vld [vmem:[%s295 + $0x30] sm:$0xff]
        %v354 = vld [vmem:[%s295 + $0x38] sm:$0xff]
        %v355 = vld [vmem:[%s295 + $0x40] sm:$0xff]
        %v356 = vld [vmem:[%s295 + $0x48] sm:$0xff]
        %v357 = vld [vmem:[%s295 + $0x50] sm:$0xff]
        %v358 = vld [vmem:[%s295 + $0x58] sm:$0xff]
        %v359 = vld [vmem:[%s295 + $0x60] sm:$0xff]
        %v360 = vld [vmem:[%s295 + $0x68] sm:$0xff]
        %v361 = vld [vmem:[%s295 + $0x70] sm:$0xff]
        %v362 = vld [vmem:[%s295 + $0x78] sm:$0xff]
        %v363 = vld [vmem:[%s295 + $0x80] sm:$0xff]
        %v364 = vld [vmem:[%s295 + $0x88] sm:$0xff]
        %v365 = vld [vmem:[%s295 + $0x90] sm:$0xff]
        %v366 = vld [vmem:[%s295 + $0x98] sm:$0xff]
        %v367 = vld [vmem:[%s295 + $0xa0] sm:$0xff]
        %v368 = vld [vmem:[%s295 + $0xa8] sm:$0xff]
        %v369 = vld [vmem:[%s295 + $0xb0] sm:$0xff]
        %v370 = vld [vmem:[%s295 + $0xb8] sm:$0xff]
        %v371 = vld [vmem:[%s295 + $0xc0] sm:$0xff]
        %v372 = vld [vmem:[%s295 + $0xc8] sm:$0xff]
        %v373 = vld [vmem:[%s295 + $0xd0] sm:$0xff]
        %v374 = vld [vmem:[%s295 + $0xd8] sm:$0xff]
        %v375 = vld [vmem:[%s295 + $0xe0] sm:$0xff]
        %v376 = vld [vmem:[%s295 + $0xe8] sm:$0xff]
        %v377 = vld [vmem:[%s295 + $0xf0] sm:$0xff]
        %v378 = vld [vmem:[%s295 + $0xf8] sm:$0xff]
        %v379 = vld [vmem:[%s295 + $0x100] sm:$0xff]
        %v380 = vld [vmem:[%s295 + $0x108] sm:$0xff]
        %v381 = vld [vmem:[%s295 + $0x110] sm:$0xff]
        %v382 = vld [vmem:[%s295 + $0x118] sm:$0xff]
        %v383 = vld [vmem:[%s295 + $0x120] sm:$0xff]
        %v384 = vld [vmem:[%s295 + $0x128] sm:$0xff]
        %v385 = vld [vmem:[%s295 + $0x130] sm:$0xff]
        %v386 = vld [vmem:[%s295 + $0x138] sm:$0xff]
        %v387 = vld [vmem:[%s295 + $0x140] sm:$0xff]
        %v388 = vld [vmem:[%s295 + $0x148] sm:$0xff]
        %v389 = vld [vmem:[%s295 + $0x150] sm:$0xff]
        %v390 = vld [vmem:[%s295 + $0x158] sm:$0xff]
        %v391 = vld [vmem:[%s295 + $0x160] sm:$0xff]
        %v392 = vld [vmem:[%s295 + $0x168] sm:$0xff]
        %v393 = vld [vmem:[%s295 + $0x170] sm:$0xff]
        %v394 = vld [vmem:[%s295 + $0x178] sm:$0xff]
        %v395 = vld [vmem:[%s295 + $0x180] sm:$0xff]
        %v396 = vld [vmem:[%s295 + $0x188] sm:$0xff]
        %v397 = vld [vmem:[%s295 + $0x190] sm:$0xff]
        %v398 = vld [vmem:[%s295 + $0x198] sm:$0xff]
        %v399 = vld [vmem:[%s295 + $0x1a0] sm:$0xff]
        %v400 = vld [vmem:[%s295 + $0x1a8] sm:$0xff]
        %v401 = vld [vmem:[%s295 + $0x1b0] sm:$0xff]
        %v402 = vld [vmem:[%s295 + $0x1b8] sm:$0xff]
        %v403 = vld [vmem:[%s295 + $0x1c0] sm:$0xff]
        %v404 = vld [vmem:[%s295 + $0x1c8] sm:$0xff]
        %v405 = vld [vmem:[%s295 + $0x1d0] sm:$0xff]
        %v406 = vld [vmem:[%s295 + $0x1d8] sm:$0xff]
        %v407 = vld [vmem:[%s295 + $0x1e0] sm:$0xff]
        %v408 = vld [vmem:[%s295 + $0x1e8] sm:$0xff]
        %v409 = vld [vmem:[%s295 + $0x1f0] sm:$0xff]
        %v410 = vld [vmem:[%s295 + $0x1f8] sm:$0xff]
        %v411 = vld [vmem:[%s295 + $0x200] sm:$0xff]
        %v412 = vld [vmem:[%s295 + $0x208] sm:$0xff]
        %v413 = vld [vmem:[%s295 + $0x210] sm:$0xff]
        %v414 = vld [vmem:[%s295 + $0x218] sm:$0xff]
        %v415 = vld [vmem:[%s295 + $0x220] sm:$0xff]
        %v416 = vld [vmem:[%s295 + $0x228] sm:$0xff]
        %v417 = vld [vmem:[%s295 + $0x230] sm:$0xff]
        %v418 = vld [vmem:[%s295 + $0x238] sm:$0xff]
        %v419 = vld [vmem:[%s295 + $0x240] sm:$0xff]
        %v420 = vld [vmem:[%s295 + $0x248] sm:$0xff]
        %v421 = vld [vmem:[%s295 + $0x250] sm:$0xff]
        %v422 = vld [vmem:[%s295 + $0x258] sm:$0xff]
        %v423 = vld [vmem:[%s295 + $0x260] sm:$0xff]
        %v424 = vld [vmem:[%s295 + $0x268] sm:$0xff]
        %v425 = vld [vmem:[%s295 + $0x270] sm:$0xff]
        %v426 = vld [vmem:[%s295 + $0x278] sm:$0xff]
        %v427 = vld [vmem:[%s295 + $0x280] sm:$0xff]
        %v428 = vld [vmem:[%s295 + $0x288] sm:$0xff]
        %v429 = vld [vmem:[%s295 + $0x290] sm:$0xff]
        %v430 = vld [vmem:[%s295 + $0x298] sm:$0xff]
        %v431 = vld [vmem:[%s295 + $0x2a0] sm:$0xff]
        %v432 = vld [vmem:[%s295 + $0x2a8] sm:$0xff]
        %v433 = vld [vmem:[%s295 + $0x2b0] sm:$0xff]
        %v434 = vld [vmem:[%s295 + $0x2b8] sm:$0xff]
        %v435 = vld [vmem:[%s295 + $0x2c0] sm:$0xff]
        %v436 = vld [vmem:[%s295 + $0x2c8] sm:$0xff]
        %v437 = vld [vmem:[%s295 + $0x2d0] sm:$0xff]
        %v438 = vld [vmem:[%s295 + $0x2d8] sm:$0xff]
        %v439 = vld [vmem:[%s295 + $0x2e0] sm:$0xff]
        %v440 = vld [vmem:[%s295 + $0x2e8] sm:$0xff]
        %v441 = vld [vmem:[%s295 + $0x2f0] sm:$0xff]
        %v442 = vld [vmem:[%s295 + $0x2f8] sm:$0xff]
        %v443 = vld [vmem:[%s295 + $0x300] sm:$0xff]
        %v444 = vld [vmem:[%s295 + $0x308] sm:$0xff]
        %v445 = vld [vmem:[%s295 + $0x310] sm:$0xff]
        %v446 = vld [vmem:[%s295 + $0x318] sm:$0xff]
        %v447 = vld [vmem:[%s295 + $0x320] sm:$0xff]
        %v448 = vld [vmem:[%s295 + $0x328] sm:$0xff]
        %v449 = vld [vmem:[%s295 + $0x330] sm:$0xff]
        %v450 = vld [vmem:[%s295 + $0x338] sm:$0xff]
        %v451 = vld [vmem:[%s295 + $0x340] sm:$0xff]
        %v452 = vld [vmem:[%s295 + $0x348] sm:$0xff]
        %v453 = vld [vmem:[%s295 + $0x350] sm:$0xff]
        %v454 = vld [vmem:[%s295 + $0x358] sm:$0xff]
        %v455 = vld [vmem:[%s295 + $0x360] sm:$0xff]
        %v456 = vld [vmem:[%s295 + $0x368] sm:$0xff]
        %v457 = vld [vmem:[%s295 + $0x370] sm:$0xff]
        %v458 = vld [vmem:[%s295 + $0x378] sm:$0xff]
        %v459 = vld [vmem:[%s295 + $0x380] sm:$0xff]
        %v460 = vld [vmem:[%s295 + $0x388] sm:$0xff]
        %v461 = vld [vmem:[%s295 + $0x390] sm:$0xff]
        %v462 = vld [vmem:[%s295 + $0x398] sm:$0xff]
        %v463 = vld [vmem:[%s295 + $0x3a0] sm:$0xff]
        %v464 = vld [vmem:[%s295 + $0x3a8] sm:$0xff]
        %v465 = vld [vmem:[%s295 + $0x3b0] sm:$0xff]
        %v466 = vld [vmem:[%s295 + $0x3b8] sm:$0xff]
        %v467 = vld [vmem:[%s295 + $0x3c0] sm:$0xff]
        %v468 = vld [vmem:[%s295 + $0x3c8] sm:$0xff]
        %v469 = vld [vmem:[%s295 + $0x3d0] sm:$0xff]
        %v470 = vld [vmem:[%s295 + $0x3d8] sm:$0xff]
        %v471 = vld [vmem:[%s295 + $0x3e0] sm:$0xff]
        %v472 = vld [vmem:[%s295 + $0x3e8] sm:$0xff]
        %v473 = vld [vmem:[%s295 + $0x3f0] sm:$0xff]
        %v474 = vld [vmem:[%s295 + $0x3f8] sm:$0xff]
        %v475 = vld [vmem:[%s295 + $0x400] sm:$0xff]
        %v476 = vld [vmem:[%s295 + $0x408] sm:$0xff]
        %v477 = vld [vmem:[%s295 + $0x410] sm:$0xff]
        %v478 = vld [vmem:[%s295 + $0x418] sm:$0xff]
        %v479 = vld [vmem:[%s295 + $0x420] sm:$0xff]
        %v480 = vld [vmem:[%s295 + $0x428] sm:$0xff]
        %v481 = vld [vmem:[%s295 + $0x430] sm:$0xff]
        %v482 = vld [vmem:[%s295 + $0x438] sm:$0xff]
        %v483 = vld [vmem:[%s295 + $0x440] sm:$0xff]
        %v484 = vld [vmem:[%s295 + $0x448] sm:$0xff]
        %v485 = vld [vmem:[%s295 + $0x450] sm:$0xff]
        %v486 = vld [vmem:[%s295 + $0x458] sm:$0xff]
        %v487 = vld [vmem:[%s295 + $0x460] sm:$0xff]
        %v488 = vld [vmem:[%s295 + $0x468] sm:$0xff]
        %v489 = vld [vmem:[%s295 + $0x470] sm:$0xff]
        %v490 = vld [vmem:[%s295 + $0x478] sm:$0xff]
        %v491 = vld [vmem:[%s295 + $0x480] sm:$0xff]
        %v492 = vld [vmem:[%s295 + $0x488] sm:$0xff]
        %v493 = vld [vmem:[%s295 + $0x490] sm:$0xff]
        %v494 = vld [vmem:[%s295 + $0x498] sm:$0xff]
        %v495 = vld [vmem:[%s295 + $0x4a0] sm:$0xff]
        %v496 = vld [vmem:[%s295 + $0x4a8] sm:$0xff]
        %v497 = vld [vmem:[%s295 + $0x4b0] sm:$0xff]
        %v498 = vld [vmem:[%s295 + $0x4b8] sm:$0xff]
        %v499 = vld [vmem:[%s295 + $0x4c0] sm:$0xff]
        %v500 = vld [vmem:[%s295 + $0x4c8] sm:$0xff]
        %v501 = vld [vmem:[%s295 + $0x4d0] sm:$0xff]
        %v502 = vld [vmem:[%s295 + $0x4d8] sm:$0xff]
        %v503 = vld [vmem:[%s295 + $0x4e0] sm:$0xff]
        %v504 = vld [vmem:[%s295 + $0x4e8] sm:$0xff]
        %v505 = vld [vmem:[%s295 + $0x4f0] sm:$0xff]
        %v506 = vld [vmem:[%s295 + $0x4f8] sm:$0xff]
        %v507 = vld [vmem:[%s295 + $0x500] sm:$0xff]
        %v508 = vld [vmem:[%s295 + $0x508] sm:$0xff]
        %v509 = vld [vmem:[%s295 + $0x510] sm:$0xff]
        %v510 = vld [vmem:[%s295 + $0x518] sm:$0xff]
        %v511 = vld [vmem:[%s295 + $0x520] sm:$0xff]
        %v512 = vld [vmem:[%s295 + $0x528] sm:$0xff]
        %v513 = vld [vmem:[%s295 + $0x530] sm:$0xff]
        %v514 = vld [vmem:[%s295 + $0x538] sm:$0xff]
        %v515 = vld [vmem:[%s295 + $0x540] sm:$0xff]
        %v516 = vld [vmem:[%s295 + $0x548] sm:$0xff]
        %v517 = vld [vmem:[%s295 + $0x550] sm:$0xff]
        %v518 = vld [vmem:[%s295 + $0x558] sm:$0xff]
        %v519 = vld [vmem:[%s295 + $0x560] sm:$0xff]
        %v520 = vld [vmem:[%s295 + $0x568] sm:$0xff]
        %v521 = vld [vmem:[%s295 + $0x570] sm:$0xff]
        %v522 = vld [vmem:[%s295 + $0x578] sm:$0xff]
        %v523 = vld [vmem:[%s295 + $0x580] sm:$0xff]
        %v524 = vld [vmem:[%s295 + $0x588] sm:$0xff]
        %v525 = vld [vmem:[%s295 + $0x590] sm:$0xff]
        %v526 = vld [vmem:[%s295 + $0x598] sm:$0xff]
        %v527 = vld [vmem:[%s295 + $0x5a0] sm:$0xff]
        %v528 = vld [vmem:[%s295 + $0x5a8] sm:$0xff]
        %v529 = vld [vmem:[%s295 + $0x5b0] sm:$0xff]
        %v530 = vld [vmem:[%s295 + $0x5b8] sm:$0xff]
        %v531 = vld [vmem:[%s295 + $0x5c0] sm:$0xff]
        %v532 = vld [vmem:[%s295 + $0x5c8] sm:$0xff]
        %v533 = vld [vmem:[%s295 + $0x5d0] sm:$0xff]
        %v534 = vld [vmem:[%s295 + $0x5d8] sm:$0xff]
        %v535 = vld [vmem:[%s295 + $0x5e0] sm:$0xff]
        %v536 = vld [vmem:[%s295 + $0x5e8] sm:$0xff]
        %v537 = vld [vmem:[%s295 + $0x5f0] sm:$0xff]
        %v538 = vld [vmem:[%s295 + $0x5f8] sm:$0xff]
        %v539 = vld [vmem:[%s295 + $0x600] sm:$0xff]
        %v540 = vld [vmem:[%s295 + $0x608] sm:$0xff]
        %v541 = vld [vmem:[%s295 + $0x610] sm:$0xff]
        %v542 = vld [vmem:[%s295 + $0x618] sm:$0xff]
        %v543 = vld [vmem:[%s295 + $0x620] sm:$0xff]
        %v544 = vld [vmem:[%s295 + $0x628] sm:$0xff]
        %v545 = vld [vmem:[%s295 + $0x630] sm:$0xff]
        %v546 = vld [vmem:[%s295 + $0x638] sm:$0xff]
        %v547 = vld [vmem:[%s295 + $0x640] sm:$0xff]
        %v548 = vld [vmem:[%s295 + $0x648] sm:$0xff]
        %v549 = vld [vmem:[%s295 + $0x650] sm:$0xff]
        %v550 = vld [vmem:[%s295 + $0x658] sm:$0xff]
        %v551 = vld [vmem:[%s295 + $0x660] sm:$0xff]
        %v552 = vld [vmem:[%s295 + $0x668] sm:$0xff]
        %v553 = vld [vmem:[%s295 + $0x670] sm:$0xff]
        %v554 = vld [vmem:[%s295 + $0x678] sm:$0xff]
        %v555 = vld [vmem:[%s295 + $0x680] sm:$0xff]
        %v556 = vld [vmem:[%s295 + $0x688] sm:$0xff]
        %v557 = vld [vmem:[%s295 + $0x690] sm:$0xff]
        %v558 = vld [vmem:[%s295 + $0x698] sm:$0xff]
        %v559 = vld [vmem:[%s295 + $0x6a0] sm:$0xff]
        %v560 = vld [vmem:[%s295 + $0x6a8] sm:$0xff]
        %v561 = vld [vmem:[%s295 + $0x6b0] sm:$0xff]
        %v562 = vld [vmem:[%s295 + $0x6b8] sm:$0xff]
        %v563 = vld [vmem:[%s295 + $0x6c0] sm:$0xff]
        %v564 = vld [vmem:[%s295 + $0x6c8] sm:$0xff]
        %v565 = vld [vmem:[%s295 + $0x6d0] sm:$0xff]
        %v566 = vld [vmem:[%s295 + $0x6d8] sm:$0xff]
        %v567 = vld [vmem:[%s295 + $0x6e0] sm:$0xff]
        %v568 = vld [vmem:[%s295 + $0x6e8] sm:$0xff]
        %v569 = vld [vmem:[%s295 + $0x6f0] sm:$0xff]
        %v570 = vld [vmem:[%s295 + $0x6f8] sm:$0xff]
        %v571 = vld [vmem:[%s295 + $0x700] sm:$0xff]
        %v572 = vld [vmem:[%s295 + $0x708] sm:$0xff]
        %v573 = vld [vmem:[%s295 + $0x710] sm:$0xff]
        %v574 = vld [vmem:[%s295 + $0x718] sm:$0xff]
        %v575 = vld [vmem:[%s295 + $0x720] sm:$0xff]
        %v576 = vld [vmem:[%s295 + $0x728] sm:$0xff]
        %v577 = vld [vmem:[%s295 + $0x730] sm:$0xff]
        %v578 = vld [vmem:[%s295 + $0x738] sm:$0xff]
        %v579 = vld [vmem:[%s295 + $0x740] sm:$0xff]
        %v580 = vld [vmem:[%s295 + $0x748] sm:$0xff]
        %v581 = vld [vmem:[%s295 + $0x750] sm:$0xff]
        %v582 = vld [vmem:[%s295 + $0x758] sm:$0xff]
        %v583 = vld [vmem:[%s295 + $0x760] sm:$0xff]
        %v584 = vld [vmem:[%s295 + $0x768] sm:$0xff]
        %v585 = vld [vmem:[%s295 + $0x770] sm:$0xff]
        %v586 = vld [vmem:[%s295 + $0x778] sm:$0xff]
        %v587 = vld [vmem:[%s295 + $0x780] sm:$0xff]
        %v588 = vld [vmem:[%s295 + $0x788] sm:$0xff]
        %v589 = vld [vmem:[%s295 + $0x790] sm:$0xff]
        %v590 = vld [vmem:[%s295 + $0x798] sm:$0xff]
        %v591 = vld [vmem:[%s295 + $0x7a0] sm:$0xff]
        %v592 = vld [vmem:[%s295 + $0x7a8] sm:$0xff]
        %v593 = vld [vmem:[%s295 + $0x7b0] sm:$0xff]
        %v594 = vld [vmem:[%s295 + $0x7b8] sm:$0xff]
        %v595 = vld [vmem:[%s295 + $0x7c0] sm:$0xff]
        %v596 = vld [vmem:[%s295 + $0x7c8] sm:$0xff]
        %v597 = vld [vmem:[%s295 + $0x7d0] sm:$0xff]
        %v598 = vld [vmem:[%s295 + $0x7d8] sm:$0xff]
        %v599 = vld [vmem:[%s295 + $0x7e0] sm:$0xff]
        %v600 = vld [vmem:[%s295 + $0x7e8] sm:$0xff]
        %v601 = vld [vmem:[%s295 + $0x7f0] sm:$0xff]
        %v602 = vld [vmem:[%s295 + $0x7f8] sm:$0xff]
        %v603 = vld [vmem:[%s295 + $0x800] sm:$0xff]
        %v604 = vld [vmem:[%s295 + $0x808] sm:$0xff]
        %v605 = vld [vmem:[%s295 + $0x810] sm:$0xff]
        %v606 = vld [vmem:[%s295 + $0x818] sm:$0xff]
        %v607 = vld [vmem:[%s295 + $0x820] sm:$0xff]
        %v608 = vld [vmem:[%s295 + $0x828] sm:$0xff]
        %v609 = vld [vmem:[%s295 + $0x830] sm:$0xff]
        %v610 = vld [vmem:[%s295 + $0x838] sm:$0xff]
        %v611 = vld [vmem:[%s295 + $0x840] sm:$0xff]
        %v612 = vld [vmem:[%s295 + $0x848] sm:$0xff]
        %v613 = vld [vmem:[%s295 + $0x850] sm:$0xff]
        %v614 = vld [vmem:[%s295 + $0x858] sm:$0xff]
        %v615 = vld [vmem:[%s295 + $0x860] sm:$0xff]
        %v616 = vld [vmem:[%s295 + $0x868] sm:$0xff]
        %v617 = vld [vmem:[%s295 + $0x870] sm:$0xff]
        %v618 = vld [vmem:[%s295 + $0x878] sm:$0xff]
        %v619 = vld [vmem:[%s295 + $0x880] sm:$0xff]
        %v620 = vld [vmem:[%s295 + $0x888] sm:$0xff]
        %v621 = vld [vmem:[%s295 + $0x890] sm:$0xff]
        %v622 = vld [vmem:[%s295 + $0x898] sm:$0xff]
        %v623 = vld [vmem:[%s295 + $0x8a0] sm:$0xff]
        %v624 = vld [vmem:[%s295 + $0x8a8] sm:$0xff]
        %v625 = vld [vmem:[%s295 + $0x8b0] sm:$0xff]
        %v626 = vld [vmem:[%s295 + $0x8b8] sm:$0xff]
        %v627 = vld [vmem:[%s295 + $0x8c0] sm:$0xff]
        %v628 = vld [vmem:[%s295 + $0x8c8] sm:$0xff]
        %v629 = vld [vmem:[%s295 + $0x8d0] sm:$0xff]
        %v630 = vld [vmem:[%s295 + $0x8d8] sm:$0xff]
        %v631 = vld [vmem:[%s295 + $0x8e0] sm:$0xff]
        %v632 = vld [vmem:[%s295 + $0x8e8] sm:$0xff]
        %v633 = vld [vmem:[%s295 + $0x8f0] sm:$0xff]
        %v634 = vld [vmem:[%s295 + $0x8f8] sm:$0xff]
        %v635 = vld [vmem:[%s295 + $0x900] sm:$0xff]
        %v636 = vld [vmem:[%s295 + $0x908] sm:$0xff]
        %v637 = vld [vmem:[%s295 + $0x910] sm:$0xff]
        %v638 = vld [vmem:[%s295 + $0x918] sm:$0xff]
        %v639 = vld [vmem:[%s295 + $0x920] sm:$0xff]
        %v640 = vld [vmem:[%s295 + $0x928] sm:$0xff]
        %v641 = vld [vmem:[%s295 + $0x930] sm:$0xff]
        %v642 = vld [vmem:[%s295 + $0x938] sm:$0xff]
        %v643 = vld [vmem:[%s295 + $0x940] sm:$0xff]
        %v644 = vld [vmem:[%s295 + $0x948] sm:$0xff]
        %v645 = vld [vmem:[%s295 + $0x950] sm:$0xff]
        %v646 = vld [vmem:[%s295 + $0x958] sm:$0xff]
        %v647 = vld [vmem:[%s295 + $0x960] sm:$0xff]
        %v648 = vld [vmem:[%s295 + $0x968] sm:$0xff]
        %v649 = vld [vmem:[%s295 + $0x970] sm:$0xff]
        %v650 = vld [vmem:[%s295 + $0x978] sm:$0xff]
        %v651 = vld [vmem:[%s295 + $0x980] sm:$0xff]
        %v652 = vld [vmem:[%s295 + $0x988] sm:$0xff]
        %v653 = vld [vmem:[%s295 + $0x990] sm:$0xff]
        %v654 = vld [vmem:[%s295 + $0x998] sm:$0xff]
        %v655 = vld [vmem:[%s295 + $0x9a0] sm:$0xff]
        %v656 = vld [vmem:[%s295 + $0x9a8] sm:$0xff]
        %v657 = vld [vmem:[%s295 + $0x9b0] sm:$0xff]
        %v658 = vld [vmem:[%s295 + $0x9b8] sm:$0xff]
        %v659 = vld [vmem:[%s295 + $0x9c0] sm:$0xff]
        %v660 = vld [vmem:[%s295 + $0x9c8] sm:$0xff]
        %v661 = vld [vmem:[%s295 + $0x9d0] sm:$0xff]
        %v662 = vld [vmem:[%s295 + $0x9d8] sm:$0xff]
        %v663 = vld [vmem:[%s295 + $0x9e0] sm:$0xff]
        %v664 = vld [vmem:[%s295 + $0x9e8] sm:$0xff]
        %v665 = vld [vmem:[%s295 + $0x9f0] sm:$0xff]
        %v666 = vld [vmem:[%s295 + $0x9f8] sm:$0xff]
        %v667 = vld [vmem:[%s295 + $0xa00] sm:$0xff]
        %v668 = vld [vmem:[%s295 + $0xa08] sm:$0xff]
        %v669 = vld [vmem:[%s295 + $0xa10] sm:$0xff]
        %v670 = vld [vmem:[%s295 + $0xa18] sm:$0xff]
        %v671 = vld [vmem:[%s295 + $0xa20] sm:$0xff]
        %v672 = vld [vmem:[%s295 + $0xa28] sm:$0xff]
        %v673 = vld [vmem:[%s295 + $0xa30] sm:$0xff]
        %v674 = vld [vmem:[%s295 + $0xa38] sm:$0xff]
        %v675 = vld [vmem:[%s295 + $0xa40] sm:$0xff]
        %v676 = vld [vmem:[%s295 + $0xa48] sm:$0xff]
        %v677 = vld [vmem:[%s295 + $0xa50] sm:$0xff]
        %v678 = vld [vmem:[%s295 + $0xa58] sm:$0xff]
        %v679 = vld [vmem:[%s295 + $0xa60] sm:$0xff]
        %v680 = vld [vmem:[%s295 + $0xa68] sm:$0xff]
        %v681 = vld [vmem:[%s295 + $0xa70] sm:$0xff]
        %v682 = vld [vmem:[%s295 + $0xa78] sm:$0xff]
        %v683 = vld [vmem:[%s295 + $0xa80] sm:$0xff]
        %v684 = vld [vmem:[%s295 + $0xa88] sm:$0xff]
        %v685 = vld [vmem:[%s295 + $0xa90] sm:$0xff]
        %v686 = vld [vmem:[%s295 + $0xa98] sm:$0xff]
        %v687 = vld [vmem:[%s295 + $0xaa0] sm:$0xff]
        %v688 = vld [vmem:[%s295 + $0xaa8] sm:$0xff]
        %v689 = vld [vmem:[%s295 + $0xab0] sm:$0xff]
        %v690 = vld [vmem:[%s295 + $0xab8] sm:$0xff]
        %v691 = vld [vmem:[%s295 + $0xac0] sm:$0xff]
        %v692 = vld [vmem:[%s295 + $0xac8] sm:$0xff]
        %v693 = vld [vmem:[%s295 + $0xad0] sm:$0xff]
        %v694 = vld [vmem:[%s295 + $0xad8] sm:$0xff]
        %v695 = vld [vmem:[%s295 + $0xae0] sm:$0xff]
        %v696 = vld [vmem:[%s295 + $0xae8] sm:$0xff]
        %v697 = vld [vmem:[%s295 + $0xaf0] sm:$0xff]
        %v698 = vld [vmem:[%s295 + $0xaf8] sm:$0xff]
        %v699 = vld [vmem:[%s295 + $0xb00] sm:$0xff]
        %v700 = vld [vmem:[%s295 + $0xb08] sm:$0xff]
        %v701 = vld [vmem:[%s295 + $0xb10] sm:$0xff]
        %v702 = vld [vmem:[%s295 + $0xb18] sm:$0xff]
        %v703 = vld [vmem:[%s295 + $0xb20] sm:$0xff]
        %v704 = vld [vmem:[%s295 + $0xb28] sm:$0xff]
        %v705 = vld [vmem:[%s295 + $0xb30] sm:$0xff]
        %v706 = vld [vmem:[%s295 + $0xb38] sm:$0xff]
        %v707 = vld [vmem:[%s295 + $0xb40] sm:$0xff]
        %v708 = vld [vmem:[%s295 + $0xb48] sm:$0xff]
        %v709 = vld [vmem:[%s295 + $0xb50] sm:$0xff]
        %v710 = vld [vmem:[%s295 + $0xb58] sm:$0xff]
        %v711 = vld [vmem:[%s295 + $0xb60] sm:$0xff]
        %v712 = vld [vmem:[%s295 + $0xb68] sm:$0xff]
        %v713 = vld [vmem:[%s295 + $0xb70] sm:$0xff]
        %v714 = vld [vmem:[%s295 + $0xb78] sm:$0xff]
        %v715 = vld [vmem:[%s295 + $0xb80] sm:$0xff]
        %v716 = vld [vmem:[%s295 + $0xb88] sm:$0xff]
        %v717 = vld [vmem:[%s295 + $0xb90] sm:$0xff]
        %v718 = vld [vmem:[%s295 + $0xb98] sm:$0xff]
        %v719 = vld [vmem:[%s295 + $0xba0] sm:$0xff]
        %v720 = vld [vmem:[%s295 + $0xba8] sm:$0xff]
        %v721 = vld [vmem:[%s295 + $0xbb0] sm:$0xff]
        %v722 = vld [vmem:[%s295 + $0xbb8] sm:$0xff]
        %v723 = vld [vmem:[%s295 + $0xbc0] sm:$0xff]
        %v724 = vld [vmem:[%s295 + $0xbc8] sm:$0xff]
        %v725 = vld [vmem:[%s295 + $0xbd0] sm:$0xff]
        %v726 = vld [vmem:[%s295 + $0xbd8] sm:$0xff]
        %v727 = vld [vmem:[%s295 + $0xbe0] sm:$0xff]
        %v728 = vld [vmem:[%s295 + $0xbe8] sm:$0xff]
        %v729 = vld [vmem:[%s295 + $0xbf0] sm:$0xff]
        %v730 = vld [vmem:[%s295 + $0xbf8] sm:$0xff]
        %v731 = vld [vmem:[%s295 + $0xc00] sm:$0xff]
        %v732 = vld [vmem:[%s295 + $0xc08] sm:$0xff]
        %v733 = vld [vmem:[%s295 + $0xc10] sm:$0xff]
        %v734 = vld [vmem:[%s295 + $0xc18] sm:$0xff]
        %v735 = vld [vmem:[%s295 + $0xc20] sm:$0xff]
        %v736 = vld [vmem:[%s295 + $0xc28] sm:$0xff]
        %v737 = vld [vmem:[%s295 + $0xc30] sm:$0xff]
        %v738 = vld [vmem:[%s295 + $0xc38] sm:$0xff]
        %v739 = vld [vmem:[%s295 + $0xc40] sm:$0xff]
        %v740 = vld [vmem:[%s295 + $0xc48] sm:$0xff]
        %v741 = vld [vmem:[%s295 + $0xc50] sm:$0xff]
        %v742 = vld [vmem:[%s295 + $0xc58] sm:$0xff]
        %v743 = vld [vmem:[%s295 + $0xc60] sm:$0xff]
        %v744 = vld [vmem:[%s295 + $0xc68] sm:$0xff]
        %v745 = vld [vmem:[%s295 + $0xc70] sm:$0xff]
        %v746 = vld [vmem:[%s295 + $0xc78] sm:$0xff]
        %v747 = vld [vmem:[%s295 + $0xc80] sm:$0xff]
        %v748 = vld [vmem:[%s295 + $0xc88] sm:$0xff]
        %v749 = vld [vmem:[%s295 + $0xc90] sm:$0xff]
        %v750 = vld [vmem:[%s295 + $0xc98] sm:$0xff]
        %v751 = vld [vmem:[%s295 + $0xca0] sm:$0xff]
        %v752 = vld [vmem:[%s295 + $0xca8] sm:$0xff]
        %v753 = vld [vmem:[%s295 + $0xcb0] sm:$0xff]
        %v754 = vld [vmem:[%s295 + $0xcb8] sm:$0xff]
        %v755 = vld [vmem:[%s295 + $0xcc0] sm:$0xff]
        %v756 = vld [vmem:[%s295 + $0xcc8] sm:$0xff]
        %v757 = vld [vmem:[%s295 + $0xcd0] sm:$0xff]
        %v758 = vld [vmem:[%s295 + $0xcd8] sm:$0xff]
        %v759 = vld [vmem:[%s295 + $0xce0] sm:$0xff]
        %v760 = vld [vmem:[%s295 + $0xce8] sm:$0xff]
        %v761 = vld [vmem:[%s295 + $0xcf0] sm:$0xff]
        %v762 = vld [vmem:[%s295 + $0xcf8] sm:$0xff]
        %v763 = vld [vmem:[%s295 + $0xd00] sm:$0xff]
        %v764 = vld [vmem:[%s295 + $0xd08] sm:$0xff]
        %v765 = vld [vmem:[%s295 + $0xd10] sm:$0xff]
        %v766 = vld [vmem:[%s295 + $0xd18] sm:$0xff]
        %v767 = vld [vmem:[%s295 + $0xd20] sm:$0xff]
        %v768 = vld [vmem:[%s295 + $0xd28] sm:$0xff]
        %v769 = vld [vmem:[%s295 + $0xd30] sm:$0xff]
        %v770 = vld [vmem:[%s295 + $0xd38] sm:$0xff]
        %v771 = vld [vmem:[%s295 + $0xd40] sm:$0xff]
        %v772 = vld [vmem:[%s295 + $0xd48] sm:$0xff]
        %v773 = vld [vmem:[%s295 + $0xd50] sm:$0xff]
        %v774 = vld [vmem:[%s295 + $0xd58] sm:$0xff]
        %v775 = vld [vmem:[%s295 + $0xd60] sm:$0xff]
        %v776 = vld [vmem:[%s295 + $0xd68] sm:$0xff]
        %v777 = vld [vmem:[%s295 + $0xd70] sm:$0xff]
        %v778 = vld [vmem:[%s295 + $0xd78] sm:$0xff]
        %v779 = vld [vmem:[%s295 + $0xd80] sm:$0xff]
        %v780 = vld [vmem:[%s295 + $0xd88] sm:$0xff]
        %v781 = vld [vmem:[%s295 + $0xd90] sm:$0xff]
        %v782 = vld [vmem:[%s295 + $0xd98] sm:$0xff]
        %v783 = vld [vmem:[%s295 + $0xda0] sm:$0xff]
        %v784 = vld [vmem:[%s295 + $0xda8] sm:$0xff]
        %v785 = vld [vmem:[%s295 + $0xdb0] sm:$0xff]
        %v786 = vld [vmem:[%s295 + $0xdb8] sm:$0xff]
        %v787 = vld [vmem:[%s295 + $0xdc0] sm:$0xff]
        %v788 = vld [vmem:[%s295 + $0xdc8] sm:$0xff]
        %v789 = vld [vmem:[%s295 + $0xdd0] sm:$0xff]
        %v790 = vld [vmem:[%s295 + $0xdd8] sm:$0xff]
        %v791 = vld [vmem:[%s295 + $0xde0] sm:$0xff]
        %v792 = vld [vmem:[%s295 + $0xde8] sm:$0xff]
        %v793 = vld [vmem:[%s295 + $0xdf0] sm:$0xff]
        %v794 = vld [vmem:[%s295 + $0xdf8] sm:$0xff]
        %v795 = vld [vmem:[%s295 + $0xe00] sm:$0xff]
        %v796 = vld [vmem:[%s295 + $0xe08] sm:$0xff]
        %v797 = vld [vmem:[%s295 + $0xe10] sm:$0xff]
        %v798 = vld [vmem:[%s295 + $0xe18] sm:$0xff]
        %v799 = vld [vmem:[%s295 + $0xe20] sm:$0xff]
        %v800 = vld [vmem:[%s295 + $0xe28] sm:$0xff]
        %v801 = vld [vmem:[%s295 + $0xe30] sm:$0xff]
        %v802 = vld [vmem:[%s295 + $0xe38] sm:$0xff]
        %v803 = vld [vmem:[%s295 + $0xe40] sm:$0xff]
        %v804 = vld [vmem:[%s295 + $0xe48] sm:$0xff]
        %v805 = vld [vmem:[%s295 + $0xe50] sm:$0xff]
        %v806 = vld [vmem:[%s295 + $0xe58] sm:$0xff]
        %v807 = vld [vmem:[%s295 + $0xe60] sm:$0xff]
        %v808 = vld [vmem:[%s295 + $0xe68] sm:$0xff]
        %v809 = vld [vmem:[%s295 + $0xe70] sm:$0xff]
        %v810 = vld [vmem:[%s295 + $0xe78] sm:$0xff]
        %v811 = vld [vmem:[%s295 + $0xe80] sm:$0xff]
        %v812 = vld [vmem:[%s295 + $0xe88] sm:$0xff]
        %v813 = vld [vmem:[%s295 + $0xe90] sm:$0xff]
        %v814 = vld [vmem:[%s295 + $0xe98] sm:$0xff]
        %v815 = vld [vmem:[%s295 + $0xea0] sm:$0xff]
        %v816 = vld [vmem:[%s295 + $0xea8] sm:$0xff]
        %v817 = vld [vmem:[%s295 + $0xeb0] sm:$0xff]
        %v818 = vld [vmem:[%s295 + $0xeb8] sm:$0xff]
        %v819 = vld [vmem:[%s295 + $0xec0] sm:$0xff]
        %v820 = vld [vmem:[%s295 + $0xec8] sm:$0xff]
        %v821 = vld [vmem:[%s295 + $0xed0] sm:$0xff]
        %v822 = vld [vmem:[%s295 + $0xed8] sm:$0xff]
        %v823 = vld [vmem:[%s295 + $0xee0] sm:$0xff]
        %v824 = vld [vmem:[%s295 + $0xee8] sm:$0xff]
        %v825 = vld [vmem:[%s295 + $0xef0] sm:$0xff]
        %v826 = vld [vmem:[%s295 + $0xef8] sm:$0xff]
        %v827 = vld [vmem:[%s295 + $0xf00] sm:$0xff]
        %v828 = vld [vmem:[%s295 + $0xf08] sm:$0xff]
        %v829 = vld [vmem:[%s295 + $0xf10] sm:$0xff]
        %v830 = vld [vmem:[%s295 + $0xf18] sm:$0xff]
        %v831 = vld [vmem:[%s295 + $0xf20] sm:$0xff]
        %v832 = vld [vmem:[%s295 + $0xf28] sm:$0xff]
        %v833 = vld [vmem:[%s295 + $0xf30] sm:$0xff]
        %v834 = vld [vmem:[%s295 + $0xf38] sm:$0xff]
        %v835 = vld [vmem:[%s295 + $0xf40] sm:$0xff]
        %v836 = vld [vmem:[%s295 + $0xf48] sm:$0xff]
        %v837 = vld [vmem:[%s295 + $0xf50] sm:$0xff]
        %v838 = vld [vmem:[%s295 + $0xf58] sm:$0xff]
        %v839 = vld [vmem:[%s295 + $0xf60] sm:$0xff]
        %v840 = vld [vmem:[%s295 + $0xf68] sm:$0xff]
        %v841 = vld [vmem:[%s295 + $0xf70] sm:$0xff]
        %v842 = vld [vmem:[%s295 + $0xf78] sm:$0xff]
        %v843 = vld [vmem:[%s295 + $0xf80] sm:$0xff]
        %v844 = vld [vmem:[%s295 + $0xf88] sm:$0xff]
        %v845 = vld [vmem:[%s295 + $0xf90] sm:$0xff]
        %v846 = vld [vmem:[%s295 + $0xf98] sm:$0xff]
        %v847 = vld [vmem:[%s295 + $0xfa0] sm:$0xff]
        %v848 = vld [vmem:[%s295 + $0xfa8] sm:$0xff]
        %v849 = vld [vmem:[%s295 + $0xfb0] sm:$0xff]
        %v850 = vld [vmem:[%s295 + $0xfb8] sm:$0xff]
        %v851 = vld [vmem:[%s295 + $0xfc0] sm:$0xff]
        %v852 = vld [vmem:[%s295 + $0xfc8] sm:$0xff]
        %v853 = vld [vmem:[%s295 + $0xfd0] sm:$0xff]
        %v854 = vld [vmem:[%s295 + $0xfd8] sm:$0xff]
        %v855 = vld [vmem:[%s295 + $0xfe0] sm:$0xff]
        %v856 = vld [vmem:[%s295 + $0xfe8] sm:$0xff]
        %v857 = vld [vmem:[%s295 + $0xff0] sm:$0xff]
        %v858 = vld [vmem:[%s295 + $0xff8] sm:$0xff]
        %v859 = vld [vmem:[%s295 + $0x1000] sm:$0xff]
        %v860 = vld [vmem:[%s295 + $0x1008] sm:$0xff]
        %v861 = vld [vmem:[%s295 + $0x1010] sm:$0xff]
        %v862 = vld [vmem:[%s295 + $0x1018] sm:$0xff]
        %v863 = vld [vmem:[%s295 + $0x1020] sm:$0xff]
        %v864 = vld [vmem:[%s295 + $0x1028] sm:$0xff]
        %v865 = vld [vmem:[%s295 + $0x1030] sm:$0xff]
        %v866 = vld [vmem:[%s295 + $0x1038] sm:$0xff]
        %v867 = vld [vmem:[%s295 + $0x1040] sm:$0xff]
        %v868 = vld [vmem:[%s295 + $0x1048] sm:$0xff]
        %v869 = vld [vmem:[%s295 + $0x1050] sm:$0xff]
        %v870 = vld [vmem:[%s295 + $0x1058] sm:$0xff]
        %v871 = vld [vmem:[%s295 + $0x1060] sm:$0xff]
        %v872 = vld [vmem:[%s295 + $0x1068] sm:$0xff]
        %v873 = vld [vmem:[%s295 + $0x1070] sm:$0xff]
        %v874 = vld [vmem:[%s295 + $0x1078] sm:$0xff]
        %v875 = vld [vmem:[%s295 + $0x1080] sm:$0xff]
        %v876 = vld [vmem:[%s295 + $0x1088] sm:$0xff]
        %v877 = vld [vmem:[%s295 + $0x1090] sm:$0xff]
        %v878 = vld [vmem:[%s295 + $0x1098] sm:$0xff]
        %v879 = vld [vmem:[%s295 + $0x10a0] sm:$0xff]
        %v880 = vld [vmem:[%s295 + $0x10a8] sm:$0xff]
        %v881 = vld [vmem:[%s295 + $0x10b0] sm:$0xff]
        %v882 = vld [vmem:[%s295 + $0x10b8] sm:$0xff]
        %v883 = vld [vmem:[%s295 + $0x10c0] sm:$0xff]
        %v884 = vld [vmem:[%s295 + $0x10c8] sm:$0xff]
        %v885 = vld [vmem:[%s295 + $0x10d0] sm:$0xff]
        %v886 = vld [vmem:[%s295 + $0x10d8] sm:$0xff]
        %v887 = vld [vmem:[%s295 + $0x10e0] sm:$0xff]
        %v888 = vld [vmem:[%s295 + $0x10e8] sm:$0xff]
        %v889 = vld [vmem:[%s295 + $0x10f0] sm:$0xff]
        %v890 = vld [vmem:[%s295 + $0x10f8] sm:$0xff]
        %v891 = vld [vmem:[%s295 + $0x1100] sm:$0xff]
        %v892 = vld [vmem:[%s295 + $0x1108] sm:$0xff]
        %v893 = vld [vmem:[%s295 + $0x1110] sm:$0xff]
        %v894 = vld [vmem:[%s295 + $0x1118] sm:$0xff]
        %v895 = vld [vmem:[%s295 + $0x1120] sm:$0xff]
        %v896 = vld [vmem:[%s295 + $0x1128] sm:$0xff]
        %v897 = vld [vmem:[%s295 + $0x1130] sm:$0xff]
        %v898 = vld [vmem:[%s295 + $0x1138] sm:$0xff]
        %v899 = vld [vmem:[%s295 + $0x1140] sm:$0xff]
        %v900 = vld [vmem:[%s295 + $0x1148] sm:$0xff]
        %v901 = vld [vmem:[%s295 + $0x1150] sm:$0xff]
        %v902 = vld [vmem:[%s295 + $0x1158] sm:$0xff]
        %v903 = vld [vmem:[%s295 + $0x1160] sm:$0xff]
        %v904 = vld [vmem:[%s295 + $0x1168] sm:$0xff]
        %v905 = vld [vmem:[%s295 + $0x1170] sm:$0xff]
        %v906 = vld [vmem:[%s295 + $0x1178] sm:$0xff]
        %v907 = vld [vmem:[%s295 + $0x1180] sm:$0xff]
        %v908 = vld [vmem:[%s295 + $0x1188] sm:$0xff]
        %v909 = vld [vmem:[%s295 + $0x1190] sm:$0xff]
        %v910 = vld [vmem:[%s295 + $0x1198] sm:$0xff]
        %v911 = vld [vmem:[%s295 + $0x11a0] sm:$0xff]
        %v912 = vld [vmem:[%s295 + $0x11a8] sm:$0xff]
        %v913 = vld [vmem:[%s295 + $0x11b0] sm:$0xff]
        %v914 = vld [vmem:[%s295 + $0x11b8] sm:$0xff]
        %v915 = vld [vmem:[%s295 + $0x11c0] sm:$0xff]
        %v916 = vld [vmem:[%s295 + $0x11c8] sm:$0xff]
        %v917 = vld [vmem:[%s295 + $0x11d0] sm:$0xff]
        %v918 = vld [vmem:[%s295 + $0x11d8] sm:$0xff]
        %v919 = vld [vmem:[%s295 + $0x11e0] sm:$0xff]
        %v920 = vld [vmem:[%s295 + $0x11e8] sm:$0xff]
        %v921 = vld [vmem:[%s295 + $0x11f0] sm:$0xff]
        %v922 = vld [vmem:[%s295 + $0x11f8] sm:$0xff]
        %v923 = vld [vmem:[%s295 + $0x1200] sm:$0xff]
        %v924 = vld [vmem:[%s295 + $0x1208] sm:$0xff]
        %v925 = vld [vmem:[%s295 + $0x1210] sm:$0xff]
        %v926 = vld [vmem:[%s295 + $0x1218] sm:$0xff]
        %v927 = vld [vmem:[%s295 + $0x1220] sm:$0xff]
        %v928 = vld [vmem:[%s295 + $0x1228] sm:$0xff]
        %v929 = vld [vmem:[%s295 + $0x1230] sm:$0xff]
        %v930 = vld [vmem:[%s295 + $0x1238] sm:$0xff]
        %v931 = vld [vmem:[%s295 + $0x1240] sm:$0xff]
        %v932 = vld [vmem:[%s295 + $0x1248] sm:$0xff]
        %v933 = vld [vmem:[%s295 + $0x1250] sm:$0xff]
        %v934 = vld [vmem:[%s295 + $0x1258] sm:$0xff]
        %v935 = vld [vmem:[%s295 + $0x1260] sm:$0xff]
        %v936 = vld [vmem:[%s295 + $0x1268] sm:$0xff]
        %v937 = vld [vmem:[%s295 + $0x1270] sm:$0xff]
        %v938 = vld [vmem:[%s295 + $0x1278] sm:$0xff]
        %v939 = vld [vmem:[%s295 + $0x1280] sm:$0xff]
        %v940 = vld [vmem:[%s295 + $0x1288] sm:$0xff]
        %v941 = vld [vmem:[%s295 + $0x1290] sm:$0xff]
        %v942 = vld [vmem:[%s295 + $0x1298] sm:$0xff]
        %v943 = vld [vmem:[%s295 + $0x12a0] sm:$0xff]
        %v944 = vld [vmem:[%s295 + $0x12a8] sm:$0xff]
        %v945 = vld [vmem:[%s295 + $0x12b0] sm:$0xff]
        %v946 = vld [vmem:[%s295 + $0x12b8] sm:$0xff]
        %v947 = vld [vmem:[%s295 + $0x12c0] sm:$0xff]
        %v948 = vld [vmem:[%s295 + $0x12c8] sm:$0xff]
        %v949 = vld [vmem:[%s295 + $0x12d0] sm:$0xff]
        %v950 = vld [vmem:[%s295 + $0x12d8] sm:$0xff]
        %v951 = vld [vmem:[%s295 + $0x12e0] sm:$0xff]
        %v952 = vld [vmem:[%s295 + $0x12e8] sm:$0xff]
        %v953 = vld [vmem:[%s295 + $0x12f0] sm:$0xff]
        %v954 = vld [vmem:[%s295 + $0x12f8] sm:$0xff]
        %v955 = vld [vmem:[%s295 + $0x1300] sm:$0xff]
        %v956 = vld [vmem:[%s295 + $0x1308] sm:$0xff]
        %v957 = vld [vmem:[%s295 + $0x1310] sm:$0xff]
        %v958 = vld [vmem:[%s295 + $0x1318] sm:$0xff]
        %v959 = vld [vmem:[%s295 + $0x1320] sm:$0xff]
        %v960 = vld [vmem:[%s295 + $0x1328] sm:$0xff]
        %v961 = vld [vmem:[%s295 + $0x1330] sm:$0xff]
        %v962 = vld [vmem:[%s295 + $0x1338] sm:$0xff]
        %v963 = vld [vmem:[%s295 + $0x1340] sm:$0xff]
        %v964 = vld [vmem:[%s295 + $0x1348] sm:$0xff]
        %v965 = vld [vmem:[%s295 + $0x1350] sm:$0xff]
        %v966 = vld [vmem:[%s295 + $0x1358] sm:$0xff]
        %v967 = vld [vmem:[%s295 + $0x1360] sm:$0xff]
        %v968 = vld [vmem:[%s295 + $0x1368] sm:$0xff]
        %v969 = vld [vmem:[%s295 + $0x1370] sm:$0xff]
        %v970 = vld [vmem:[%s295 + $0x1378] sm:$0xff]
        %v971 = vld [vmem:[%s295 + $0x1380] sm:$0xff]
        %v972 = vld [vmem:[%s295 + $0x1388] sm:$0xff]
        %v973 = vld [vmem:[%s295 + $0x1390] sm:$0xff]
        %v974 = vld [vmem:[%s295 + $0x1398] sm:$0xff]
        %v975 = vld [vmem:[%s295 + $0x13a0] sm:$0xff]
        %v976 = vld [vmem:[%s295 + $0x13a8] sm:$0xff]
        %v977 = vld [vmem:[%s295 + $0x13b0] sm:$0xff]
        %v978 = vld [vmem:[%s295 + $0x13b8] sm:$0xff]
        %v979 = vld [vmem:[%s295 + $0x13c0] sm:$0xff]
        %v980 = vld [vmem:[%s295 + $0x13c8] sm:$0xff]
        %v981 = vld [vmem:[%s295 + $0x13d0] sm:$0xff]
        %v982 = vld [vmem:[%s295 + $0x13d8] sm:$0xff]
        %v983 = vld [vmem:[%s295 + $0x13e0] sm:$0xff]
        %v984 = vld [vmem:[%s295 + $0x13e8] sm:$0xff]
        %v985 = vld [vmem:[%s295 + $0x13f0] sm:$0xff]
        %v986 = vld [vmem:[%s295 + $0x13f8] sm:$0xff]
        %v987 = vld [vmem:[%s295 + $0x1400] sm:$0xff]
        %v988 = vld [vmem:[%s295 + $0x1408] sm:$0xff]
        %v989 = vld [vmem:[%s295 + $0x1410] sm:$0xff]
        %v990 = vld [vmem:[%s295 + $0x1418] sm:$0xff]
        %v991 = vld [vmem:[%s295 + $0x1420] sm:$0xff]
        %v992 = vld [vmem:[%s295 + $0x1428] sm:$0xff]
        %v993 = vld [vmem:[%s295 + $0x1430] sm:$0xff]
        %v994 = vld [vmem:[%s295 + $0x1438] sm:$0xff]
        %v995 = vld [vmem:[%s295 + $0x1440] sm:$0xff]
        %v996 = vld [vmem:[%s295 + $0x1448] sm:$0xff]
        %v997 = vld [vmem:[%s295 + $0x1450] sm:$0xff]
        %v998 = vld [vmem:[%s295 + $0x1458] sm:$0xff]
        %v999 = vld [vmem:[%s295 + $0x1460] sm:$0xff]
        %v1000 = vld [vmem:[%s295 + $0x1468] sm:$0xff]
        %v1001 = vld [vmem:[%s295 + $0x1470] sm:$0xff]
        %v1002 = vld [vmem:[%s295 + $0x1478] sm:$0xff]
        %v1003 = vld [vmem:[%s295 + $0x1480] sm:$0xff]
        %v1004 = vld [vmem:[%s295 + $0x1488] sm:$0xff]
        %v1005 = vld [vmem:[%s295 + $0x1490] sm:$0xff]
        %v1006 = vld [vmem:[%s295 + $0x1498] sm:$0xff]
        %v1007 = vld [vmem:[%s295 + $0x14a0] sm:$0xff]
        %v1008 = vld [vmem:[%s295 + $0x14a8] sm:$0xff]
        %v1009 = vld [vmem:[%s295 + $0x14b0] sm:$0xff]
        %v1010 = vld [vmem:[%s295 + $0x14b8] sm:$0xff]
        %v1011 = vld [vmem:[%s295 + $0x14c0] sm:$0xff]
        %v1012 = vld [vmem:[%s295 + $0x14c8] sm:$0xff]
        %v1013 = vld [vmem:[%s295 + $0x14d0] sm:$0xff]
        %v1014 = vld [vmem:[%s295 + $0x14d8] sm:$0xff]
        %v1015 = vld [vmem:[%s295 + $0x14e0] sm:$0xff]
        %v1016 = vld [vmem:[%s295 + $0x14e8] sm:$0xff]
        %v1017 = vld [vmem:[%s295 + $0x14f0] sm:$0xff]
        %v1018 = vld [vmem:[%s295 + $0x14f8] sm:$0xff]
        %v1019 = vld [vmem:[%s295 + $0x1500] sm:$0xff]
        %v1020 = vld [vmem:[%s295 + $0x1508] sm:$0xff]
        %v1021 = vld [vmem:[%s295 + $0x1510] sm:$0xff]
        %v1022 = vld [vmem:[%s295 + $0x1518] sm:$0xff]
        %v1023 = vld [vmem:[%s295 + $0x1520] sm:$0xff]
        %v1024 = vld [vmem:[%s295 + $0x1528] sm:$0xff]
        %v1025 = vld [vmem:[%s295 + $0x1530] sm:$0xff]
        %v1026 = vld [vmem:[%s295 + $0x1538] sm:$0xff]
        %v1027 = vld [vmem:[%s295 + $0x1540] sm:$0xff]
        %v1028 = vld [vmem:[%s295 + $0x1548] sm:$0xff]
        %v1029 = vld [vmem:[%s295 + $0x1550] sm:$0xff]
        %v1030 = vld [vmem:[%s295 + $0x1558] sm:$0xff]
        %v1031 = vld [vmem:[%s295 + $0x1560] sm:$0xff]
        %v1032 = vld [vmem:[%s295 + $0x1568] sm:$0xff]
        %v1033 = vld [vmem:[%s295 + $0x1570] sm:$0xff]
        %v1034 = vld [vmem:[%s295 + $0x1578] sm:$0xff]
        %v1035 = vld [vmem:[%s295 + $0x1580] sm:$0xff]
        %v1036 = vld [vmem:[%s295 + $0x1588] sm:$0xff]
        %v1037 = vld [vmem:[%s295 + $0x1590] sm:$0xff]
        %v1038 = vld [vmem:[%s295 + $0x1598] sm:$0xff]
        %v1039 = vld [vmem:[%s295 + $0x15a0] sm:$0xff]
        %v1040 = vld [vmem:[%s295 + $0x15a8] sm:$0xff]
        %v1041 = vld [vmem:[%s295 + $0x15b0] sm:$0xff]
        %v1042 = vld [vmem:[%s295 + $0x15b8] sm:$0xff]
        %v1043 = vld [vmem:[%s295 + $0x15c0] sm:$0xff]
        %v1044 = vld [vmem:[%s295 + $0x15c8] sm:$0xff]
        %v1045 = vld [vmem:[%s295 + $0x15d0] sm:$0xff]
        %v1046 = vld [vmem:[%s295 + $0x15d8] sm:$0xff]
        %v1047 = vld [vmem:[%s295 + $0x15e0] sm:$0xff]
        %v1048 = vld [vmem:[%s295 + $0x15e8] sm:$0xff]
        %v1049 = vld [vmem:[%s295 + $0x15f0] sm:$0xff]
        %v1050 = vld [vmem:[%s295 + $0x15f8] sm:$0xff]
        %v1051 = vld [vmem:[%s295 + $0x1600] sm:$0xff]
        %v1052 = vld [vmem:[%s295 + $0x1608] sm:$0xff]
        %v1053 = vld [vmem:[%s295 + $0x1610] sm:$0xff]
        %v1054 = vld [vmem:[%s295 + $0x1618] sm:$0xff]
        %v1055 = vld [vmem:[%s295 + $0x1620] sm:$0xff]
        %v1056 = vld [vmem:[%s295 + $0x1628] sm:$0xff]
        %v1057 = vld [vmem:[%s295 + $0x1630] sm:$0xff]
        %v1058 = vld [vmem:[%s295 + $0x1638] sm:$0xff]
        %v1059 = vld [vmem:[%s295 + $0x1640] sm:$0xff]
        %v1060 = vld [vmem:[%s295 + $0x1648] sm:$0xff]
        %v1061 = vld [vmem:[%s295 + $0x1650] sm:$0xff]
        %v1062 = vld [vmem:[%s295 + $0x1658] sm:$0xff]
        %v1063 = vld [vmem:[%s295 + $0x1660] sm:$0xff]
        %v1064 = vld [vmem:[%s295 + $0x1668] sm:$0xff]
        %v1065 = vld [vmem:[%s295 + $0x1670] sm:$0xff]
        %v1066 = vld [vmem:[%s295 + $0x1678] sm:$0xff]
        %v1067 = vld [vmem:[%s295 + $0x1680] sm:$0xff]
        %v1068 = vld [vmem:[%s295 + $0x1688] sm:$0xff]
        %v1069 = vld [vmem:[%s295 + $0x1690] sm:$0xff]
        %v1070 = vld [vmem:[%s295 + $0x1698] sm:$0xff]
        %v1071 = vld [vmem:[%s295 + $0x16a0] sm:$0xff]
        %v1072 = vld [vmem:[%s295 + $0x16a8] sm:$0xff]
        %v1073 = vld [vmem:[%s295 + $0x16b0] sm:$0xff]
        %v1074 = vld [vmem:[%s295 + $0x16b8] sm:$0xff]
        %v1075 = vld [vmem:[%s295 + $0x16c0] sm:$0xff]
        %v1076 = vld [vmem:[%s295 + $0x16c8] sm:$0xff]
        %v1077 = vld [vmem:[%s295 + $0x16d0] sm:$0xff]
        %v1078 = vld [vmem:[%s295 + $0x16d8] sm:$0xff]
        %v1079 = vld [vmem:[%s295 + $0x16e0] sm:$0xff]
        %v1080 = vld [vmem:[%s295 + $0x16e8] sm:$0xff]
        %v1081 = vld [vmem:[%s295 + $0x16f0] sm:$0xff]
        %v1082 = vld [vmem:[%s295 + $0x16f8] sm:$0xff]
        %v1083 = vld [vmem:[%s295 + $0x1700] sm:$0xff]
        %v1084 = vld [vmem:[%s295 + $0x1708] sm:$0xff]
        %v1085 = vld [vmem:[%s295 + $0x1710] sm:$0xff]
        %v1086 = vld [vmem:[%s295 + $0x1718] sm:$0xff]
        %v1087 = vld [vmem:[%s295 + $0x1720] sm:$0xff]
        %v1088 = vld [vmem:[%s295 + $0x1728] sm:$0xff]
        %v1089 = vld [vmem:[%s295 + $0x1730] sm:$0xff]
        %v1090 = vld [vmem:[%s295 + $0x1738] sm:$0xff]
        %v1091 = vld [vmem:[%s295 + $0x1740] sm:$0xff]
        %v1092 = vld [vmem:[%s295 + $0x1748] sm:$0xff]
        %v1093 = vld [vmem:[%s295 + $0x1750] sm:$0xff]
        %v1094 = vld [vmem:[%s295 + $0x1758] sm:$0xff]
        %v1095 = vld [vmem:[%s295 + $0x1760] sm:$0xff]
        %v1096 = vld [vmem:[%s295 + $0x1768] sm:$0xff]
        %v1097 = vld [vmem:[%s295 + $0x1770] sm:$0xff]
        %v1098 = vld [vmem:[%s295 + $0x1778] sm:$0xff]
        %v1099 = vld [vmem:[%s295 + $0x1780] sm:$0xff]
        %v1100 = vld [vmem:[%s295 + $0x1788] sm:$0xff]
        %v1101 = vld [vmem:[%s295 + $0x1790] sm:$0xff]
        %v1102 = vld [vmem:[%s295 + $0x1798] sm:$0xff]
        %v1103 = vld [vmem:[%s295 + $0x17a0] sm:$0xff]
        %v1104 = vld [vmem:[%s295 + $0x17a8] sm:$0xff]
        %v1105 = vld [vmem:[%s295 + $0x17b0] sm:$0xff]
        %v1106 = vld [vmem:[%s295 + $0x17b8] sm:$0xff]
        %v1107 = vld [vmem:[%s295 + $0x17c0] sm:$0xff]
        %v1108 = vld [vmem:[%s295 + $0x17c8] sm:$0xff]
        %v1109 = vld [vmem:[%s295 + $0x17d0] sm:$0xff]
        %v1110 = vld [vmem:[%s295 + $0x17d8] sm:$0xff]
        %v1111 = vld [vmem:[%s295 + $0x17e0] sm:$0xff]
        %v1112 = vld [vmem:[%s295 + $0x17e8] sm:$0xff]
        %v1113 = vld [vmem:[%s295 + $0x17f0] sm:$0xff]
        %v1114 = vld [vmem:[%s295 + $0x17f8] sm:$0xff]
        %v1115 = vld [vmem:[%s295 + $0x1800] sm:$0xff]
        %v1116 = vld [vmem:[%s295 + $0x1808] sm:$0xff]
        %v1117 = vld [vmem:[%s295 + $0x1810] sm:$0xff]
        %v1118 = vld [vmem:[%s295 + $0x1818] sm:$0xff]
        %v1119 = vld [vmem:[%s295 + $0x1820] sm:$0xff]
        %v1120 = vld [vmem:[%s295 + $0x1828] sm:$0xff]
        %v1121 = vld [vmem:[%s295 + $0x1830] sm:$0xff]
        %v1122 = vld [vmem:[%s295 + $0x1838] sm:$0xff]
        %v1123 = vld [vmem:[%s295 + $0x1840] sm:$0xff]
        %v1124 = vld [vmem:[%s295 + $0x1848] sm:$0xff]
        %v1125 = vld [vmem:[%s295 + $0x1850] sm:$0xff]
        %v1126 = vld [vmem:[%s295 + $0x1858] sm:$0xff]
        %v1127 = vld [vmem:[%s295 + $0x1860] sm:$0xff]
        %v1128 = vld [vmem:[%s295 + $0x1868] sm:$0xff]
        %v1129 = vld [vmem:[%s295 + $0x1870] sm:$0xff]
        %v1130 = vld [vmem:[%s295 + $0x1878] sm:$0xff]
        %v1131 = vld [vmem:[%s337] sm:$0x3]
        %v1133 = vlaneseq
        %v1134 = vshrl.u32 %v1133, 7
        %v1135 = vsub.s32 0, %v1134
        %v1136 = vrot.slane %v1131, %v1135
        %v1137 = vlaneseq
        %v1138 = vshrl.u32 %v1137, 7
        %v1139 = vsub.s32 1, %v1138
        %v1140 = vrot.slane %v1131, %v1139
        %v1150 = vcombine.high %v340, %v340
        %v1152 = vunpack.c.l.s4 1966171168
        %v1153 = vunpack.c.0.s8 %v1152
        %v1154 = vlaneseq
        %v1155 = vshrl.u32 %v1154, 7
        %v1156 = vsub.s32 %v1153, %v1155
        %v1157 = vrot.slane %v340, %v1156
        %v1159 = vunpack.c.l.s4 1966171168
        %v1160 = vunpack.c.0.s8 %v1159
        %v1161 = vlaneseq
        %v1162 = vshrl.u32 %v1161, 7
        %v1163 = vsub.s32 %v1160, %v1162
        %v1164 = vrot.slane %v1150, %v1163
        %v1165 = vcombine.high %v1157, %v1157
        %v1166 = vcombine.high %v1164, %v1164
        %v1168 = vunpack.c.l.s4 1966171168
        %v1169 = vunpack.c.0.s8 %v1168
        %v1170 = vlaneseq
        %v1171 = vshrl.u32 %v1170, 7
        %v1172 = vsub.s32 %v1169, %v1171
        %v1173 = vrot.slane %v1157, %v1172
        %v1175 = vunpack.c.l.s4 1966171168
        %v1176 = vunpack.c.0.s8 %v1175
        %v1177 = vlaneseq
        %v1178 = vshrl.u32 %v1177, 7
        %v1179 = vsub.s32 %v1176, %v1178
        %v1180 = vrot.slane %v1164, %v1179
        %v1182 = vunpack.c.l.s4 1966171168
        %v1183 = vunpack.c.0.s8 %v1182
        %v1184 = vlaneseq
        %v1185 = vshrl.u32 %v1184, 7
        %v1186 = vsub.s32 %v1183, %v1185
        %v1187 = vrot.slane %v1165, %v1186
        %v1189 = vunpack.c.l.s4 1966171168
        %v1190 = vunpack.c.0.s8 %v1189
        %v1191 = vlaneseq
        %v1192 = vshrl.u32 %v1191, 7
        %v1193 = vsub.s32 %v1190, %v1192
        %v1194 = vrot.slane %v1166, %v1193
        %v1195 = vcombine.high %v1173, %v1173
        %v1196 = vcombine.high %v1180, %v1180
        %v1197 = vcombine.high %v1187, %v1187
        %v1198 = vcombine.high %v1194, %v1194
        %v1199 = vcombine.high %v341, %v341
        %v1201 = vunpack.c.l.s4 1966171168
        %v1202 = vunpack.c.0.s8 %v1201
        %v1203 = vlaneseq
        %v1204 = vshrl.u32 %v1203, 7
        %v1205 = vsub.s32 %v1202, %v1204
        %v1206 = vrot.slane %v341, %v1205
        %v1208 = vunpack.c.l.s4 1966171168
        %v1209 = vunpack.c.0.s8 %v1208
        %v1210 = vlaneseq
        %v1211 = vshrl.u32 %v1210, 7
        %v1212 = vsub.s32 %v1209, %v1211
        %v1213 = vrot.slane %v1199, %v1212
        %v1214 = vcombine.high %v1206, %v1206
        %v1215 = vcombine.high %v1213, %v1213
        %v1217 = vunpack.c.l.s4 1966171168
        %v1218 = vunpack.c.0.s8 %v1217
        %v1219 = vlaneseq
        %v1220 = vshrl.u32 %v1219, 7
        %v1221 = vsub.s32 %v1218, %v1220
        %v1222 = vrot.slane %v1206, %v1221
        %v1224 = vunpack.c.l.s4 1966171168
        %v1225 = vunpack.c.0.s8 %v1224
        %v1226 = vlaneseq
        %v1227 = vshrl.u32 %v1226, 7
        %v1228 = vsub.s32 %v1225, %v1227
        %v1229 = vrot.slane %v1213, %v1228
        %v1231 = vunpack.c.l.s4 1966171168
        %v1232 = vunpack.c.0.s8 %v1231
        %v1233 = vlaneseq
        %v1234 = vshrl.u32 %v1233, 7
        %v1235 = vsub.s32 %v1232, %v1234
        %v1236 = vrot.slane %v1214, %v1235
        %v1238 = vunpack.c.l.s4 1966171168
        %v1239 = vunpack.c.0.s8 %v1238
        %v1240 = vlaneseq
        %v1241 = vshrl.u32 %v1240, 7
        %v1242 = vsub.s32 %v1239, %v1241
        %v1243 = vrot.slane %v1215, %v1242
        %v1244 = vcombine.high %v1222, %v1222
        %v1245 = vcombine.high %v1229, %v1229
        %v1246 = vcombine.high %v1236, %v1236
        %v1247 = vcombine.high %v1243, %v1243
        %v1248 = vcombine.high %v342, %v342
        %v1250 = vunpack.c.l.s4 1966171168
        %v1251 = vunpack.c.0.s8 %v1250
        %v1252 = vlaneseq
        %v1253 = vshrl.u32 %v1252, 7
        %v1254 = vsub.s32 %v1251, %v1253
        %v1255 = vrot.slane %v342, %v1254
        %v1257 = vunpack.c.l.s4 1966171168
        %v1258 = vunpack.c.0.s8 %v1257
        %v1259 = vlaneseq
        %v1260 = vshrl.u32 %v1259, 7
        %v1261 = vsub.s32 %v1258, %v1260
        %v1262 = vrot.slane %v1248, %v1261
        %v1263 = vcombine.high %v1255, %v1255
        %v1264 = vcombine.high %v1262, %v1262
        %v1266 = vunpack.c.l.s4 1966171168
        %v1267 = vunpack.c.0.s8 %v1266
        %v1268 = vlaneseq
        %v1269 = vshrl.u32 %v1268, 7
        %v1270 = vsub.s32 %v1267, %v1269
        %v1271 = vrot.slane %v1255, %v1270
        %v1273 = vunpack.c.l.s4 1966171168
        %v1274 = vunpack.c.0.s8 %v1273
        %v1275 = vlaneseq
        %v1276 = vshrl.u32 %v1275, 7
        %v1277 = vsub.s32 %v1274, %v1276
        %v1278 = vrot.slane %v1262, %v1277
        %v1280 = vunpack.c.l.s4 1966171168
        %v1281 = vunpack.c.0.s8 %v1280
        %v1282 = vlaneseq
        %v1283 = vshrl.u32 %v1282, 7
        %v1284 = vsub.s32 %v1281, %v1283
        %v1285 = vrot.slane %v1263, %v1284
        %v1287 = vunpack.c.l.s4 1966171168
        %v1288 = vunpack.c.0.s8 %v1287
        %v1289 = vlaneseq
        %v1290 = vshrl.u32 %v1289, 7
        %v1291 = vsub.s32 %v1288, %v1290
        %v1292 = vrot.slane %v1264, %v1291
        %v1293 = vcombine.high %v1271, %v1271
        %v1294 = vcombine.high %v1278, %v1278
        %v1295 = vcombine.high %v1285, %v1285
        %v1296 = vcombine.high %v1292, %v1292
        %v1297 = vcombine.high %v343, %v343
        %v1299 = vunpack.c.l.s4 1966171168
        %v1300 = vunpack.c.0.s8 %v1299
        %v1301 = vlaneseq
        %v1302 = vshrl.u32 %v1301, 7
        %v1303 = vsub.s32 %v1300, %v1302
        %v1304 = vrot.slane %v343, %v1303
        %v1306 = vunpack.c.l.s4 1966171168
        %v1307 = vunpack.c.0.s8 %v1306
        %v1308 = vlaneseq
        %v1309 = vshrl.u32 %v1308, 7
        %v1310 = vsub.s32 %v1307, %v1309
        %v1311 = vrot.slane %v1297, %v1310
        %v1312 = vcombine.high %v1304, %v1304
        %v1313 = vcombine.high %v1311, %v1311
        %v1315 = vunpack.c.l.s4 1966171168
        %v1316 = vunpack.c.0.s8 %v1315
        %v1317 = vlaneseq
        %v1318 = vshrl.u32 %v1317, 7
        %v1319 = vsub.s32 %v1316, %v1318
        %v1320 = vrot.slane %v1304, %v1319
        %v1322 = vunpack.c.l.s4 1966171168
        %v1323 = vunpack.c.0.s8 %v1322
        %v1324 = vlaneseq
        %v1325 = vshrl.u32 %v1324, 7
        %v1326 = vsub.s32 %v1323, %v1325
        %v1327 = vrot.slane %v1311, %v1326
        %v1329 = vunpack.c.l.s4 1966171168
        %v1330 = vunpack.c.0.s8 %v1329
        %v1331 = vlaneseq
        %v1332 = vshrl.u32 %v1331, 7
        %v1333 = vsub.s32 %v1330, %v1332
        %v1334 = vrot.slane %v1312, %v1333
        %v1336 = vunpack.c.l.s4 1966171168
        %v1337 = vunpack.c.0.s8 %v1336
        %v1338 = vlaneseq
        %v1339 = vshrl.u32 %v1338, 7
        %v1340 = vsub.s32 %v1337, %v1339
        %v1341 = vrot.slane %v1313, %v1340
        %v1342 = vcombine.high %v1320, %v1320
        %v1343 = vcombine.high %v1327, %v1327
        %v1344 = vcombine.high %v1334, %v1334
        %v1345 = vcombine.high %v1341, %v1341
        %v1346 = vcombine.high %v344, %v344
        %v1348 = vunpack.c.l.s4 1966171168
        %v1349 = vunpack.c.0.s8 %v1348
        %v1350 = vlaneseq
        %v1351 = vshrl.u32 %v1350, 7
        %v1352 = vsub.s32 %v1349, %v1351
        %v1353 = vrot.slane %v344, %v1352
        %v1355 = vunpack.c.l.s4 1966171168
        %v1356 = vunpack.c.0.s8 %v1355
        %v1357 = vlaneseq
        %v1358 = vshrl.u32 %v1357, 7
        %v1359 = vsub.s32 %v1356, %v1358
        %v1360 = vrot.slane %v1346, %v1359
        %v1361 = vcombine.high %v1353, %v1353
        %v1362 = vcombine.high %v1360, %v1360
        %v1364 = vunpack.c.l.s4 1966171168
        %v1365 = vunpack.c.0.s8 %v1364
        %v1366 = vlaneseq
        %v1367 = vshrl.u32 %v1366, 7
        %v1368 = vsub.s32 %v1365, %v1367
        %v1369 = vrot.slane %v1353, %v1368
        %v1371 = vunpack.c.l.s4 1966171168
        %v1372 = vunpack.c.0.s8 %v1371
        %v1373 = vlaneseq
        %v1374 = vshrl.u32 %v1373, 7
        %v1375 = vsub.s32 %v1372, %v1374
        %v1376 = vrot.slane %v1360, %v1375
        %v1378 = vunpack.c.l.s4 1966171168
        %v1379 = vunpack.c.0.s8 %v1378
        %v1380 = vlaneseq
        %v1381 = vshrl.u32 %v1380, 7
        %v1382 = vsub.s32 %v1379, %v1381
        %v1383 = vrot.slane %v1361, %v1382
        %v1385 = vunpack.c.l.s4 1966171168
        %v1386 = vunpack.c.0.s8 %v1385
        %v1387 = vlaneseq
        %v1388 = vshrl.u32 %v1387, 7
        %v1389 = vsub.s32 %v1386, %v1388
        %v1390 = vrot.slane %v1362, %v1389
        %v1391 = vcombine.high %v1369, %v1369
        %v1392 = vcombine.high %v1376, %v1376
        %v1393 = vcombine.high %v1383, %v1383
        %v1394 = vcombine.high %v1390, %v1390
        %v1395 = vcombine.high %v345, %v345
        %v1397 = vunpack.c.l.s4 1966171168
        %v1398 = vunpack.c.0.s8 %v1397
        %v1399 = vlaneseq
        %v1400 = vshrl.u32 %v1399, 7
        %v1401 = vsub.s32 %v1398, %v1400
        %v1402 = vrot.slane %v345, %v1401
        %v1404 = vunpack.c.l.s4 1966171168
        %v1405 = vunpack.c.0.s8 %v1404
        %v1406 = vlaneseq
        %v1407 = vshrl.u32 %v1406, 7
        %v1408 = vsub.s32 %v1405, %v1407
        %v1409 = vrot.slane %v1395, %v1408
        %v1410 = vcombine.high %v1402, %v1402
        %v1411 = vcombine.high %v1409, %v1409
        %v1413 = vunpack.c.l.s4 1966171168
        %v1414 = vunpack.c.0.s8 %v1413
        %v1415 = vlaneseq
        %v1416 = vshrl.u32 %v1415, 7
        %v1417 = vsub.s32 %v1414, %v1416
        %v1418 = vrot.slane %v1402, %v1417
        %v1420 = vunpack.c.l.s4 1966171168
        %v1421 = vunpack.c.0.s8 %v1420
        %v1422 = vlaneseq
        %v1423 = vshrl.u32 %v1422, 7
        %v1424 = vsub.s32 %v1421, %v1423
        %v1425 = vrot.slane %v1409, %v1424
        %v1427 = vunpack.c.l.s4 1966171168
        %v1428 = vunpack.c.0.s8 %v1427
        %v1429 = vlaneseq
        %v1430 = vshrl.u32 %v1429, 7
        %v1431 = vsub.s32 %v1428, %v1430
        %v1432 = vrot.slane %v1410, %v1431
        %v1434 = vunpack.c.l.s4 1966171168
        %v1435 = vunpack.c.0.s8 %v1434
        %v1436 = vlaneseq
        %v1437 = vshrl.u32 %v1436, 7
        %v1438 = vsub.s32 %v1435, %v1437
        %v1439 = vrot.slane %v1411, %v1438
        %v1440 = vcombine.high %v1418, %v1418
        %v1441 = vcombine.high %v1425, %v1425
        %v1442 = vcombine.high %v1432, %v1432
        %v1443 = vcombine.high %v1439, %v1439
        %v1445 = vunpack.c.l.s4 1966171168
        %v1446 = vunpack.c.0.s8 %v1445
        %v1447 = vlaneseq
        %v1448 = vshrl.u32 %v1447, 7
        %v1449 = vsub.s32 %v1446, %v1448
        %v1450 = vrot.slane %v346, %v1449
        %v1452 = vunpack.c.l.s4 1966171168
        %v1453 = vunpack.c.0.s8 %v1452
        %v1454 = vlaneseq
        %v1455 = vshrl.u32 %v1454, 7
        %v1456 = vsub.s32 %v1453, %v1455
        %v1457 = vrot.slane %v1450, %v1456
        %v2291 = vunpack.c.l.b16 %v347
        %v2292 = vunpack.c.h.b16 %v347
        %v2293 = vunpack.c.l.b16 %v348
        %v2294 = vunpack.c.h.b16 %v348
        %v2295 = vunpack.c.l.b16 %v349
        %v2296 = vunpack.c.h.b16 %v349
        %v2297 = vunpack.c.l.b16 %v350
        %v2298 = vunpack.c.h.b16 %v350
        %v2299 = vunpack.c.l.b16 %v351
        %v2300 = vunpack.c.h.b16 %v351
        %v2301 = vunpack.c.l.b16 %v352
        %v2302 = vunpack.c.h.b16 %v352
        %v2303 = vunpack.c.l.b16 %v353
        %v2304 = vunpack.c.h.b16 %v353
        %v2305 = vunpack.c.l.b16 %v354
        %v2306 = vunpack.c.h.b16 %v354
        %v2307 = vunpack.c.l.b16 %v355
        %v2308 = vunpack.c.h.b16 %v355
        %v2309 = vunpack.c.l.b16 %v356
        %v2310 = vunpack.c.h.b16 %v356
        %v2311 = vunpack.c.l.b16 %v357
        %v2312 = vunpack.c.h.b16 %v357
        %v2313 = vunpack.c.l.b16 %v358
        %v2314 = vunpack.c.h.b16 %v358
        %v2315 = vunpack.c.l.b16 %v359
        %v2316 = vunpack.c.h.b16 %v359
        %v2317 = vunpack.c.l.b16 %v360
        %v2318 = vunpack.c.h.b16 %v360
        %v2319 = vunpack.c.l.b16 %v361
        %v2320 = vunpack.c.h.b16 %v361
        %v2321 = vunpack.c.l.b16 %v362
        %v2322 = vunpack.c.h.b16 %v362
        %v2323 = vunpack.c.l.b16 %v363
        %v2324 = vunpack.c.h.b16 %v363
        %v2325 = vunpack.c.l.b16 %v364
        %v2326 = vunpack.c.h.b16 %v364
        %v2327 = vunpack.c.l.b16 %v365
        %v2328 = vunpack.c.h.b16 %v365
        %v2329 = vunpack.c.l.b16 %v366
        %v2330 = vunpack.c.h.b16 %v366
        %v2331 = vunpack.c.l.b16 %v367
        %v2332 = vunpack.c.h.b16 %v367
        %v2333 = vunpack.c.l.b16 %v368
        %v2334 = vunpack.c.h.b16 %v368
        %v2335 = vunpack.c.l.b16 %v369
        %v2336 = vunpack.c.h.b16 %v369
        %v2337 = vunpack.c.l.b16 %v370
        %v2338 = vunpack.c.h.b16 %v370
        %v2339 = vunpack.c.l.b16 %v371
        %v2340 = vunpack.c.h.b16 %v371
        %v2341 = vunpack.c.l.b16 %v372
        %v2342 = vunpack.c.h.b16 %v372
        %v2343 = vunpack.c.l.b16 %v373
        %v2344 = vunpack.c.h.b16 %v373
        %v2345 = vunpack.c.l.b16 %v374
        %v2346 = vunpack.c.h.b16 %v374
        %v2347 = vunpack.c.l.b16 %v375
        %v2348 = vunpack.c.h.b16 %v375
        %v2349 = vunpack.c.l.b16 %v376
        %v2350 = vunpack.c.h.b16 %v376
        %v2351 = vunpack.c.l.b16 %v377
        %v2352 = vunpack.c.h.b16 %v377
        %v2353 = vunpack.c.l.b16 %v378
        %v2354 = vunpack.c.h.b16 %v378
        %v2355 = vunpack.c.l.b16 %v379
        %v2356 = vunpack.c.h.b16 %v379
        %v2357 = vunpack.c.l.b16 %v380
        %v2358 = vunpack.c.h.b16 %v380
        %v2359 = vunpack.c.l.b16 %v381
        %v2360 = vunpack.c.h.b16 %v381
        %v2361 = vunpack.c.l.b16 %v382
        %v2362 = vunpack.c.h.b16 %v382
        %v2363 = vunpack.c.l.b16 %v383
        %v2364 = vunpack.c.h.b16 %v383
        %v2365 = vunpack.c.l.b16 %v384
        %v2366 = vunpack.c.h.b16 %v384
        %v2367 = vunpack.c.l.b16 %v385
        %v2368 = vunpack.c.h.b16 %v385
        %v2369 = vunpack.c.l.b16 %v386
        %v2370 = vunpack.c.h.b16 %v386
        %v2371 = vunpack.c.l.b16 %v387
        %v2372 = vunpack.c.h.b16 %v387
        %v2373 = vunpack.c.l.b16 %v388
        %v2374 = vunpack.c.h.b16 %v388
        %v2375 = vunpack.c.l.b16 %v389
        %v2376 = vunpack.c.h.b16 %v389
        %v2377 = vunpack.c.l.b16 %v390
        %v2378 = vunpack.c.h.b16 %v390
        %v2379 = vunpack.c.l.b16 %v391
        %v2380 = vunpack.c.h.b16 %v391
        %v2381 = vunpack.c.l.b16 %v392
        %v2382 = vunpack.c.h.b16 %v392
        %v2383 = vunpack.c.l.b16 %v393
        %v2384 = vunpack.c.h.b16 %v393
        %v2385 = vunpack.c.l.b16 %v394
        %v2386 = vunpack.c.h.b16 %v394
        %v2387 = vunpack.c.l.b16 %v395
        %v2388 = vunpack.c.h.b16 %v395
        %v2389 = vunpack.c.l.b16 %v396
        %v2390 = vunpack.c.h.b16 %v396
        %v2391 = vunpack.c.l.b16 %v397
        %v2392 = vunpack.c.h.b16 %v397
        %v2393 = vunpack.c.l.b16 %v398
        %v2394 = vunpack.c.h.b16 %v398
        %v2395 = vunpack.c.l.b16 %v399
        %v2396 = vunpack.c.h.b16 %v399
        %v2397 = vunpack.c.l.b16 %v400
        %v2398 = vunpack.c.h.b16 %v400
        %v2399 = vunpack.c.l.b16 %v401
        %v2400 = vunpack.c.h.b16 %v401
        %v2401 = vunpack.c.l.b16 %v402
        %v2402 = vunpack.c.h.b16 %v402
        %v2403 = vunpack.c.l.b16 %v403
        %v2404 = vunpack.c.h.b16 %v403
        %v2405 = vunpack.c.l.b16 %v404
        %v2406 = vunpack.c.h.b16 %v404
        %v2407 = vunpack.c.l.b16 %v405
        %v2408 = vunpack.c.h.b16 %v405
        %v2409 = vunpack.c.l.b16 %v406
        %v2410 = vunpack.c.h.b16 %v406
        %v2411 = vunpack.c.l.b16 %v407
        %v2412 = vunpack.c.h.b16 %v407
        %v2413 = vunpack.c.l.b16 %v408
        %v2414 = vunpack.c.h.b16 %v408
        %v2415 = vunpack.c.l.b16 %v409
        %v2416 = vunpack.c.h.b16 %v409
        %v2417 = vunpack.c.l.b16 %v410
        %v2418 = vunpack.c.h.b16 %v410
        %v2419 = vunpack.c.l.b16 %v411
        %v2420 = vunpack.c.h.b16 %v411
        %v2421 = vunpack.c.l.b16 %v412
        %v2422 = vunpack.c.h.b16 %v412
        %v2423 = vunpack.c.l.b16 %v413
        %v2424 = vunpack.c.h.b16 %v413
        %v2425 = vunpack.c.l.b16 %v414
        %v2426 = vunpack.c.h.b16 %v414
        %v2427 = vunpack.c.l.b16 %v415
        %v2428 = vunpack.c.h.b16 %v415
        %v2429 = vunpack.c.l.b16 %v416
        %v2430 = vunpack.c.h.b16 %v416
        %v2431 = vunpack.c.l.b16 %v417
        %v2432 = vunpack.c.h.b16 %v417
        %v2433 = vunpack.c.l.b16 %v418
        %v2434 = vunpack.c.h.b16 %v418
        %v2435 = vunpack.c.l.b16 %v419
        %v2436 = vunpack.c.h.b16 %v419
        %v2437 = vunpack.c.l.b16 %v420
        %v2438 = vunpack.c.h.b16 %v420
        %v2439 = vunpack.c.l.b16 %v421
        %v2440 = vunpack.c.h.b16 %v421
        %v2441 = vunpack.c.l.b16 %v422
        %v2442 = vunpack.c.h.b16 %v422
        %v2443 = vunpack.c.l.b16 %v423
        %v2444 = vunpack.c.h.b16 %v423
        %v2445 = vunpack.c.l.b16 %v424
        %v2446 = vunpack.c.h.b16 %v424
        %v2447 = vunpack.c.l.b16 %v425
        %v2448 = vunpack.c.h.b16 %v425
        %v2449 = vunpack.c.l.b16 %v426
        %v2450 = vunpack.c.h.b16 %v426
        %v2451 = vunpack.c.l.b16 %v427
        %v2452 = vunpack.c.h.b16 %v427
        %v2453 = vunpack.c.l.b16 %v428
        %v2454 = vunpack.c.h.b16 %v428
        %v2455 = vunpack.c.l.b16 %v429
        %v2456 = vunpack.c.h.b16 %v429
        %v2457 = vunpack.c.l.b16 %v430
        %v2458 = vunpack.c.h.b16 %v430
        %v2459 = vunpack.c.l.b16 %v431
        %v2460 = vunpack.c.h.b16 %v431
        %v2461 = vunpack.c.l.b16 %v432
        %v2462 = vunpack.c.h.b16 %v432
        %v2463 = vunpack.c.l.b16 %v433
        %v2464 = vunpack.c.h.b16 %v433
        %v2465 = vunpack.c.l.b16 %v434
        %v2466 = vunpack.c.h.b16 %v434
        %v2467 = vunpack.c.l.b16 %v435
        %v2468 = vunpack.c.h.b16 %v435
        %v2469 = vunpack.c.l.b16 %v436
        %v2470 = vunpack.c.h.b16 %v436
        %v2471 = vunpack.c.l.b16 %v437
        %v2472 = vunpack.c.h.b16 %v437
        %v2473 = vunpack.c.l.b16 %v438
        %v2474 = vunpack.c.h.b16 %v438
        %v2475 = vunpack.c.l.b16 %v439
        %v2476 = vunpack.c.h.b16 %v439
        %v2477 = vunpack.c.l.b16 %v440
        %v2478 = vunpack.c.h.b16 %v440
        %v2479 = vunpack.c.l.b16 %v441
        %v2480 = vunpack.c.h.b16 %v441
        %v2481 = vunpack.c.l.b16 %v442
        %v2482 = vunpack.c.h.b16 %v442
        %v2483 = vunpack.c.l.b16 %v443
        %v2484 = vunpack.c.h.b16 %v443
        %v2485 = vunpack.c.l.b16 %v444
        %v2486 = vunpack.c.h.b16 %v444
        %v2487 = vunpack.c.l.b16 %v445
        %v2488 = vunpack.c.h.b16 %v445
        %v2489 = vunpack.c.l.b16 %v446
        %v2490 = vunpack.c.h.b16 %v446
        %v2491 = vunpack.c.l.b16 %v447
        %v2492 = vunpack.c.h.b16 %v447
        %v2493 = vunpack.c.l.b16 %v448
        %v2494 = vunpack.c.h.b16 %v448
        %v2495 = vunpack.c.l.b16 %v449
        %v2496 = vunpack.c.h.b16 %v449
        %v2497 = vunpack.c.l.b16 %v450
        %v2498 = vunpack.c.h.b16 %v450
        %v2499 = vunpack.c.l.b16 %v451
        %v2500 = vunpack.c.h.b16 %v451
        %v2501 = vunpack.c.l.b16 %v452
        %v2502 = vunpack.c.h.b16 %v452
        %v2503 = vunpack.c.l.b16 %v453
        %v2504 = vunpack.c.h.b16 %v453
        %v2505 = vunpack.c.l.b16 %v454
        %v2506 = vunpack.c.h.b16 %v454
        %v2507 = vunpack.c.l.b16 %v455
        %v2508 = vunpack.c.h.b16 %v455
        %v2509 = vunpack.c.l.b16 %v456
        %v2510 = vunpack.c.h.b16 %v456
        %v2511 = vunpack.c.l.b16 %v457
        %v2512 = vunpack.c.h.b16 %v457
        %v2513 = vunpack.c.l.b16 %v458
        %v2514 = vunpack.c.h.b16 %v458
        %v2515 = vunpack.c.l.b16 %v459
        %v2516 = vunpack.c.h.b16 %v459
        %v2517 = vunpack.c.l.b16 %v460
        %v2518 = vunpack.c.h.b16 %v460
        %v2519 = vunpack.c.l.b16 %v461
        %v2520 = vunpack.c.h.b16 %v461
        %v2521 = vunpack.c.l.b16 %v462
        %v2522 = vunpack.c.h.b16 %v462
        %v2523 = vunpack.c.l.b16 %v463
        %v2524 = vunpack.c.h.b16 %v463
        %v2525 = vunpack.c.l.b16 %v464
        %v2526 = vunpack.c.h.b16 %v464
        %v2527 = vunpack.c.l.b16 %v465
        %v2528 = vunpack.c.h.b16 %v465
        %v2529 = vunpack.c.l.b16 %v466
        %v2530 = vunpack.c.h.b16 %v466
        %v2531 = vunpack.c.l.b16 %v467
        %v2532 = vunpack.c.h.b16 %v467
        %v2533 = vunpack.c.l.b16 %v468
        %v2534 = vunpack.c.h.b16 %v468
        %v2535 = vunpack.c.l.b16 %v469
        %v2536 = vunpack.c.h.b16 %v469
        %v2537 = vunpack.c.l.b16 %v470
        %v2538 = vunpack.c.h.b16 %v470
        %v2539 = vunpack.c.l.b16 %v471
        %v2540 = vunpack.c.h.b16 %v471
        %v2541 = vunpack.c.l.b16 %v472
        %v2542 = vunpack.c.h.b16 %v472
        %v2543 = vunpack.c.l.b16 %v473
        %v2544 = vunpack.c.h.b16 %v473
        %v2545 = vunpack.c.l.b16 %v474
        %v2546 = vunpack.c.h.b16 %v474
        %v2547 = vunpack.c.l.b16 %v475
        %v2548 = vunpack.c.h.b16 %v475
        %v2549 = vunpack.c.l.b16 %v476
        %v2550 = vunpack.c.h.b16 %v476
        %v2551 = vunpack.c.l.b16 %v477
        %v2552 = vunpack.c.h.b16 %v477
        %v2553 = vunpack.c.l.b16 %v478
        %v2554 = vunpack.c.h.b16 %v478
        %v2555 = vunpack.c.l.b16 %v479
        %v2556 = vunpack.c.h.b16 %v479
        %v2557 = vunpack.c.l.b16 %v480
        %v2558 = vunpack.c.h.b16 %v480
        %v2559 = vunpack.c.l.b16 %v481
        %v2560 = vunpack.c.h.b16 %v481
        %v2561 = vunpack.c.l.b16 %v482
        %v2562 = vunpack.c.h.b16 %v482
        %v2563 = vunpack.c.l.b16 %v483
        %v2564 = vunpack.c.h.b16 %v483
        %v2565 = vunpack.c.l.b16 %v484
        %v2566 = vunpack.c.h.b16 %v484
        %v2567 = vunpack.c.l.b16 %v485
        %v2568 = vunpack.c.h.b16 %v485
        %v2569 = vunpack.c.l.b16 %v486
        %v2570 = vunpack.c.h.b16 %v486
        %v2571 = vunpack.c.l.b16 %v487
        %v2572 = vunpack.c.h.b16 %v487
        %v2573 = vunpack.c.l.b16 %v488
        %v2574 = vunpack.c.h.b16 %v488
        %v2575 = vunpack.c.l.b16 %v489
        %v2576 = vunpack.c.h.b16 %v489
        %v2577 = vunpack.c.l.b16 %v490
        %v2578 = vunpack.c.h.b16 %v490
        %v2579 = vunpack.c.l.b16 %v491
        %v2580 = vunpack.c.h.b16 %v491
        %v2581 = vunpack.c.l.b16 %v492
        %v2582 = vunpack.c.h.b16 %v492
        %v2583 = vunpack.c.l.b16 %v493
        %v2584 = vunpack.c.h.b16 %v493
        %v2585 = vunpack.c.l.b16 %v494
        %v2586 = vunpack.c.h.b16 %v494
        %v2587 = vunpack.c.l.b16 %v495
        %v2588 = vunpack.c.h.b16 %v495
        %v2589 = vunpack.c.l.b16 %v496
        %v2590 = vunpack.c.h.b16 %v496
        %v2591 = vunpack.c.l.b16 %v497
        %v2592 = vunpack.c.h.b16 %v497
        %v2593 = vunpack.c.l.b16 %v498
        %v2594 = vunpack.c.h.b16 %v498
        %v2595 = vunpack.c.l.b16 %v499
        %v2596 = vunpack.c.h.b16 %v499
        %v2597 = vunpack.c.l.b16 %v500
        %v2598 = vunpack.c.h.b16 %v500
        %v2599 = vunpack.c.l.b16 %v501
        %v2600 = vunpack.c.h.b16 %v501
        %v2601 = vunpack.c.l.b16 %v502
        %v2602 = vunpack.c.h.b16 %v502
        %v2603 = vunpack.c.l.b16 %v503
        %v2604 = vunpack.c.h.b16 %v503
        %v2605 = vunpack.c.l.b16 %v504
        %v2606 = vunpack.c.h.b16 %v504
        %v2607 = vunpack.c.l.b16 %v505
        %v2608 = vunpack.c.h.b16 %v505
        %v2609 = vunpack.c.l.b16 %v506
        %v2610 = vunpack.c.h.b16 %v506
        %v2611 = vunpack.c.l.b16 %v507
        %v2612 = vunpack.c.h.b16 %v507
        %v2613 = vunpack.c.l.b16 %v508
        %v2614 = vunpack.c.h.b16 %v508
        %v2615 = vunpack.c.l.b16 %v509
        %v2616 = vunpack.c.h.b16 %v509
        %v2617 = vunpack.c.l.b16 %v510
        %v2618 = vunpack.c.h.b16 %v510
        %v2619 = vunpack.c.l.b16 %v511
        %v2620 = vunpack.c.h.b16 %v511
        %v2621 = vunpack.c.l.b16 %v512
        %v2622 = vunpack.c.h.b16 %v512
        %v2623 = vunpack.c.l.b16 %v513
        %v2624 = vunpack.c.h.b16 %v513
        %v2625 = vunpack.c.l.b16 %v514
        %v2626 = vunpack.c.h.b16 %v514
        %v2627 = vunpack.c.l.b16 %v515
        %v2628 = vunpack.c.h.b16 %v515
        %v2629 = vunpack.c.l.b16 %v516
        %v2630 = vunpack.c.h.b16 %v516
        %v2631 = vunpack.c.l.b16 %v517
        %v2632 = vunpack.c.h.b16 %v517
        %v2633 = vunpack.c.l.b16 %v518
        %v2634 = vunpack.c.h.b16 %v518
        %v2635 = vunpack.c.l.b16 %v519
        %v2636 = vunpack.c.h.b16 %v519
        %v2637 = vunpack.c.l.b16 %v520
        %v2638 = vunpack.c.h.b16 %v520
        %v2639 = vunpack.c.l.b16 %v521
        %v2640 = vunpack.c.h.b16 %v521
        %v2641 = vunpack.c.l.b16 %v522
        %v2642 = vunpack.c.h.b16 %v522
        %v2643 = vunpack.c.l.b16 %v523
        %v2644 = vunpack.c.h.b16 %v523
        %v2645 = vunpack.c.l.b16 %v524
        %v2646 = vunpack.c.h.b16 %v524
        %v2647 = vunpack.c.l.b16 %v525
        %v2648 = vunpack.c.h.b16 %v525
        %v2649 = vunpack.c.l.b16 %v526
        %v2650 = vunpack.c.h.b16 %v526
        %v2651 = vunpack.c.l.b16 %v527
        %v2652 = vunpack.c.h.b16 %v527
        %v2653 = vunpack.c.l.b16 %v528
        %v2654 = vunpack.c.h.b16 %v528
        %v2655 = vunpack.c.l.b16 %v529
        %v2656 = vunpack.c.h.b16 %v529
        %v2657 = vunpack.c.l.b16 %v530
        %v2658 = vunpack.c.h.b16 %v530
        %v2659 = vunpack.c.l.b16 %v531
        %v2660 = vunpack.c.h.b16 %v531
        %v2661 = vunpack.c.l.b16 %v532
        %v2662 = vunpack.c.h.b16 %v532
        %v2663 = vunpack.c.l.b16 %v533
        %v2664 = vunpack.c.h.b16 %v533
        %v2665 = vunpack.c.l.b16 %v534
        %v2666 = vunpack.c.h.b16 %v534
        %v2667 = vunpack.c.l.b16 %v535
        %v2668 = vunpack.c.h.b16 %v535
        %v2669 = vunpack.c.l.b16 %v536
        %v2670 = vunpack.c.h.b16 %v536
        %v2671 = vunpack.c.l.b16 %v537
        %v2672 = vunpack.c.h.b16 %v537
        %v2673 = vunpack.c.l.b16 %v538
        %v2674 = vunpack.c.h.b16 %v538
        %v2675 = vunpack.c.l.b16 %v539
        %v2676 = vunpack.c.h.b16 %v539
        %v2677 = vunpack.c.l.b16 %v540
        %v2678 = vunpack.c.h.b16 %v540
        %v2679 = vunpack.c.l.b16 %v541
        %v2680 = vunpack.c.h.b16 %v541
        %v2681 = vunpack.c.l.b16 %v542
        %v2682 = vunpack.c.h.b16 %v542
        %v2683 = vunpack.c.l.b16 %v543
        %v2684 = vunpack.c.h.b16 %v543
        %v2685 = vunpack.c.l.b16 %v544
        %v2686 = vunpack.c.h.b16 %v544
        %v2687 = vunpack.c.l.b16 %v545
        %v2688 = vunpack.c.h.b16 %v545
        %v2689 = vunpack.c.l.b16 %v546
        %v2690 = vunpack.c.h.b16 %v546
        %v2691 = vunpack.c.l.b16 %v547
        %v2692 = vunpack.c.h.b16 %v547
        %v2693 = vunpack.c.l.b16 %v548
        %v2694 = vunpack.c.h.b16 %v548
        %v2695 = vunpack.c.l.b16 %v549
        %v2696 = vunpack.c.h.b16 %v549
        %v2697 = vunpack.c.l.b16 %v550
        %v2698 = vunpack.c.h.b16 %v550
        %v2699 = vunpack.c.l.b16 %v551
        %v2700 = vunpack.c.h.b16 %v551
        %v2701 = vunpack.c.l.b16 %v552
        %v2702 = vunpack.c.h.b16 %v552
        %v2703 = vunpack.c.l.b16 %v553
        %v2704 = vunpack.c.h.b16 %v553
        %v2705 = vunpack.c.l.b16 %v554
        %v2706 = vunpack.c.h.b16 %v554
        %v2707 = vunpack.c.l.b16 %v555
        %v2708 = vunpack.c.h.b16 %v555
        %v2709 = vunpack.c.l.b16 %v556
        %v2710 = vunpack.c.h.b16 %v556
        %v2711 = vunpack.c.l.b16 %v557
        %v2712 = vunpack.c.h.b16 %v557
        %v2713 = vunpack.c.l.b16 %v558
        %v2714 = vunpack.c.h.b16 %v558
        %v2715 = vunpack.c.l.b16 %v559
        %v2716 = vunpack.c.h.b16 %v559
        %v2717 = vunpack.c.l.b16 %v560
        %v2718 = vunpack.c.h.b16 %v560
        %v2719 = vunpack.c.l.b16 %v561
        %v2720 = vunpack.c.h.b16 %v561
        %v2721 = vunpack.c.l.b16 %v562
        %v2722 = vunpack.c.h.b16 %v562
        %v2723 = vunpack.c.l.b16 %v563
        %v2724 = vunpack.c.h.b16 %v563
        %v2725 = vunpack.c.l.b16 %v564
        %v2726 = vunpack.c.h.b16 %v564
        %v2727 = vunpack.c.l.b16 %v565
        %v2728 = vunpack.c.h.b16 %v565
        %v2729 = vunpack.c.l.b16 %v566
        %v2730 = vunpack.c.h.b16 %v566
        %v2731 = vunpack.c.l.b16 %v567
        %v2732 = vunpack.c.h.b16 %v567
        %v2733 = vunpack.c.l.b16 %v568
        %v2734 = vunpack.c.h.b16 %v568
        %v2735 = vunpack.c.l.b16 %v569
        %v2736 = vunpack.c.h.b16 %v569
        %v2737 = vunpack.c.l.b16 %v570
        %v2738 = vunpack.c.h.b16 %v570
        %v2739 = vunpack.c.l.b16 %v571
        %v2740 = vunpack.c.h.b16 %v571
        %v2741 = vunpack.c.l.b16 %v572
        %v2742 = vunpack.c.h.b16 %v572
        %v2743 = vunpack.c.l.b16 %v573
        %v2744 = vunpack.c.h.b16 %v573
        %v2745 = vunpack.c.l.b16 %v574
        %v2746 = vunpack.c.h.b16 %v574
        %v2747 = vunpack.c.l.b16 %v575
        %v2748 = vunpack.c.h.b16 %v575
        %v2749 = vunpack.c.l.b16 %v576
        %v2750 = vunpack.c.h.b16 %v576
        %v2751 = vunpack.c.l.b16 %v577
        %v2752 = vunpack.c.h.b16 %v577
        %v2753 = vunpack.c.l.b16 %v578
        %v2754 = vunpack.c.h.b16 %v578
        %v2755 = vunpack.c.l.b16 %v579
        %v2756 = vunpack.c.h.b16 %v579
        %v2757 = vunpack.c.l.b16 %v580
        %v2758 = vunpack.c.h.b16 %v580
        %v2759 = vunpack.c.l.b16 %v581
        %v2760 = vunpack.c.h.b16 %v581
        %v2761 = vunpack.c.l.b16 %v582
        %v2762 = vunpack.c.h.b16 %v582
        %v2763 = vunpack.c.l.b16 %v583
        %v2764 = vunpack.c.h.b16 %v583
        %v2765 = vunpack.c.l.b16 %v584
        %v2766 = vunpack.c.h.b16 %v584
        %v2767 = vunpack.c.l.b16 %v585
        %v2768 = vunpack.c.h.b16 %v585
        %v2769 = vunpack.c.l.b16 %v586
        %v2770 = vunpack.c.h.b16 %v586
        %v2771 = vunpack.c.l.b16 %v587
        %v2772 = vunpack.c.h.b16 %v587
        %v2773 = vunpack.c.l.b16 %v588
        %v2774 = vunpack.c.h.b16 %v588
        %v2775 = vunpack.c.l.b16 %v589
        %v2776 = vunpack.c.h.b16 %v589
        %v2777 = vunpack.c.l.b16 %v590
        %v2778 = vunpack.c.h.b16 %v590
        %v2779 = vunpack.c.l.b16 %v591
        %v2780 = vunpack.c.h.b16 %v591
        %v2781 = vunpack.c.l.b16 %v592
        %v2782 = vunpack.c.h.b16 %v592
        %v2783 = vunpack.c.l.b16 %v593
        %v2784 = vunpack.c.h.b16 %v593
        %v2785 = vunpack.c.l.b16 %v594
        %v2786 = vunpack.c.h.b16 %v594
        %v2787 = vunpack.c.l.b16 %v595
        %v2788 = vunpack.c.h.b16 %v595
        %v2789 = vunpack.c.l.b16 %v596
        %v2790 = vunpack.c.h.b16 %v596
        %v2791 = vunpack.c.l.b16 %v597
        %v2792 = vunpack.c.h.b16 %v597
        %v2793 = vunpack.c.l.b16 %v598
        %v2794 = vunpack.c.h.b16 %v598
        %v2795 = vunpack.c.l.b16 %v599
        %v2796 = vunpack.c.h.b16 %v599
        %v2797 = vunpack.c.l.b16 %v600
        %v2798 = vunpack.c.h.b16 %v600
        %v2799 = vunpack.c.l.b16 %v601
        %v2800 = vunpack.c.h.b16 %v601
        %v2801 = vunpack.c.l.b16 %v602
        %v2802 = vunpack.c.h.b16 %v602
        %v2803 = vunpack.c.l.b16 %v603
        %v2804 = vunpack.c.h.b16 %v603
        %v2805 = vunpack.c.l.b16 %v604
        %v2806 = vunpack.c.h.b16 %v604
        %v2807 = vunpack.c.l.b16 %v605
        %v2808 = vunpack.c.h.b16 %v605
        %v2809 = vunpack.c.l.b16 %v606
        %v2810 = vunpack.c.h.b16 %v606
        %v2811 = vunpack.c.l.b16 %v607
        %v2812 = vunpack.c.h.b16 %v607
        %v2813 = vunpack.c.l.b16 %v608
        %v2814 = vunpack.c.h.b16 %v608
        %v2815 = vunpack.c.l.b16 %v609
        %v2816 = vunpack.c.h.b16 %v609
        %v2817 = vunpack.c.l.b16 %v610
        %v2818 = vunpack.c.h.b16 %v610
        %v2819 = vunpack.c.l.b16 %v611
        %v2820 = vunpack.c.h.b16 %v611
        %v2821 = vunpack.c.l.b16 %v612
        %v2822 = vunpack.c.h.b16 %v612
        %v2823 = vunpack.c.l.b16 %v613
        %v2824 = vunpack.c.h.b16 %v613
        %v2825 = vunpack.c.l.b16 %v614
        %v2826 = vunpack.c.h.b16 %v614
        %v2827 = vunpack.c.l.b16 %v615
        %v2828 = vunpack.c.h.b16 %v615
        %v2829 = vunpack.c.l.b16 %v616
        %v2830 = vunpack.c.h.b16 %v616
        %v2831 = vunpack.c.l.b16 %v617
        %v2832 = vunpack.c.h.b16 %v617
        %v2833 = vunpack.c.l.b16 %v618
        %v2834 = vunpack.c.h.b16 %v618
        %v2835 = vunpack.c.l.b16 %v619
        %v2836 = vunpack.c.h.b16 %v619
        %v2837 = vunpack.c.l.b16 %v620
        %v2838 = vunpack.c.h.b16 %v620
        %v2839 = vunpack.c.l.b16 %v621
        %v2840 = vunpack.c.h.b16 %v621
        %v2841 = vunpack.c.l.b16 %v622
        %v2842 = vunpack.c.h.b16 %v622
        %v2843 = vunpack.c.l.b16 %v623
        %v2844 = vunpack.c.h.b16 %v623
        %v2845 = vunpack.c.l.b16 %v624
        %v2846 = vunpack.c.h.b16 %v624
        %v2847 = vunpack.c.l.b16 %v625
        %v2848 = vunpack.c.h.b16 %v625
        %v2849 = vunpack.c.l.b16 %v626
        %v2850 = vunpack.c.h.b16 %v626
        %v2851 = vunpack.c.l.b16 %v627
        %v2852 = vunpack.c.h.b16 %v627
        %v2853 = vunpack.c.l.b16 %v628
        %v2854 = vunpack.c.h.b16 %v628
        %v2855 = vunpack.c.l.b16 %v629
        %v2856 = vunpack.c.h.b16 %v629
        %v2857 = vunpack.c.l.b16 %v630
        %v2858 = vunpack.c.h.b16 %v630
        %v2859 = vunpack.c.l.b16 %v631
        %v2860 = vunpack.c.h.b16 %v631
        %v2861 = vunpack.c.l.b16 %v632
        %v2862 = vunpack.c.h.b16 %v632
        %v2863 = vunpack.c.l.b16 %v633
        %v2864 = vunpack.c.h.b16 %v633
        %v2865 = vunpack.c.l.b16 %v634
        %v2866 = vunpack.c.h.b16 %v634
        %v2867 = vunpack.c.l.b16 %v635
        %v2868 = vunpack.c.h.b16 %v635
        %v2869 = vunpack.c.l.b16 %v636
        %v2870 = vunpack.c.h.b16 %v636
        %v2871 = vunpack.c.l.b16 %v637
        %v2872 = vunpack.c.h.b16 %v637
        %v2873 = vunpack.c.l.b16 %v638
        %v2874 = vunpack.c.h.b16 %v638
        %v2875 = vunpack.c.l.b16 %v639
        %v2876 = vunpack.c.h.b16 %v639
        %v2877 = vunpack.c.l.b16 %v640
        %v2878 = vunpack.c.h.b16 %v640
        %v2879 = vunpack.c.l.b16 %v641
        %v2880 = vunpack.c.h.b16 %v641
        %v2881 = vunpack.c.l.b16 %v642
        %v2882 = vunpack.c.h.b16 %v642
        %v2883 = vunpack.c.l.b16 %v643
        %v2884 = vunpack.c.h.b16 %v643
        %v2885 = vunpack.c.l.b16 %v644
        %v2886 = vunpack.c.h.b16 %v644
        %v2887 = vunpack.c.l.b16 %v645
        %v2888 = vunpack.c.h.b16 %v645
        %v2889 = vunpack.c.l.b16 %v646
        %v2890 = vunpack.c.h.b16 %v646
        %v2891 = vunpack.c.l.b16 %v647
        %v2892 = vunpack.c.h.b16 %v647
        %v2893 = vunpack.c.l.b16 %v648
        %v2894 = vunpack.c.h.b16 %v648
        %v2895 = vunpack.c.l.b16 %v649
        %v2896 = vunpack.c.h.b16 %v649
        %v2897 = vunpack.c.l.b16 %v650
        %v2898 = vunpack.c.h.b16 %v650
        %v2899 = vunpack.c.l.b16 %v651
        %v2900 = vunpack.c.h.b16 %v651
        %v2901 = vunpack.c.l.b16 %v652
        %v2902 = vunpack.c.h.b16 %v652
        %v2903 = vunpack.c.l.b16 %v653
        %v2904 = vunpack.c.h.b16 %v653
        %v2905 = vunpack.c.l.b16 %v654
        %v2906 = vunpack.c.h.b16 %v654
        %v2907 = vunpack.c.l.b16 %v655
        %v2908 = vunpack.c.h.b16 %v655
        %v2909 = vunpack.c.l.b16 %v656
        %v2910 = vunpack.c.h.b16 %v656
        %v2911 = vunpack.c.l.b16 %v657
        %v2912 = vunpack.c.h.b16 %v657
        %v2913 = vunpack.c.l.b16 %v658
        %v2914 = vunpack.c.h.b16 %v658
        %v2915 = vunpack.c.l.b16 %v659
        %v2916 = vunpack.c.h.b16 %v659
        %v2917 = vunpack.c.l.b16 %v660
        %v2918 = vunpack.c.h.b16 %v660
        %v2919 = vunpack.c.l.b16 %v661
        %v2920 = vunpack.c.h.b16 %v661
        %v2921 = vunpack.c.l.b16 %v662
        %v2922 = vunpack.c.h.b16 %v662
        %v2923 = vunpack.c.l.b16 %v663
        %v2924 = vunpack.c.h.b16 %v663
        %v2925 = vunpack.c.l.b16 %v664
        %v2926 = vunpack.c.h.b16 %v664
        %v2927 = vunpack.c.l.b16 %v665
        %v2928 = vunpack.c.h.b16 %v665
        %v2929 = vunpack.c.l.b16 %v666
        %v2930 = vunpack.c.h.b16 %v666
        %v2931 = vunpack.c.l.b16 %v667
        %v2932 = vunpack.c.h.b16 %v667
        %v2933 = vunpack.c.l.b16 %v668
        %v2934 = vunpack.c.h.b16 %v668
        %v2935 = vunpack.c.l.b16 %v669
        %v2936 = vunpack.c.h.b16 %v669
        %v2937 = vunpack.c.l.b16 %v670
        %v2938 = vunpack.c.h.b16 %v670
        %v2939 = vunpack.c.l.b16 %v671
        %v2940 = vunpack.c.h.b16 %v671
        %v2941 = vunpack.c.l.b16 %v672
        %v2942 = vunpack.c.h.b16 %v672
        %v2943 = vunpack.c.l.b16 %v673
        %v2944 = vunpack.c.h.b16 %v673
        %v2945 = vunpack.c.l.b16 %v674
        %v2946 = vunpack.c.h.b16 %v674
        %v2947 = vunpack.c.l.b16 %v675
        %v2948 = vunpack.c.h.b16 %v675
        %v2949 = vunpack.c.l.b16 %v676
        %v2950 = vunpack.c.h.b16 %v676
        %v2951 = vunpack.c.l.b16 %v677
        %v2952 = vunpack.c.h.b16 %v677
        %v2953 = vunpack.c.l.b16 %v678
        %v2954 = vunpack.c.h.b16 %v678
        %v2955 = vunpack.c.l.b16 %v679
        %v2956 = vunpack.c.h.b16 %v679
        %v2957 = vunpack.c.l.b16 %v680
        %v2958 = vunpack.c.h.b16 %v680
        %v2959 = vunpack.c.l.b16 %v681
        %v2960 = vunpack.c.h.b16 %v681
        %v2961 = vunpack.c.l.b16 %v682
        %v2962 = vunpack.c.h.b16 %v682
        %v2963 = vunpack.c.l.b16 %v683
        %v2964 = vunpack.c.h.b16 %v683
        %v2965 = vunpack.c.l.b16 %v684
        %v2966 = vunpack.c.h.b16 %v684
        %v2967 = vunpack.c.l.b16 %v685
        %v2968 = vunpack.c.h.b16 %v685
        %v2969 = vunpack.c.l.b16 %v686
        %v2970 = vunpack.c.h.b16 %v686
        %v2971 = vunpack.c.l.b16 %v687
        %v2972 = vunpack.c.h.b16 %v687
        %v2973 = vunpack.c.l.b16 %v688
        %v2974 = vunpack.c.h.b16 %v688
        %v2975 = vunpack.c.l.b16 %v689
        %v2976 = vunpack.c.h.b16 %v689
        %v2977 = vunpack.c.l.b16 %v690
        %v2978 = vunpack.c.h.b16 %v690
        %v2979 = vunpack.c.l.b16 %v691
        %v2980 = vunpack.c.h.b16 %v691
        %v2981 = vunpack.c.l.b16 %v692
        %v2982 = vunpack.c.h.b16 %v692
        %v2983 = vunpack.c.l.b16 %v693
        %v2984 = vunpack.c.h.b16 %v693
        %v2985 = vunpack.c.l.b16 %v694
        %v2986 = vunpack.c.h.b16 %v694
        %v2987 = vunpack.c.l.b16 %v695
        %v2988 = vunpack.c.h.b16 %v695
        %v2989 = vunpack.c.l.b16 %v696
        %v2990 = vunpack.c.h.b16 %v696
        %v2991 = vunpack.c.l.b16 %v697
        %v2992 = vunpack.c.h.b16 %v697
        %v2993 = vunpack.c.l.b16 %v698
        %v2994 = vunpack.c.h.b16 %v698
        %v2995 = vunpack.c.l.b16 %v699
        %v2996 = vunpack.c.h.b16 %v699
        %v2997 = vunpack.c.l.b16 %v700
        %v2998 = vunpack.c.h.b16 %v700
        %v2999 = vunpack.c.l.b16 %v701
        %v3000 = vunpack.c.h.b16 %v701
        %v3001 = vunpack.c.l.b16 %v702
        %v3002 = vunpack.c.h.b16 %v702
        %v3003 = vunpack.c.l.b16 %v703
        %v3004 = vunpack.c.h.b16 %v703
        %v3005 = vunpack.c.l.b16 %v704
        %v3006 = vunpack.c.h.b16 %v704
        %v3007 = vunpack.c.l.b16 %v705
        %v3008 = vunpack.c.h.b16 %v705
        %v3009 = vunpack.c.l.b16 %v706
        %v3010 = vunpack.c.h.b16 %v706
        %v3011 = vunpack.c.l.b16 %v707
        %v3012 = vunpack.c.h.b16 %v707
        %v3013 = vunpack.c.l.b16 %v708
        %v3014 = vunpack.c.h.b16 %v708
        %v3015 = vunpack.c.l.b16 %v709
        %v3016 = vunpack.c.h.b16 %v709
        %v3017 = vunpack.c.l.b16 %v710
        %v3018 = vunpack.c.h.b16 %v710
        %v3019 = vunpack.c.l.b16 %v711
        %v3020 = vunpack.c.h.b16 %v711
        %v3021 = vunpack.c.l.b16 %v712
        %v3022 = vunpack.c.h.b16 %v712
        %v3023 = vunpack.c.l.b16 %v713
        %v3024 = vunpack.c.h.b16 %v713
        %v3025 = vunpack.c.l.b16 %v714
        %v3026 = vunpack.c.h.b16 %v714
        %v3027 = vunpack.c.l.b16 %v715
        %v3028 = vunpack.c.h.b16 %v715
        %v3029 = vunpack.c.l.b16 %v716
        %v3030 = vunpack.c.h.b16 %v716
        %v3031 = vunpack.c.l.b16 %v717
        %v3032 = vunpack.c.h.b16 %v717
        %v3033 = vunpack.c.l.b16 %v718
        %v3034 = vunpack.c.h.b16 %v718
        %v3035 = vunpack.c.l.b16 %v719
        %v3036 = vunpack.c.h.b16 %v719
        %v3037 = vunpack.c.l.b16 %v720
        %v3038 = vunpack.c.h.b16 %v720
        %v3039 = vunpack.c.l.b16 %v721
        %v3040 = vunpack.c.h.b16 %v721
        %v3041 = vunpack.c.l.b16 %v722
        %v3042 = vunpack.c.h.b16 %v722
        %v3043 = vunpack.c.l.b16 %v723
        %v3044 = vunpack.c.h.b16 %v723
        %v3045 = vunpack.c.l.b16 %v724
        %v3046 = vunpack.c.h.b16 %v724
        %v3047 = vunpack.c.l.b16 %v725
        %v3048 = vunpack.c.h.b16 %v725
        %v3049 = vunpack.c.l.b16 %v726
        %v3050 = vunpack.c.h.b16 %v726
        %v3051 = vunpack.c.l.b16 %v727
        %v3052 = vunpack.c.h.b16 %v727
        %v3053 = vunpack.c.l.b16 %v728
        %v3054 = vunpack.c.h.b16 %v728
        %v3055 = vunpack.c.l.b16 %v729
        %v3056 = vunpack.c.h.b16 %v729
        %v3057 = vunpack.c.l.b16 %v730
        %v3058 = vunpack.c.h.b16 %v730
        %v3059 = vunpack.c.l.b16 %v731
        %v3060 = vunpack.c.h.b16 %v731
        %v3061 = vunpack.c.l.b16 %v732
        %v3062 = vunpack.c.h.b16 %v732
        %v3063 = vunpack.c.l.b16 %v733
        %v3064 = vunpack.c.h.b16 %v733
        %v3065 = vunpack.c.l.b16 %v734
        %v3066 = vunpack.c.h.b16 %v734
        %v3067 = vunpack.c.l.b16 %v735
        %v3068 = vunpack.c.h.b16 %v735
        %v3069 = vunpack.c.l.b16 %v736
        %v3070 = vunpack.c.h.b16 %v736
        %v3071 = vunpack.c.l.b16 %v737
        %v3072 = vunpack.c.h.b16 %v737
        %v3073 = vunpack.c.l.b16 %v738
        %v3074 = vunpack.c.h.b16 %v738
        %v3075 = vunpack.c.l.b16 %v739
        %v3076 = vunpack.c.h.b16 %v739
        %v3077 = vunpack.c.l.b16 %v740
        %v3078 = vunpack.c.h.b16 %v740
        %v3079 = vunpack.c.l.b16 %v741
        %v3080 = vunpack.c.h.b16 %v741
        %v3081 = vunpack.c.l.b16 %v742
        %v3082 = vunpack.c.h.b16 %v742
        %v3083 = vunpack.c.l.b16 %v743
        %v3084 = vunpack.c.h.b16 %v743
        %v3085 = vunpack.c.l.b16 %v744
        %v3086 = vunpack.c.h.b16 %v744
        %v3087 = vunpack.c.l.b16 %v745
        %v3088 = vunpack.c.h.b16 %v745
        %v3089 = vunpack.c.l.b16 %v746
        %v3090 = vunpack.c.h.b16 %v746
        %v3091 = vunpack.c.l.b16 %v747
        %v3092 = vunpack.c.h.b16 %v747
        %v3093 = vunpack.c.l.b16 %v748
        %v3094 = vunpack.c.h.b16 %v748
        %v3095 = vunpack.c.l.b16 %v749
        %v3096 = vunpack.c.h.b16 %v749
        %v3097 = vunpack.c.l.b16 %v750
        %v3098 = vunpack.c.h.b16 %v750
        %v3099 = vunpack.c.l.b16 %v751
        %v3100 = vunpack.c.h.b16 %v751
        %v3101 = vunpack.c.l.b16 %v752
        %v3102 = vunpack.c.h.b16 %v752
        %v3103 = vunpack.c.l.b16 %v753
        %v3104 = vunpack.c.h.b16 %v753
        %v3105 = vunpack.c.l.b16 %v754
        %v3106 = vunpack.c.h.b16 %v754
        %v3107 = vunpack.c.l.b16 %v755
        %v3108 = vunpack.c.h.b16 %v755
        %v3109 = vunpack.c.l.b16 %v756
        %v3110 = vunpack.c.h.b16 %v756
        %v3111 = vunpack.c.l.b16 %v757
        %v3112 = vunpack.c.h.b16 %v757
        %v3113 = vunpack.c.l.b16 %v758
        %v3114 = vunpack.c.h.b16 %v758
        %v3115 = vunpack.c.l.b16 %v759
        %v3116 = vunpack.c.h.b16 %v759
        %v3117 = vunpack.c.l.b16 %v760
        %v3118 = vunpack.c.h.b16 %v760
        %v3119 = vunpack.c.l.b16 %v761
        %v3120 = vunpack.c.h.b16 %v761
        %v3121 = vunpack.c.l.b16 %v762
        %v3122 = vunpack.c.h.b16 %v762
        %v3123 = vunpack.c.l.b16 %v763
        %v3124 = vunpack.c.h.b16 %v763
        %v3125 = vunpack.c.l.b16 %v764
        %v3126 = vunpack.c.h.b16 %v764
        %v3127 = vunpack.c.l.b16 %v765
        %v3128 = vunpack.c.h.b16 %v765
        %v3129 = vunpack.c.l.b16 %v766
        %v3130 = vunpack.c.h.b16 %v766
        %v3131 = vunpack.c.l.b16 %v767
        %v3132 = vunpack.c.h.b16 %v767
        %v3133 = vunpack.c.l.b16 %v768
        %v3134 = vunpack.c.h.b16 %v768
        %v3135 = vunpack.c.l.b16 %v769
        %v3136 = vunpack.c.h.b16 %v769
        %v3137 = vunpack.c.l.b16 %v770
        %v3138 = vunpack.c.h.b16 %v770
        %v3139 = vunpack.c.l.b16 %v771
        %v3140 = vunpack.c.h.b16 %v771
        %v3141 = vunpack.c.l.b16 %v772
        %v3142 = vunpack.c.h.b16 %v772
        %v3143 = vunpack.c.l.b16 %v773
        %v3144 = vunpack.c.h.b16 %v773
        %v3145 = vunpack.c.l.b16 %v774
        %v3146 = vunpack.c.h.b16 %v774
        %v3147 = vunpack.c.l.b16 %v775
        %v3148 = vunpack.c.h.b16 %v775
        %v3149 = vunpack.c.l.b16 %v776
        %v3150 = vunpack.c.h.b16 %v776
        %v3151 = vunpack.c.l.b16 %v777
        %v3152 = vunpack.c.h.b16 %v777
        %v3153 = vunpack.c.l.b16 %v778
        %v3154 = vunpack.c.h.b16 %v778
        %v3155 = vunpack.c.l.b16 %v779
        %v3156 = vunpack.c.h.b16 %v779
        %v3157 = vunpack.c.l.b16 %v780
        %v3158 = vunpack.c.h.b16 %v780
        %v3159 = vunpack.c.l.b16 %v781
        %v3160 = vunpack.c.h.b16 %v781
        %v3161 = vunpack.c.l.b16 %v782
        %v3162 = vunpack.c.h.b16 %v782
        %v3163 = vunpack.c.l.b16 %v783
        %v3164 = vunpack.c.h.b16 %v783
        %v3165 = vunpack.c.l.b16 %v784
        %v3166 = vunpack.c.h.b16 %v784
        %v3167 = vunpack.c.l.b16 %v785
        %v3168 = vunpack.c.h.b16 %v785
        %v3169 = vunpack.c.l.b16 %v786
        %v3170 = vunpack.c.h.b16 %v786
        %v3171 = vunpack.c.l.b16 %v787
        %v3172 = vunpack.c.h.b16 %v787
        %v3173 = vunpack.c.l.b16 %v788
        %v3174 = vunpack.c.h.b16 %v788
        %v3175 = vunpack.c.l.b16 %v789
        %v3176 = vunpack.c.h.b16 %v789
        %v3177 = vunpack.c.l.b16 %v790
        %v3178 = vunpack.c.h.b16 %v790
        %v3179 = vunpack.c.l.b16 %v791
        %v3180 = vunpack.c.h.b16 %v791
        %v3181 = vunpack.c.l.b16 %v792
        %v3182 = vunpack.c.h.b16 %v792
        %v3183 = vunpack.c.l.b16 %v793
        %v3184 = vunpack.c.h.b16 %v793
        %v3185 = vunpack.c.l.b16 %v794
        %v3186 = vunpack.c.h.b16 %v794
        %v3187 = vunpack.c.l.b16 %v795
        %v3188 = vunpack.c.h.b16 %v795
        %v3189 = vunpack.c.l.b16 %v796
        %v3190 = vunpack.c.h.b16 %v796
        %v3191 = vunpack.c.l.b16 %v797
        %v3192 = vunpack.c.h.b16 %v797
        %v3193 = vunpack.c.l.b16 %v798
        %v3194 = vunpack.c.h.b16 %v798
        %v3195 = vunpack.c.l.b16 %v799
        %v3196 = vunpack.c.h.b16 %v799
        %v3197 = vunpack.c.l.b16 %v800
        %v3198 = vunpack.c.h.b16 %v800
        %v3199 = vunpack.c.l.b16 %v801
        %v3200 = vunpack.c.h.b16 %v801
        %v3201 = vunpack.c.l.b16 %v802
        %v3202 = vunpack.c.h.b16 %v802
        %v3203 = vunpack.c.l.b16 %v803
        %v3204 = vunpack.c.h.b16 %v803
        %v3205 = vunpack.c.l.b16 %v804
        %v3206 = vunpack.c.h.b16 %v804
        %v3207 = vunpack.c.l.b16 %v805
        %v3208 = vunpack.c.h.b16 %v805
        %v3209 = vunpack.c.l.b16 %v806
        %v3210 = vunpack.c.h.b16 %v806
        %v3211 = vunpack.c.l.b16 %v807
        %v3212 = vunpack.c.h.b16 %v807
        %v3213 = vunpack.c.l.b16 %v808
        %v3214 = vunpack.c.h.b16 %v808
        %v3215 = vunpack.c.l.b16 %v809
        %v3216 = vunpack.c.h.b16 %v809
        %v3217 = vunpack.c.l.b16 %v810
        %v3218 = vunpack.c.h.b16 %v810
        %v3219 = vunpack.c.l.b16 %v811
        %v3220 = vunpack.c.h.b16 %v811
        %v3221 = vunpack.c.l.b16 %v812
        %v3222 = vunpack.c.h.b16 %v812
        %v3223 = vunpack.c.l.b16 %v813
        %v3224 = vunpack.c.h.b16 %v813
        %v3225 = vunpack.c.l.b16 %v814
        %v3226 = vunpack.c.h.b16 %v814
        %v3227 = vunpack.c.l.b16 %v815
        %v3228 = vunpack.c.h.b16 %v815
        %v3229 = vunpack.c.l.b16 %v816
        %v3230 = vunpack.c.h.b16 %v816
        %v3231 = vunpack.c.l.b16 %v817
        %v3232 = vunpack.c.h.b16 %v817
        %v3233 = vunpack.c.l.b16 %v818
        %v3234 = vunpack.c.h.b16 %v818
        %v3235 = vunpack.c.l.b16 %v819
        %v3236 = vunpack.c.h.b16 %v819
        %v3237 = vunpack.c.l.b16 %v820
        %v3238 = vunpack.c.h.b16 %v820
        %v3239 = vunpack.c.l.b16 %v821
        %v3240 = vunpack.c.h.b16 %v821
        %v3241 = vunpack.c.l.b16 %v822
        %v3242 = vunpack.c.h.b16 %v822
        %v3243 = vunpack.c.l.b16 %v823
        %v3244 = vunpack.c.h.b16 %v823
        %v3245 = vunpack.c.l.b16 %v824
        %v3246 = vunpack.c.h.b16 %v824
        %v3247 = vunpack.c.l.b16 %v825
        %v3248 = vunpack.c.h.b16 %v825
        %v3249 = vunpack.c.l.b16 %v826
        %v3250 = vunpack.c.h.b16 %v826
        %v3251 = vunpack.c.l.b16 %v827
        %v3252 = vunpack.c.h.b16 %v827
        %v3253 = vunpack.c.l.b16 %v828
        %v3254 = vunpack.c.h.b16 %v828
        %v3255 = vunpack.c.l.b16 %v829
        %v3256 = vunpack.c.h.b16 %v829
        %v3257 = vunpack.c.l.b16 %v830
        %v3258 = vunpack.c.h.b16 %v830
        %v3259 = vunpack.c.l.b16 %v831
        %v3260 = vunpack.c.h.b16 %v831
        %v3261 = vunpack.c.l.b16 %v832
        %v3262 = vunpack.c.h.b16 %v832
        %v3263 = vunpack.c.l.b16 %v833
        %v3264 = vunpack.c.h.b16 %v833
        %v3265 = vunpack.c.l.b16 %v834
        %v3266 = vunpack.c.h.b16 %v834
        %v3267 = vunpack.c.l.b16 %v835
        %v3268 = vunpack.c.h.b16 %v835
        %v3269 = vunpack.c.l.b16 %v836
        %v3270 = vunpack.c.h.b16 %v836
        %v3271 = vunpack.c.l.b16 %v837
        %v3272 = vunpack.c.h.b16 %v837
        %v3273 = vunpack.c.l.b16 %v838
        %v3274 = vunpack.c.h.b16 %v838
        %v3275 = vunpack.c.l.b16 %v839
        %v3276 = vunpack.c.h.b16 %v839
        %v3277 = vunpack.c.l.b16 %v840
        %v3278 = vunpack.c.h.b16 %v840
        %v3279 = vunpack.c.l.b16 %v841
        %v3280 = vunpack.c.h.b16 %v841
        %v3281 = vunpack.c.l.b16 %v842
        %v3282 = vunpack.c.h.b16 %v842
        %v3283 = vunpack.c.l.b16 %v843
        %v3284 = vunpack.c.h.b16 %v843
        %v3285 = vunpack.c.l.b16 %v844
        %v3286 = vunpack.c.h.b16 %v844
        %v3287 = vunpack.c.l.b16 %v845
        %v3288 = vunpack.c.h.b16 %v845
        %v3289 = vunpack.c.l.b16 %v846
        %v3290 = vunpack.c.h.b16 %v846
        %v3291 = vunpack.c.l.b16 %v847
        %v3292 = vunpack.c.h.b16 %v847
        %v3293 = vunpack.c.l.b16 %v848
        %v3294 = vunpack.c.h.b16 %v848
        %v3295 = vunpack.c.l.b16 %v849
        %v3296 = vunpack.c.h.b16 %v849
        %v3297 = vunpack.c.l.b16 %v850
        %v3298 = vunpack.c.h.b16 %v850
        %v3299 = vunpack.c.l.b16 %v851
        %v3300 = vunpack.c.h.b16 %v851
        %v3301 = vunpack.c.l.b16 %v852
        %v3302 = vunpack.c.h.b16 %v852
        %v3303 = vunpack.c.l.b16 %v853
        %v3304 = vunpack.c.h.b16 %v853
        %v3305 = vunpack.c.l.b16 %v854
        %v3306 = vunpack.c.h.b16 %v854
        %v3307 = vunpack.c.l.b16 %v855
        %v3308 = vunpack.c.h.b16 %v855
        %v3309 = vunpack.c.l.b16 %v856
        %v3310 = vunpack.c.h.b16 %v856
        %v3311 = vunpack.c.l.b16 %v857
        %v3312 = vunpack.c.h.b16 %v857
        %v3313 = vunpack.c.l.b16 %v858
        %v3314 = vunpack.c.h.b16 %v858
        %v3315 = vunpack.c.l.b16 %v859
        %v3316 = vunpack.c.h.b16 %v859
        %v3317 = vunpack.c.l.b16 %v860
        %v3318 = vunpack.c.h.b16 %v860
        %v3319 = vunpack.c.l.b16 %v861
        %v3320 = vunpack.c.h.b16 %v861
        %v3321 = vunpack.c.l.b16 %v862
        %v3322 = vunpack.c.h.b16 %v862
        %v3323 = vunpack.c.l.b16 %v863
        %v3324 = vunpack.c.h.b16 %v863
        %v3325 = vunpack.c.l.b16 %v864
        %v3326 = vunpack.c.h.b16 %v864
        %v3327 = vunpack.c.l.b16 %v865
        %v3328 = vunpack.c.h.b16 %v865
        %v3329 = vunpack.c.l.b16 %v866
        %v3330 = vunpack.c.h.b16 %v866
        %v3331 = vunpack.c.l.b16 %v867
        %v3332 = vunpack.c.h.b16 %v867
        %v3333 = vunpack.c.l.b16 %v868
        %v3334 = vunpack.c.h.b16 %v868
        %v3335 = vunpack.c.l.b16 %v869
        %v3336 = vunpack.c.h.b16 %v869
        %v3337 = vunpack.c.l.b16 %v870
        %v3338 = vunpack.c.h.b16 %v870
        %v3339 = vunpack.c.l.b16 %v871
        %v3340 = vunpack.c.h.b16 %v871
        %v3341 = vunpack.c.l.b16 %v872
        %v3342 = vunpack.c.h.b16 %v872
        %v3343 = vunpack.c.l.b16 %v873
        %v3344 = vunpack.c.h.b16 %v873
        %v3345 = vunpack.c.l.b16 %v874
        %v3346 = vunpack.c.h.b16 %v874
        %v3347 = vunpack.c.l.b16 %v875
        %v3348 = vunpack.c.h.b16 %v875
        %v3349 = vunpack.c.l.b16 %v876
        %v3350 = vunpack.c.h.b16 %v876
        %v3351 = vunpack.c.l.b16 %v877
        %v3352 = vunpack.c.h.b16 %v877
        %v3353 = vunpack.c.l.b16 %v878
        %v3354 = vunpack.c.h.b16 %v878
        %v3355 = vunpack.c.l.b16 %v879
        %v3356 = vunpack.c.h.b16 %v879
        %v3357 = vunpack.c.l.b16 %v880
        %v3358 = vunpack.c.h.b16 %v880
        %v3359 = vunpack.c.l.b16 %v881
        %v3360 = vunpack.c.h.b16 %v881
        %v3361 = vunpack.c.l.b16 %v882
        %v3362 = vunpack.c.h.b16 %v882
        %v3363 = vunpack.c.l.b16 %v883
        %v3364 = vunpack.c.h.b16 %v883
        %v3365 = vunpack.c.l.b16 %v884
        %v3366 = vunpack.c.h.b16 %v884
        %v3367 = vunpack.c.l.b16 %v885
        %v3368 = vunpack.c.h.b16 %v885
        %v3369 = vunpack.c.l.b16 %v886
        %v3370 = vunpack.c.h.b16 %v886
        %v3371 = vunpack.c.l.b16 %v887
        %v3372 = vunpack.c.h.b16 %v887
        %v3373 = vunpack.c.l.b16 %v888
        %v3374 = vunpack.c.h.b16 %v888
        %v3375 = vunpack.c.l.b16 %v889
        %v3376 = vunpack.c.h.b16 %v889
        %v3377 = vunpack.c.l.b16 %v890
        %v3378 = vunpack.c.h.b16 %v890
        %v3379 = vunpack.c.l.b16 %v891
        %v3380 = vunpack.c.h.b16 %v891
        %v3381 = vunpack.c.l.b16 %v892
        %v3382 = vunpack.c.h.b16 %v892
        %v3383 = vunpack.c.l.b16 %v893
        %v3384 = vunpack.c.h.b16 %v893
        %v3385 = vunpack.c.l.b16 %v894
        %v3386 = vunpack.c.h.b16 %v894
        %v3387 = vunpack.c.l.b16 %v895
        %v3388 = vunpack.c.h.b16 %v895
        %v3389 = vunpack.c.l.b16 %v896
        %v3390 = vunpack.c.h.b16 %v896
        %v3391 = vunpack.c.l.b16 %v897
        %v3392 = vunpack.c.h.b16 %v897
        %v3393 = vunpack.c.l.b16 %v898
        %v3394 = vunpack.c.h.b16 %v898
        %v3395 = vunpack.c.l.b16 %v899
        %v3396 = vunpack.c.h.b16 %v899
        %v3397 = vunpack.c.l.b16 %v900
        %v3398 = vunpack.c.h.b16 %v900
        %v3399 = vunpack.c.l.b16 %v901
        %v3400 = vunpack.c.h.b16 %v901
        %v3401 = vunpack.c.l.b16 %v902
        %v3402 = vunpack.c.h.b16 %v902
        %v3403 = vunpack.c.l.b16 %v903
        %v3404 = vunpack.c.h.b16 %v903
        %v3405 = vunpack.c.l.b16 %v904
        %v3406 = vunpack.c.h.b16 %v904
        %v3407 = vunpack.c.l.b16 %v905
        %v3408 = vunpack.c.h.b16 %v905
        %v3409 = vunpack.c.l.b16 %v906
        %v3410 = vunpack.c.h.b16 %v906
        %v3411 = vunpack.c.l.b16 %v907
        %v3412 = vunpack.c.h.b16 %v907
        %v3413 = vunpack.c.l.b16 %v908
        %v3414 = vunpack.c.h.b16 %v908
        %v3415 = vunpack.c.l.b16 %v909
        %v3416 = vunpack.c.h.b16 %v909
        %v3417 = vunpack.c.l.b16 %v910
        %v3418 = vunpack.c.h.b16 %v910
        %v3419 = vunpack.c.l.b16 %v911
        %v3420 = vunpack.c.h.b16 %v911
        %v3421 = vunpack.c.l.b16 %v912
        %v3422 = vunpack.c.h.b16 %v912
        %v3423 = vunpack.c.l.b16 %v913
        %v3424 = vunpack.c.h.b16 %v913
        %v3425 = vunpack.c.l.b16 %v914
        %v3426 = vunpack.c.h.b16 %v914
        %v3427 = vunpack.c.l.b16 %v915
        %v3428 = vunpack.c.h.b16 %v915
        %v3429 = vunpack.c.l.b16 %v916
        %v3430 = vunpack.c.h.b16 %v916
        %v3431 = vunpack.c.l.b16 %v917
        %v3432 = vunpack.c.h.b16 %v917
        %v3433 = vunpack.c.l.b16 %v918
        %v3434 = vunpack.c.h.b16 %v918
        %v3435 = vunpack.c.l.b16 %v919
        %v3436 = vunpack.c.h.b16 %v919
        %v3437 = vunpack.c.l.b16 %v920
        %v3438 = vunpack.c.h.b16 %v920
        %v3439 = vunpack.c.l.b16 %v921
        %v3440 = vunpack.c.h.b16 %v921
        %v3441 = vunpack.c.l.b16 %v922
        %v3442 = vunpack.c.h.b16 %v922
        %v3443 = vunpack.c.l.b16 %v923
        %v3444 = vunpack.c.h.b16 %v923
        %v3445 = vunpack.c.l.b16 %v924
        %v3446 = vunpack.c.h.b16 %v924
        %v3447 = vunpack.c.l.b16 %v925
        %v3448 = vunpack.c.h.b16 %v925
        %v3449 = vunpack.c.l.b16 %v926
        %v3450 = vunpack.c.h.b16 %v926
        %v3451 = vunpack.c.l.b16 %v927
        %v3452 = vunpack.c.h.b16 %v927
        %v3453 = vunpack.c.l.b16 %v928
        %v3454 = vunpack.c.h.b16 %v928
        %v3455 = vunpack.c.l.b16 %v929
        %v3456 = vunpack.c.h.b16 %v929
        %v3457 = vunpack.c.l.b16 %v930
        %v3458 = vunpack.c.h.b16 %v930
        %v3459 = vunpack.c.l.b16 %v931
        %v3460 = vunpack.c.h.b16 %v931
        %v3461 = vunpack.c.l.b16 %v932
        %v3462 = vunpack.c.h.b16 %v932
        %v3463 = vunpack.c.l.b16 %v933
        %v3464 = vunpack.c.h.b16 %v933
        %v3465 = vunpack.c.l.b16 %v934
        %v3466 = vunpack.c.h.b16 %v934
        %v3467 = vunpack.c.l.b16 %v935
        %v3468 = vunpack.c.h.b16 %v935
        %v3469 = vunpack.c.l.b16 %v936
        %v3470 = vunpack.c.h.b16 %v936
        %v3471 = vunpack.c.l.b16 %v937
        %v3472 = vunpack.c.h.b16 %v937
        %v3473 = vunpack.c.l.b16 %v938
        %v3474 = vunpack.c.h.b16 %v938
        %v3475 = vunpack.c.l.b16 %v939
        %v3476 = vunpack.c.h.b16 %v939
        %v3477 = vunpack.c.l.b16 %v940
        %v3478 = vunpack.c.h.b16 %v940
        %v3479 = vunpack.c.l.b16 %v941
        %v3480 = vunpack.c.h.b16 %v941
        %v3481 = vunpack.c.l.b16 %v942
        %v3482 = vunpack.c.h.b16 %v942
        %v3483 = vunpack.c.l.b16 %v943
        %v3484 = vunpack.c.h.b16 %v943
        %v3485 = vunpack.c.l.b16 %v944
        %v3486 = vunpack.c.h.b16 %v944
        %v3487 = vunpack.c.l.b16 %v945
        %v3488 = vunpack.c.h.b16 %v945
        %v3489 = vunpack.c.l.b16 %v946
        %v3490 = vunpack.c.h.b16 %v946
        %v3491 = vunpack.c.l.b16 %v947
        %v3492 = vunpack.c.h.b16 %v947
        %v3493 = vunpack.c.l.b16 %v948
        %v3494 = vunpack.c.h.b16 %v948
        %v3495 = vunpack.c.l.b16 %v949
        %v3496 = vunpack.c.h.b16 %v949
        %v3497 = vunpack.c.l.b16 %v950
        %v3498 = vunpack.c.h.b16 %v950
        %v3499 = vunpack.c.l.b16 %v951
        %v3500 = vunpack.c.h.b16 %v951
        %v3501 = vunpack.c.l.b16 %v952
        %v3502 = vunpack.c.h.b16 %v952
        %v3503 = vunpack.c.l.b16 %v953
        %v3504 = vunpack.c.h.b16 %v953
        %v3505 = vunpack.c.l.b16 %v954
        %v3506 = vunpack.c.h.b16 %v954
        %v3507 = vunpack.c.l.b16 %v955
        %v3508 = vunpack.c.h.b16 %v955
        %v3509 = vunpack.c.l.b16 %v956
        %v3510 = vunpack.c.h.b16 %v956
        %v3511 = vunpack.c.l.b16 %v957
        %v3512 = vunpack.c.h.b16 %v957
        %v3513 = vunpack.c.l.b16 %v958
        %v3514 = vunpack.c.h.b16 %v958
        %v3515 = vunpack.c.l.b16 %v959
        %v3516 = vunpack.c.h.b16 %v959
        %v3517 = vunpack.c.l.b16 %v960
        %v3518 = vunpack.c.h.b16 %v960
        %v3519 = vunpack.c.l.b16 %v961
        %v3520 = vunpack.c.h.b16 %v961
        %v3521 = vunpack.c.l.b16 %v962
        %v3522 = vunpack.c.h.b16 %v962
        %v3523 = vunpack.c.l.b16 %v963
        %v3524 = vunpack.c.h.b16 %v963
        %v3525 = vunpack.c.l.b16 %v964
        %v3526 = vunpack.c.h.b16 %v964
        %v3527 = vunpack.c.l.b16 %v965
        %v3528 = vunpack.c.h.b16 %v965
        %v3529 = vunpack.c.l.b16 %v966
        %v3530 = vunpack.c.h.b16 %v966
        %v3531 = vunpack.c.l.b16 %v967
        %v3532 = vunpack.c.h.b16 %v967
        %v3533 = vunpack.c.l.b16 %v968
        %v3534 = vunpack.c.h.b16 %v968
        %v3535 = vunpack.c.l.b16 %v969
        %v3536 = vunpack.c.h.b16 %v969
        %v3537 = vunpack.c.l.b16 %v970
        %v3538 = vunpack.c.h.b16 %v970
        %v3539 = vunpack.c.l.b16 %v971
        %v3540 = vunpack.c.h.b16 %v971
        %v3541 = vunpack.c.l.b16 %v972
        %v3542 = vunpack.c.h.b16 %v972
        %v3543 = vunpack.c.l.b16 %v973
        %v3544 = vunpack.c.h.b16 %v973
        %v3545 = vunpack.c.l.b16 %v974
        %v3546 = vunpack.c.h.b16 %v974
        %v3547 = vunpack.c.l.b16 %v975
        %v3548 = vunpack.c.h.b16 %v975
        %v3549 = vunpack.c.l.b16 %v976
        %v3550 = vunpack.c.h.b16 %v976
        %v3551 = vunpack.c.l.b16 %v977
        %v3552 = vunpack.c.h.b16 %v977
        %v3553 = vunpack.c.l.b16 %v978
        %v3554 = vunpack.c.h.b16 %v978
        %v3555 = vunpack.c.l.b16 %v979
        %v3556 = vunpack.c.h.b16 %v979
        %v3557 = vunpack.c.l.b16 %v980
        %v3558 = vunpack.c.h.b16 %v980
        %v3559 = vunpack.c.l.b16 %v981
        %v3560 = vunpack.c.h.b16 %v981
        %v3561 = vunpack.c.l.b16 %v982
        %v3562 = vunpack.c.h.b16 %v982
        %v3563 = vunpack.c.l.b16 %v983
        %v3564 = vunpack.c.h.b16 %v983
        %v3565 = vunpack.c.l.b16 %v984
        %v3566 = vunpack.c.h.b16 %v984
        %v3567 = vunpack.c.l.b16 %v985
        %v3568 = vunpack.c.h.b16 %v985
        %v3569 = vunpack.c.l.b16 %v986
        %v3570 = vunpack.c.h.b16 %v986
        %v3571 = vunpack.c.l.b16 %v987
        %v3572 = vunpack.c.h.b16 %v987
        %v3573 = vunpack.c.l.b16 %v988
        %v3574 = vunpack.c.h.b16 %v988
        %v3575 = vunpack.c.l.b16 %v989
        %v3576 = vunpack.c.h.b16 %v989
        %v3577 = vunpack.c.l.b16 %v990
        %v3578 = vunpack.c.h.b16 %v990
        %v3579 = vunpack.c.l.b16 %v991
        %v3580 = vunpack.c.h.b16 %v991
        %v3581 = vunpack.c.l.b16 %v992
        %v3582 = vunpack.c.h.b16 %v992
        %v3583 = vunpack.c.l.b16 %v993
        %v3584 = vunpack.c.h.b16 %v993
        %v3585 = vunpack.c.l.b16 %v994
        %v3586 = vunpack.c.h.b16 %v994
        %v3587 = vunpack.c.l.b16 %v995
        %v3588 = vunpack.c.h.b16 %v995
        %v3589 = vunpack.c.l.b16 %v996
        %v3590 = vunpack.c.h.b16 %v996
        %v3591 = vunpack.c.l.b16 %v997
        %v3592 = vunpack.c.h.b16 %v997
        %v3593 = vunpack.c.l.b16 %v998
        %v3594 = vunpack.c.h.b16 %v998
        %v3595 = vunpack.c.l.b16 %v999
        %v3596 = vunpack.c.h.b16 %v999
        %v3597 = vunpack.c.l.b16 %v1000
        %v3598 = vunpack.c.h.b16 %v1000
        %v3599 = vunpack.c.l.b16 %v1001
        %v3600 = vunpack.c.h.b16 %v1001
        %v3601 = vunpack.c.l.b16 %v1002
        %v3602 = vunpack.c.h.b16 %v1002
        %v3603 = vunpack.c.l.b16 %v1003
        %v3604 = vunpack.c.h.b16 %v1003
        %v3605 = vunpack.c.l.b16 %v1004
        %v3606 = vunpack.c.h.b16 %v1004
        %v3607 = vunpack.c.l.b16 %v1005
        %v3608 = vunpack.c.h.b16 %v1005
        %v3609 = vunpack.c.l.b16 %v1006
        %v3610 = vunpack.c.h.b16 %v1006
        %v3611 = vunpack.c.l.b16 %v1007
        %v3612 = vunpack.c.h.b16 %v1007
        %v3613 = vunpack.c.l.b16 %v1008
        %v3614 = vunpack.c.h.b16 %v1008
        %v3615 = vunpack.c.l.b16 %v1009
        %v3616 = vunpack.c.h.b16 %v1009
        %v3617 = vunpack.c.l.b16 %v1010
        %v3618 = vunpack.c.h.b16 %v1010
        %v3619 = vunpack.c.l.b16 %v1011
        %v3620 = vunpack.c.h.b16 %v1011
        %v3621 = vunpack.c.l.b16 %v1012
        %v3622 = vunpack.c.h.b16 %v1012
        %v3623 = vunpack.c.l.b16 %v1013
        %v3624 = vunpack.c.h.b16 %v1013
        %v3625 = vunpack.c.l.b16 %v1014
        %v3626 = vunpack.c.h.b16 %v1014
        %v3627 = vunpack.c.l.b16 %v1015
        %v3628 = vunpack.c.h.b16 %v1015
        %v3629 = vunpack.c.l.b16 %v1016
        %v3630 = vunpack.c.h.b16 %v1016
        %v3631 = vunpack.c.l.b16 %v1017
        %v3632 = vunpack.c.h.b16 %v1017
        %v3633 = vunpack.c.l.b16 %v1018
        %v3634 = vunpack.c.h.b16 %v1018
        %v3635 = vunpack.c.l.b16 %v1019
        %v3636 = vunpack.c.h.b16 %v1019
        %v3637 = vunpack.c.l.b16 %v1020
        %v3638 = vunpack.c.h.b16 %v1020
        %v3639 = vunpack.c.l.b16 %v1021
        %v3640 = vunpack.c.h.b16 %v1021
        %v3641 = vunpack.c.l.b16 %v1022
        %v3642 = vunpack.c.h.b16 %v1022
        %v3643 = vunpack.c.l.b16 %v1023
        %v3644 = vunpack.c.h.b16 %v1023
        %v3645 = vunpack.c.l.b16 %v1024
        %v3646 = vunpack.c.h.b16 %v1024
        %v3647 = vunpack.c.l.b16 %v1025
        %v3648 = vunpack.c.h.b16 %v1025
        %v3649 = vunpack.c.l.b16 %v1026
        %v3650 = vunpack.c.h.b16 %v1026
        %v3651 = vunpack.c.l.b16 %v1027
        %v3652 = vunpack.c.h.b16 %v1027
        %v3653 = vunpack.c.l.b16 %v1028
        %v3654 = vunpack.c.h.b16 %v1028
        %v3655 = vunpack.c.l.b16 %v1029
        %v3656 = vunpack.c.h.b16 %v1029
        %v3657 = vunpack.c.l.b16 %v1030
        %v3658 = vunpack.c.h.b16 %v1030
        %v3659 = vunpack.c.l.b16 %v1031
        %v3660 = vunpack.c.h.b16 %v1031
        %v3661 = vunpack.c.l.b16 %v1032
        %v3662 = vunpack.c.h.b16 %v1032
        %v3663 = vunpack.c.l.b16 %v1033
        %v3664 = vunpack.c.h.b16 %v1033
        %v3665 = vunpack.c.l.b16 %v1034
        %v3666 = vunpack.c.h.b16 %v1034
        %v3667 = vunpack.c.l.b16 %v1035
        %v3668 = vunpack.c.h.b16 %v1035
        %v3669 = vunpack.c.l.b16 %v1036
        %v3670 = vunpack.c.h.b16 %v1036
        %v3671 = vunpack.c.l.b16 %v1037
        %v3672 = vunpack.c.h.b16 %v1037
        %v3673 = vunpack.c.l.b16 %v1038
        %v3674 = vunpack.c.h.b16 %v1038
        %v3675 = vunpack.c.l.b16 %v1039
        %v3676 = vunpack.c.h.b16 %v1039
        %v3677 = vunpack.c.l.b16 %v1040
        %v3678 = vunpack.c.h.b16 %v1040
        %v3679 = vunpack.c.l.b16 %v1041
        %v3680 = vunpack.c.h.b16 %v1041
        %v3681 = vunpack.c.l.b16 %v1042
        %v3682 = vunpack.c.h.b16 %v1042
        %v3683 = vunpack.c.l.b16 %v1043
        %v3684 = vunpack.c.h.b16 %v1043
        %v3685 = vunpack.c.l.b16 %v1044
        %v3686 = vunpack.c.h.b16 %v1044
        %v3687 = vunpack.c.l.b16 %v1045
        %v3688 = vunpack.c.h.b16 %v1045
        %v3689 = vunpack.c.l.b16 %v1046
        %v3690 = vunpack.c.h.b16 %v1046
        %v3691 = vunpack.c.l.b16 %v1047
        %v3692 = vunpack.c.h.b16 %v1047
        %v3693 = vunpack.c.l.b16 %v1048
        %v3694 = vunpack.c.h.b16 %v1048
        %v3695 = vunpack.c.l.b16 %v1049
        %v3696 = vunpack.c.h.b16 %v1049
        %v3697 = vunpack.c.l.b16 %v1050
        %v3698 = vunpack.c.h.b16 %v1050
        %v3699 = vunpack.c.l.b16 %v1051
        %v3700 = vunpack.c.h.b16 %v1051
        %v3701 = vunpack.c.l.b16 %v1052
        %v3702 = vunpack.c.h.b16 %v1052
        %v3703 = vunpack.c.l.b16 %v1053
        %v3704 = vunpack.c.h.b16 %v1053
        %v3705 = vunpack.c.l.b16 %v1054
        %v3706 = vunpack.c.h.b16 %v1054
        %v3707 = vunpack.c.l.b16 %v1055
        %v3708 = vunpack.c.h.b16 %v1055
        %v3709 = vunpack.c.l.b16 %v1056
        %v3710 = vunpack.c.h.b16 %v1056
        %v3711 = vunpack.c.l.b16 %v1057
        %v3712 = vunpack.c.h.b16 %v1057
        %v3713 = vunpack.c.l.b16 %v1058
        %v3714 = vunpack.c.h.b16 %v1058
        %v3715 = vunpack.c.l.b16 %v1059
        %v3716 = vunpack.c.h.b16 %v1059
        %v3717 = vunpack.c.l.b16 %v1060
        %v3718 = vunpack.c.h.b16 %v1060
        %v3719 = vunpack.c.l.b16 %v1061
        %v3720 = vunpack.c.h.b16 %v1061
        %v3721 = vunpack.c.l.b16 %v1062
        %v3722 = vunpack.c.h.b16 %v1062
        %v3723 = vunpack.c.l.b16 %v1063
        %v3724 = vunpack.c.h.b16 %v1063
        %v3725 = vunpack.c.l.b16 %v1064
        %v3726 = vunpack.c.h.b16 %v1064
        %v3727 = vunpack.c.l.b16 %v1065
        %v3728 = vunpack.c.h.b16 %v1065
        %v3729 = vunpack.c.l.b16 %v1066
        %v3730 = vunpack.c.h.b16 %v1066
        %v3731 = vunpack.c.l.b16 %v1067
        %v3732 = vunpack.c.h.b16 %v1067
        %v3733 = vunpack.c.l.b16 %v1068
        %v3734 = vunpack.c.h.b16 %v1068
        %v3735 = vunpack.c.l.b16 %v1069
        %v3736 = vunpack.c.h.b16 %v1069
        %v3737 = vunpack.c.l.b16 %v1070
        %v3738 = vunpack.c.h.b16 %v1070
        %v3739 = vunpack.c.l.b16 %v1071
        %v3740 = vunpack.c.h.b16 %v1071
        %v3741 = vunpack.c.l.b16 %v1072
        %v3742 = vunpack.c.h.b16 %v1072
        %v3743 = vunpack.c.l.b16 %v1073
        %v3744 = vunpack.c.h.b16 %v1073
        %v3745 = vunpack.c.l.b16 %v1074
        %v3746 = vunpack.c.h.b16 %v1074
        %v3747 = vunpack.c.l.b16 %v1075
        %v3748 = vunpack.c.h.b16 %v1075
        %v3749 = vunpack.c.l.b16 %v1076
        %v3750 = vunpack.c.h.b16 %v1076
        %v3751 = vunpack.c.l.b16 %v1077
        %v3752 = vunpack.c.h.b16 %v1077
        %v3753 = vunpack.c.l.b16 %v1078
        %v3754 = vunpack.c.h.b16 %v1078
        %v3755 = vunpack.c.l.b16 %v1079
        %v3756 = vunpack.c.h.b16 %v1079
        %v3757 = vunpack.c.l.b16 %v1080
        %v3758 = vunpack.c.h.b16 %v1080
        %v3759 = vunpack.c.l.b16 %v1081
        %v3760 = vunpack.c.h.b16 %v1081
        %v3761 = vunpack.c.l.b16 %v1082
        %v3762 = vunpack.c.h.b16 %v1082
        %v3763 = vunpack.c.l.b16 %v1083
        %v3764 = vunpack.c.h.b16 %v1083
        %v3765 = vunpack.c.l.b16 %v1084
        %v3766 = vunpack.c.h.b16 %v1084
        %v3767 = vunpack.c.l.b16 %v1085
        %v3768 = vunpack.c.h.b16 %v1085
        %v3769 = vunpack.c.l.b16 %v1086
        %v3770 = vunpack.c.h.b16 %v1086
        %v3771 = vunpack.c.l.b16 %v1087
        %v3772 = vunpack.c.h.b16 %v1087
        %v3773 = vunpack.c.l.b16 %v1088
        %v3774 = vunpack.c.h.b16 %v1088
        %v3775 = vunpack.c.l.b16 %v1089
        %v3776 = vunpack.c.h.b16 %v1089
        %v3777 = vunpack.c.l.b16 %v1090
        %v3778 = vunpack.c.h.b16 %v1090
        %v3779 = vunpack.c.l.b16 %v1091
        %v3780 = vunpack.c.h.b16 %v1091
        %v3781 = vunpack.c.l.b16 %v1092
        %v3782 = vunpack.c.h.b16 %v1092
        %v3783 = vunpack.c.l.b16 %v1093
        %v3784 = vunpack.c.h.b16 %v1093
        %v3785 = vunpack.c.l.b16 %v1094
        %v3786 = vunpack.c.h.b16 %v1094
        %v3787 = vunpack.c.l.b16 %v1095
        %v3788 = vunpack.c.h.b16 %v1095
        %v3789 = vunpack.c.l.b16 %v1096
        %v3790 = vunpack.c.h.b16 %v1096
        %v3791 = vunpack.c.l.b16 %v1097
        %v3792 = vunpack.c.h.b16 %v1097
        %v3793 = vunpack.c.l.b16 %v1098
        %v3794 = vunpack.c.h.b16 %v1098
        %v3795 = vunpack.c.l.b16 %v1099
        %v3796 = vunpack.c.h.b16 %v1099
        %v3797 = vunpack.c.l.b16 %v1100
        %v3798 = vunpack.c.h.b16 %v1100
        %v3799 = vunpack.c.l.b16 %v1101
        %v3800 = vunpack.c.h.b16 %v1101
        %v3801 = vunpack.c.l.b16 %v1102
        %v3802 = vunpack.c.h.b16 %v1102
        %v3803 = vunpack.c.l.b16 %v1103
        %v3804 = vunpack.c.h.b16 %v1103
        %v3805 = vunpack.c.l.b16 %v1104
        %v3806 = vunpack.c.h.b16 %v1104
        %v3807 = vunpack.c.l.b16 %v1105
        %v3808 = vunpack.c.h.b16 %v1105
        %v3809 = vunpack.c.l.b16 %v1106
        %v3810 = vunpack.c.h.b16 %v1106
        %v3811 = vunpack.c.l.b16 %v1107
        %v3812 = vunpack.c.h.b16 %v1107
        %v3813 = vunpack.c.l.b16 %v1108
        %v3814 = vunpack.c.h.b16 %v1108
        %v3815 = vunpack.c.l.b16 %v1109
        %v3816 = vunpack.c.h.b16 %v1109
        %v3817 = vunpack.c.l.b16 %v1110
        %v3818 = vunpack.c.h.b16 %v1110
        %v3819 = vunpack.c.l.b16 %v1111
        %v3820 = vunpack.c.h.b16 %v1111
        %v3821 = vunpack.c.l.b16 %v1112
        %v3822 = vunpack.c.h.b16 %v1112
        %v3823 = vunpack.c.l.b16 %v1113
        %v3824 = vunpack.c.h.b16 %v1113
        %v3825 = vunpack.c.l.b16 %v1114
        %v3826 = vunpack.c.h.b16 %v1114
        %v3827 = vunpack.c.l.b16 %v1115
        %v3828 = vunpack.c.h.b16 %v1115
        %v3829 = vunpack.c.l.b16 %v1116
        %v3830 = vunpack.c.h.b16 %v1116
        %v3831 = vunpack.c.l.b16 %v1117
        %v3832 = vunpack.c.h.b16 %v1117
        %v3833 = vunpack.c.l.b16 %v1118
        %v3834 = vunpack.c.h.b16 %v1118
        %v3835 = vunpack.c.l.b16 %v1119
        %v3836 = vunpack.c.h.b16 %v1119
        %v3837 = vunpack.c.l.b16 %v1120
        %v3838 = vunpack.c.h.b16 %v1120
        %v3839 = vunpack.c.l.b16 %v1121
        %v3840 = vunpack.c.h.b16 %v1121
        %v3841 = vunpack.c.l.b16 %v1122
        %v3842 = vunpack.c.h.b16 %v1122
        %v3843 = vunpack.c.l.b16 %v1123
        %v3844 = vunpack.c.h.b16 %v1123
        %v3845 = vunpack.c.l.b16 %v1124
        %v3846 = vunpack.c.h.b16 %v1124
        %v3847 = vunpack.c.l.b16 %v1125
        %v3848 = vunpack.c.h.b16 %v1125
        %v3849 = vunpack.c.l.b16 %v1126
        %v3850 = vunpack.c.h.b16 %v1126
        %v3851 = vunpack.c.l.b16 %v1127
        %v3852 = vunpack.c.h.b16 %v1127
        %v3853 = vunpack.c.l.b16 %v1128
        %v3854 = vunpack.c.h.b16 %v1128
        %v3855 = vunpack.c.l.b16 %v1129
        %v3856 = vunpack.c.h.b16 %v1129
        %v3857 = vunpack.c.l.b16 %v1130
        %v3858 = vunpack.c.h.b16 %v1130
        %v3859 = vpack.c.b16 %v2293, %v2291
        %v3860 = vpack.c.b16 %v2294, %v2292
        %v3861 = vpack.c.b16 %v2297, %v2295
        %v3862 = vpack.c.b16 %v2298, %v2296
        %v3863 = vpack.c.b16 %v2301, %v2299
        %v3864 = vpack.c.b16 %v2302, %v2300
        %v3865 = vpack.c.b16 %v2305, %v2303
        %v3866 = vpack.c.b16 %v2306, %v2304
        %v3867 = vpack.c.b16 %v2309, %v2307
        %v3868 = vpack.c.b16 %v2310, %v2308
        %v3869 = vpack.c.b16 %v2313, %v2311
        %v3870 = vpack.c.b16 %v2314, %v2312
        %v3871 = vpack.c.b16 %v2317, %v2315
        %v3872 = vpack.c.b16 %v2318, %v2316
        %v3873 = vpack.c.b16 %v2321, %v2319
        %v3874 = vpack.c.b16 %v2322, %v2320
        %v3875 = vpack.c.b16 %v2325, %v2323
        %v3876 = vpack.c.b16 %v2326, %v2324
        %v3877 = vpack.c.b16 %v2329, %v2327
        %v3878 = vpack.c.b16 %v2330, %v2328
        %v3879 = vpack.c.b16 %v2333, %v2331
        %v3880 = vpack.c.b16 %v2334, %v2332
        %v3881 = vpack.c.b16 %v2337, %v2335
        %v3882 = vpack.c.b16 %v2338, %v2336
        %v3883 = vpack.c.b16 %v2341, %v2339
        %v3884 = vpack.c.b16 %v2342, %v2340
        %v3885 = vpack.c.b16 %v2345, %v2343
        %v3886 = vpack.c.b16 %v2346, %v2344
        %v3887 = vpack.c.b16 %v2349, %v2347
        %v3888 = vpack.c.b16 %v2350, %v2348
        %v3889 = vpack.c.b16 %v2353, %v2351
        %v3890 = vpack.c.b16 %v2354, %v2352
        %v3891 = vpack.c.b16 %v2357, %v2355
        %v3892 = vpack.c.b16 %v2358, %v2356
        %v3893 = vpack.c.b16 %v2361, %v2359
        %v3894 = vpack.c.b16 %v2362, %v2360
        %v3895 = vpack.c.b16 %v2365, %v2363
        %v3896 = vpack.c.b16 %v2366, %v2364
        %v3897 = vpack.c.b16 %v2369, %v2367
        %v3898 = vpack.c.b16 %v2370, %v2368
        %v3899 = vpack.c.b16 %v2373, %v2371
        %v3900 = vpack.c.b16 %v2374, %v2372
        %v3901 = vpack.c.b16 %v2377, %v2375
        %v3902 = vpack.c.b16 %v2378, %v2376
        %v3903 = vpack.c.b16 %v2381, %v2379
        %v3904 = vpack.c.b16 %v2382, %v2380
        %v3905 = vpack.c.b16 %v2385, %v2383
        %v3906 = vpack.c.b16 %v2386, %v2384
        %v3907 = vpack.c.b16 %v2389, %v2387
        %v3908 = vpack.c.b16 %v2390, %v2388
        %v3909 = vpack.c.b16 %v2393, %v2391
        %v3910 = vpack.c.b16 %v2394, %v2392
        %v3911 = vpack.c.b16 %v2397, %v2395
        %v3912 = vpack.c.b16 %v2398, %v2396
        %v3913 = vpack.c.b16 %v2401, %v2399
        %v3914 = vpack.c.b16 %v2402, %v2400
        %v3915 = vpack.c.b16 %v2405, %v2403
        %v3916 = vpack.c.b16 %v2406, %v2404
        %v3917 = vpack.c.b16 %v2409, %v2407
        %v3918 = vpack.c.b16 %v2410, %v2408
        %v3919 = vpack.c.b16 %v2413, %v2411
        %v3920 = vpack.c.b16 %v2414, %v2412
        %v3921 = vpack.c.b16 %v2417, %v2415
        %v3922 = vpack.c.b16 %v2418, %v2416
        %v3923 = vpack.c.b16 %v2421, %v2419
        %v3924 = vpack.c.b16 %v2422, %v2420
        %v3925 = vpack.c.b16 %v2425, %v2423
        %v3926 = vpack.c.b16 %v2426, %v2424
        %v3927 = vpack.c.b16 %v2429, %v2427
        %v3928 = vpack.c.b16 %v2430, %v2428
        %v3929 = vpack.c.b16 %v2433, %v2431
        %v3930 = vpack.c.b16 %v2434, %v2432
        %v3931 = vpack.c.b16 %v2437, %v2435
        %v3932 = vpack.c.b16 %v2438, %v2436
        %v3933 = vpack.c.b16 %v2441, %v2439
        %v3934 = vpack.c.b16 %v2442, %v2440
        %v3935 = vpack.c.b16 %v2445, %v2443
        %v3936 = vpack.c.b16 %v2446, %v2444
        %v3937 = vpack.c.b16 %v2449, %v2447
        %v3938 = vpack.c.b16 %v2450, %v2448
        %v3939 = vpack.c.b16 %v2453, %v2451
        %v3940 = vpack.c.b16 %v2454, %v2452
        %v3941 = vpack.c.b16 %v2457, %v2455
        %v3942 = vpack.c.b16 %v2458, %v2456
        %v3943 = vpack.c.b16 %v2461, %v2459
        %v3944 = vpack.c.b16 %v2462, %v2460
        %v3945 = vpack.c.b16 %v2465, %v2463
        %v3946 = vpack.c.b16 %v2466, %v2464
        %v3947 = vpack.c.b16 %v2469, %v2467
        %v3948 = vpack.c.b16 %v2470, %v2468
        %v3949 = vpack.c.b16 %v2473, %v2471
        %v3950 = vpack.c.b16 %v2474, %v2472
        %v3951 = vpack.c.b16 %v2477, %v2475
        %v3952 = vpack.c.b16 %v2478, %v2476
        %v3953 = vpack.c.b16 %v2481, %v2479
        %v3954 = vpack.c.b16 %v2482, %v2480
        %v3955 = vpack.c.b16 %v2485, %v2483
        %v3956 = vpack.c.b16 %v2486, %v2484
        %v3957 = vpack.c.b16 %v2489, %v2487
        %v3958 = vpack.c.b16 %v2490, %v2488
        %v3959 = vpack.c.b16 %v2493, %v2491
        %v3960 = vpack.c.b16 %v2494, %v2492
        %v3961 = vpack.c.b16 %v2497, %v2495
        %v3962 = vpack.c.b16 %v2498, %v2496
        %v3963 = vpack.c.b16 %v2501, %v2499
        %v3964 = vpack.c.b16 %v2502, %v2500
        %v3965 = vpack.c.b16 %v2505, %v2503
        %v3966 = vpack.c.b16 %v2506, %v2504
        %v3967 = vpack.c.b16 %v2509, %v2507
        %v3968 = vpack.c.b16 %v2510, %v2508
        %v3969 = vpack.c.b16 %v2513, %v2511
        %v3970 = vpack.c.b16 %v2514, %v2512
        %v3971 = vpack.c.b16 %v2517, %v2515
        %v3972 = vpack.c.b16 %v2518, %v2516
        %v3973 = vpack.c.b16 %v2521, %v2519
        %v3974 = vpack.c.b16 %v2522, %v2520
        %v3975 = vpack.c.b16 %v2525, %v2523
        %v3976 = vpack.c.b16 %v2526, %v2524
        %v3977 = vpack.c.b16 %v2529, %v2527
        %v3978 = vpack.c.b16 %v2530, %v2528
        %v3979 = vpack.c.b16 %v2533, %v2531
        %v3980 = vpack.c.b16 %v2534, %v2532
        %v3981 = vpack.c.b16 %v2537, %v2535
        %v3982 = vpack.c.b16 %v2538, %v2536
        %v3983 = vpack.c.b16 %v2541, %v2539
        %v3984 = vpack.c.b16 %v2542, %v2540
        %v3985 = vpack.c.b16 %v2545, %v2543
        %v3986 = vpack.c.b16 %v2546, %v2544
        %v3987 = vpack.c.b16 %v2549, %v2547
        %v3988 = vpack.c.b16 %v2550, %v2548
        %v3989 = vpack.c.b16 %v2553, %v2551
        %v3990 = vpack.c.b16 %v2554, %v2552
        %v3991 = vpack.c.b16 %v2557, %v2555
        %v3992 = vpack.c.b16 %v2558, %v2556
        %v3993 = vpack.c.b16 %v2561, %v2559
        %v3994 = vpack.c.b16 %v2562, %v2560
        %v3995 = vpack.c.b16 %v2565, %v2563
        %v3996 = vpack.c.b16 %v2566, %v2564
        %v3997 = vpack.c.b16 %v2569, %v2567
        %v3998 = vpack.c.b16 %v2570, %v2568
        %v3999 = vpack.c.b16 %v2573, %v2571
        %v4000 = vpack.c.b16 %v2574, %v2572
        %v4001 = vpack.c.b16 %v2577, %v2575
        %v4002 = vpack.c.b16 %v2578, %v2576
        %v4003 = vpack.c.b16 %v2581, %v2579
        %v4004 = vpack.c.b16 %v2582, %v2580
        %v4005 = vpack.c.b16 %v2585, %v2583
        %v4006 = vpack.c.b16 %v2586, %v2584
        %v4007 = vpack.c.b16 %v2589, %v2587
        %v4008 = vpack.c.b16 %v2590, %v2588
        %v4009 = vpack.c.b16 %v2593, %v2591
        %v4010 = vpack.c.b16 %v2594, %v2592
        %v4011 = vpack.c.b16 %v2597, %v2595
        %v4012 = vpack.c.b16 %v2598, %v2596
        %v4013 = vpack.c.b16 %v2601, %v2599
        %v4014 = vpack.c.b16 %v2602, %v2600
        %v4015 = vpack.c.b16 %v2605, %v2603
        %v4016 = vpack.c.b16 %v2606, %v2604
        %v4017 = vpack.c.b16 %v2609, %v2607
        %v4018 = vpack.c.b16 %v2610, %v2608
        %v4019 = vpack.c.b16 %v2613, %v2611
        %v4020 = vpack.c.b16 %v2614, %v2612
        %v4021 = vpack.c.b16 %v2617, %v2615
        %v4022 = vpack.c.b16 %v2618, %v2616
        %v4023 = vpack.c.b16 %v2621, %v2619
        %v4024 = vpack.c.b16 %v2622, %v2620
        %v4025 = vpack.c.b16 %v2625, %v2623
        %v4026 = vpack.c.b16 %v2626, %v2624
        %v4027 = vpack.c.b16 %v2629, %v2627
        %v4028 = vpack.c.b16 %v2630, %v2628
        %v4029 = vpack.c.b16 %v2633, %v2631
        %v4030 = vpack.c.b16 %v2634, %v2632
        %v4031 = vpack.c.b16 %v2637, %v2635
        %v4032 = vpack.c.b16 %v2638, %v2636
        %v4033 = vpack.c.b16 %v2641, %v2639
        %v4034 = vpack.c.b16 %v2642, %v2640
        %v4035 = vpack.c.b16 %v2645, %v2643
        %v4036 = vpack.c.b16 %v2646, %v2644
        %v4037 = vpack.c.b16 %v2649, %v2647
        %v4038 = vpack.c.b16 %v2650, %v2648
        %v4039 = vpack.c.b16 %v2653, %v2651
        %v4040 = vpack.c.b16 %v2654, %v2652
        %v4041 = vpack.c.b16 %v2657, %v2655
        %v4042 = vpack.c.b16 %v2658, %v2656
        %v4043 = vpack.c.b16 %v2661, %v2659
        %v4044 = vpack.c.b16 %v2662, %v2660
        %v4045 = vpack.c.b16 %v2665, %v2663
        %v4046 = vpack.c.b16 %v2666, %v2664
        %v4047 = vpack.c.b16 %v2669, %v2667
        %v4048 = vpack.c.b16 %v2670, %v2668
        %v4049 = vpack.c.b16 %v2673, %v2671
        %v4050 = vpack.c.b16 %v2674, %v2672
        %v4051 = vpack.c.b16 %v2677, %v2675
        %v4052 = vpack.c.b16 %v2678, %v2676
        %v4053 = vpack.c.b16 %v2681, %v2679
        %v4054 = vpack.c.b16 %v2682, %v2680
        %v4055 = vpack.c.b16 %v2685, %v2683
        %v4056 = vpack.c.b16 %v2686, %v2684
        %v4057 = vpack.c.b16 %v2689, %v2687
        %v4058 = vpack.c.b16 %v2690, %v2688
        %v4059 = vpack.c.b16 %v2693, %v2691
        %v4060 = vpack.c.b16 %v2694, %v2692
        %v4061 = vpack.c.b16 %v2697, %v2695
        %v4062 = vpack.c.b16 %v2698, %v2696
        %v4063 = vpack.c.b16 %v2701, %v2699
        %v4064 = vpack.c.b16 %v2702, %v2700
        %v4065 = vpack.c.b16 %v2705, %v2703
        %v4066 = vpack.c.b16 %v2706, %v2704
        %v4067 = vpack.c.b16 %v2709, %v2707
        %v4068 = vpack.c.b16 %v2710, %v2708
        %v4069 = vpack.c.b16 %v2713, %v2711
        %v4070 = vpack.c.b16 %v2714, %v2712
        %v4071 = vpack.c.b16 %v2717, %v2715
        %v4072 = vpack.c.b16 %v2718, %v2716
        %v4073 = vpack.c.b16 %v2721, %v2719
        %v4074 = vpack.c.b16 %v2722, %v2720
        %v4075 = vpack.c.b16 %v2725, %v2723
        %v4076 = vpack.c.b16 %v2726, %v2724
        %v4077 = vpack.c.b16 %v2729, %v2727
        %v4078 = vpack.c.b16 %v2730, %v2728
        %v4079 = vpack.c.b16 %v2733, %v2731
        %v4080 = vpack.c.b16 %v2734, %v2732
        %v4081 = vpack.c.b16 %v2737, %v2735
        %v4082 = vpack.c.b16 %v2738, %v2736
        %v4083 = vpack.c.b16 %v2741, %v2739
        %v4084 = vpack.c.b16 %v2742, %v2740
        %v4085 = vpack.c.b16 %v2745, %v2743
        %v4086 = vpack.c.b16 %v2746, %v2744
        %v4087 = vpack.c.b16 %v2749, %v2747
        %v4088 = vpack.c.b16 %v2750, %v2748
        %v4089 = vpack.c.b16 %v2753, %v2751
        %v4090 = vpack.c.b16 %v2754, %v2752
        %v4091 = vpack.c.b16 %v2757, %v2755
        %v4092 = vpack.c.b16 %v2758, %v2756
        %v4093 = vpack.c.b16 %v2761, %v2759
        %v4094 = vpack.c.b16 %v2762, %v2760
        %v4095 = vpack.c.b16 %v2765, %v2763
        %v4096 = vpack.c.b16 %v2766, %v2764
        %v4097 = vpack.c.b16 %v2769, %v2767
        %v4098 = vpack.c.b16 %v2770, %v2768
        %v4099 = vpack.c.b16 %v2773, %v2771
        %v4100 = vpack.c.b16 %v2774, %v2772
        %v4101 = vpack.c.b16 %v2777, %v2775
        %v4102 = vpack.c.b16 %v2778, %v2776
        %v4103 = vpack.c.b16 %v2781, %v2779
        %v4104 = vpack.c.b16 %v2782, %v2780
        %v4105 = vpack.c.b16 %v2785, %v2783
        %v4106 = vpack.c.b16 %v2786, %v2784
        %v4107 = vpack.c.b16 %v2789, %v2787
        %v4108 = vpack.c.b16 %v2790, %v2788
        %v4109 = vpack.c.b16 %v2793, %v2791
        %v4110 = vpack.c.b16 %v2794, %v2792
        %v4111 = vpack.c.b16 %v2797, %v2795
        %v4112 = vpack.c.b16 %v2798, %v2796
        %v4113 = vpack.c.b16 %v2801, %v2799
        %v4114 = vpack.c.b16 %v2802, %v2800
        %v4115 = vpack.c.b16 %v2805, %v2803
        %v4116 = vpack.c.b16 %v2806, %v2804
        %v4117 = vpack.c.b16 %v2809, %v2807
        %v4118 = vpack.c.b16 %v2810, %v2808
        %v4119 = vpack.c.b16 %v2813, %v2811
        %v4120 = vpack.c.b16 %v2814, %v2812
        %v4121 = vpack.c.b16 %v2817, %v2815
        %v4122 = vpack.c.b16 %v2818, %v2816
        %v4123 = vpack.c.b16 %v2821, %v2819
        %v4124 = vpack.c.b16 %v2822, %v2820
        %v4125 = vpack.c.b16 %v2825, %v2823
        %v4126 = vpack.c.b16 %v2826, %v2824
        %v4127 = vpack.c.b16 %v2829, %v2827
        %v4128 = vpack.c.b16 %v2830, %v2828
        %v4129 = vpack.c.b16 %v2833, %v2831
        %v4130 = vpack.c.b16 %v2834, %v2832
        %v4131 = vpack.c.b16 %v2837, %v2835
        %v4132 = vpack.c.b16 %v2838, %v2836
        %v4133 = vpack.c.b16 %v2841, %v2839
        %v4134 = vpack.c.b16 %v2842, %v2840
        %v4135 = vpack.c.b16 %v2845, %v2843
        %v4136 = vpack.c.b16 %v2846, %v2844
        %v4137 = vpack.c.b16 %v2849, %v2847
        %v4138 = vpack.c.b16 %v2850, %v2848
        %v4139 = vpack.c.b16 %v2853, %v2851
        %v4140 = vpack.c.b16 %v2854, %v2852
        %v4141 = vpack.c.b16 %v2857, %v2855
        %v4142 = vpack.c.b16 %v2858, %v2856
        %v4143 = vpack.c.b16 %v2861, %v2859
        %v4144 = vpack.c.b16 %v2862, %v2860
        %v4145 = vpack.c.b16 %v2865, %v2863
        %v4146 = vpack.c.b16 %v2866, %v2864
        %v4147 = vpack.c.b16 %v2869, %v2867
        %v4148 = vpack.c.b16 %v2870, %v2868
        %v4149 = vpack.c.b16 %v2873, %v2871
        %v4150 = vpack.c.b16 %v2874, %v2872
        %v4151 = vpack.c.b16 %v2877, %v2875
        %v4152 = vpack.c.b16 %v2878, %v2876
        %v4153 = vpack.c.b16 %v2881, %v2879
        %v4154 = vpack.c.b16 %v2882, %v2880
        %v4155 = vpack.c.b16 %v2885, %v2883
        %v4156 = vpack.c.b16 %v2886, %v2884
        %v4157 = vpack.c.b16 %v2889, %v2887
        %v4158 = vpack.c.b16 %v2890, %v2888
        %v4159 = vpack.c.b16 %v2893, %v2891
        %v4160 = vpack.c.b16 %v2894, %v2892
        %v4161 = vpack.c.b16 %v2897, %v2895
        %v4162 = vpack.c.b16 %v2898, %v2896
        %v4163 = vpack.c.b16 %v2901, %v2899
        %v4164 = vpack.c.b16 %v2902, %v2900
        %v4165 = vpack.c.b16 %v2905, %v2903
        %v4166 = vpack.c.b16 %v2906, %v2904
        %v4167 = vpack.c.b16 %v2909, %v2907
        %v4168 = vpack.c.b16 %v2910, %v2908
        %v4169 = vpack.c.b16 %v2913, %v2911
        %v4170 = vpack.c.b16 %v2914, %v2912
        %v4171 = vpack.c.b16 %v2917, %v2915
        %v4172 = vpack.c.b16 %v2918, %v2916
        %v4173 = vpack.c.b16 %v2921, %v2919
        %v4174 = vpack.c.b16 %v2922, %v2920
        %v4175 = vpack.c.b16 %v2925, %v2923
        %v4176 = vpack.c.b16 %v2926, %v2924
        %v4177 = vpack.c.b16 %v2929, %v2927
        %v4178 = vpack.c.b16 %v2930, %v2928
        %v4179 = vpack.c.b16 %v2933, %v2931
        %v4180 = vpack.c.b16 %v2934, %v2932
        %v4181 = vpack.c.b16 %v2937, %v2935
        %v4182 = vpack.c.b16 %v2938, %v2936
        %v4183 = vpack.c.b16 %v2941, %v2939
        %v4184 = vpack.c.b16 %v2942, %v2940
        %v4185 = vpack.c.b16 %v2945, %v2943
        %v4186 = vpack.c.b16 %v2946, %v2944
        %v4187 = vpack.c.b16 %v2949, %v2947
        %v4188 = vpack.c.b16 %v2950, %v2948
        %v4189 = vpack.c.b16 %v2953, %v2951
        %v4190 = vpack.c.b16 %v2954, %v2952
        %v4191 = vpack.c.b16 %v2957, %v2955
        %v4192 = vpack.c.b16 %v2958, %v2956
        %v4193 = vpack.c.b16 %v2961, %v2959
        %v4194 = vpack.c.b16 %v2962, %v2960
        %v4195 = vpack.c.b16 %v2965, %v2963
        %v4196 = vpack.c.b16 %v2966, %v2964
        %v4197 = vpack.c.b16 %v2969, %v2967
        %v4198 = vpack.c.b16 %v2970, %v2968
        %v4199 = vpack.c.b16 %v2973, %v2971
        %v4200 = vpack.c.b16 %v2974, %v2972
        %v4201 = vpack.c.b16 %v2977, %v2975
        %v4202 = vpack.c.b16 %v2978, %v2976
        %v4203 = vpack.c.b16 %v2981, %v2979
        %v4204 = vpack.c.b16 %v2982, %v2980
        %v4205 = vpack.c.b16 %v2985, %v2983
        %v4206 = vpack.c.b16 %v2986, %v2984
        %v4207 = vpack.c.b16 %v2989, %v2987
        %v4208 = vpack.c.b16 %v2990, %v2988
        %v4209 = vpack.c.b16 %v2993, %v2991
        %v4210 = vpack.c.b16 %v2994, %v2992
        %v4211 = vpack.c.b16 %v2997, %v2995
        %v4212 = vpack.c.b16 %v2998, %v2996
        %v4213 = vpack.c.b16 %v3001, %v2999
        %v4214 = vpack.c.b16 %v3002, %v3000
        %v4215 = vpack.c.b16 %v3005, %v3003
        %v4216 = vpack.c.b16 %v3006, %v3004
        %v4217 = vpack.c.b16 %v3009, %v3007
        %v4218 = vpack.c.b16 %v3010, %v3008
        %v4219 = vpack.c.b16 %v3013, %v3011
        %v4220 = vpack.c.b16 %v3014, %v3012
        %v4221 = vpack.c.b16 %v3017, %v3015
        %v4222 = vpack.c.b16 %v3018, %v3016
        %v4223 = vpack.c.b16 %v3021, %v3019
        %v4224 = vpack.c.b16 %v3022, %v3020
        %v4225 = vpack.c.b16 %v3025, %v3023
        %v4226 = vpack.c.b16 %v3026, %v3024
        %v4227 = vpack.c.b16 %v3029, %v3027
        %v4228 = vpack.c.b16 %v3030, %v3028
        %v4229 = vpack.c.b16 %v3033, %v3031
        %v4230 = vpack.c.b16 %v3034, %v3032
        %v4231 = vpack.c.b16 %v3037, %v3035
        %v4232 = vpack.c.b16 %v3038, %v3036
        %v4233 = vpack.c.b16 %v3041, %v3039
        %v4234 = vpack.c.b16 %v3042, %v3040
        %v4235 = vpack.c.b16 %v3045, %v3043
        %v4236 = vpack.c.b16 %v3046, %v3044
        %v4237 = vpack.c.b16 %v3049, %v3047
        %v4238 = vpack.c.b16 %v3050, %v3048
        %v4239 = vpack.c.b16 %v3053, %v3051
        %v4240 = vpack.c.b16 %v3054, %v3052
        %v4241 = vpack.c.b16 %v3057, %v3055
        %v4242 = vpack.c.b16 %v3058, %v3056
        %v4243 = vpack.c.b16 %v3061, %v3059
        %v4244 = vpack.c.b16 %v3062, %v3060
        %v4245 = vpack.c.b16 %v3065, %v3063
        %v4246 = vpack.c.b16 %v3066, %v3064
        %v4247 = vpack.c.b16 %v3069, %v3067
        %v4248 = vpack.c.b16 %v3070, %v3068
        %v4249 = vpack.c.b16 %v3073, %v3071
        %v4250 = vpack.c.b16 %v3074, %v3072
        %v4251 = vpack.c.b16 %v3077, %v3075
        %v4252 = vpack.c.b16 %v3078, %v3076
        %v4253 = vpack.c.b16 %v3081, %v3079
        %v4254 = vpack.c.b16 %v3082, %v3080
        %v4255 = vpack.c.b16 %v3085, %v3083
        %v4256 = vpack.c.b16 %v3086, %v3084
        %v4257 = vpack.c.b16 %v3089, %v3087
        %v4258 = vpack.c.b16 %v3090, %v3088
        %v4259 = vpack.c.b16 %v3093, %v3091
        %v4260 = vpack.c.b16 %v3094, %v3092
        %v4261 = vpack.c.b16 %v3097, %v3095
        %v4262 = vpack.c.b16 %v3098, %v3096
        %v4263 = vpack.c.b16 %v3101, %v3099
        %v4264 = vpack.c.b16 %v3102, %v3100
        %v4265 = vpack.c.b16 %v3105, %v3103
        %v4266 = vpack.c.b16 %v3106, %v3104
        %v4267 = vpack.c.b16 %v3109, %v3107
        %v4268 = vpack.c.b16 %v3110, %v3108
        %v4269 = vpack.c.b16 %v3113, %v3111
        %v4270 = vpack.c.b16 %v3114, %v3112
        %v4271 = vpack.c.b16 %v3117, %v3115
        %v4272 = vpack.c.b16 %v3118, %v3116
        %v4273 = vpack.c.b16 %v3121, %v3119
        %v4274 = vpack.c.b16 %v3122, %v3120
        %v4275 = vpack.c.b16 %v3125, %v3123
        %v4276 = vpack.c.b16 %v3126, %v3124
        %v4277 = vpack.c.b16 %v3129, %v3127
        %v4278 = vpack.c.b16 %v3130, %v3128
        %v4279 = vpack.c.b16 %v3133, %v3131
        %v4280 = vpack.c.b16 %v3134, %v3132
        %v4281 = vpack.c.b16 %v3137, %v3135
        %v4282 = vpack.c.b16 %v3138, %v3136
        %v4283 = vpack.c.b16 %v3141, %v3139
        %v4284 = vpack.c.b16 %v3142, %v3140
        %v4285 = vpack.c.b16 %v3145, %v3143
        %v4286 = vpack.c.b16 %v3146, %v3144
        %v4287 = vpack.c.b16 %v3149, %v3147
        %v4288 = vpack.c.b16 %v3150, %v3148
        %v4289 = vpack.c.b16 %v3153, %v3151
        %v4290 = vpack.c.b16 %v3154, %v3152
        %v4291 = vpack.c.b16 %v3157, %v3155
        %v4292 = vpack.c.b16 %v3158, %v3156
        %v4293 = vpack.c.b16 %v3161, %v3159
        %v4294 = vpack.c.b16 %v3162, %v3160
        %v4295 = vpack.c.b16 %v3165, %v3163
        %v4296 = vpack.c.b16 %v3166, %v3164
        %v4297 = vpack.c.b16 %v3169, %v3167
        %v4298 = vpack.c.b16 %v3170, %v3168
        %v4299 = vpack.c.b16 %v3173, %v3171
        %v4300 = vpack.c.b16 %v3174, %v3172
        %v4301 = vpack.c.b16 %v3177, %v3175
        %v4302 = vpack.c.b16 %v3178, %v3176
        %v4303 = vpack.c.b16 %v3181, %v3179
        %v4304 = vpack.c.b16 %v3182, %v3180
        %v4305 = vpack.c.b16 %v3185, %v3183
        %v4306 = vpack.c.b16 %v3186, %v3184
        %v4307 = vpack.c.b16 %v3189, %v3187
        %v4308 = vpack.c.b16 %v3190, %v3188
        %v4309 = vpack.c.b16 %v3193, %v3191
        %v4310 = vpack.c.b16 %v3194, %v3192
        %v4311 = vpack.c.b16 %v3197, %v3195
        %v4312 = vpack.c.b16 %v3198, %v3196
        %v4313 = vpack.c.b16 %v3201, %v3199
        %v4314 = vpack.c.b16 %v3202, %v3200
        %v4315 = vpack.c.b16 %v3205, %v3203
        %v4316 = vpack.c.b16 %v3206, %v3204
        %v4317 = vpack.c.b16 %v3209, %v3207
        %v4318 = vpack.c.b16 %v3210, %v3208
        %v4319 = vpack.c.b16 %v3213, %v3211
        %v4320 = vpack.c.b16 %v3214, %v3212
        %v4321 = vpack.c.b16 %v3217, %v3215
        %v4322 = vpack.c.b16 %v3218, %v3216
        %v4323 = vpack.c.b16 %v3221, %v3219
        %v4324 = vpack.c.b16 %v3222, %v3220
        %v4325 = vpack.c.b16 %v3225, %v3223
        %v4326 = vpack.c.b16 %v3226, %v3224
        %v4327 = vpack.c.b16 %v3229, %v3227
        %v4328 = vpack.c.b16 %v3230, %v3228
        %v4329 = vpack.c.b16 %v3233, %v3231
        %v4330 = vpack.c.b16 %v3234, %v3232
        %v4331 = vpack.c.b16 %v3237, %v3235
        %v4332 = vpack.c.b16 %v3238, %v3236
        %v4333 = vpack.c.b16 %v3241, %v3239
        %v4334 = vpack.c.b16 %v3242, %v3240
        %v4335 = vpack.c.b16 %v3245, %v3243
        %v4336 = vpack.c.b16 %v3246, %v3244
        %v4337 = vpack.c.b16 %v3249, %v3247
        %v4338 = vpack.c.b16 %v3250, %v3248
        %v4339 = vpack.c.b16 %v3253, %v3251
        %v4340 = vpack.c.b16 %v3254, %v3252
        %v4341 = vpack.c.b16 %v3257, %v3255
        %v4342 = vpack.c.b16 %v3258, %v3256
        %v4343 = vpack.c.b16 %v3261, %v3259
        %v4344 = vpack.c.b16 %v3262, %v3260
        %v4345 = vpack.c.b16 %v3265, %v3263
        %v4346 = vpack.c.b16 %v3266, %v3264
        %v4347 = vpack.c.b16 %v3269, %v3267
        %v4348 = vpack.c.b16 %v3270, %v3268
        %v4349 = vpack.c.b16 %v3273, %v3271
        %v4350 = vpack.c.b16 %v3274, %v3272
        %v4351 = vpack.c.b16 %v3277, %v3275
        %v4352 = vpack.c.b16 %v3278, %v3276
        %v4353 = vpack.c.b16 %v3281, %v3279
        %v4354 = vpack.c.b16 %v3282, %v3280
        %v4355 = vpack.c.b16 %v3285, %v3283
        %v4356 = vpack.c.b16 %v3286, %v3284
        %v4357 = vpack.c.b16 %v3289, %v3287
        %v4358 = vpack.c.b16 %v3290, %v3288
        %v4359 = vpack.c.b16 %v3293, %v3291
        %v4360 = vpack.c.b16 %v3294, %v3292
        %v4361 = vpack.c.b16 %v3297, %v3295
        %v4362 = vpack.c.b16 %v3298, %v3296
        %v4363 = vpack.c.b16 %v3301, %v3299
        %v4364 = vpack.c.b16 %v3302, %v3300
        %v4365 = vpack.c.b16 %v3305, %v3303
        %v4366 = vpack.c.b16 %v3306, %v3304
        %v4367 = vpack.c.b16 %v3309, %v3307
        %v4368 = vpack.c.b16 %v3310, %v3308
        %v4369 = vpack.c.b16 %v3313, %v3311
        %v4370 = vpack.c.b16 %v3314, %v3312
        %v4371 = vpack.c.b16 %v3317, %v3315
        %v4372 = vpack.c.b16 %v3318, %v3316
        %v4373 = vpack.c.b16 %v3321, %v3319
        %v4374 = vpack.c.b16 %v3322, %v3320
        %v4375 = vpack.c.b16 %v3325, %v3323
        %v4376 = vpack.c.b16 %v3326, %v3324
        %v4377 = vpack.c.b16 %v3329, %v3327
        %v4378 = vpack.c.b16 %v3330, %v3328
        %v4379 = vpack.c.b16 %v3333, %v3331
        %v4380 = vpack.c.b16 %v3334, %v3332
        %v4381 = vpack.c.b16 %v3337, %v3335
        %v4382 = vpack.c.b16 %v3338, %v3336
        %v4383 = vpack.c.b16 %v3341, %v3339
        %v4384 = vpack.c.b16 %v3342, %v3340
        %v4385 = vpack.c.b16 %v3345, %v3343
        %v4386 = vpack.c.b16 %v3346, %v3344
        %v4387 = vpack.c.b16 %v3349, %v3347
        %v4388 = vpack.c.b16 %v3350, %v3348
        %v4389 = vpack.c.b16 %v3353, %v3351
        %v4390 = vpack.c.b16 %v3354, %v3352
        %v4391 = vpack.c.b16 %v3357, %v3355
        %v4392 = vpack.c.b16 %v3358, %v3356
        %v4393 = vpack.c.b16 %v3361, %v3359
        %v4394 = vpack.c.b16 %v3362, %v3360
        %v4395 = vpack.c.b16 %v3365, %v3363
        %v4396 = vpack.c.b16 %v3366, %v3364
        %v4397 = vpack.c.b16 %v3369, %v3367
        %v4398 = vpack.c.b16 %v3370, %v3368
        %v4399 = vpack.c.b16 %v3373, %v3371
        %v4400 = vpack.c.b16 %v3374, %v3372
        %v4401 = vpack.c.b16 %v3377, %v3375
        %v4402 = vpack.c.b16 %v3378, %v3376
        %v4403 = vpack.c.b16 %v3381, %v3379
        %v4404 = vpack.c.b16 %v3382, %v3380
        %v4405 = vpack.c.b16 %v3385, %v3383
        %v4406 = vpack.c.b16 %v3386, %v3384
        %v4407 = vpack.c.b16 %v3389, %v3387
        %v4408 = vpack.c.b16 %v3390, %v3388
        %v4409 = vpack.c.b16 %v3393, %v3391
        %v4410 = vpack.c.b16 %v3394, %v3392
        %v4411 = vpack.c.b16 %v3397, %v3395
        %v4412 = vpack.c.b16 %v3398, %v3396
        %v4413 = vpack.c.b16 %v3401, %v3399
        %v4414 = vpack.c.b16 %v3402, %v3400
        %v4415 = vpack.c.b16 %v3405, %v3403
        %v4416 = vpack.c.b16 %v3406, %v3404
        %v4417 = vpack.c.b16 %v3409, %v3407
        %v4418 = vpack.c.b16 %v3410, %v3408
        %v4419 = vpack.c.b16 %v3413, %v3411
        %v4420 = vpack.c.b16 %v3414, %v3412
        %v4421 = vpack.c.b16 %v3417, %v3415
        %v4422 = vpack.c.b16 %v3418, %v3416
        %v4423 = vpack.c.b16 %v3421, %v3419
        %v4424 = vpack.c.b16 %v3422, %v3420
        %v4425 = vpack.c.b16 %v3425, %v3423
        %v4426 = vpack.c.b16 %v3426, %v3424
        %v4427 = vpack.c.b16 %v3429, %v3427
        %v4428 = vpack.c.b16 %v3430, %v3428
        %v4429 = vpack.c.b16 %v3433, %v3431
        %v4430 = vpack.c.b16 %v3434, %v3432
        %v4431 = vpack.c.b16 %v3437, %v3435
        %v4432 = vpack.c.b16 %v3438, %v3436
        %v4433 = vpack.c.b16 %v3441, %v3439
        %v4434 = vpack.c.b16 %v3442, %v3440
        %v4435 = vpack.c.b16 %v3445, %v3443
        %v4436 = vpack.c.b16 %v3446, %v3444
        %v4437 = vpack.c.b16 %v3449, %v3447
        %v4438 = vpack.c.b16 %v3450, %v3448
        %v4439 = vpack.c.b16 %v3453, %v3451
        %v4440 = vpack.c.b16 %v3454, %v3452
        %v4441 = vpack.c.b16 %v3457, %v3455
        %v4442 = vpack.c.b16 %v3458, %v3456
        %v4443 = vpack.c.b16 %v3461, %v3459
        %v4444 = vpack.c.b16 %v3462, %v3460
        %v4445 = vpack.c.b16 %v3465, %v3463
        %v4446 = vpack.c.b16 %v3466, %v3464
        %v4447 = vpack.c.b16 %v3469, %v3467
        %v4448 = vpack.c.b16 %v3470, %v3468
        %v4449 = vpack.c.b16 %v3473, %v3471
        %v4450 = vpack.c.b16 %v3474, %v3472
        %v4451 = vpack.c.b16 %v3477, %v3475
        %v4452 = vpack.c.b16 %v3478, %v3476
        %v4453 = vpack.c.b16 %v3481, %v3479
        %v4454 = vpack.c.b16 %v3482, %v3480
        %v4455 = vpack.c.b16 %v3485, %v3483
        %v4456 = vpack.c.b16 %v3486, %v3484
        %v4457 = vpack.c.b16 %v3489, %v3487
        %v4458 = vpack.c.b16 %v3490, %v3488
        %v4459 = vpack.c.b16 %v3493, %v3491
        %v4460 = vpack.c.b16 %v3494, %v3492
        %v4461 = vpack.c.b16 %v3497, %v3495
        %v4462 = vpack.c.b16 %v3498, %v3496
        %v4463 = vpack.c.b16 %v3501, %v3499
        %v4464 = vpack.c.b16 %v3502, %v3500
        %v4465 = vpack.c.b16 %v3505, %v3503
        %v4466 = vpack.c.b16 %v3506, %v3504
        %v4467 = vpack.c.b16 %v3509, %v3507
        %v4468 = vpack.c.b16 %v3510, %v3508
        %v4469 = vpack.c.b16 %v3513, %v3511
        %v4470 = vpack.c.b16 %v3514, %v3512
        %v4471 = vpack.c.b16 %v3517, %v3515
        %v4472 = vpack.c.b16 %v3518, %v3516
        %v4473 = vpack.c.b16 %v3521, %v3519
        %v4474 = vpack.c.b16 %v3522, %v3520
        %v4475 = vpack.c.b16 %v3525, %v3523
        %v4476 = vpack.c.b16 %v3526, %v3524
        %v4477 = vpack.c.b16 %v3529, %v3527
        %v4478 = vpack.c.b16 %v3530, %v3528
        %v4479 = vpack.c.b16 %v3533, %v3531
        %v4480 = vpack.c.b16 %v3534, %v3532
        %v4481 = vpack.c.b16 %v3537, %v3535
        %v4482 = vpack.c.b16 %v3538, %v3536
        %v4483 = vpack.c.b16 %v3541, %v3539
        %v4484 = vpack.c.b16 %v3542, %v3540
        %v4485 = vpack.c.b16 %v3545, %v3543
        %v4486 = vpack.c.b16 %v3546, %v3544
        %v4487 = vpack.c.b16 %v3549, %v3547
        %v4488 = vpack.c.b16 %v3550, %v3548
        %v4489 = vpack.c.b16 %v3553, %v3551
        %v4490 = vpack.c.b16 %v3554, %v3552
        %v4491 = vpack.c.b16 %v3557, %v3555
        %v4492 = vpack.c.b16 %v3558, %v3556
        %v4493 = vpack.c.b16 %v3561, %v3559
        %v4494 = vpack.c.b16 %v3562, %v3560
        %v4495 = vpack.c.b16 %v3565, %v3563
        %v4496 = vpack.c.b16 %v3566, %v3564
        %v4497 = vpack.c.b16 %v3569, %v3567
        %v4498 = vpack.c.b16 %v3570, %v3568
        %v4499 = vpack.c.b16 %v3573, %v3571
        %v4500 = vpack.c.b16 %v3574, %v3572
        %v4501 = vpack.c.b16 %v3577, %v3575
        %v4502 = vpack.c.b16 %v3578, %v3576
        %v4503 = vpack.c.b16 %v3581, %v3579
        %v4504 = vpack.c.b16 %v3582, %v3580
        %v4505 = vpack.c.b16 %v3585, %v3583
        %v4506 = vpack.c.b16 %v3586, %v3584
        %v4507 = vpack.c.b16 %v3589, %v3587
        %v4508 = vpack.c.b16 %v3590, %v3588
        %v4509 = vpack.c.b16 %v3593, %v3591
        %v4510 = vpack.c.b16 %v3594, %v3592
        %v4511 = vpack.c.b16 %v3597, %v3595
        %v4512 = vpack.c.b16 %v3598, %v3596
        %v4513 = vpack.c.b16 %v3601, %v3599
        %v4514 = vpack.c.b16 %v3602, %v3600
        %v4515 = vpack.c.b16 %v3605, %v3603
        %v4516 = vpack.c.b16 %v3606, %v3604
        %v4517 = vpack.c.b16 %v3609, %v3607
        %v4518 = vpack.c.b16 %v3610, %v3608
        %v4519 = vpack.c.b16 %v3613, %v3611
        %v4520 = vpack.c.b16 %v3614, %v3612
        %v4521 = vpack.c.b16 %v3617, %v3615
        %v4522 = vpack.c.b16 %v3618, %v3616
        %v4523 = vpack.c.b16 %v3621, %v3619
        %v4524 = vpack.c.b16 %v3622, %v3620
        %v4525 = vpack.c.b16 %v3625, %v3623
        %v4526 = vpack.c.b16 %v3626, %v3624
        %v4527 = vpack.c.b16 %v3629, %v3627
        %v4528 = vpack.c.b16 %v3630, %v3628
        %v4529 = vpack.c.b16 %v3633, %v3631
        %v4530 = vpack.c.b16 %v3634, %v3632
        %v4531 = vpack.c.b16 %v3637, %v3635
        %v4532 = vpack.c.b16 %v3638, %v3636
        %v4533 = vpack.c.b16 %v3641, %v3639
        %v4534 = vpack.c.b16 %v3642, %v3640
        %v4535 = vpack.c.b16 %v3645, %v3643
        %v4536 = vpack.c.b16 %v3646, %v3644
        %v4537 = vpack.c.b16 %v3649, %v3647
        %v4538 = vpack.c.b16 %v3650, %v3648
        %v4539 = vpack.c.b16 %v3653, %v3651
        %v4540 = vpack.c.b16 %v3654, %v3652
        %v4541 = vpack.c.b16 %v3657, %v3655
        %v4542 = vpack.c.b16 %v3658, %v3656
        %v4543 = vpack.c.b16 %v3661, %v3659
        %v4544 = vpack.c.b16 %v3662, %v3660
        %v4545 = vpack.c.b16 %v3665, %v3663
        %v4546 = vpack.c.b16 %v3666, %v3664
        %v4547 = vpack.c.b16 %v3669, %v3667
        %v4548 = vpack.c.b16 %v3670, %v3668
        %v4549 = vpack.c.b16 %v3673, %v3671
        %v4550 = vpack.c.b16 %v3674, %v3672
        %v4551 = vpack.c.b16 %v3677, %v3675
        %v4552 = vpack.c.b16 %v3678, %v3676
        %v4553 = vpack.c.b16 %v3681, %v3679
        %v4554 = vpack.c.b16 %v3682, %v3680
        %v4555 = vpack.c.b16 %v3685, %v3683
        %v4556 = vpack.c.b16 %v3686, %v3684
        %v4557 = vpack.c.b16 %v3689, %v3687
        %v4558 = vpack.c.b16 %v3690, %v3688
        %v4559 = vpack.c.b16 %v3693, %v3691
        %v4560 = vpack.c.b16 %v3694, %v3692
        %v4561 = vpack.c.b16 %v3697, %v3695
        %v4562 = vpack.c.b16 %v3698, %v3696
        %v4563 = vpack.c.b16 %v3701, %v3699
        %v4564 = vpack.c.b16 %v3702, %v3700
        %v4565 = vpack.c.b16 %v3705, %v3703
        %v4566 = vpack.c.b16 %v3706, %v3704
        %v4567 = vpack.c.b16 %v3709, %v3707
        %v4568 = vpack.c.b16 %v3710, %v3708
        %v4569 = vpack.c.b16 %v3713, %v3711
        %v4570 = vpack.c.b16 %v3714, %v3712
        %v4571 = vpack.c.b16 %v3717, %v3715
        %v4572 = vpack.c.b16 %v3718, %v3716
        %v4573 = vpack.c.b16 %v3721, %v3719
        %v4574 = vpack.c.b16 %v3722, %v3720
        %v4575 = vpack.c.b16 %v3725, %v3723
        %v4576 = vpack.c.b16 %v3726, %v3724
        %v4577 = vpack.c.b16 %v3729, %v3727
        %v4578 = vpack.c.b16 %v3730, %v3728
        %v4579 = vpack.c.b16 %v3733, %v3731
        %v4580 = vpack.c.b16 %v3734, %v3732
        %v4581 = vpack.c.b16 %v3737, %v3735
        %v4582 = vpack.c.b16 %v3738, %v3736
        %v4583 = vpack.c.b16 %v3741, %v3739
        %v4584 = vpack.c.b16 %v3742, %v3740
        %v4585 = vpack.c.b16 %v3745, %v3743
        %v4586 = vpack.c.b16 %v3746, %v3744
        %v4587 = vpack.c.b16 %v3749, %v3747
        %v4588 = vpack.c.b16 %v3750, %v3748
        %v4589 = vpack.c.b16 %v3753, %v3751
        %v4590 = vpack.c.b16 %v3754, %v3752
        %v4591 = vpack.c.b16 %v3757, %v3755
        %v4592 = vpack.c.b16 %v3758, %v3756
        %v4593 = vpack.c.b16 %v3761, %v3759
        %v4594 = vpack.c.b16 %v3762, %v3760
        %v4595 = vpack.c.b16 %v3765, %v3763
        %v4596 = vpack.c.b16 %v3766, %v3764
        %v4597 = vpack.c.b16 %v3769, %v3767
        %v4598 = vpack.c.b16 %v3770, %v3768
        %v4599 = vpack.c.b16 %v3773, %v3771
        %v4600 = vpack.c.b16 %v3774, %v3772
        %v4601 = vpack.c.b16 %v3777, %v3775
        %v4602 = vpack.c.b16 %v3778, %v3776
        %v4603 = vpack.c.b16 %v3781, %v3779
        %v4604 = vpack.c.b16 %v3782, %v3780
        %v4605 = vpack.c.b16 %v3785, %v3783
        %v4606 = vpack.c.b16 %v3786, %v3784
        %v4607 = vpack.c.b16 %v3789, %v3787
        %v4608 = vpack.c.b16 %v3790, %v3788
        %v4609 = vpack.c.b16 %v3793, %v3791
        %v4610 = vpack.c.b16 %v3794, %v3792
        %v4611 = vpack.c.b16 %v3797, %v3795
        %v4612 = vpack.c.b16 %v3798, %v3796
        %v4613 = vpack.c.b16 %v3801, %v3799
        %v4614 = vpack.c.b16 %v3802, %v3800
        %v4615 = vpack.c.b16 %v3805, %v3803
        %v4616 = vpack.c.b16 %v3806, %v3804
        %v4617 = vpack.c.b16 %v3809, %v3807
        %v4618 = vpack.c.b16 %v3810, %v3808
        %v4619 = vpack.c.b16 %v3813, %v3811
        %v4620 = vpack.c.b16 %v3814, %v3812
        %v4621 = vpack.c.b16 %v3817, %v3815
        %v4622 = vpack.c.b16 %v3818, %v3816
        %v4623 = vpack.c.b16 %v3821, %v3819
        %v4624 = vpack.c.b16 %v3822, %v3820
        %v4625 = vpack.c.b16 %v3825, %v3823
        %v4626 = vpack.c.b16 %v3826, %v3824
        %v4627 = vpack.c.b16 %v3829, %v3827
        %v4628 = vpack.c.b16 %v3830, %v3828
        %v4629 = vpack.c.b16 %v3833, %v3831
        %v4630 = vpack.c.b16 %v3834, %v3832
        %v4631 = vpack.c.b16 %v3837, %v3835
        %v4632 = vpack.c.b16 %v3838, %v3836
        %v4633 = vpack.c.b16 %v3841, %v3839
        %v4634 = vpack.c.b16 %v3842, %v3840
        %v4635 = vpack.c.b16 %v3845, %v3843
        %v4636 = vpack.c.b16 %v3846, %v3844
        %v4637 = vpack.c.b16 %v3849, %v3847
        %v4638 = vpack.c.b16 %v3850, %v3848
        %v4639 = vpack.c.b16 %v3853, %v3851
        %v4640 = vpack.c.b16 %v3854, %v3852
        %v4641 = vpack.c.b16 %v3857, %v3855
        %v4642 = vpack.c.b16 %v3858, %v3856
        %5427 = vmatprep.subr.bf16.mxu0 %v3860
        %5428 = vmatpush1.bf16.msra.mxu0 %v3859
        %5429 = vmatprep.subr.bf16.mxu0 %v3862
        %5430 = vmatpush1.bf16.msra.mxu0 %v3861
        %5431 = vmatprep.subr.bf16.mxu0 %v3864
        %5432 = vmatpush1.bf16.msra.mxu0 %v3863
        %5433 = vmatprep.subr.bf16.mxu0 %v3866
        %5434 = vmatpush1.bf16.msra.mxu0 %v3865
        %5435 = vmatprep.subr.bf16.mxu0 %v3868
        %5436 = vmatpush1.bf16.msra.mxu0 %v3867
        %5437 = vmatprep.subr.bf16.mxu0 %v3870
        %5438 = vmatpush1.bf16.msra.mxu0 %v3869
        %5439 = vmatprep.subr.bf16.mxu0 %v3872
        %5440 = vmatpush1.bf16.msra.mxu0 %v3871
        %5441 = vmatprep.subr.bf16.mxu0 %v3874
        %5442 = vmatpush1.bf16.msra.mxu0 %v3873
        %5443 = vmatprep.subr.bf16.mxu0 %v3876
        %5444 = vmatpush1.bf16.msra.mxu0 %v3875
        %5445 = vmatprep.subr.bf16.mxu0 %v3878
        %5446 = vmatpush1.bf16.msra.mxu0 %v3877
        %5447 = vmatprep.subr.bf16.mxu0 %v3880
        %5448 = vmatpush1.bf16.msra.mxu0 %v3879
        %5449 = vmatprep.subr.bf16.mxu0 %v3882
        %5450 = vmatpush1.bf16.msra.mxu0 %v3881
        %5451 = vmatprep.subr.bf16.mxu0 %v3884
        %5452 = vmatpush1.bf16.msra.mxu0 %v3883
        %5453 = vmatprep.subr.bf16.mxu0 %v3886
        %5454 = vmatpush1.bf16.msra.mxu0 %v3885
        %5455 = vmatprep.subr.bf16.mxu0 %v3888
        %5456 = vmatpush1.bf16.msra.mxu0 %v3887
        %5457 = vmatprep.subr.bf16.mxu0 %v3890
        %5458 = vmatpush1.bf16.msra.mxu0 %v3889
        %5459 = vmatprep.mubr.bf16.mxu0 %v1187
        %5460 = vmatmul.mubr.bf16.gmra.mrb[0].mxu0 %v1173
        %v5461 = vpop.f32.mrb[0].mxu0
        %v5462 = vadd.f32 %v1136, %v5461
        %v5463 = vpop.f32.mrb[0].mxu0
        %v5464 = vadd.f32 %v1140, %v5463
        %v5465 = vpop.f32.mrb[0].mxu0
        %v5466 = vpop.f32.mrb[0].mxu0
        %5467 = vdwg.mxu0
        %5468 = vmatprep.subr.bf16.mxu0 %v3892
        %5469 = vmatpush1.bf16.msra.mxu0 %v3891
        %5470 = vmatprep.subr.bf16.mxu0 %v3894
        %5471 = vmatpush1.bf16.msra.mxu0 %v3893
        %5472 = vmatprep.subr.bf16.mxu0 %v3896
        %5473 = vmatpush1.bf16.msra.mxu0 %v3895
        %5474 = vmatprep.subr.bf16.mxu0 %v3898
        %5475 = vmatpush1.bf16.msra.mxu0 %v3897
        %5476 = vmatprep.subr.bf16.mxu0 %v3900
        %5477 = vmatpush1.bf16.msra.mxu0 %v3899
        %5478 = vmatprep.subr.bf16.mxu0 %v3902
        %5479 = vmatpush1.bf16.msra.mxu0 %v3901
        %5480 = vmatprep.subr.bf16.mxu0 %v3904
        %5481 = vmatpush1.bf16.msra.mxu0 %v3903
        %5482 = vmatprep.subr.bf16.mxu0 %v3906
        %5483 = vmatpush1.bf16.msra.mxu0 %v3905
        %5484 = vmatprep.subr.bf16.mxu0 %v3908
        %5485 = vmatpush1.bf16.msra.mxu0 %v3907
        %5486 = vmatprep.subr.bf16.mxu0 %v3910
        %5487 = vmatpush1.bf16.msra.mxu0 %v3909
        %5488 = vmatprep.subr.bf16.mxu0 %v3912
        %5489 = vmatpush1.bf16.msra.mxu0 %v3911
        %5490 = vmatprep.subr.bf16.mxu0 %v3914
        %5491 = vmatpush1.bf16.msra.mxu0 %v3913
        %5492 = vmatprep.subr.bf16.mxu0 %v3916
        %5493 = vmatpush1.bf16.msra.mxu0 %v3915
        %5494 = vmatprep.subr.bf16.mxu0 %v3918
        %5495 = vmatpush1.bf16.msra.mxu0 %v3917
        %5496 = vmatprep.subr.bf16.mxu0 %v3920
        %5497 = vmatpush1.bf16.msra.mxu0 %v3919
        %5498 = vmatprep.subr.bf16.mxu0 %v3922
        %5499 = vmatpush1.bf16.msra.mxu0 %v3921
        %5500 = vmatprep.mubr.bf16.mxu0 %v1197
        %5501 = vmatmul.mubr.bf16.gmra.mrb[0].mxu0 %v1195
        %v5502 = vpop.f32.mrb[0].mxu0
        %v5503 = vadd.f32 %v5462, %v5502
        %v5504 = vpop.f32.mrb[0].mxu0
        %v5505 = vadd.f32 %v5464, %v5504
        %v5506 = vpop.f32.mrb[0].mxu0
        %v5507 = vpop.f32.mrb[0].mxu0
        %5508 = vdwg.mxu0
        %5509 = vmatprep.subr.bf16.mxu0 %v3924
        %5510 = vmatpush1.bf16.msra.mxu0 %v3923
        %5511 = vmatprep.subr.bf16.mxu0 %v3926
        %5512 = vmatpush1.bf16.msra.mxu0 %v3925
        %5513 = vmatprep.subr.bf16.mxu0 %v3928
        %5514 = vmatpush1.bf16.msra.mxu0 %v3927
        %5515 = vmatprep.subr.bf16.mxu0 %v3930
        %5516 = vmatpush1.bf16.msra.mxu0 %v3929
        %5517 = vmatprep.subr.bf16.mxu0 %v3932
        %5518 = vmatpush1.bf16.msra.mxu0 %v3931
        %5519 = vmatprep.subr.bf16.mxu0 %v3934
        %5520 = vmatpush1.bf16.msra.mxu0 %v3933
        %5521 = vmatprep.subr.bf16.mxu0 %v3936
        %5522 = vmatpush1.bf16.msra.mxu0 %v3935
        %5523 = vmatprep.subr.bf16.mxu0 %v3938
        %5524 = vmatpush1.bf16.msra.mxu0 %v3937
        %5525 = vmatprep.subr.bf16.mxu0 %v3940
        %5526 = vmatpush1.bf16.msra.mxu0 %v3939
        %5527 = vmatprep.subr.bf16.mxu0 %v3942
        %5528 = vmatpush1.bf16.msra.mxu0 %v3941
        %5529 = vmatprep.subr.bf16.mxu0 %v3944
        %5530 = vmatpush1.bf16.msra.mxu0 %v3943
        %5531 = vmatprep.subr.bf16.mxu0 %v3946
        %5532 = vmatpush1.bf16.msra.mxu0 %v3945
        %5533 = vmatprep.subr.bf16.mxu0 %v3948
        %5534 = vmatpush1.bf16.msra.mxu0 %v3947
        %5535 = vmatprep.subr.bf16.mxu0 %v3950
        %5536 = vmatpush1.bf16.msra.mxu0 %v3949
        %5537 = vmatprep.subr.bf16.mxu0 %v3952
        %5538 = vmatpush1.bf16.msra.mxu0 %v3951
        %5539 = vmatprep.subr.bf16.mxu0 %v3954
        %5540 = vmatpush1.bf16.msra.mxu0 %v3953
        %5541 = vmatprep.mubr.bf16.mxu0 %v1194
        %5542 = vmatmul.mubr.bf16.gmra.mrb[0].mxu0 %v1180
        %v5543 = vpop.f32.mrb[0].mxu0
        %v5544 = vadd.f32 %v5503, %v5543
        %v5545 = vpop.f32.mrb[0].mxu0
        %v5546 = vadd.f32 %v5505, %v5545
        %v5547 = vpop.f32.mrb[0].mxu0
        %v5548 = vpop.f32.mrb[0].mxu0
        %5549 = vdwg.mxu0
        %5550 = vmatprep.subr.bf16.mxu0 %v3956
        %5551 = vmatpush1.bf16.msra.mxu0 %v3955
        %5552 = vmatprep.subr.bf16.mxu0 %v3958
        %5553 = vmatpush1.bf16.msra.mxu0 %v3957
        %5554 = vmatprep.subr.bf16.mxu0 %v3960
        %5555 = vmatpush1.bf16.msra.mxu0 %v3959
        %5556 = vmatprep.subr.bf16.mxu0 %v3962
        %5557 = vmatpush1.bf16.msra.mxu0 %v3961
        %5558 = vmatprep.subr.bf16.mxu0 %v3964
        %5559 = vmatpush1.bf16.msra.mxu0 %v3963
        %5560 = vmatprep.subr.bf16.mxu0 %v3966
        %5561 = vmatpush1.bf16.msra.mxu0 %v3965
        %5562 = vmatprep.subr.bf16.mxu0 %v3968
        %5563 = vmatpush1.bf16.msra.mxu0 %v3967
        %5564 = vmatprep.subr.bf16.mxu0 %v3970
        %5565 = vmatpush1.bf16.msra.mxu0 %v3969
        %5566 = vmatprep.subr.bf16.mxu0 %v3972
        %5567 = vmatpush1.bf16.msra.mxu0 %v3971
        %5568 = vmatprep.subr.bf16.mxu0 %v3974
        %5569 = vmatpush1.bf16.msra.mxu0 %v3973
        %5570 = vmatprep.subr.bf16.mxu0 %v3976
        %5571 = vmatpush1.bf16.msra.mxu0 %v3975
        %5572 = vmatprep.subr.bf16.mxu0 %v3978
        %5573 = vmatpush1.bf16.msra.mxu0 %v3977
        %5574 = vmatprep.subr.bf16.mxu0 %v3980
        %5575 = vmatpush1.bf16.msra.mxu0 %v3979
        %5576 = vmatprep.subr.bf16.mxu0 %v3982
        %5577 = vmatpush1.bf16.msra.mxu0 %v3981
        %5578 = vmatprep.subr.bf16.mxu0 %v3984
        %5579 = vmatpush1.bf16.msra.mxu0 %v3983
        %5580 = vmatprep.subr.bf16.mxu0 %v3986
        %5581 = vmatpush1.bf16.msra.mxu0 %v3985
        %5582 = vmatprep.mubr.bf16.mxu0 %v1198
        %5583 = vmatmul.mubr.bf16.gmra.mrb[0].mxu0 %v1196
        %v5584 = vpop.f32.mrb[0].mxu0
        %v5585 = vadd.f32 %v5544, %v5584
        %v5586 = vpop.f32.mrb[0].mxu0
        %v5587 = vadd.f32 %v5546, %v5586
        %v5588 = vpop.f32.mrb[0].mxu0
        %v5589 = vpop.f32.mrb[0].mxu0
        %5590 = vdwg.mxu0
        %5591 = vmatprep.subr.bf16.mxu0 %v3988
        %5592 = vmatpush1.bf16.msra.mxu0 %v3987
        %5593 = vmatprep.subr.bf16.mxu0 %v3990
        %5594 = vmatpush1.bf16.msra.mxu0 %v3989
        %5595 = vmatprep.subr.bf16.mxu0 %v3992
        %5596 = vmatpush1.bf16.msra.mxu0 %v3991
        %5597 = vmatprep.subr.bf16.mxu0 %v3994
        %5598 = vmatpush1.bf16.msra.mxu0 %v3993
        %5599 = vmatprep.subr.bf16.mxu0 %v3996
        %5600 = vmatpush1.bf16.msra.mxu0 %v3995
        %5601 = vmatprep.subr.bf16.mxu0 %v3998
        %5602 = vmatpush1.bf16.msra.mxu0 %v3997
        %5603 = vmatprep.subr.bf16.mxu0 %v4000
        %5604 = vmatpush1.bf16.msra.mxu0 %v3999
        %5605 = vmatprep.subr.bf16.mxu0 %v4002
        %5606 = vmatpush1.bf16.msra.mxu0 %v4001
        %5607 = vmatprep.subr.bf16.mxu0 %v4004
        %5608 = vmatpush1.bf16.msra.mxu0 %v4003
        %5609 = vmatprep.subr.bf16.mxu0 %v4006
        %5610 = vmatpush1.bf16.msra.mxu0 %v4005
        %5611 = vmatprep.subr.bf16.mxu0 %v4008
        %5612 = vmatpush1.bf16.msra.mxu0 %v4007
        %5613 = vmatprep.subr.bf16.mxu0 %v4010
        %5614 = vmatpush1.bf16.msra.mxu0 %v4009
        %5615 = vmatprep.subr.bf16.mxu0 %v4012
        %5616 = vmatpush1.bf16.msra.mxu0 %v4011
        %5617 = vmatprep.subr.bf16.mxu0 %v4014
        %5618 = vmatpush1.bf16.msra.mxu0 %v4013
        %5619 = vmatprep.subr.bf16.mxu0 %v4016
        %5620 = vmatpush1.bf16.msra.mxu0 %v4015
        %5621 = vmatprep.subr.bf16.mxu0 %v4018
        %5622 = vmatpush1.bf16.msra.mxu0 %v4017
        %5623 = vmatprep.mubr.bf16.mxu0 %v1236
        %5624 = vmatmul.mubr.bf16.gmra.mrb[0].mxu0 %v1222
        %v5625 = vpop.f32.mrb[0].mxu0
        %v5626 = vadd.f32 %v5585, %v5625
        %v5627 = vpop.f32.mrb[0].mxu0
        %v5628 = vadd.f32 %v5587, %v5627
        %v5629 = vpop.f32.mrb[0].mxu0
        %v5630 = vpop.f32.mrb[0].mxu0
        %5631 = vdwg.mxu0
        %5632 = vmatprep.subr.bf16.mxu0 %v4020
        %5633 = vmatpush1.bf16.msra.mxu0 %v4019
        %5634 = vmatprep.subr.bf16.mxu0 %v4022
        %5635 = vmatpush1.bf16.msra.mxu0 %v4021
        %5636 = vmatprep.subr.bf16.mxu0 %v4024
        %5637 = vmatpush1.bf16.msra.mxu0 %v4023
        %5638 = vmatprep.subr.bf16.mxu0 %v4026
        %5639 = vmatpush1.bf16.msra.mxu0 %v4025
        %5640 = vmatprep.subr.bf16.mxu0 %v4028
        %5641 = vmatpush1.bf16.msra.mxu0 %v4027
        %5642 = vmatprep.subr.bf16.mxu0 %v4030
        %5643 = vmatpush1.bf16.msra.mxu0 %v4029
        %5644 = vmatprep.subr.bf16.mxu0 %v4032
        %5645 = vmatpush1.bf16.msra.mxu0 %v4031
        %5646 = vmatprep.subr.bf16.mxu0 %v4034
        %5647 = vmatpush1.bf16.msra.mxu0 %v4033
        %5648 = vmatprep.subr.bf16.mxu0 %v4036
        %5649 = vmatpush1.bf16.msra.mxu0 %v4035
        %5650 = vmatprep.subr.bf16.mxu0 %v4038
        %5651 = vmatpush1.bf16.msra.mxu0 %v4037
        %5652 = vmatprep.subr.bf16.mxu0 %v4040
        %5653 = vmatpush1.bf16.msra.mxu0 %v4039
        %5654 = vmatprep.subr.bf16.mxu0 %v4042
        %5655 = vmatpush1.bf16.msra.mxu0 %v4041
        %5656 = vmatprep.subr.bf16.mxu0 %v4044
        %5657 = vmatpush1.bf16.msra.mxu0 %v4043
        %5658 = vmatprep.subr.bf16.mxu0 %v4046
        %5659 = vmatpush1.bf16.msra.mxu0 %v4045
        %5660 = vmatprep.subr.bf16.mxu0 %v4048
        %5661 = vmatpush1.bf16.msra.mxu0 %v4047
        %5662 = vmatprep.subr.bf16.mxu0 %v4050
        %5663 = vmatpush1.bf16.msra.mxu0 %v4049
        %5664 = vmatprep.mubr.bf16.mxu0 %v1246
        %5665 = vmatmul.mubr.bf16.gmra.mrb[0].mxu0 %v1244
        %v5666 = vpop.f32.mrb[0].mxu0
        %v5667 = vadd.f32 %v5626, %v5666
        %v5668 = vpop.f32.mrb[0].mxu0
        %v5669 = vadd.f32 %v5628, %v5668
        %v5670 = vpop.f32.mrb[0].mxu0
        %v5671 = vpop.f32.mrb[0].mxu0
        %5672 = vdwg.mxu0
        %5673 = vmatprep.subr.bf16.mxu0 %v4052
        %5674 = vmatpush1.bf16.msra.mxu0 %v4051
        %5675 = vmatprep.subr.bf16.mxu0 %v4054
        %5676 = vmatpush1.bf16.msra.mxu0 %v4053
        %5677 = vmatprep.subr.bf16.mxu0 %v4056
        %5678 = vmatpush1.bf16.msra.mxu0 %v4055
        %5679 = vmatprep.subr.bf16.mxu0 %v4058
        %5680 = vmatpush1.bf16.msra.mxu0 %v4057
        %5681 = vmatprep.subr.bf16.mxu0 %v4060
        %5682 = vmatpush1.bf16.msra.mxu0 %v4059
        %5683 = vmatprep.subr.bf16.mxu0 %v4062
        %5684 = vmatpush1.bf16.msra.mxu0 %v4061
        %5685 = vmatprep.subr.bf16.mxu0 %v4064
        %5686 = vmatpush1.bf16.msra.mxu0 %v4063
        %5687 = vmatprep.subr.bf16.mxu0 %v4066
        %5688 = vmatpush1.bf16.msra.mxu0 %v4065
        %5689 = vmatprep.subr.bf16.mxu0 %v4068
        %5690 = vmatpush1.bf16.msra.mxu0 %v4067
        %5691 = vmatprep.subr.bf16.mxu0 %v4070
        %5692 = vmatpush1.bf16.msra.mxu0 %v4069
        %5693 = vmatprep.subr.bf16.mxu0 %v4072
        %5694 = vmatpush1.bf16.msra.mxu0 %v4071
        %5695 = vmatprep.subr.bf16.mxu0 %v4074
        %5696 = vmatpush1.bf16.msra.mxu0 %v4073
        %5697 = vmatprep.subr.bf16.mxu0 %v4076
        %5698 = vmatpush1.bf16.msra.mxu0 %v4075
        %5699 = vmatprep.subr.bf16.mxu0 %v4078
        %5700 = vmatpush1.bf16.msra.mxu0 %v4077
        %5701 = vmatprep.subr.bf16.mxu0 %v4080
        %5702 = vmatpush1.bf16.msra.mxu0 %v4079
        %5703 = vmatprep.subr.bf16.mxu0 %v4082
        %5704 = vmatpush1.bf16.msra.mxu0 %v4081
        %5705 = vmatprep.mubr.bf16.mxu0 %v1243
        %5706 = vmatmul.mubr.bf16.gmra.mrb[0].mxu0 %v1229
        %v5707 = vpop.f32.mrb[0].mxu0
        %v5708 = vadd.f32 %v5667, %v5707
        %v5709 = vpop.f32.mrb[0].mxu0
        %v5710 = vadd.f32 %v5669, %v5709
        %v5711 = vpop.f32.mrb[0].mxu0
        %v5712 = vpop.f32.mrb[0].mxu0
        %5713 = vdwg.mxu0
        %5714 = vmatprep.subr.bf16.mxu0 %v4084
        %5715 = vmatpush1.bf16.msra.mxu0 %v4083
        %5716 = vmatprep.subr.bf16.mxu0 %v4086
        %5717 = vmatpush1.bf16.msra.mxu0 %v4085
        %5718 = vmatprep.subr.bf16.mxu0 %v4088
        %5719 = vmatpush1.bf16.msra.mxu0 %v4087
        %5720 = vmatprep.subr.bf16.mxu0 %v4090
        %5721 = vmatpush1.bf16.msra.mxu0 %v4089
        %5722 = vmatprep.subr.bf16.mxu0 %v4092
        %5723 = vmatpush1.bf16.msra.mxu0 %v4091
        %5724 = vmatprep.subr.bf16.mxu0 %v4094
        %5725 = vmatpush1.bf16.msra.mxu0 %v4093
        %5726 = vmatprep.subr.bf16.mxu0 %v4096
        %5727 = vmatpush1.bf16.msra.mxu0 %v4095
        %5728 = vmatprep.subr.bf16.mxu0 %v4098
        %5729 = vmatpush1.bf16.msra.mxu0 %v4097
        %5730 = vmatprep.subr.bf16.mxu0 %v4100
        %5731 = vmatpush1.bf16.msra.mxu0 %v4099
        %5732 = vmatprep.subr.bf16.mxu0 %v4102
        %5733 = vmatpush1.bf16.msra.mxu0 %v4101
        %5734 = vmatprep.subr.bf16.mxu0 %v4104
        %5735 = vmatpush1.bf16.msra.mxu0 %v4103
        %5736 = vmatprep.subr.bf16.mxu0 %v4106
        %5737 = vmatpush1.bf16.msra.mxu0 %v4105
        %5738 = vmatprep.subr.bf16.mxu0 %v4108
        %5739 = vmatpush1.bf16.msra.mxu0 %v4107
        %5740 = vmatprep.subr.bf16.mxu0 %v4110
        %5741 = vmatpush1.bf16.msra.mxu0 %v4109
        %5742 = vmatprep.subr.bf16.mxu0 %v4112
        %5743 = vmatpush1.bf16.msra.mxu0 %v4111
        %5744 = vmatprep.subr.bf16.mxu0 %v4114
        %5745 = vmatpush1.bf16.msra.mxu0 %v4113
        %5746 = vmatprep.mubr.bf16.mxu0 %v1247
        %5747 = vmatmul.mubr.bf16.gmra.mrb[0].mxu0 %v1245
        %v5748 = vpop.f32.mrb[0].mxu0
        %v5749 = vadd.f32 %v5708, %v5748
        %v5750 = vpop.f32.mrb[0].mxu0
        %v5751 = vadd.f32 %v5710, %v5750
        %v5752 = vpop.f32.mrb[0].mxu0
        %v5753 = vpop.f32.mrb[0].mxu0
        %5754 = vdwg.mxu0
        %5755 = vmatprep.subr.bf16.mxu0 %v4116
        %5756 = vmatpush1.bf16.msra.mxu0 %v4115
        %5757 = vmatprep.subr.bf16.mxu0 %v4118
        %5758 = vmatpush1.bf16.msra.mxu0 %v4117
        %5759 = vmatprep.subr.bf16.mxu0 %v4120
        %5760 = vmatpush1.bf16.msra.mxu0 %v4119
        %5761 = vmatprep.subr.bf16.mxu0 %v4122
        %5762 = vmatpush1.bf16.msra.mxu0 %v4121
        %5763 = vmatprep.subr.bf16.mxu0 %v4124
        %5764 = vmatpush1.bf16.msra.mxu0 %v4123
        %5765 = vmatprep.subr.bf16.mxu0 %v4126
        %5766 = vmatpush1.bf16.msra.mxu0 %v4125
        %5767 = vmatprep.subr.bf16.mxu0 %v4128
        %5768 = vmatpush1.bf16.msra.mxu0 %v4127
        %5769 = vmatprep.subr.bf16.mxu0 %v4130
        %5770 = vmatpush1.bf16.msra.mxu0 %v4129
        %5771 = vmatprep.subr.bf16.mxu0 %v4132
        %5772 = vmatpush1.bf16.msra.mxu0 %v4131
        %5773 = vmatprep.subr.bf16.mxu0 %v4134
        %5774 = vmatpush1.bf16.msra.mxu0 %v4133
        %5775 = vmatprep.subr.bf16.mxu0 %v4136
        %5776 = vmatpush1.bf16.msra.mxu0 %v4135
        %5777 = vmatprep.subr.bf16.mxu0 %v4138
        %5778 = vmatpush1.bf16.msra.mxu0 %v4137
        %5779 = vmatprep.subr.bf16.mxu0 %v4140
        %5780 = vmatpush1.bf16.msra.mxu0 %v4139
        %5781 = vmatprep.subr.bf16.mxu0 %v4142
        %5782 = vmatpush1.bf16.msra.mxu0 %v4141
        %5783 = vmatprep.subr.bf16.mxu0 %v4144
        %5784 = vmatpush1.bf16.msra.mxu0 %v4143
        %5785 = vmatprep.subr.bf16.mxu0 %v4146
        %5786 = vmatpush1.bf16.msra.mxu0 %v4145
        %5787 = vmatprep.mubr.bf16.mxu0 %v1285
        %5788 = vmatmul.mubr.bf16.gmra.mrb[0].mxu0 %v1271
        %v5789 = vpop.f32.mrb[0].mxu0
        %v5790 = vadd.f32 %v5749, %v5789
        %v5791 = vpop.f32.mrb[0].mxu0
        %v5792 = vadd.f32 %v5751, %v5791
        %v5793 = vpop.f32.mrb[0].mxu0
        %v5794 = vpop.f32.mrb[0].mxu0
        %5795 = vdwg.mxu0
        %5796 = vmatprep.subr.bf16.mxu0 %v4148
        %5797 = vmatpush1.bf16.msra.mxu0 %v4147
        %5798 = vmatprep.subr.bf16.mxu0 %v4150
        %5799 = vmatpush1.bf16.msra.mxu0 %v4149
        %5800 = vmatprep.subr.bf16.mxu0 %v4152
        %5801 = vmatpush1.bf16.msra.mxu0 %v4151
        %5802 = vmatprep.subr.bf16.mxu0 %v4154
        %5803 = vmatpush1.bf16.msra.mxu0 %v4153
        %5804 = vmatprep.subr.bf16.mxu0 %v4156
        %5805 = vmatpush1.bf16.msra.mxu0 %v4155
        %5806 = vmatprep.subr.bf16.mxu0 %v4158
        %5807 = vmatpush1.bf16.msra.mxu0 %v4157
        %5808 = vmatprep.subr.bf16.mxu0 %v4160
        %5809 = vmatpush1.bf16.msra.mxu0 %v4159
        %5810 = vmatprep.subr.bf16.mxu0 %v4162
        %5811 = vmatpush1.bf16.msra.mxu0 %v4161
        %5812 = vmatprep.subr.bf16.mxu0 %v4164
        %5813 = vmatpush1.bf16.msra.mxu0 %v4163
        %5814 = vmatprep.subr.bf16.mxu0 %v4166
        %5815 = vmatpush1.bf16.msra.mxu0 %v4165
        %5816 = vmatprep.subr.bf16.mxu0 %v4168
        %5817 = vmatpush1.bf16.msra.mxu0 %v4167
        %5818 = vmatprep.subr.bf16.mxu0 %v4170
        %5819 = vmatpush1.bf16.msra.mxu0 %v4169
        %5820 = vmatprep.subr.bf16.mxu0 %v4172
        %5821 = vmatpush1.bf16.msra.mxu0 %v4171
        %5822 = vmatprep.subr.bf16.mxu0 %v4174
        %5823 = vmatpush1.bf16.msra.mxu0 %v4173
        %5824 = vmatprep.subr.bf16.mxu0 %v4176
        %5825 = vmatpush1.bf16.msra.mxu0 %v4175
        %5826 = vmatprep.subr.bf16.mxu0 %v4178
        %5827 = vmatpush1.bf16.msra.mxu0 %v4177
        %5828 = vmatprep.mubr.bf16.mxu0 %v1295
        %5829 = vmatmul.mubr.bf16.gmra.mrb[0].mxu0 %v1293
        %v5830 = vpop.f32.mrb[0].mxu0
        %v5831 = vadd.f32 %v5790, %v5830
        %v5832 = vpop.f32.mrb[0].mxu0
        %v5833 = vadd.f32 %v5792, %v5832
        %v5834 = vpop.f32.mrb[0].mxu0
        %v5835 = vpop.f32.mrb[0].mxu0
        %5836 = vdwg.mxu0
        %5837 = vmatprep.subr.bf16.mxu0 %v4180
        %5838 = vmatpush1.bf16.msra.mxu0 %v4179
        %5839 = vmatprep.subr.bf16.mxu0 %v4182
        %5840 = vmatpush1.bf16.msra.mxu0 %v4181
        %5841 = vmatprep.subr.bf16.mxu0 %v4184
        %5842 = vmatpush1.bf16.msra.mxu0 %v4183
        %5843 = vmatprep.subr.bf16.mxu0 %v4186
        %5844 = vmatpush1.bf16.msra.mxu0 %v4185
        %5845 = vmatprep.subr.bf16.mxu0 %v4188
        %5846 = vmatpush1.bf16.msra.mxu0 %v4187
        %5847 = vmatprep.subr.bf16.mxu0 %v4190
        %5848 = vmatpush1.bf16.msra.mxu0 %v4189
        %5849 = vmatprep.subr.bf16.mxu0 %v4192
        %5850 = vmatpush1.bf16.msra.mxu0 %v4191
        %5851 = vmatprep.subr.bf16.mxu0 %v4194
        %5852 = vmatpush1.bf16.msra.mxu0 %v4193
        %5853 = vmatprep.subr.bf16.mxu0 %v4196
        %5854 = vmatpush1.bf16.msra.mxu0 %v4195
        %5855 = vmatprep.subr.bf16.mxu0 %v4198
        %5856 = vmatpush1.bf16.msra.mxu0 %v4197
        %5857 = vmatprep.subr.bf16.mxu0 %v4200
        %5858 = vmatpush1.bf16.msra.mxu0 %v4199
        %5859 = vmatprep.subr.bf16.mxu0 %v4202
        %5860 = vmatpush1.bf16.msra.mxu0 %v4201
        %5861 = vmatprep.subr.bf16.mxu0 %v4204
        %5862 = vmatpush1.bf16.msra.mxu0 %v4203
        %5863 = vmatprep.subr.bf16.mxu0 %v4206
        %5864 = vmatpush1.bf16.msra.mxu0 %v4205
        %5865 = vmatprep.subr.bf16.mxu0 %v4208
        %5866 = vmatpush1.bf16.msra.mxu0 %v4207
        %5867 = vmatprep.subr.bf16.mxu0 %v4210
        %5868 = vmatpush1.bf16.msra.mxu0 %v4209
        %5869 = vmatprep.mubr.bf16.mxu0 %v1292
        %5870 = vmatmul.mubr.bf16.gmra.mrb[0].mxu0 %v1278
        %v5871 = vpop.f32.mrb[0].mxu0
        %v5872 = vadd.f32 %v5831, %v5871
        %v5873 = vpop.f32.mrb[0].mxu0
        %v5874 = vadd.f32 %v5833, %v5873
        %v5875 = vpop.f32.mrb[0].mxu0
        %v5876 = vpop.f32.mrb[0].mxu0
        %5877 = vdwg.mxu0
        %5878 = vmatprep.subr.bf16.mxu0 %v4212
        %5879 = vmatpush1.bf16.msra.mxu0 %v4211
        %5880 = vmatprep.subr.bf16.mxu0 %v4214
        %5881 = vmatpush1.bf16.msra.mxu0 %v4213
        %5882 = vmatprep.subr.bf16.mxu0 %v4216
        %5883 = vmatpush1.bf16.msra.mxu0 %v4215
        %5884 = vmatprep.subr.bf16.mxu0 %v4218
        %5885 = vmatpush1.bf16.msra.mxu0 %v4217
        %5886 = vmatprep.subr.bf16.mxu0 %v4220
        %5887 = vmatpush1.bf16.msra.mxu0 %v4219
        %5888 = vmatprep.subr.bf16.mxu0 %v4222
        %5889 = vmatpush1.bf16.msra.mxu0 %v4221
        %5890 = vmatprep.subr.bf16.mxu0 %v4224
        %5891 = vmatpush1.bf16.msra.mxu0 %v4223
        %5892 = vmatprep.subr.bf16.mxu0 %v4226
        %5893 = vmatpush1.bf16.msra.mxu0 %v4225
        %5894 = vmatprep.subr.bf16.mxu0 %v4228
        %5895 = vmatpush1.bf16.msra.mxu0 %v4227
        %5896 = vmatprep.subr.bf16.mxu0 %v4230
        %5897 = vmatpush1.bf16.msra.mxu0 %v4229
        %5898 = vmatprep.subr.bf16.mxu0 %v4232
        %5899 = vmatpush1.bf16.msra.mxu0 %v4231
        %5900 = vmatprep.subr.bf16.mxu0 %v4234
        %5901 = vmatpush1.bf16.msra.mxu0 %v4233
        %5902 = vmatprep.subr.bf16.mxu0 %v4236
        %5903 = vmatpush1.bf16.msra.mxu0 %v4235
        %5904 = vmatprep.subr.bf16.mxu0 %v4238
        %5905 = vmatpush1.bf16.msra.mxu0 %v4237
        %5906 = vmatprep.subr.bf16.mxu0 %v4240
        %5907 = vmatpush1.bf16.msra.mxu0 %v4239
        %5908 = vmatprep.subr.bf16.mxu0 %v4242
        %5909 = vmatpush1.bf16.msra.mxu0 %v4241
        %5910 = vmatprep.mubr.bf16.mxu0 %v1296
        %5911 = vmatmul.mubr.bf16.gmra.mrb[0].mxu0 %v1294
        %v5912 = vpop.f32.mrb[0].mxu0
        %v5913 = vadd.f32 %v5872, %v5912
        %v5914 = vpop.f32.mrb[0].mxu0
        %v5915 = vadd.f32 %v5874, %v5914
        %v5916 = vpop.f32.mrb[0].mxu0
        %v5917 = vpop.f32.mrb[0].mxu0
        %5918 = vdwg.mxu0
        %5919 = vmatprep.subr.bf16.mxu0 %v4244
        %5920 = vmatpush1.bf16.msra.mxu0 %v4243
        %5921 = vmatprep.subr.bf16.mxu0 %v4246
        %5922 = vmatpush1.bf16.msra.mxu0 %v4245
        %5923 = vmatprep.subr.bf16.mxu0 %v4248
        %5924 = vmatpush1.bf16.msra.mxu0 %v4247
        %5925 = vmatprep.subr.bf16.mxu0 %v4250
        %5926 = vmatpush1.bf16.msra.mxu0 %v4249
        %5927 = vmatprep.subr.bf16.mxu0 %v4252
        %5928 = vmatpush1.bf16.msra.mxu0 %v4251
        %5929 = vmatprep.subr.bf16.mxu0 %v4254
        %5930 = vmatpush1.bf16.msra.mxu0 %v4253
        %5931 = vmatprep.subr.bf16.mxu0 %v4256
        %5932 = vmatpush1.bf16.msra.mxu0 %v4255
        %5933 = vmatprep.subr.bf16.mxu0 %v4258
        %5934 = vmatpush1.bf16.msra.mxu0 %v4257
        %5935 = vmatprep.subr.bf16.mxu0 %v4260
        %5936 = vmatpush1.bf16.msra.mxu0 %v4259
        %5937 = vmatprep.subr.bf16.mxu0 %v4262
        %5938 = vmatpush1.bf16.msra.mxu0 %v4261
        %5939 = vmatprep.subr.bf16.mxu0 %v4264
        %5940 = vmatpush1.bf16.msra.mxu0 %v4263
        %5941 = vmatprep.subr.bf16.mxu0 %v4266
        %5942 = vmatpush1.bf16.msra.mxu0 %v4265
        %5943 = vmatprep.subr.bf16.mxu0 %v4268
        %5944 = vmatpush1.bf16.msra.mxu0 %v4267
        %5945 = vmatprep.subr.bf16.mxu0 %v4270
        %5946 = vmatpush1.bf16.msra.mxu0 %v4269
        %5947 = vmatprep.subr.bf16.mxu0 %v4272
        %5948 = vmatpush1.bf16.msra.mxu0 %v4271
        %5949 = vmatprep.subr.bf16.mxu0 %v4274
        %5950 = vmatpush1.bf16.msra.mxu0 %v4273
        %5951 = vmatprep.mubr.bf16.mxu0 %v1334
        %5952 = vmatmul.mubr.bf16.gmra.mrb[0].mxu0 %v1320
        %v5953 = vpop.f32.mrb[0].mxu0
        %v5954 = vadd.f32 %v5913, %v5953
        %v5955 = vpop.f32.mrb[0].mxu0
        %v5956 = vadd.f32 %v5915, %v5955
        %v5957 = vpop.f32.mrb[0].mxu0
        %v5958 = vpop.f32.mrb[0].mxu0
        %5959 = vdwg.mxu0
        %5960 = vmatprep.subr.bf16.mxu0 %v4276
        %5961 = vmatpush1.bf16.msra.mxu0 %v4275
        %5962 = vmatprep.subr.bf16.mxu0 %v4278
        %5963 = vmatpush1.bf16.msra.mxu0 %v4277
        %5964 = vmatprep.subr.bf16.mxu0 %v4280
        %5965 = vmatpush1.bf16.msra.mxu0 %v4279
        %5966 = vmatprep.subr.bf16.mxu0 %v4282
        %5967 = vmatpush1.bf16.msra.mxu0 %v4281
        %5968 = vmatprep.subr.bf16.mxu0 %v4284
        %5969 = vmatpush1.bf16.msra.mxu0 %v4283
        %5970 = vmatprep.subr.bf16.mxu0 %v4286
        %5971 = vmatpush1.bf16.msra.mxu0 %v4285
        %5972 = vmatprep.subr.bf16.mxu0 %v4288
        %5973 = vmatpush1.bf16.msra.mxu0 %v4287
        %5974 = vmatprep.subr.bf16.mxu0 %v4290
        %5975 = vmatpush1.bf16.msra.mxu0 %v4289
        %5976 = vmatprep.subr.bf16.mxu0 %v4292
        %5977 = vmatpush1.bf16.msra.mxu0 %v4291
        %5978 = vmatprep.subr.bf16.mxu0 %v4294
        %5979 = vmatpush1.bf16.msra.mxu0 %v4293
        %5980 = vmatprep.subr.bf16.mxu0 %v4296
        %5981 = vmatpush1.bf16.msra.mxu0 %v4295
        %5982 = vmatprep.subr.bf16.mxu0 %v4298
        %5983 = vmatpush1.bf16.msra.mxu0 %v4297
        %5984 = vmatprep.subr.bf16.mxu0 %v4300
        %5985 = vmatpush1.bf16.msra.mxu0 %v4299
        %5986 = vmatprep.subr.bf16.mxu0 %v4302
        %5987 = vmatpush1.bf16.msra.mxu0 %v4301
        %5988 = vmatprep.subr.bf16.mxu0 %v4304
        %5989 = vmatpush1.bf16.msra.mxu0 %v4303
        %5990 = vmatprep.subr.bf16.mxu0 %v4306
        %5991 = vmatpush1.bf16.msra.mxu0 %v4305
        %5992 = vmatprep.mubr.bf16.mxu0 %v1344
        %5993 = vmatmul.mubr.bf16.gmra.mrb[0].mxu0 %v1342
        %v5994 = vpop.f32.mrb[0].mxu0
        %v5995 = vadd.f32 %v5954, %v5994
        %v5996 = vpop.f32.mrb[0].mxu0
        %v5997 = vadd.f32 %v5956, %v5996
        %v5998 = vpop.f32.mrb[0].mxu0
        %v5999 = vpop.f32.mrb[0].mxu0
        %6000 = vdwg.mxu0
        %6001 = vmatprep.subr.bf16.mxu0 %v4308
        %6002 = vmatpush1.bf16.msra.mxu0 %v4307
        %6003 = vmatprep.subr.bf16.mxu0 %v4310
        %6004 = vmatpush1.bf16.msra.mxu0 %v4309
        %6005 = vmatprep.subr.bf16.mxu0 %v4312
        %6006 = vmatpush1.bf16.msra.mxu0 %v4311
        %6007 = vmatprep.subr.bf16.mxu0 %v4314
        %6008 = vmatpush1.bf16.msra.mxu0 %v4313
        %6009 = vmatprep.subr.bf16.mxu0 %v4316
        %6010 = vmatpush1.bf16.msra.mxu0 %v4315
        %6011 = vmatprep.subr.bf16.mxu0 %v4318
        %6012 = vmatpush1.bf16.msra.mxu0 %v4317
        %6013 = vmatprep.subr.bf16.mxu0 %v4320
        %6014 = vmatpush1.bf16.msra.mxu0 %v4319
        %6015 = vmatprep.subr.bf16.mxu0 %v4322
        %6016 = vmatpush1.bf16.msra.mxu0 %v4321
        %6017 = vmatprep.subr.bf16.mxu0 %v4324
        %6018 = vmatpush1.bf16.msra.mxu0 %v4323
        %6019 = vmatprep.subr.bf16.mxu0 %v4326
        %6020 = vmatpush1.bf16.msra.mxu0 %v4325
        %6021 = vmatprep.subr.bf16.mxu0 %v4328
        %6022 = vmatpush1.bf16.msra.mxu0 %v4327
        %6023 = vmatprep.subr.bf16.mxu0 %v4330
        %6024 = vmatpush1.bf16.msra.mxu0 %v4329
        %6025 = vmatprep.subr.bf16.mxu0 %v4332
        %6026 = vmatpush1.bf16.msra.mxu0 %v4331
        %6027 = vmatprep.subr.bf16.mxu0 %v4334
        %6028 = vmatpush1.bf16.msra.mxu0 %v4333
        %6029 = vmatprep.subr.bf16.mxu0 %v4336
        %6030 = vmatpush1.bf16.msra.mxu0 %v4335
        %6031 = vmatprep.subr.bf16.mxu0 %v4338
        %6032 = vmatpush1.bf16.msra.mxu0 %v4337
        %6033 = vmatprep.mubr.bf16.mxu0 %v1341
        %6034 = vmatmul.mubr.bf16.gmra.mrb[0].mxu0 %v1327
        %v6035 = vpop.f32.mrb[0].mxu0
        %v6036 = vadd.f32 %v5995, %v6035
        %v6037 = vpop.f32.mrb[0].mxu0
        %v6038 = vadd.f32 %v5997, %v6037
        %v6039 = vpop.f32.mrb[0].mxu0
        %v6040 = vpop.f32.mrb[0].mxu0
        %6041 = vdwg.mxu0
        %6042 = vmatprep.subr.bf16.mxu0 %v4340
        %6043 = vmatpush1.bf16.msra.mxu0 %v4339
        %6044 = vmatprep.subr.bf16.mxu0 %v4342
        %6045 = vmatpush1.bf16.msra.mxu0 %v4341
        %6046 = vmatprep.subr.bf16.mxu0 %v4344
        %6047 = vmatpush1.bf16.msra.mxu0 %v4343
        %6048 = vmatprep.subr.bf16.mxu0 %v4346
        %6049 = vmatpush1.bf16.msra.mxu0 %v4345
        %6050 = vmatprep.subr.bf16.mxu0 %v4348
        %6051 = vmatpush1.bf16.msra.mxu0 %v4347
        %6052 = vmatprep.subr.bf16.mxu0 %v4350
        %6053 = vmatpush1.bf16.msra.mxu0 %v4349
        %6054 = vmatprep.subr.bf16.mxu0 %v4352
        %6055 = vmatpush1.bf16.msra.mxu0 %v4351
        %6056 = vmatprep.subr.bf16.mxu0 %v4354
        %6057 = vmatpush1.bf16.msra.mxu0 %v4353
        %6058 = vmatprep.subr.bf16.mxu0 %v4356
        %6059 = vmatpush1.bf16.msra.mxu0 %v4355
        %6060 = vmatprep.subr.bf16.mxu0 %v4358
        %6061 = vmatpush1.bf16.msra.mxu0 %v4357
        %6062 = vmatprep.subr.bf16.mxu0 %v4360
        %6063 = vmatpush1.bf16.msra.mxu0 %v4359
        %6064 = vmatprep.subr.bf16.mxu0 %v4362
        %6065 = vmatpush1.bf16.msra.mxu0 %v4361
        %6066 = vmatprep.subr.bf16.mxu0 %v4364
        %6067 = vmatpush1.bf16.msra.mxu0 %v4363
        %6068 = vmatprep.subr.bf16.mxu0 %v4366
        %6069 = vmatpush1.bf16.msra.mxu0 %v4365
        %6070 = vmatprep.subr.bf16.mxu0 %v4368
        %6071 = vmatpush1.bf16.msra.mxu0 %v4367
        %6072 = vmatprep.subr.bf16.mxu0 %v4370
        %6073 = vmatpush1.bf16.msra.mxu0 %v4369
        %6074 = vmatprep.mubr.bf16.mxu0 %v1345
        %6075 = vmatmul.mubr.bf16.gmra.mrb[0].mxu0 %v1343
        %v6076 = vpop.f32.mrb[0].mxu0
        %v6077 = vadd.f32 %v6036, %v6076
        %v6078 = vpop.f32.mrb[0].mxu0
        %v6079 = vadd.f32 %v6038, %v6078
        %v6080 = vpop.f32.mrb[0].mxu0
        %v6081 = vpop.f32.mrb[0].mxu0
        %6082 = vdwg.mxu0
        %6083 = vmatprep.subr.bf16.mxu0 %v4372
        %6084 = vmatpush1.bf16.msra.mxu0 %v4371
        %6085 = vmatprep.subr.bf16.mxu0 %v4374
        %6086 = vmatpush1.bf16.msra.mxu0 %v4373
        %6087 = vmatprep.subr.bf16.mxu0 %v4376
        %6088 = vmatpush1.bf16.msra.mxu0 %v4375
        %6089 = vmatprep.subr.bf16.mxu0 %v4378
        %6090 = vmatpush1.bf16.msra.mxu0 %v4377
        %6091 = vmatprep.subr.bf16.mxu0 %v4380
        %6092 = vmatpush1.bf16.msra.mxu0 %v4379
        %6093 = vmatprep.subr.bf16.mxu0 %v4382
        %6094 = vmatpush1.bf16.msra.mxu0 %v4381
        %6095 = vmatprep.subr.bf16.mxu0 %v4384
        %6096 = vmatpush1.bf16.msra.mxu0 %v4383
        %6097 = vmatprep.subr.bf16.mxu0 %v4386
        %6098 = vmatpush1.bf16.msra.mxu0 %v4385
        %6099 = vmatprep.subr.bf16.mxu0 %v4388
        %6100 = vmatpush1.bf16.msra.mxu0 %v4387
        %6101 = vmatprep.subr.bf16.mxu0 %v4390
        %6102 = vmatpush1.bf16.msra.mxu0 %v4389
        %6103 = vmatprep.subr.bf16.mxu0 %v4392
        %6104 = vmatpush1.bf16.msra.mxu0 %v4391
        %6105 = vmatprep.subr.bf16.mxu0 %v4394
        %6106 = vmatpush1.bf16.msra.mxu0 %v4393
        %6107 = vmatprep.subr.bf16.mxu0 %v4396
        %6108 = vmatpush1.bf16.msra.mxu0 %v4395
        %6109 = vmatprep.subr.bf16.mxu0 %v4398
        %6110 = vmatpush1.bf16.msra.mxu0 %v4397
        %6111 = vmatprep.subr.bf16.mxu0 %v4400
        %6112 = vmatpush1.bf16.msra.mxu0 %v4399
        %6113 = vmatprep.subr.bf16.mxu0 %v4402
        %6114 = vmatpush1.bf16.msra.mxu0 %v4401
        %6115 = vmatprep.mubr.bf16.mxu0 %v1383
        %6116 = vmatmul.mubr.bf16.gmra.mrb[0].mxu0 %v1369
        %v6117 = vpop.f32.mrb[0].mxu0
        %v6118 = vadd.f32 %v6077, %v6117
        %v6119 = vpop.f32.mrb[0].mxu0
        %v6120 = vadd.f32 %v6079, %v6119
        %v6121 = vpop.f32.mrb[0].mxu0
        %v6122 = vpop.f32.mrb[0].mxu0
        %6123 = vdwg.mxu0
        %6124 = vmatprep.subr.bf16.mxu0 %v4404
        %6125 = vmatpush1.bf16.msra.mxu0 %v4403
        %6126 = vmatprep.subr.bf16.mxu0 %v4406
        %6127 = vmatpush1.bf16.msra.mxu0 %v4405
        %6128 = vmatprep.subr.bf16.mxu0 %v4408
        %6129 = vmatpush1.bf16.msra.mxu0 %v4407
        %6130 = vmatprep.subr.bf16.mxu0 %v4410
        %6131 = vmatpush1.bf16.msra.mxu0 %v4409
        %6132 = vmatprep.subr.bf16.mxu0 %v4412
        %6133 = vmatpush1.bf16.msra.mxu0 %v4411
        %6134 = vmatprep.subr.bf16.mxu0 %v4414
        %6135 = vmatpush1.bf16.msra.mxu0 %v4413
        %6136 = vmatprep.subr.bf16.mxu0 %v4416
        %6137 = vmatpush1.bf16.msra.mxu0 %v4415
        %6138 = vmatprep.subr.bf16.mxu0 %v4418
        %6139 = vmatpush1.bf16.msra.mxu0 %v4417
        %6140 = vmatprep.subr.bf16.mxu0 %v4420
        %6141 = vmatpush1.bf16.msra.mxu0 %v4419
        %6142 = vmatprep.subr.bf16.mxu0 %v4422
        %6143 = vmatpush1.bf16.msra.mxu0 %v4421
        %6144 = vmatprep.subr.bf16.mxu0 %v4424
        %6145 = vmatpush1.bf16.msra.mxu0 %v4423
        %6146 = vmatprep.subr.bf16.mxu0 %v4426
        %6147 = vmatpush1.bf16.msra.mxu0 %v4425
        %6148 = vmatprep.subr.bf16.mxu0 %v4428
        %6149 = vmatpush1.bf16.msra.mxu0 %v4427
        %6150 = vmatprep.subr.bf16.mxu0 %v4430
        %6151 = vmatpush1.bf16.msra.mxu0 %v4429
        %6152 = vmatprep.subr.bf16.mxu0 %v4432
        %6153 = vmatpush1.bf16.msra.mxu0 %v4431
        %6154 = vmatprep.subr.bf16.mxu0 %v4434
        %6155 = vmatpush1.bf16.msra.mxu0 %v4433
        %6156 = vmatprep.mubr.bf16.mxu0 %v1393
        %6157 = vmatmul.mubr.bf16.gmra.mrb[0].mxu0 %v1391
        %v6158 = vpop.f32.mrb[0].mxu0
        %v6159 = vadd.f32 %v6118, %v6158
        %v6160 = vpop.f32.mrb[0].mxu0
        %v6161 = vadd.f32 %v6120, %v6160
        %v6162 = vpop.f32.mrb[0].mxu0
        %v6163 = vpop.f32.mrb[0].mxu0
        %6164 = vdwg.mxu0
        %6165 = vmatprep.subr.bf16.mxu0 %v4436
        %6166 = vmatpush1.bf16.msra.mxu0 %v4435
        %6167 = vmatprep.subr.bf16.mxu0 %v4438
        %6168 = vmatpush1.bf16.msra.mxu0 %v4437
        %6169 = vmatprep.subr.bf16.mxu0 %v4440
        %6170 = vmatpush1.bf16.msra.mxu0 %v4439
        %6171 = vmatprep.subr.bf16.mxu0 %v4442
        %6172 = vmatpush1.bf16.msra.mxu0 %v4441
        %6173 = vmatprep.subr.bf16.mxu0 %v4444
        %6174 = vmatpush1.bf16.msra.mxu0 %v4443
        %6175 = vmatprep.subr.bf16.mxu0 %v4446
        %6176 = vmatpush1.bf16.msra.mxu0 %v4445
        %6177 = vmatprep.subr.bf16.mxu0 %v4448
        %6178 = vmatpush1.bf16.msra.mxu0 %v4447
        %6179 = vmatprep.subr.bf16.mxu0 %v4450
        %6180 = vmatpush1.bf16.msra.mxu0 %v4449
        %6181 = vmatprep.subr.bf16.mxu0 %v4452
        %6182 = vmatpush1.bf16.msra.mxu0 %v4451
        %6183 = vmatprep.subr.bf16.mxu0 %v4454
        %6184 = vmatpush1.bf16.msra.mxu0 %v4453
        %6185 = vmatprep.subr.bf16.mxu0 %v4456
        %6186 = vmatpush1.bf16.msra.mxu0 %v4455
        %6187 = vmatprep.subr.bf16.mxu0 %v4458
        %6188 = vmatpush1.bf16.msra.mxu0 %v4457
        %6189 = vmatprep.subr.bf16.mxu0 %v4460
        %6190 = vmatpush1.bf16.msra.mxu0 %v4459
        %6191 = vmatprep.subr.bf16.mxu0 %v4462
        %6192 = vmatpush1.bf16.msra.mxu0 %v4461
        %6193 = vmatprep.subr.bf16.mxu0 %v4464
        %6194 = vmatpush1.bf16.msra.mxu0 %v4463
        %6195 = vmatprep.subr.bf16.mxu0 %v4466
        %6196 = vmatpush1.bf16.msra.mxu0 %v4465
        %6197 = vmatprep.mubr.bf16.mxu0 %v1390
        %6198 = vmatmul.mubr.bf16.gmra.mrb[0].mxu0 %v1376
        %v6199 = vpop.f32.mrb[0].mxu0
        %v6200 = vadd.f32 %v6159, %v6199
        %v6201 = vpop.f32.mrb[0].mxu0
        %v6202 = vadd.f32 %v6161, %v6201
        %v6203 = vpop.f32.mrb[0].mxu0
        %v6204 = vpop.f32.mrb[0].mxu0
        %6205 = vdwg.mxu0
        %6206 = vmatprep.subr.bf16.mxu0 %v4468
        %6207 = vmatpush1.bf16.msra.mxu0 %v4467
        %6208 = vmatprep.subr.bf16.mxu0 %v4470
        %6209 = vmatpush1.bf16.msra.mxu0 %v4469
        %6210 = vmatprep.subr.bf16.mxu0 %v4472
        %6211 = vmatpush1.bf16.msra.mxu0 %v4471
        %6212 = vmatprep.subr.bf16.mxu0 %v4474
        %6213 = vmatpush1.bf16.msra.mxu0 %v4473
        %6214 = vmatprep.subr.bf16.mxu0 %v4476
        %6215 = vmatpush1.bf16.msra.mxu0 %v4475
        %6216 = vmatprep.subr.bf16.mxu0 %v4478
        %6217 = vmatpush1.bf16.msra.mxu0 %v4477
        %6218 = vmatprep.subr.bf16.mxu0 %v4480
        %6219 = vmatpush1.bf16.msra.mxu0 %v4479
        %6220 = vmatprep.subr.bf16.mxu0 %v4482
        %6221 = vmatpush1.bf16.msra.mxu0 %v4481
        %6222 = vmatprep.subr.bf16.mxu0 %v4484
        %6223 = vmatpush1.bf16.msra.mxu0 %v4483
        %6224 = vmatprep.subr.bf16.mxu0 %v4486
        %6225 = vmatpush1.bf16.msra.mxu0 %v4485
        %6226 = vmatprep.subr.bf16.mxu0 %v4488
        %6227 = vmatpush1.bf16.msra.mxu0 %v4487
        %6228 = vmatprep.subr.bf16.mxu0 %v4490
        %6229 = vmatpush1.bf16.msra.mxu0 %v4489
        %6230 = vmatprep.subr.bf16.mxu0 %v4492
        %6231 = vmatpush1.bf16.msra.mxu0 %v4491
        %6232 = vmatprep.subr.bf16.mxu0 %v4494
        %6233 = vmatpush1.bf16.msra.mxu0 %v4493
        %6234 = vmatprep.subr.bf16.mxu0 %v4496
        %6235 = vmatpush1.bf16.msra.mxu0 %v4495
        %6236 = vmatprep.subr.bf16.mxu0 %v4498
        %6237 = vmatpush1.bf16.msra.mxu0 %v4497
        %6238 = vmatprep.mubr.bf16.mxu0 %v1394
        %6239 = vmatmul.mubr.bf16.gmra.mrb[0].mxu0 %v1392
        %v6240 = vpop.f32.mrb[0].mxu0
        %v6241 = vadd.f32 %v6200, %v6240
        %v6242 = vpop.f32.mrb[0].mxu0
        %v6243 = vadd.f32 %v6202, %v6242
        %v6244 = vpop.f32.mrb[0].mxu0
        %v6245 = vpop.f32.mrb[0].mxu0
        %6246 = vdwg.mxu0
        %6247 = vmatprep.subr.bf16.mxu0 %v4500
        %6248 = vmatpush1.bf16.msra.mxu0 %v4499
        %6249 = vmatprep.subr.bf16.mxu0 %v4502
        %6250 = vmatpush1.bf16.msra.mxu0 %v4501
        %6251 = vmatprep.subr.bf16.mxu0 %v4504
        %6252 = vmatpush1.bf16.msra.mxu0 %v4503
        %6253 = vmatprep.subr.bf16.mxu0 %v4506
        %6254 = vmatpush1.bf16.msra.mxu0 %v4505
        %6255 = vmatprep.subr.bf16.mxu0 %v4508
        %6256 = vmatpush1.bf16.msra.mxu0 %v4507
        %6257 = vmatprep.subr.bf16.mxu0 %v4510
        %6258 = vmatpush1.bf16.msra.mxu0 %v4509
        %6259 = vmatprep.subr.bf16.mxu0 %v4512
        %6260 = vmatpush1.bf16.msra.mxu0 %v4511
        %6261 = vmatprep.subr.bf16.mxu0 %v4514
        %6262 = vmatpush1.bf16.msra.mxu0 %v4513
        %6263 = vmatprep.subr.bf16.mxu0 %v4516
        %6264 = vmatpush1.bf16.msra.mxu0 %v4515
        %6265 = vmatprep.subr.bf16.mxu0 %v4518
        %6266 = vmatpush1.bf16.msra.mxu0 %v4517
        %6267 = vmatprep.subr.bf16.mxu0 %v4520
        %6268 = vmatpush1.bf16.msra.mxu0 %v4519
        %6269 = vmatprep.subr.bf16.mxu0 %v4522
        %6270 = vmatpush1.bf16.msra.mxu0 %v4521
        %6271 = vmatprep.subr.bf16.mxu0 %v4524
        %6272 = vmatpush1.bf16.msra.mxu0 %v4523
        %6273 = vmatprep.subr.bf16.mxu0 %v4526
        %6274 = vmatpush1.bf16.msra.mxu0 %v4525
        %6275 = vmatprep.subr.bf16.mxu0 %v4528
        %6276 = vmatpush1.bf16.msra.mxu0 %v4527
        %6277 = vmatprep.subr.bf16.mxu0 %v4530
        %6278 = vmatpush1.bf16.msra.mxu0 %v4529
        %6279 = vmatprep.mubr.bf16.mxu0 %v1432
        %6280 = vmatmul.mubr.bf16.gmra.mrb[0].mxu0 %v1418
        %v6281 = vpop.f32.mrb[0].mxu0
        %v6282 = vadd.f32 %v6241, %v6281
        %v6283 = vpop.f32.mrb[0].mxu0
        %v6284 = vadd.f32 %v6243, %v6283
        %v6285 = vpop.f32.mrb[0].mxu0
        %v6286 = vpop.f32.mrb[0].mxu0
        %6287 = vdwg.mxu0
        %6288 = vmatprep.subr.bf16.mxu0 %v4532
        %6289 = vmatpush1.bf16.msra.mxu0 %v4531
        %6290 = vmatprep.subr.bf16.mxu0 %v4534
        %6291 = vmatpush1.bf16.msra.mxu0 %v4533
        %6292 = vmatprep.subr.bf16.mxu0 %v4536
        %6293 = vmatpush1.bf16.msra.mxu0 %v4535
        %6294 = vmatprep.subr.bf16.mxu0 %v4538
        %6295 = vmatpush1.bf16.msra.mxu0 %v4537
        %6296 = vmatprep.subr.bf16.mxu0 %v4540
        %6297 = vmatpush1.bf16.msra.mxu0 %v4539
        %6298 = vmatprep.subr.bf16.mxu0 %v4542
        %6299 = vmatpush1.bf16.msra.mxu0 %v4541
        %6300 = vmatprep.subr.bf16.mxu0 %v4544
        %6301 = vmatpush1.bf16.msra.mxu0 %v4543
        %6302 = vmatprep.subr.bf16.mxu0 %v4546
        %6303 = vmatpush1.bf16.msra.mxu0 %v4545
        %6304 = vmatprep.subr.bf16.mxu0 %v4548
        %6305 = vmatpush1.bf16.msra.mxu0 %v4547
        %6306 = vmatprep.subr.bf16.mxu0 %v4550
        %6307 = vmatpush1.bf16.msra.mxu0 %v4549
        %6308 = vmatprep.subr.bf16.mxu0 %v4552
        %6309 = vmatpush1.bf16.msra.mxu0 %v4551
        %6310 = vmatprep.subr.bf16.mxu0 %v4554
        %6311 = vmatpush1.bf16.msra.mxu0 %v4553
        %6312 = vmatprep.subr.bf16.mxu0 %v4556
        %6313 = vmatpush1.bf16.msra.mxu0 %v4555
        %6314 = vmatprep.subr.bf16.mxu0 %v4558
        %6315 = vmatpush1.bf16.msra.mxu0 %v4557
        %6316 = vmatprep.subr.bf16.mxu0 %v4560
        %6317 = vmatpush1.bf16.msra.mxu0 %v4559
        %6318 = vmatprep.subr.bf16.mxu0 %v4562
        %6319 = vmatpush1.bf16.msra.mxu0 %v4561
        %6320 = vmatprep.mubr.bf16.mxu0 %v1442
        %6321 = vmatmul.mubr.bf16.gmra.mrb[0].mxu0 %v1440
        %v6322 = vpop.f32.mrb[0].mxu0
        %v6323 = vadd.f32 %v6282, %v6322
        %v6324 = vpop.f32.mrb[0].mxu0
        %v6325 = vadd.f32 %v6284, %v6324
        %v6326 = vpop.f32.mrb[0].mxu0
        %v6327 = vpop.f32.mrb[0].mxu0
        %6328 = vdwg.mxu0
        %6329 = vmatprep.subr.bf16.mxu0 %v4564
        %6330 = vmatpush1.bf16.msra.mxu0 %v4563
        %6331 = vmatprep.subr.bf16.mxu0 %v4566
        %6332 = vmatpush1.bf16.msra.mxu0 %v4565
        %6333 = vmatprep.subr.bf16.mxu0 %v4568
        %6334 = vmatpush1.bf16.msra.mxu0 %v4567
        %6335 = vmatprep.subr.bf16.mxu0 %v4570
        %6336 = vmatpush1.bf16.msra.mxu0 %v4569
        %6337 = vmatprep.subr.bf16.mxu0 %v4572
        %6338 = vmatpush1.bf16.msra.mxu0 %v4571
        %6339 = vmatprep.subr.bf16.mxu0 %v4574
        %6340 = vmatpush1.bf16.msra.mxu0 %v4573
        %6341 = vmatprep.subr.bf16.mxu0 %v4576
        %6342 = vmatpush1.bf16.msra.mxu0 %v4575
        %6343 = vmatprep.subr.bf16.mxu0 %v4578
        %6344 = vmatpush1.bf16.msra.mxu0 %v4577
        %6345 = vmatprep.subr.bf16.mxu0 %v4580
        %6346 = vmatpush1.bf16.msra.mxu0 %v4579
        %6347 = vmatprep.subr.bf16.mxu0 %v4582
        %6348 = vmatpush1.bf16.msra.mxu0 %v4581
        %6349 = vmatprep.subr.bf16.mxu0 %v4584
        %6350 = vmatpush1.bf16.msra.mxu0 %v4583
        %6351 = vmatprep.subr.bf16.mxu0 %v4586
        %6352 = vmatpush1.bf16.msra.mxu0 %v4585
        %6353 = vmatprep.subr.bf16.mxu0 %v4588
        %6354 = vmatpush1.bf16.msra.mxu0 %v4587
        %6355 = vmatprep.subr.bf16.mxu0 %v4590
        %6356 = vmatpush1.bf16.msra.mxu0 %v4589
        %6357 = vmatprep.subr.bf16.mxu0 %v4592
        %6358 = vmatpush1.bf16.msra.mxu0 %v4591
        %6359 = vmatprep.subr.bf16.mxu0 %v4594
        %6360 = vmatpush1.bf16.msra.mxu0 %v4593
        %6361 = vmatprep.mubr.bf16.mxu0 %v1439
        %6362 = vmatmul.mubr.bf16.gmra.mrb[0].mxu0 %v1425
        %v6363 = vpop.f32.mrb[0].mxu0
        %v6364 = vadd.f32 %v6323, %v6363
        %v6365 = vpop.f32.mrb[0].mxu0
        %v6366 = vadd.f32 %v6325, %v6365
        %v6367 = vpop.f32.mrb[0].mxu0
        %v6368 = vpop.f32.mrb[0].mxu0
        %6369 = vdwg.mxu0
        %6370 = vmatprep.subr.bf16.mxu0 %v4596
        %6371 = vmatpush1.bf16.msra.mxu0 %v4595
        %6372 = vmatprep.subr.bf16.mxu0 %v4598
        %6373 = vmatpush1.bf16.msra.mxu0 %v4597
        %6374 = vmatprep.subr.bf16.mxu0 %v4600
        %6375 = vmatpush1.bf16.msra.mxu0 %v4599
        %6376 = vmatprep.subr.bf16.mxu0 %v4602
        %6377 = vmatpush1.bf16.msra.mxu0 %v4601
        %6378 = vmatprep.subr.bf16.mxu0 %v4604
        %6379 = vmatpush1.bf16.msra.mxu0 %v4603
        %6380 = vmatprep.subr.bf16.mxu0 %v4606
        %6381 = vmatpush1.bf16.msra.mxu0 %v4605
        %6382 = vmatprep.subr.bf16.mxu0 %v4608
        %6383 = vmatpush1.bf16.msra.mxu0 %v4607
        %6384 = vmatprep.subr.bf16.mxu0 %v4610
        %6385 = vmatpush1.bf16.msra.mxu0 %v4609
        %6386 = vmatprep.subr.bf16.mxu0 %v4612
        %6387 = vmatpush1.bf16.msra.mxu0 %v4611
        %6388 = vmatprep.subr.bf16.mxu0 %v4614
        %6389 = vmatpush1.bf16.msra.mxu0 %v4613
        %6390 = vmatprep.subr.bf16.mxu0 %v4616
        %6391 = vmatpush1.bf16.msra.mxu0 %v4615
        %6392 = vmatprep.subr.bf16.mxu0 %v4618
        %6393 = vmatpush1.bf16.msra.mxu0 %v4617
        %6394 = vmatprep.subr.bf16.mxu0 %v4620
        %6395 = vmatpush1.bf16.msra.mxu0 %v4619
        %6396 = vmatprep.subr.bf16.mxu0 %v4622
        %6397 = vmatpush1.bf16.msra.mxu0 %v4621
        %6398 = vmatprep.subr.bf16.mxu0 %v4624
        %6399 = vmatpush1.bf16.msra.mxu0 %v4623
        %6400 = vmatprep.subr.bf16.mxu0 %v4626
        %6401 = vmatpush1.bf16.msra.mxu0 %v4625
        %6402 = vmatprep.mubr.bf16.mxu0 %v1443
        %6403 = vmatmul.mubr.bf16.gmra.mrb[0].mxu0 %v1441
        %v6404 = vpop.f32.mrb[0].mxu0
        %v6405 = vadd.f32 %v6364, %v6404
        %v6406 = vpop.f32.mrb[0].mxu0
        %v6407 = vadd.f32 %v6366, %v6406
        %v6408 = vpop.f32.mrb[0].mxu0
        %v6409 = vpop.f32.mrb[0].mxu0
        %6410 = vdwg.mxu0
        %6411 = vmatprep.subr.bf16.mxu0 %v4628
        %6412 = vmatpush1.bf16.msra.mxu0 %v4627
        %6413 = vmatprep.subr.bf16.mxu0 %v4630
        %6414 = vmatpush1.bf16.msra.mxu0 %v4629
        %6415 = vmatprep.subr.bf16.mxu0 %v4632
        %6416 = vmatpush1.bf16.msra.mxu0 %v4631
        %6417 = vmatprep.subr.bf16.mxu0 %v4634
        %6418 = vmatpush1.bf16.msra.mxu0 %v4633
        %6419 = vmatprep.subr.bf16.mxu0 %v4636
        %6420 = vmatpush1.bf16.msra.mxu0 %v4635
        %6421 = vmatprep.subr.bf16.mxu0 %v4638
        %6422 = vmatpush1.bf16.msra.mxu0 %v4637
        %6423 = vmatprep.subr.bf16.mxu0 %v4640
        %6424 = vmatpush1.bf16.msra.mxu0 %v4639
        %6425 = vmatprep.subr.bf16.mxu0 %v4642
        %6426 = vmatpush1.bf16.msra.mxu0 %v4641
        %6427 = vmatprep.subr.bf16.mxu0 0
        %6428 = vmatpush1.bf16.msra.mxu0 0
        %6429 = vmatprep.subr.bf16.mxu0 0
        %6430 = vmatpush1.bf16.msra.mxu0 0
        %6431 = vmatprep.subr.bf16.mxu0 0
        %6432 = vmatpush1.bf16.msra.mxu0 0
        %6433 = vmatprep.subr.bf16.mxu0 0
        %6434 = vmatpush1.bf16.msra.mxu0 0
        %6435 = vmatprep.subr.bf16.mxu0 0
        %6436 = vmatpush1.bf16.msra.mxu0 0
        %6437 = vmatprep.subr.bf16.mxu0 0
        %6438 = vmatpush1.bf16.msra.mxu0 0
        %6439 = vmatprep.subr.bf16.mxu0 0
        %6440 = vmatpush1.bf16.msra.mxu0 0
        %6441 = vmatprep.subr.bf16.mxu0 0
        %6442 = vmatpush1.bf16.msra.mxu0 0
        %6443 = vmatprep.mubr.bf16.mxu0 0
        %6444 = vmatmul.mubr.bf16.gmra.mrb[0].mxu0 %v1457
        %v6445 = vpop.f32.mrb[0].mxu0
        %v6446 = vadd.f32 %v6405, %v6445
        %v6447 = vpop.f32.mrb[0].mxu0
        %v6448 = vadd.f32 %v6407, %v6447
        %v6449 = vpop.f32.mrb[0].mxu0
        %v6450 = vpop.f32.mrb[0].mxu0
        %6451 = vdwg.mxu0
        %v6452 = vmax.f32 %v6446, 0.0
        %v6453 = vmax.f32 %v6448, 0.0
        %s6454 = smul.u32 %s27, 256
        %v6455 = vpack.c.bf16 %v6452, %v6452
        %v6456 = vpack.c.bf16 %v6453, %v6453
        %v6459 = vcombine.low %v6455, %v6456
        %v6461 = vunpack.c.l.s4 1966171168
        %v6462 = vunpack.c.0.s8 %v6461
        %v6463 = vlaneseq
        %v6464 = vshrl.u32 %v6463, 7
        %v6465 = vsub.s32 %v6462, %v6464
        %v6466 = vrot.slane %v6459, %v6465
        %v6468 = vunpack.c.l.s4 1966171168
        %v6469 = vunpack.c.0.s8 %v6468
        %v6470 = vlaneseq
        %v6471 = vshrl.u32 %v6470, 7
        %v6472 = vsub.s32 %v6469, %v6471
        %v6473 = vrot.slane %v6466, %v6472
        %s6475 = sshra.s32 %s6454, 7
        %s6476 = sand.u32 %s6454, 127
        %s6477 = scalar_lea.vmem [#allocation2], %s6475
        %6478 = vst [vmem:[%s6477] sm:$0x3] %v6473
        %p6479 = scmp.eq.s32.totalorder %s27, 3
        // Predicated region
        $region53: #{mnist_2nn_pallas.3} parent=47 // pred_check
          %p6480 = pneg %p6479
        $region54: #{mnist_2nn_pallas.3} parent=47 // pred_check_branch
          %6482 = sbr.rel (%p6480) target = $region56
        $region55: #{mnist_2nn_pallas.3} parent=47 // pred_region
          %v6483 = vld [vmem:[#allocation2] sm:$0xff]
          %v6484 = vld [vmem:[%s3] sm:$0xff]
          %v6485 = vld [vmem:[%s3 + $0x8] sm:$0xff]
          %v6486 = vld [vmem:[%s3 + $0x10] sm:$0xff]
          %v6487 = vld [vmem:[%s3 + $0x18] sm:$0xff]
          %v6488 = vld [vmem:[%s3 + $0x20] sm:$0xff]
          %v6489 = vld [vmem:[%s3 + $0x28] sm:$0xff]
          %v6490 = vld [vmem:[%s3 + $0x30] sm:$0xff]
          %v6491 = vld [vmem:[%s3 + $0x38] sm:$0xff]
          %v6492 = vld [vmem:[%s3 + $0x40] sm:$0xff]
          %v6493 = vld [vmem:[%s3 + $0x48] sm:$0xff]
          %v6494 = vld [vmem:[%s3 + $0x50] sm:$0xff]
          %v6495 = vld [vmem:[%s3 + $0x58] sm:$0xff]
          %v6496 = vld [vmem:[%s3 + $0x60] sm:$0xff]
          %v6497 = vld [vmem:[%s3 + $0x68] sm:$0xff]
          %v6498 = vld [vmem:[%s3 + $0x70] sm:$0xff]
          %v6499 = vld [vmem:[%s3 + $0x78] sm:$0xff]
          %v6500 = vld [vmem:[%s3 + $0x80] sm:$0xff]
          %v6501 = vld [vmem:[%s3 + $0x88] sm:$0xff]
          %v6502 = vld [vmem:[%s3 + $0x90] sm:$0xff]
          %v6503 = vld [vmem:[%s3 + $0x98] sm:$0xff]
          %v6504 = vld [vmem:[%s3 + $0xa0] sm:$0xff]
          %v6505 = vld [vmem:[%s3 + $0xa8] sm:$0xff]
          %v6506 = vld [vmem:[%s3 + $0xb0] sm:$0xff]
          %v6507 = vld [vmem:[%s3 + $0xb8] sm:$0xff]
          %v6508 = vld [vmem:[%s3 + $0xc0] sm:$0xff]
          %v6509 = vld [vmem:[%s3 + $0xc8] sm:$0xff]
          %v6510 = vld [vmem:[%s3 + $0xd0] sm:$0xff]
          %v6511 = vld [vmem:[%s3 + $0xd8] sm:$0xff]
          %v6512 = vld [vmem:[%s3 + $0xe0] sm:$0xff]
          %v6513 = vld [vmem:[%s3 + $0xe8] sm:$0xff]
          %v6514 = vld [vmem:[%s3 + $0xf0] sm:$0xff]
          %v6515 = vld [vmem:[%s3 + $0xf8] sm:$0xff]
          %v6516 = vld [vmem:[%s3 + $0x100] sm:$0xff]
          %v6517 = vld [vmem:[%s3 + $0x108] sm:$0xff]
          %v6518 = vld [vmem:[%s3 + $0x110] sm:$0xff]
          %v6519 = vld [vmem:[%s3 + $0x118] sm:$0xff]
          %v6520 = vld [vmem:[%s3 + $0x120] sm:$0xff]
          %v6521 = vld [vmem:[%s3 + $0x128] sm:$0xff]
          %v6522 = vld [vmem:[%s3 + $0x130] sm:$0xff]
          %v6523 = vld [vmem:[%s3 + $0x138] sm:$0xff]
          %v6524 = vld [vmem:[%s3 + $0x140] sm:$0xff]
          %v6525 = vld [vmem:[%s3 + $0x148] sm:$0xff]
          %v6526 = vld [vmem:[%s3 + $0x150] sm:$0xff]
          %v6527 = vld [vmem:[%s3 + $0x158] sm:$0xff]
          %v6528 = vld [vmem:[%s3 + $0x160] sm:$0xff]
          %v6529 = vld [vmem:[%s3 + $0x168] sm:$0xff]
          %v6530 = vld [vmem:[%s3 + $0x170] sm:$0xff]
          %v6531 = vld [vmem:[%s3 + $0x178] sm:$0xff]
          %v6532 = vld [vmem:[%s3 + $0x180] sm:$0xff]
          %v6533 = vld [vmem:[%s3 + $0x188] sm:$0xff]
          %v6534 = vld [vmem:[%s3 + $0x190] sm:$0xff]
          %v6535 = vld [vmem:[%s3 + $0x198] sm:$0xff]
          %v6536 = vld [vmem:[%s3 + $0x1a0] sm:$0xff]
          %v6537 = vld [vmem:[%s3 + $0x1a8] sm:$0xff]
          %v6538 = vld [vmem:[%s3 + $0x1b0] sm:$0xff]
          %v6539 = vld [vmem:[%s3 + $0x1b8] sm:$0xff]
          %v6540 = vld [vmem:[%s3 + $0x1c0] sm:$0xff]
          %v6541 = vld [vmem:[%s3 + $0x1c8] sm:$0xff]
          %v6542 = vld [vmem:[%s3 + $0x1d0] sm:$0xff]
          %v6543 = vld [vmem:[%s3 + $0x1d8] sm:$0xff]
          %v6544 = vld [vmem:[%s3 + $0x1e0] sm:$0xff]
          %v6545 = vld [vmem:[%s3 + $0x1e8] sm:$0xff]
          %v6546 = vld [vmem:[%s3 + $0x1f0] sm:$0xff]
          %v6547 = vld [vmem:[%s3 + $0x1f8] sm:$0xff]
          %v6548 = vld [vmem:[%s3 + $0x200] sm:$0xff]
          %v6549 = vld [vmem:[%s3 + $0x208] sm:$0xff]
          %v6550 = vld [vmem:[%s3 + $0x210] sm:$0xff]
          %v6551 = vld [vmem:[%s3 + $0x218] sm:$0xff]
          %v6552 = vld [vmem:[%s3 + $0x220] sm:$0xff]
          %v6553 = vld [vmem:[%s3 + $0x228] sm:$0xff]
          %v6554 = vld [vmem:[%s3 + $0x230] sm:$0xff]
          %v6555 = vld [vmem:[%s3 + $0x238] sm:$0xff]
          %v6556 = vld [vmem:[%s3 + $0x240] sm:$0xff]
          %v6557 = vld [vmem:[%s3 + $0x248] sm:$0xff]
          %v6558 = vld [vmem:[%s3 + $0x250] sm:$0xff]
          %v6559 = vld [vmem:[%s3 + $0x258] sm:$0xff]
          %v6560 = vld [vmem:[%s3 + $0x260] sm:$0xff]
          %v6561 = vld [vmem:[%s3 + $0x268] sm:$0xff]
          %v6562 = vld [vmem:[%s3 + $0x270] sm:$0xff]
          %v6563 = vld [vmem:[%s3 + $0x278] sm:$0xff]
          %v6564 = vld [vmem:[%s3 + $0x280] sm:$0xff]
          %v6565 = vld [vmem:[%s3 + $0x288] sm:$0xff]
          %v6566 = vld [vmem:[%s3 + $0x290] sm:$0xff]
          %v6567 = vld [vmem:[%s3 + $0x298] sm:$0xff]
          %v6568 = vld [vmem:[%s3 + $0x2a0] sm:$0xff]
          %v6569 = vld [vmem:[%s3 + $0x2a8] sm:$0xff]
          %v6570 = vld [vmem:[%s3 + $0x2b0] sm:$0xff]
          %v6571 = vld [vmem:[%s3 + $0x2b8] sm:$0xff]
          %v6572 = vld [vmem:[%s3 + $0x2c0] sm:$0xff]
          %v6573 = vld [vmem:[%s3 + $0x2c8] sm:$0xff]
          %v6574 = vld [vmem:[%s3 + $0x2d0] sm:$0xff]
          %v6575 = vld [vmem:[%s3 + $0x2d8] sm:$0xff]
          %v6576 = vld [vmem:[%s3 + $0x2e0] sm:$0xff]
          %v6577 = vld [vmem:[%s3 + $0x2e8] sm:$0xff]
          %v6578 = vld [vmem:[%s3 + $0x2f0] sm:$0xff]
          %v6579 = vld [vmem:[%s3 + $0x2f8] sm:$0xff]
          %v6580 = vld [vmem:[%s3 + $0x300] sm:$0xff]
          %v6581 = vld [vmem:[%s3 + $0x308] sm:$0xff]
          %v6582 = vld [vmem:[%s3 + $0x310] sm:$0xff]
          %v6583 = vld [vmem:[%s3 + $0x318] sm:$0xff]
          %v6584 = vld [vmem:[%s3 + $0x320] sm:$0xff]
          %v6585 = vld [vmem:[%s3 + $0x328] sm:$0xff]
          %v6586 = vld [vmem:[%s3 + $0x330] sm:$0xff]
          %v6587 = vld [vmem:[%s3 + $0x338] sm:$0xff]
          %v6588 = vld [vmem:[%s3 + $0x340] sm:$0xff]
          %v6589 = vld [vmem:[%s3 + $0x348] sm:$0xff]
          %v6590 = vld [vmem:[%s3 + $0x350] sm:$0xff]
          %v6591 = vld [vmem:[%s3 + $0x358] sm:$0xff]
          %v6592 = vld [vmem:[%s3 + $0x360] sm:$0xff]
          %v6593 = vld [vmem:[%s3 + $0x368] sm:$0xff]
          %v6594 = vld [vmem:[%s3 + $0x370] sm:$0xff]
          %v6595 = vld [vmem:[%s3 + $0x378] sm:$0xff]
          %v6596 = vld [vmem:[%s3 + $0x380] sm:$0xff]
          %v6597 = vld [vmem:[%s3 + $0x388] sm:$0xff]
          %v6598 = vld [vmem:[%s3 + $0x390] sm:$0xff]
          %v6599 = vld [vmem:[%s3 + $0x398] sm:$0xff]
          %v6600 = vld [vmem:[%s3 + $0x3a0] sm:$0xff]
          %v6601 = vld [vmem:[%s3 + $0x3a8] sm:$0xff]
          %v6602 = vld [vmem:[%s3 + $0x3b0] sm:$0xff]
          %v6603 = vld [vmem:[%s3 + $0x3b8] sm:$0xff]
          %v6604 = vld [vmem:[%s3 + $0x3c0] sm:$0xff]
          %v6605 = vld [vmem:[%s3 + $0x3c8] sm:$0xff]
          %v6606 = vld [vmem:[%s3 + $0x3d0] sm:$0xff]
          %v6607 = vld [vmem:[%s3 + $0x3d8] sm:$0xff]
          %v6608 = vld [vmem:[%s3 + $0x3e0] sm:$0xff]
          %v6609 = vld [vmem:[%s3 + $0x3e8] sm:$0xff]
          %v6610 = vld [vmem:[%s3 + $0x3f0] sm:$0xff]
          %v6611 = vld [vmem:[%s3 + $0x3f8] sm:$0xff]
          %v6612 = vld [vmem:[%s3 + $0x400] sm:$0xff]
          %v6613 = vld [vmem:[%s3 + $0x408] sm:$0xff]
          %v6614 = vld [vmem:[%s3 + $0x410] sm:$0xff]
          %v6615 = vld [vmem:[%s3 + $0x418] sm:$0xff]
          %v6616 = vld [vmem:[%s3 + $0x420] sm:$0xff]
          %v6617 = vld [vmem:[%s3 + $0x428] sm:$0xff]
          %v6618 = vld [vmem:[%s3 + $0x430] sm:$0xff]
          %v6619 = vld [vmem:[%s3 + $0x438] sm:$0xff]
          %v6620 = vld [vmem:[%s3 + $0x440] sm:$0xff]
          %v6621 = vld [vmem:[%s3 + $0x448] sm:$0xff]
          %v6622 = vld [vmem:[%s3 + $0x450] sm:$0xff]
          %v6623 = vld [vmem:[%s3 + $0x458] sm:$0xff]
          %v6624 = vld [vmem:[%s3 + $0x460] sm:$0xff]
          %v6625 = vld [vmem:[%s3 + $0x468] sm:$0xff]
          %v6626 = vld [vmem:[%s3 + $0x470] sm:$0xff]
          %v6627 = vld [vmem:[%s3 + $0x478] sm:$0xff]
          %v6628 = vld [vmem:[%s3 + $0x480] sm:$0xff]
          %v6629 = vld [vmem:[%s3 + $0x488] sm:$0xff]
          %v6630 = vld [vmem:[%s3 + $0x490] sm:$0xff]
          %v6631 = vld [vmem:[%s3 + $0x498] sm:$0xff]
          %v6632 = vld [vmem:[%s3 + $0x4a0] sm:$0xff]
          %v6633 = vld [vmem:[%s3 + $0x4a8] sm:$0xff]
          %v6634 = vld [vmem:[%s3 + $0x4b0] sm:$0xff]
          %v6635 = vld [vmem:[%s3 + $0x4b8] sm:$0xff]
          %v6636 = vld [vmem:[%s3 + $0x4c0] sm:$0xff]
          %v6637 = vld [vmem:[%s3 + $0x4c8] sm:$0xff]
          %v6638 = vld [vmem:[%s3 + $0x4d0] sm:$0xff]
          %v6639 = vld [vmem:[%s3 + $0x4d8] sm:$0xff]
          %v6640 = vld [vmem:[%s3 + $0x4e0] sm:$0xff]
          %v6641 = vld [vmem:[%s3 + $0x4e8] sm:$0xff]
          %v6642 = vld [vmem:[%s3 + $0x4f0] sm:$0xff]
          %v6643 = vld [vmem:[%s3 + $0x4f8] sm:$0xff]
          %v6644 = vld [vmem:[%s3 + $0x500] sm:$0xff]
          %v6645 = vld [vmem:[%s3 + $0x508] sm:$0xff]
          %v6646 = vld [vmem:[%s3 + $0x510] sm:$0xff]
          %v6647 = vld [vmem:[%s3 + $0x518] sm:$0xff]
          %v6648 = vld [vmem:[%s3 + $0x520] sm:$0xff]
          %v6649 = vld [vmem:[%s3 + $0x528] sm:$0xff]
          %v6650 = vld [vmem:[%s3 + $0x530] sm:$0xff]
          %v6651 = vld [vmem:[%s3 + $0x538] sm:$0xff]
          %v6652 = vld [vmem:[%s3 + $0x540] sm:$0xff]
          %v6653 = vld [vmem:[%s3 + $0x548] sm:$0xff]
          %v6654 = vld [vmem:[%s3 + $0x550] sm:$0xff]
          %v6655 = vld [vmem:[%s3 + $0x558] sm:$0xff]
          %v6656 = vld [vmem:[%s3 + $0x560] sm:$0xff]
          %v6657 = vld [vmem:[%s3 + $0x568] sm:$0xff]
          %v6658 = vld [vmem:[%s3 + $0x570] sm:$0xff]
          %v6659 = vld [vmem:[%s3 + $0x578] sm:$0xff]
          %v6660 = vld [vmem:[%s3 + $0x580] sm:$0xff]
          %v6661 = vld [vmem:[%s3 + $0x588] sm:$0xff]
          %v6662 = vld [vmem:[%s3 + $0x590] sm:$0xff]
          %v6663 = vld [vmem:[%s3 + $0x598] sm:$0xff]
          %v6664 = vld [vmem:[%s3 + $0x5a0] sm:$0xff]
          %v6665 = vld [vmem:[%s3 + $0x5a8] sm:$0xff]
          %v6666 = vld [vmem:[%s3 + $0x5b0] sm:$0xff]
          %v6667 = vld [vmem:[%s3 + $0x5b8] sm:$0xff]
          %v6668 = vld [vmem:[%s3 + $0x5c0] sm:$0xff]
          %v6669 = vld [vmem:[%s3 + $0x5c8] sm:$0xff]
          %v6670 = vld [vmem:[%s3 + $0x5d0] sm:$0xff]
          %v6671 = vld [vmem:[%s3 + $0x5d8] sm:$0xff]
          %v6672 = vld [vmem:[%s3 + $0x5e0] sm:$0xff]
          %v6673 = vld [vmem:[%s3 + $0x5e8] sm:$0xff]
          %v6674 = vld [vmem:[%s3 + $0x5f0] sm:$0xff]
          %v6675 = vld [vmem:[%s3 + $0x5f8] sm:$0xff]
          %v6676 = vld [vmem:[%s3 + $0x600] sm:$0xff]
          %v6677 = vld [vmem:[%s3 + $0x608] sm:$0xff]
          %v6678 = vld [vmem:[%s3 + $0x610] sm:$0xff]
          %v6679 = vld [vmem:[%s3 + $0x618] sm:$0xff]
          %v6680 = vld [vmem:[%s3 + $0x620] sm:$0xff]
          %v6681 = vld [vmem:[%s3 + $0x628] sm:$0xff]
          %v6682 = vld [vmem:[%s3 + $0x630] sm:$0xff]
          %v6683 = vld [vmem:[%s3 + $0x638] sm:$0xff]
          %v6684 = vld [vmem:[%s3 + $0x640] sm:$0xff]
          %v6685 = vld [vmem:[%s3 + $0x648] sm:$0xff]
          %v6686 = vld [vmem:[%s3 + $0x650] sm:$0xff]
          %v6687 = vld [vmem:[%s3 + $0x658] sm:$0xff]
          %v6688 = vld [vmem:[%s3 + $0x660] sm:$0xff]
          %v6689 = vld [vmem:[%s3 + $0x668] sm:$0xff]
          %v6690 = vld [vmem:[%s3 + $0x670] sm:$0xff]
          %v6691 = vld [vmem:[%s3 + $0x678] sm:$0xff]
          %v6692 = vld [vmem:[%s3 + $0x680] sm:$0xff]
          %v6693 = vld [vmem:[%s3 + $0x688] sm:$0xff]
          %v6694 = vld [vmem:[%s3 + $0x690] sm:$0xff]
          %v6695 = vld [vmem:[%s3 + $0x698] sm:$0xff]
          %v6696 = vld [vmem:[%s3 + $0x6a0] sm:$0xff]
          %v6697 = vld [vmem:[%s3 + $0x6a8] sm:$0xff]
          %v6698 = vld [vmem:[%s3 + $0x6b0] sm:$0xff]
          %v6699 = vld [vmem:[%s3 + $0x6b8] sm:$0xff]
          %v6700 = vld [vmem:[%s3 + $0x6c0] sm:$0xff]
          %v6701 = vld [vmem:[%s3 + $0x6c8] sm:$0xff]
          %v6702 = vld [vmem:[%s3 + $0x6d0] sm:$0xff]
          %v6703 = vld [vmem:[%s3 + $0x6d8] sm:$0xff]
          %v6704 = vld [vmem:[%s3 + $0x6e0] sm:$0xff]
          %v6705 = vld [vmem:[%s3 + $0x6e8] sm:$0xff]
          %v6706 = vld [vmem:[%s3 + $0x6f0] sm:$0xff]
          %v6707 = vld [vmem:[%s3 + $0x6f8] sm:$0xff]
          %v6708 = vld [vmem:[%s3 + $0x700] sm:$0xff]
          %v6709 = vld [vmem:[%s3 + $0x708] sm:$0xff]
          %v6710 = vld [vmem:[%s3 + $0x710] sm:$0xff]
          %v6711 = vld [vmem:[%s3 + $0x718] sm:$0xff]
          %v6712 = vld [vmem:[%s3 + $0x720] sm:$0xff]
          %v6713 = vld [vmem:[%s3 + $0x728] sm:$0xff]
          %v6714 = vld [vmem:[%s3 + $0x730] sm:$0xff]
          %v6715 = vld [vmem:[%s3 + $0x738] sm:$0xff]
          %v6716 = vld [vmem:[%s3 + $0x740] sm:$0xff]
          %v6717 = vld [vmem:[%s3 + $0x748] sm:$0xff]
          %v6718 = vld [vmem:[%s3 + $0x750] sm:$0xff]
          %v6719 = vld [vmem:[%s3 + $0x758] sm:$0xff]
          %v6720 = vld [vmem:[%s3 + $0x760] sm:$0xff]
          %v6721 = vld [vmem:[%s3 + $0x768] sm:$0xff]
          %v6722 = vld [vmem:[%s3 + $0x770] sm:$0xff]
          %v6723 = vld [vmem:[%s3 + $0x778] sm:$0xff]
          %v6724 = vld [vmem:[%s3 + $0x780] sm:$0xff]
          %v6725 = vld [vmem:[%s3 + $0x788] sm:$0xff]
          %v6726 = vld [vmem:[%s3 + $0x790] sm:$0xff]
          %v6727 = vld [vmem:[%s3 + $0x798] sm:$0xff]
          %v6728 = vld [vmem:[%s3 + $0x7a0] sm:$0xff]
          %v6729 = vld [vmem:[%s3 + $0x7a8] sm:$0xff]
          %v6730 = vld [vmem:[%s3 + $0x7b0] sm:$0xff]
          %v6731 = vld [vmem:[%s3 + $0x7b8] sm:$0xff]
          %v6732 = vld [vmem:[%s3 + $0x7c0] sm:$0xff]
          %v6733 = vld [vmem:[%s3 + $0x7c8] sm:$0xff]
          %v6734 = vld [vmem:[%s3 + $0x7d0] sm:$0xff]
          %v6735 = vld [vmem:[%s3 + $0x7d8] sm:$0xff]
          %v6736 = vld [vmem:[%s3 + $0x7e0] sm:$0xff]
          %v6737 = vld [vmem:[%s3 + $0x7e8] sm:$0xff]
          %v6738 = vld [vmem:[%s3 + $0x7f0] sm:$0xff]
          %v6739 = vld [vmem:[%s3 + $0x7f8] sm:$0xff]
          %v6740 = vld [vmem:[%s4] sm:$0xf]
          %v6742 = vlaneseq
          %v6743 = vshrl.u32 %v6742, 7
          %v6744 = vsub.s32 0, %v6743
          %v6745 = vrot.slane %v6740, %v6744
          %v6746 = vlaneseq
          %v6747 = vshrl.u32 %v6746, 7
          %v6748 = vsub.s32 1, %v6747
          %v6749 = vrot.slane %v6740, %v6748
          %v6750 = vlaneseq
          %v6751 = vshrl.u32 %v6750, 7
          %v6752 = vsub.s32 2, %v6751
          %v6753 = vrot.slane %v6740, %v6752
          %v6754 = vlaneseq
          %v6755 = vshrl.u32 %v6754, 7
          %v6756 = vsub.s32 3, %v6755
          %v6757 = vrot.slane %v6740, %v6756
          %v6763 = vcombine.high %v6483, %v6483
          %v6765 = vunpack.c.l.s4 1966171168
          %v6766 = vunpack.c.0.s8 %v6765
          %v6767 = vlaneseq
          %v6768 = vshrl.u32 %v6767, 7
          %v6769 = vsub.s32 %v6766, %v6768
          %v6770 = vrot.slane %v6483, %v6769
          %v6772 = vunpack.c.l.s4 1966171168
          %v6773 = vunpack.c.0.s8 %v6772
          %v6774 = vlaneseq
          %v6775 = vshrl.u32 %v6774, 7
          %v6776 = vsub.s32 %v6773, %v6775
          %v6777 = vrot.slane %v6763, %v6776
          %v6778 = vcombine.high %v6770, %v6770
          %v6779 = vcombine.high %v6777, %v6777
          %v6781 = vunpack.c.l.s4 1966171168
          %v6782 = vunpack.c.0.s8 %v6781
          %v6783 = vlaneseq
          %v6784 = vshrl.u32 %v6783, 7
          %v6785 = vsub.s32 %v6782, %v6784
          %v6786 = vrot.slane %v6770, %v6785
          %v6788 = vunpack.c.l.s4 1966171168
          %v6789 = vunpack.c.0.s8 %v6788
          %v6790 = vlaneseq
          %v6791 = vshrl.u32 %v6790, 7
          %v6792 = vsub.s32 %v6789, %v6791
          %v6793 = vrot.slane %v6777, %v6792
          %v6795 = vunpack.c.l.s4 1966171168
          %v6796 = vunpack.c.0.s8 %v6795
          %v6797 = vlaneseq
          %v6798 = vshrl.u32 %v6797, 7
          %v6799 = vsub.s32 %v6796, %v6798
          %v6800 = vrot.slane %v6778, %v6799
          %v6802 = vunpack.c.l.s4 1966171168
          %v6803 = vunpack.c.0.s8 %v6802
          %v6804 = vlaneseq
          %v6805 = vshrl.u32 %v6804, 7
          %v6806 = vsub.s32 %v6803, %v6805
          %v6807 = vrot.slane %v6779, %v6806
          %v6808 = vcombine.high %v6786, %v6786
          %v6809 = vcombine.high %v6793, %v6793
          %v6810 = vcombine.high %v6800, %v6800
          %v6811 = vcombine.high %v6807, %v6807
          %v7076 = vunpack.c.l.b16 %v6484
          %v7077 = vunpack.c.h.b16 %v6484
          %v7078 = vunpack.c.l.b16 %v6485
          %v7079 = vunpack.c.h.b16 %v6485
          %v7080 = vunpack.c.l.b16 %v6486
          %v7081 = vunpack.c.h.b16 %v6486
          %v7082 = vunpack.c.l.b16 %v6487
          %v7083 = vunpack.c.h.b16 %v6487
          %v7084 = vunpack.c.l.b16 %v6488
          %v7085 = vunpack.c.h.b16 %v6488
          %v7086 = vunpack.c.l.b16 %v6489
          %v7087 = vunpack.c.h.b16 %v6489
          %v7088 = vunpack.c.l.b16 %v6490
          %v7089 = vunpack.c.h.b16 %v6490
          %v7090 = vunpack.c.l.b16 %v6491
          %v7091 = vunpack.c.h.b16 %v6491
          %v7092 = vunpack.c.l.b16 %v6492
          %v7093 = vunpack.c.h.b16 %v6492
          %v7094 = vunpack.c.l.b16 %v6493
          %v7095 = vunpack.c.h.b16 %v6493
          %v7096 = vunpack.c.l.b16 %v6494
          %v7097 = vunpack.c.h.b16 %v6494
          %v7098 = vunpack.c.l.b16 %v6495
          %v7099 = vunpack.c.h.b16 %v6495
          %v7100 = vunpack.c.l.b16 %v6496
          %v7101 = vunpack.c.h.b16 %v6496
          %v7102 = vunpack.c.l.b16 %v6497
          %v7103 = vunpack.c.h.b16 %v6497
          %v7104 = vunpack.c.l.b16 %v6498
          %v7105 = vunpack.c.h.b16 %v6498
          %v7106 = vunpack.c.l.b16 %v6499
          %v7107 = vunpack.c.h.b16 %v6499
          %v7108 = vunpack.c.l.b16 %v6500
          %v7109 = vunpack.c.h.b16 %v6500
          %v7110 = vunpack.c.l.b16 %v6501
          %v7111 = vunpack.c.h.b16 %v6501
          %v7112 = vunpack.c.l.b16 %v6502
          %v7113 = vunpack.c.h.b16 %v6502
          %v7114 = vunpack.c.l.b16 %v6503
          %v7115 = vunpack.c.h.b16 %v6503
          %v7116 = vunpack.c.l.b16 %v6504
          %v7117 = vunpack.c.h.b16 %v6504
          %v7118 = vunpack.c.l.b16 %v6505
          %v7119 = vunpack.c.h.b16 %v6505
          %v7120 = vunpack.c.l.b16 %v6506
          %v7121 = vunpack.c.h.b16 %v6506
          %v7122 = vunpack.c.l.b16 %v6507
          %v7123 = vunpack.c.h.b16 %v6507
          %v7124 = vunpack.c.l.b16 %v6508
          %v7125 = vunpack.c.h.b16 %v6508
          %v7126 = vunpack.c.l.b16 %v6509
          %v7127 = vunpack.c.h.b16 %v6509
          %v7128 = vunpack.c.l.b16 %v6510
          %v7129 = vunpack.c.h.b16 %v6510
          %v7130 = vunpack.c.l.b16 %v6511
          %v7131 = vunpack.c.h.b16 %v6511
          %v7132 = vunpack.c.l.b16 %v6512
          %v7133 = vunpack.c.h.b16 %v6512
          %v7134 = vunpack.c.l.b16 %v6513
          %v7135 = vunpack.c.h.b16 %v6513
          %v7136 = vunpack.c.l.b16 %v6514
          %v7137 = vunpack.c.h.b16 %v6514
          %v7138 = vunpack.c.l.b16 %v6515
          %v7139 = vunpack.c.h.b16 %v6515
          %v7140 = vunpack.c.l.b16 %v6516
          %v7141 = vunpack.c.h.b16 %v6516
          %v7142 = vunpack.c.l.b16 %v6517
          %v7143 = vunpack.c.h.b16 %v6517
          %v7144 = vunpack.c.l.b16 %v6518
          %v7145 = vunpack.c.h.b16 %v6518
          %v7146 = vunpack.c.l.b16 %v6519
          %v7147 = vunpack.c.h.b16 %v6519
          %v7148 = vunpack.c.l.b16 %v6520
          %v7149 = vunpack.c.h.b16 %v6520
          %v7150 = vunpack.c.l.b16 %v6521
          %v7151 = vunpack.c.h.b16 %v6521
          %v7152 = vunpack.c.l.b16 %v6522
          %v7153 = vunpack.c.h.b16 %v6522
          %v7154 = vunpack.c.l.b16 %v6523
          %v7155 = vunpack.c.h.b16 %v6523
          %v7156 = vunpack.c.l.b16 %v6524
          %v7157 = vunpack.c.h.b16 %v6524
          %v7158 = vunpack.c.l.b16 %v6525
          %v7159 = vunpack.c.h.b16 %v6525
          %v7160 = vunpack.c.l.b16 %v6526
          %v7161 = vunpack.c.h.b16 %v6526
          %v7162 = vunpack.c.l.b16 %v6527
          %v7163 = vunpack.c.h.b16 %v6527
          %v7164 = vunpack.c.l.b16 %v6528
          %v7165 = vunpack.c.h.b16 %v6528
          %v7166 = vunpack.c.l.b16 %v6529
          %v7167 = vunpack.c.h.b16 %v6529
          %v7168 = vunpack.c.l.b16 %v6530
          %v7169 = vunpack.c.h.b16 %v6530
          %v7170 = vunpack.c.l.b16 %v6531
          %v7171 = vunpack.c.h.b16 %v6531
          %v7172 = vunpack.c.l.b16 %v6532
          %v7173 = vunpack.c.h.b16 %v6532
          %v7174 = vunpack.c.l.b16 %v6533
          %v7175 = vunpack.c.h.b16 %v6533
          %v7176 = vunpack.c.l.b16 %v6534
          %v7177 = vunpack.c.h.b16 %v6534
          %v7178 = vunpack.c.l.b16 %v6535
          %v7179 = vunpack.c.h.b16 %v6535
          %v7180 = vunpack.c.l.b16 %v6536
          %v7181 = vunpack.c.h.b16 %v6536
          %v7182 = vunpack.c.l.b16 %v6537
          %v7183 = vunpack.c.h.b16 %v6537
          %v7184 = vunpack.c.l.b16 %v6538
          %v7185 = vunpack.c.h.b16 %v6538
          %v7186 = vunpack.c.l.b16 %v6539
          %v7187 = vunpack.c.h.b16 %v6539
          %v7188 = vunpack.c.l.b16 %v6540
          %v7189 = vunpack.c.h.b16 %v6540
          %v7190 = vunpack.c.l.b16 %v6541
          %v7191 = vunpack.c.h.b16 %v6541
          %v7192 = vunpack.c.l.b16 %v6542
          %v7193 = vunpack.c.h.b16 %v6542
          %v7194 = vunpack.c.l.b16 %v6543
          %v7195 = vunpack.c.h.b16 %v6543
          %v7196 = vunpack.c.l.b16 %v6544
          %v7197 = vunpack.c.h.b16 %v6544
          %v7198 = vunpack.c.l.b16 %v6545
          %v7199 = vunpack.c.h.b16 %v6545
          %v7200 = vunpack.c.l.b16 %v6546
          %v7201 = vunpack.c.h.b16 %v6546
          %v7202 = vunpack.c.l.b16 %v6547
          %v7203 = vunpack.c.h.b16 %v6547
          %v7204 = vunpack.c.l.b16 %v6548
          %v7205 = vunpack.c.h.b16 %v6548
          %v7206 = vunpack.c.l.b16 %v6549
          %v7207 = vunpack.c.h.b16 %v6549
          %v7208 = vunpack.c.l.b16 %v6550
          %v7209 = vunpack.c.h.b16 %v6550
          %v7210 = vunpack.c.l.b16 %v6551
          %v7211 = vunpack.c.h.b16 %v6551
          %v7212 = vunpack.c.l.b16 %v6552
          %v7213 = vunpack.c.h.b16 %v6552
          %v7214 = vunpack.c.l.b16 %v6553
          %v7215 = vunpack.c.h.b16 %v6553
          %v7216 = vunpack.c.l.b16 %v6554
          %v7217 = vunpack.c.h.b16 %v6554
          %v7218 = vunpack.c.l.b16 %v6555
          %v7219 = vunpack.c.h.b16 %v6555
          %v7220 = vunpack.c.l.b16 %v6556
          %v7221 = vunpack.c.h.b16 %v6556
          %v7222 = vunpack.c.l.b16 %v6557
          %v7223 = vunpack.c.h.b16 %v6557
          %v7224 = vunpack.c.l.b16 %v6558
          %v7225 = vunpack.c.h.b16 %v6558
          %v7226 = vunpack.c.l.b16 %v6559
          %v7227 = vunpack.c.h.b16 %v6559
          %v7228 = vunpack.c.l.b16 %v6560
          %v7229 = vunpack.c.h.b16 %v6560
          %v7230 = vunpack.c.l.b16 %v6561
          %v7231 = vunpack.c.h.b16 %v6561
          %v7232 = vunpack.c.l.b16 %v6562
          %v7233 = vunpack.c.h.b16 %v6562
          %v7234 = vunpack.c.l.b16 %v6563
          %v7235 = vunpack.c.h.b16 %v6563
          %v7236 = vunpack.c.l.b16 %v6564
          %v7237 = vunpack.c.h.b16 %v6564
          %v7238 = vunpack.c.l.b16 %v6565
          %v7239 = vunpack.c.h.b16 %v6565
          %v7240 = vunpack.c.l.b16 %v6566
          %v7241 = vunpack.c.h.b16 %v6566
          %v7242 = vunpack.c.l.b16 %v6567
          %v7243 = vunpack.c.h.b16 %v6567
          %v7244 = vunpack.c.l.b16 %v6568
          %v7245 = vunpack.c.h.b16 %v6568
          %v7246 = vunpack.c.l.b16 %v6569
          %v7247 = vunpack.c.h.b16 %v6569
          %v7248 = vunpack.c.l.b16 %v6570
          %v7249 = vunpack.c.h.b16 %v6570
          %v7250 = vunpack.c.l.b16 %v6571
          %v7251 = vunpack.c.h.b16 %v6571
          %v7252 = vunpack.c.l.b16 %v6572
          %v7253 = vunpack.c.h.b16 %v6572
          %v7254 = vunpack.c.l.b16 %v6573
          %v7255 = vunpack.c.h.b16 %v6573
          %v7256 = vunpack.c.l.b16 %v6574
          %v7257 = vunpack.c.h.b16 %v6574
          %v7258 = vunpack.c.l.b16 %v6575
          %v7259 = vunpack.c.h.b16 %v6575
          %v7260 = vunpack.c.l.b16 %v6576
          %v7261 = vunpack.c.h.b16 %v6576
          %v7262 = vunpack.c.l.b16 %v6577
          %v7263 = vunpack.c.h.b16 %v6577
          %v7264 = vunpack.c.l.b16 %v6578
          %v7265 = vunpack.c.h.b16 %v6578
          %v7266 = vunpack.c.l.b16 %v6579
          %v7267 = vunpack.c.h.b16 %v6579
          %v7268 = vunpack.c.l.b16 %v6580
          %v7269 = vunpack.c.h.b16 %v6580
          %v7270 = vunpack.c.l.b16 %v6581
          %v7271 = vunpack.c.h.b16 %v6581
          %v7272 = vunpack.c.l.b16 %v6582
          %v7273 = vunpack.c.h.b16 %v6582
          %v7274 = vunpack.c.l.b16 %v6583
          %v7275 = vunpack.c.h.b16 %v6583
          %v7276 = vunpack.c.l.b16 %v6584
          %v7277 = vunpack.c.h.b16 %v6584
          %v7278 = vunpack.c.l.b16 %v6585
          %v7279 = vunpack.c.h.b16 %v6585
          %v7280 = vunpack.c.l.b16 %v6586
          %v7281 = vunpack.c.h.b16 %v6586
          %v7282 = vunpack.c.l.b16 %v6587
          %v7283 = vunpack.c.h.b16 %v6587
          %v7284 = vunpack.c.l.b16 %v6588
          %v7285 = vunpack.c.h.b16 %v6588
          %v7286 = vunpack.c.l.b16 %v6589
          %v7287 = vunpack.c.h.b16 %v6589
          %v7288 = vunpack.c.l.b16 %v6590
          %v7289 = vunpack.c.h.b16 %v6590
          %v7290 = vunpack.c.l.b16 %v6591
          %v7291 = vunpack.c.h.b16 %v6591
          %v7292 = vunpack.c.l.b16 %v6592
          %v7293 = vunpack.c.h.b16 %v6592
          %v7294 = vunpack.c.l.b16 %v6593
          %v7295 = vunpack.c.h.b16 %v6593
          %v7296 = vunpack.c.l.b16 %v6594
          %v7297 = vunpack.c.h.b16 %v6594
          %v7298 = vunpack.c.l.b16 %v6595
          %v7299 = vunpack.c.h.b16 %v6595
          %v7300 = vunpack.c.l.b16 %v6596
          %v7301 = vunpack.c.h.b16 %v6596
          %v7302 = vunpack.c.l.b16 %v6597
          %v7303 = vunpack.c.h.b16 %v6597
          %v7304 = vunpack.c.l.b16 %v6598
          %v7305 = vunpack.c.h.b16 %v6598
          %v7306 = vunpack.c.l.b16 %v6599
          %v7307 = vunpack.c.h.b16 %v6599
          %v7308 = vunpack.c.l.b16 %v6600
          %v7309 = vunpack.c.h.b16 %v6600
          %v7310 = vunpack.c.l.b16 %v6601
          %v7311 = vunpack.c.h.b16 %v6601
          %v7312 = vunpack.c.l.b16 %v6602
          %v7313 = vunpack.c.h.b16 %v6602
          %v7314 = vunpack.c.l.b16 %v6603
          %v7315 = vunpack.c.h.b16 %v6603
          %v7316 = vunpack.c.l.b16 %v6604
          %v7317 = vunpack.c.h.b16 %v6604
          %v7318 = vunpack.c.l.b16 %v6605
          %v7319 = vunpack.c.h.b16 %v6605
          %v7320 = vunpack.c.l.b16 %v6606
          %v7321 = vunpack.c.h.b16 %v6606
          %v7322 = vunpack.c.l.b16 %v6607
          %v7323 = vunpack.c.h.b16 %v6607
          %v7324 = vunpack.c.l.b16 %v6608
          %v7325 = vunpack.c.h.b16 %v6608
          %v7326 = vunpack.c.l.b16 %v6609
          %v7327 = vunpack.c.h.b16 %v6609
          %v7328 = vunpack.c.l.b16 %v6610
          %v7329 = vunpack.c.h.b16 %v6610
          %v7330 = vunpack.c.l.b16 %v6611
          %v7331 = vunpack.c.h.b16 %v6611
          %v7332 = vunpack.c.l.b16 %v6612
          %v7333 = vunpack.c.h.b16 %v6612
          %v7334 = vunpack.c.l.b16 %v6613
          %v7335 = vunpack.c.h.b16 %v6613
          %v7336 = vunpack.c.l.b16 %v6614
          %v7337 = vunpack.c.h.b16 %v6614
          %v7338 = vunpack.c.l.b16 %v6615
          %v7339 = vunpack.c.h.b16 %v6615
          %v7340 = vunpack.c.l.b16 %v6616
          %v7341 = vunpack.c.h.b16 %v6616
          %v7342 = vunpack.c.l.b16 %v6617
          %v7343 = vunpack.c.h.b16 %v6617
          %v7344 = vunpack.c.l.b16 %v6618
          %v7345 = vunpack.c.h.b16 %v6618
          %v7346 = vunpack.c.l.b16 %v6619
          %v7347 = vunpack.c.h.b16 %v6619
          %v7348 = vunpack.c.l.b16 %v6620
          %v7349 = vunpack.c.h.b16 %v6620
          %v7350 = vunpack.c.l.b16 %v6621
          %v7351 = vunpack.c.h.b16 %v6621
          %v7352 = vunpack.c.l.b16 %v6622
          %v7353 = vunpack.c.h.b16 %v6622
          %v7354 = vunpack.c.l.b16 %v6623
          %v7355 = vunpack.c.h.b16 %v6623
          %v7356 = vunpack.c.l.b16 %v6624
          %v7357 = vunpack.c.h.b16 %v6624
          %v7358 = vunpack.c.l.b16 %v6625
          %v7359 = vunpack.c.h.b16 %v6625
          %v7360 = vunpack.c.l.b16 %v6626
          %v7361 = vunpack.c.h.b16 %v6626
          %v7362 = vunpack.c.l.b16 %v6627
          %v7363 = vunpack.c.h.b16 %v6627
          %v7364 = vunpack.c.l.b16 %v6628
          %v7365 = vunpack.c.h.b16 %v6628
          %v7366 = vunpack.c.l.b16 %v6629
          %v7367 = vunpack.c.h.b16 %v6629
          %v7368 = vunpack.c.l.b16 %v6630
          %v7369 = vunpack.c.h.b16 %v6630
          %v7370 = vunpack.c.l.b16 %v6631
          %v7371 = vunpack.c.h.b16 %v6631
          %v7372 = vunpack.c.l.b16 %v6632
          %v7373 = vunpack.c.h.b16 %v6632
          %v7374 = vunpack.c.l.b16 %v6633
          %v7375 = vunpack.c.h.b16 %v6633
          %v7376 = vunpack.c.l.b16 %v6634
          %v7377 = vunpack.c.h.b16 %v6634
          %v7378 = vunpack.c.l.b16 %v6635
          %v7379 = vunpack.c.h.b16 %v6635
          %v7380 = vunpack.c.l.b16 %v6636
          %v7381 = vunpack.c.h.b16 %v6636
          %v7382 = vunpack.c.l.b16 %v6637
          %v7383 = vunpack.c.h.b16 %v6637
          %v7384 = vunpack.c.l.b16 %v6638
          %v7385 = vunpack.c.h.b16 %v6638
          %v7386 = vunpack.c.l.b16 %v6639
          %v7387 = vunpack.c.h.b16 %v6639
          %v7388 = vunpack.c.l.b16 %v6640
          %v7389 = vunpack.c.h.b16 %v6640
          %v7390 = vunpack.c.l.b16 %v6641
          %v7391 = vunpack.c.h.b16 %v6641
          %v7392 = vunpack.c.l.b16 %v6642
          %v7393 = vunpack.c.h.b16 %v6642
          %v7394 = vunpack.c.l.b16 %v6643
          %v7395 = vunpack.c.h.b16 %v6643
          %v7396 = vunpack.c.l.b16 %v6644
          %v7397 = vunpack.c.h.b16 %v6644
          %v7398 = vunpack.c.l.b16 %v6645
          %v7399 = vunpack.c.h.b16 %v6645
          %v7400 = vunpack.c.l.b16 %v6646
          %v7401 = vunpack.c.h.b16 %v6646
          %v7402 = vunpack.c.l.b16 %v6647
          %v7403 = vunpack.c.h.b16 %v6647
          %v7404 = vunpack.c.l.b16 %v6648
          %v7405 = vunpack.c.h.b16 %v6648
          %v7406 = vunpack.c.l.b16 %v6649
          %v7407 = vunpack.c.h.b16 %v6649
          %v7408 = vunpack.c.l.b16 %v6650
          %v7409 = vunpack.c.h.b16 %v6650
          %v7410 = vunpack.c.l.b16 %v6651
          %v7411 = vunpack.c.h.b16 %v6651
          %v7412 = vunpack.c.l.b16 %v6652
          %v7413 = vunpack.c.h.b16 %v6652
          %v7414 = vunpack.c.l.b16 %v6653
          %v7415 = vunpack.c.h.b16 %v6653
          %v7416 = vunpack.c.l.b16 %v6654
          %v7417 = vunpack.c.h.b16 %v6654
          %v7418 = vunpack.c.l.b16 %v6655
          %v7419 = vunpack.c.h.b16 %v6655
          %v7420 = vunpack.c.l.b16 %v6656
          %v7421 = vunpack.c.h.b16 %v6656
          %v7422 = vunpack.c.l.b16 %v6657
          %v7423 = vunpack.c.h.b16 %v6657
          %v7424 = vunpack.c.l.b16 %v6658
          %v7425 = vunpack.c.h.b16 %v6658
          %v7426 = vunpack.c.l.b16 %v6659
          %v7427 = vunpack.c.h.b16 %v6659
          %v7428 = vunpack.c.l.b16 %v6660
          %v7429 = vunpack.c.h.b16 %v6660
          %v7430 = vunpack.c.l.b16 %v6661
          %v7431 = vunpack.c.h.b16 %v6661
          %v7432 = vunpack.c.l.b16 %v6662
          %v7433 = vunpack.c.h.b16 %v6662
          %v7434 = vunpack.c.l.b16 %v6663
          %v7435 = vunpack.c.h.b16 %v6663
          %v7436 = vunpack.c.l.b16 %v6664
          %v7437 = vunpack.c.h.b16 %v6664
          %v7438 = vunpack.c.l.b16 %v6665
          %v7439 = vunpack.c.h.b16 %v6665
          %v7440 = vunpack.c.l.b16 %v6666
          %v7441 = vunpack.c.h.b16 %v6666
          %v7442 = vunpack.c.l.b16 %v6667
          %v7443 = vunpack.c.h.b16 %v6667
          %v7444 = vunpack.c.l.b16 %v6668
          %v7445 = vunpack.c.h.b16 %v6668
          %v7446 = vunpack.c.l.b16 %v6669
          %v7447 = vunpack.c.h.b16 %v6669
          %v7448 = vunpack.c.l.b16 %v6670
          %v7449 = vunpack.c.h.b16 %v6670
          %v7450 = vunpack.c.l.b16 %v6671
          %v7451 = vunpack.c.h.b16 %v6671
          %v7452 = vunpack.c.l.b16 %v6672
          %v7453 = vunpack.c.h.b16 %v6672
          %v7454 = vunpack.c.l.b16 %v6673
          %v7455 = vunpack.c.h.b16 %v6673
          %v7456 = vunpack.c.l.b16 %v6674
          %v7457 = vunpack.c.h.b16 %v6674
          %v7458 = vunpack.c.l.b16 %v6675
          %v7459 = vunpack.c.h.b16 %v6675
          %v7460 = vunpack.c.l.b16 %v6676
          %v7461 = vunpack.c.h.b16 %v6676
          %v7462 = vunpack.c.l.b16 %v6677
          %v7463 = vunpack.c.h.b16 %v6677
          %v7464 = vunpack.c.l.b16 %v6678
          %v7465 = vunpack.c.h.b16 %v6678
          %v7466 = vunpack.c.l.b16 %v6679
          %v7467 = vunpack.c.h.b16 %v6679
          %v7468 = vunpack.c.l.b16 %v6680
          %v7469 = vunpack.c.h.b16 %v6680
          %v7470 = vunpack.c.l.b16 %v6681
          %v7471 = vunpack.c.h.b16 %v6681
          %v7472 = vunpack.c.l.b16 %v6682
          %v7473 = vunpack.c.h.b16 %v6682
          %v7474 = vunpack.c.l.b16 %v6683
          %v7475 = vunpack.c.h.b16 %v6683
          %v7476 = vunpack.c.l.b16 %v6684
          %v7477 = vunpack.c.h.b16 %v6684
          %v7478 = vunpack.c.l.b16 %v6685
          %v7479 = vunpack.c.h.b16 %v6685
          %v7480 = vunpack.c.l.b16 %v6686
          %v7481 = vunpack.c.h.b16 %v6686
          %v7482 = vunpack.c.l.b16 %v6687
          %v7483 = vunpack.c.h.b16 %v6687
          %v7484 = vunpack.c.l.b16 %v6688
          %v7485 = vunpack.c.h.b16 %v6688
          %v7486 = vunpack.c.l.b16 %v6689
          %v7487 = vunpack.c.h.b16 %v6689
          %v7488 = vunpack.c.l.b16 %v6690
          %v7489 = vunpack.c.h.b16 %v6690
          %v7490 = vunpack.c.l.b16 %v6691
          %v7491 = vunpack.c.h.b16 %v6691
          %v7492 = vunpack.c.l.b16 %v6692
          %v7493 = vunpack.c.h.b16 %v6692
          %v7494 = vunpack.c.l.b16 %v6693
          %v7495 = vunpack.c.h.b16 %v6693
          %v7496 = vunpack.c.l.b16 %v6694
          %v7497 = vunpack.c.h.b16 %v6694
          %v7498 = vunpack.c.l.b16 %v6695
          %v7499 = vunpack.c.h.b16 %v6695
          %v7500 = vunpack.c.l.b16 %v6696
          %v7501 = vunpack.c.h.b16 %v6696
          %v7502 = vunpack.c.l.b16 %v6697
          %v7503 = vunpack.c.h.b16 %v6697
          %v7504 = vunpack.c.l.b16 %v6698
          %v7505 = vunpack.c.h.b16 %v6698
          %v7506 = vunpack.c.l.b16 %v6699
          %v7507 = vunpack.c.h.b16 %v6699
          %v7508 = vunpack.c.l.b16 %v6700
          %v7509 = vunpack.c.h.b16 %v6700
          %v7510 = vunpack.c.l.b16 %v6701
          %v7511 = vunpack.c.h.b16 %v6701
          %v7512 = vunpack.c.l.b16 %v6702
          %v7513 = vunpack.c.h.b16 %v6702
          %v7514 = vunpack.c.l.b16 %v6703
          %v7515 = vunpack.c.h.b16 %v6703
          %v7516 = vunpack.c.l.b16 %v6704
          %v7517 = vunpack.c.h.b16 %v6704
          %v7518 = vunpack.c.l.b16 %v6705
          %v7519 = vunpack.c.h.b16 %v6705
          %v7520 = vunpack.c.l.b16 %v6706
          %v7521 = vunpack.c.h.b16 %v6706
          %v7522 = vunpack.c.l.b16 %v6707
          %v7523 = vunpack.c.h.b16 %v6707
          %v7524 = vunpack.c.l.b16 %v6708
          %v7525 = vunpack.c.h.b16 %v6708
          %v7526 = vunpack.c.l.b16 %v6709
          %v7527 = vunpack.c.h.b16 %v6709
          %v7528 = vunpack.c.l.b16 %v6710
          %v7529 = vunpack.c.h.b16 %v6710
          %v7530 = vunpack.c.l.b16 %v6711
          %v7531 = vunpack.c.h.b16 %v6711
          %v7532 = vunpack.c.l.b16 %v6712
          %v7533 = vunpack.c.h.b16 %v6712
          %v7534 = vunpack.c.l.b16 %v6713
          %v7535 = vunpack.c.h.b16 %v6713
          %v7536 = vunpack.c.l.b16 %v6714
          %v7537 = vunpack.c.h.b16 %v6714
          %v7538 = vunpack.c.l.b16 %v6715
          %v7539 = vunpack.c.h.b16 %v6715
          %v7540 = vunpack.c.l.b16 %v6716
          %v7541 = vunpack.c.h.b16 %v6716
          %v7542 = vunpack.c.l.b16 %v6717
          %v7543 = vunpack.c.h.b16 %v6717
          %v7544 = vunpack.c.l.b16 %v6718
          %v7545 = vunpack.c.h.b16 %v6718
          %v7546 = vunpack.c.l.b16 %v6719
          %v7547 = vunpack.c.h.b16 %v6719
          %v7548 = vunpack.c.l.b16 %v6720
          %v7549 = vunpack.c.h.b16 %v6720
          %v7550 = vunpack.c.l.b16 %v6721
          %v7551 = vunpack.c.h.b16 %v6721
          %v7552 = vunpack.c.l.b16 %v6722
          %v7553 = vunpack.c.h.b16 %v6722
          %v7554 = vunpack.c.l.b16 %v6723
          %v7555 = vunpack.c.h.b16 %v6723
          %v7556 = vunpack.c.l.b16 %v6724
          %v7557 = vunpack.c.h.b16 %v6724
          %v7558 = vunpack.c.l.b16 %v6725
          %v7559 = vunpack.c.h.b16 %v6725
          %v7560 = vunpack.c.l.b16 %v6726
          %v7561 = vunpack.c.h.b16 %v6726
          %v7562 = vunpack.c.l.b16 %v6727
          %v7563 = vunpack.c.h.b16 %v6727
          %v7564 = vunpack.c.l.b16 %v6728
          %v7565 = vunpack.c.h.b16 %v6728
          %v7566 = vunpack.c.l.b16 %v6729
          %v7567 = vunpack.c.h.b16 %v6729
          %v7568 = vunpack.c.l.b16 %v6730
          %v7569 = vunpack.c.h.b16 %v6730
          %v7570 = vunpack.c.l.b16 %v6731
          %v7571 = vunpack.c.h.b16 %v6731
          %v7572 = vunpack.c.l.b16 %v6732
          %v7573 = vunpack.c.h.b16 %v6732
          %v7574 = vunpack.c.l.b16 %v6733
          %v7575 = vunpack.c.h.b16 %v6733
          %v7576 = vunpack.c.l.b16 %v6734
          %v7577 = vunpack.c.h.b16 %v6734
          %v7578 = vunpack.c.l.b16 %v6735
          %v7579 = vunpack.c.h.b16 %v6735
          %v7580 = vunpack.c.l.b16 %v6736
          %v7581 = vunpack.c.h.b16 %v6736
          %v7582 = vunpack.c.l.b16 %v6737
          %v7583 = vunpack.c.h.b16 %v6737
          %v7584 = vunpack.c.l.b16 %v6738
          %v7585 = vunpack.c.h.b16 %v6738
          %v7586 = vunpack.c.l.b16 %v6739
          %v7587 = vunpack.c.h.b16 %v6739
          %v7588 = vpack.c.b16 %v7080, %v7076
          %v7589 = vpack.c.b16 %v7081, %v7077
          %v7590 = vpack.c.b16 %v7082, %v7078
          %v7591 = vpack.c.b16 %v7083, %v7079
          %v7592 = vpack.c.b16 %v7088, %v7084
          %v7593 = vpack.c.b16 %v7089, %v7085
          %v7594 = vpack.c.b16 %v7090, %v7086
          %v7595 = vpack.c.b16 %v7091, %v7087
          %v7596 = vpack.c.b16 %v7096, %v7092
          %v7597 = vpack.c.b16 %v7097, %v7093
          %v7598 = vpack.c.b16 %v7098, %v7094
          %v7599 = vpack.c.b16 %v7099, %v7095
          %v7600 = vpack.c.b16 %v7104, %v7100
          %v7601 = vpack.c.b16 %v7105, %v7101
          %v7602 = vpack.c.b16 %v7106, %v7102
          %v7603 = vpack.c.b16 %v7107, %v7103
          %v7604 = vpack.c.b16 %v7112, %v7108
          %v7605 = vpack.c.b16 %v7113, %v7109
          %v7606 = vpack.c.b16 %v7114, %v7110
          %v7607 = vpack.c.b16 %v7115, %v7111
          %v7608 = vpack.c.b16 %v7120, %v7116
          %v7609 = vpack.c.b16 %v7121, %v7117
          %v7610 = vpack.c.b16 %v7122, %v7118
          %v7611 = vpack.c.b16 %v7123, %v7119
          %v7612 = vpack.c.b16 %v7128, %v7124
          %v7613 = vpack.c.b16 %v7129, %v7125
          %v7614 = vpack.c.b16 %v7130, %v7126
          %v7615 = vpack.c.b16 %v7131, %v7127
          %v7616 = vpack.c.b16 %v7136, %v7132
          %v7617 = vpack.c.b16 %v7137, %v7133
          %v7618 = vpack.c.b16 %v7138, %v7134
          %v7619 = vpack.c.b16 %v7139, %v7135
          %v7620 = vpack.c.b16 %v7144, %v7140
          %v7621 = vpack.c.b16 %v7145, %v7141
          %v7622 = vpack.c.b16 %v7146, %v7142
          %v7623 = vpack.c.b16 %v7147, %v7143
          %v7624 = vpack.c.b16 %v7152, %v7148
          %v7625 = vpack.c.b16 %v7153, %v7149
          %v7626 = vpack.c.b16 %v7154, %v7150
          %v7627 = vpack.c.b16 %v7155, %v7151
          %v7628 = vpack.c.b16 %v7160, %v7156
          %v7629 = vpack.c.b16 %v7161, %v7157
          %v7630 = vpack.c.b16 %v7162, %v7158
          %v7631 = vpack.c.b16 %v7163, %v7159
          %v7632 = vpack.c.b16 %v7168, %v7164
          %v7633 = vpack.c.b16 %v7169, %v7165
          %v7634 = vpack.c.b16 %v7170, %v7166
          %v7635 = vpack.c.b16 %v7171, %v7167
          %v7636 = vpack.c.b16 %v7176, %v7172
          %v7637 = vpack.c.b16 %v7177, %v7173
          %v7638 = vpack.c.b16 %v7178, %v7174
          %v7639 = vpack.c.b16 %v7179, %v7175
          %v7640 = vpack.c.b16 %v7184, %v7180
          %v7641 = vpack.c.b16 %v7185, %v7181
          %v7642 = vpack.c.b16 %v7186, %v7182
          %v7643 = vpack.c.b16 %v7187, %v7183
          %v7644 = vpack.c.b16 %v7192, %v7188
          %v7645 = vpack.c.b16 %v7193, %v7189
          %v7646 = vpack.c.b16 %v7194, %v7190
          %v7647 = vpack.c.b16 %v7195, %v7191
          %v7648 = vpack.c.b16 %v7200, %v7196
          %v7649 = vpack.c.b16 %v7201, %v7197
          %v7650 = vpack.c.b16 %v7202, %v7198
          %v7651 = vpack.c.b16 %v7203, %v7199
          %v7652 = vpack.c.b16 %v7208, %v7204
          %v7653 = vpack.c.b16 %v7209, %v7205
          %v7654 = vpack.c.b16 %v7210, %v7206
          %v7655 = vpack.c.b16 %v7211, %v7207
          %v7656 = vpack.c.b16 %v7216, %v7212
          %v7657 = vpack.c.b16 %v7217, %v7213
          %v7658 = vpack.c.b16 %v7218, %v7214
          %v7659 = vpack.c.b16 %v7219, %v7215
          %v7660 = vpack.c.b16 %v7224, %v7220
          %v7661 = vpack.c.b16 %v7225, %v7221
          %v7662 = vpack.c.b16 %v7226, %v7222
          %v7663 = vpack.c.b16 %v7227, %v7223
          %v7664 = vpack.c.b16 %v7232, %v7228
          %v7665 = vpack.c.b16 %v7233, %v7229
          %v7666 = vpack.c.b16 %v7234, %v7230
          %v7667 = vpack.c.b16 %v7235, %v7231
          %v7668 = vpack.c.b16 %v7240, %v7236
          %v7669 = vpack.c.b16 %v7241, %v7237
          %v7670 = vpack.c.b16 %v7242, %v7238
          %v7671 = vpack.c.b16 %v7243, %v7239
          %v7672 = vpack.c.b16 %v7248, %v7244
          %v7673 = vpack.c.b16 %v7249, %v7245
          %v7674 = vpack.c.b16 %v7250, %v7246
          %v7675 = vpack.c.b16 %v7251, %v7247
          %v7676 = vpack.c.b16 %v7256, %v7252
          %v7677 = vpack.c.b16 %v7257, %v7253
          %v7678 = vpack.c.b16 %v7258, %v7254
          %v7679 = vpack.c.b16 %v7259, %v7255
          %v7680 = vpack.c.b16 %v7264, %v7260
          %v7681 = vpack.c.b16 %v7265, %v7261
          %v7682 = vpack.c.b16 %v7266, %v7262
          %v7683 = vpack.c.b16 %v7267, %v7263
          %v7684 = vpack.c.b16 %v7272, %v7268
          %v7685 = vpack.c.b16 %v7273, %v7269
          %v7686 = vpack.c.b16 %v7274, %v7270
          %v7687 = vpack.c.b16 %v7275, %v7271
          %v7688 = vpack.c.b16 %v7280, %v7276
          %v7689 = vpack.c.b16 %v7281, %v7277
          %v7690 = vpack.c.b16 %v7282, %v7278
          %v7691 = vpack.c.b16 %v7283, %v7279
          %v7692 = vpack.c.b16 %v7288, %v7284
          %v7693 = vpack.c.b16 %v7289, %v7285
          %v7694 = vpack.c.b16 %v7290, %v7286
          %v7695 = vpack.c.b16 %v7291, %v7287
          %v7696 = vpack.c.b16 %v7296, %v7292
          %v7697 = vpack.c.b16 %v7297, %v7293
          %v7698 = vpack.c.b16 %v7298, %v7294
          %v7699 = vpack.c.b16 %v7299, %v7295
          %v7700 = vpack.c.b16 %v7304, %v7300
          %v7701 = vpack.c.b16 %v7305, %v7301
          %v7702 = vpack.c.b16 %v7306, %v7302
          %v7703 = vpack.c.b16 %v7307, %v7303
          %v7704 = vpack.c.b16 %v7312, %v7308
          %v7705 = vpack.c.b16 %v7313, %v7309
          %v7706 = vpack.c.b16 %v7314, %v7310
          %v7707 = vpack.c.b16 %v7315, %v7311
          %v7708 = vpack.c.b16 %v7320, %v7316
          %v7709 = vpack.c.b16 %v7321, %v7317
          %v7710 = vpack.c.b16 %v7322, %v7318
          %v7711 = vpack.c.b16 %v7323, %v7319
          %v7712 = vpack.c.b16 %v7328, %v7324
          %v7713 = vpack.c.b16 %v7329, %v7325
          %v7714 = vpack.c.b16 %v7330, %v7326
          %v7715 = vpack.c.b16 %v7331, %v7327
          %v7716 = vpack.c.b16 %v7336, %v7332
          %v7717 = vpack.c.b16 %v7337, %v7333
          %v7718 = vpack.c.b16 %v7338, %v7334
          %v7719 = vpack.c.b16 %v7339, %v7335
          %v7720 = vpack.c.b16 %v7344, %v7340
          %v7721 = vpack.c.b16 %v7345, %v7341
          %v7722 = vpack.c.b16 %v7346, %v7342
          %v7723 = vpack.c.b16 %v7347, %v7343
          %v7724 = vpack.c.b16 %v7352, %v7348
          %v7725 = vpack.c.b16 %v7353, %v7349
          %v7726 = vpack.c.b16 %v7354, %v7350
          %v7727 = vpack.c.b16 %v7355, %v7351
          %v7728 = vpack.c.b16 %v7360, %v7356
          %v7729 = vpack.c.b16 %v7361, %v7357
          %v7730 = vpack.c.b16 %v7362, %v7358
          %v7731 = vpack.c.b16 %v7363, %v7359
          %v7732 = vpack.c.b16 %v7368, %v7364
          %v7733 = vpack.c.b16 %v7369, %v7365
          %v7734 = vpack.c.b16 %v7370, %v7366
          %v7735 = vpack.c.b16 %v7371, %v7367
          %v7736 = vpack.c.b16 %v7376, %v7372
          %v7737 = vpack.c.b16 %v7377, %v7373
          %v7738 = vpack.c.b16 %v7378, %v7374
          %v7739 = vpack.c.b16 %v7379, %v7375
          %v7740 = vpack.c.b16 %v7384, %v7380
          %v7741 = vpack.c.b16 %v7385, %v7381
          %v7742 = vpack.c.b16 %v7386, %v7382
          %v7743 = vpack.c.b16 %v7387, %v7383
          %v7744 = vpack.c.b16 %v7392, %v7388
          %v7745 = vpack.c.b16 %v7393, %v7389
          %v7746 = vpack.c.b16 %v7394, %v7390
          %v7747 = vpack.c.b16 %v7395, %v7391
          %v7748 = vpack.c.b16 %v7400, %v7396
          %v7749 = vpack.c.b16 %v7401, %v7397
          %v7750 = vpack.c.b16 %v7402, %v7398
          %v7751 = vpack.c.b16 %v7403, %v7399
          %v7752 = vpack.c.b16 %v7408, %v7404
          %v7753 = vpack.c.b16 %v7409, %v7405
          %v7754 = vpack.c.b16 %v7410, %v7406
          %v7755 = vpack.c.b16 %v7411, %v7407
          %v7756 = vpack.c.b16 %v7416, %v7412
          %v7757 = vpack.c.b16 %v7417, %v7413
          %v7758 = vpack.c.b16 %v7418, %v7414
          %v7759 = vpack.c.b16 %v7419, %v7415
          %v7760 = vpack.c.b16 %v7424, %v7420
          %v7761 = vpack.c.b16 %v7425, %v7421
          %v7762 = vpack.c.b16 %v7426, %v7422
          %v7763 = vpack.c.b16 %v7427, %v7423
          %v7764 = vpack.c.b16 %v7432, %v7428
          %v7765 = vpack.c.b16 %v7433, %v7429
          %v7766 = vpack.c.b16 %v7434, %v7430
          %v7767 = vpack.c.b16 %v7435, %v7431
          %v7768 = vpack.c.b16 %v7440, %v7436
          %v7769 = vpack.c.b16 %v7441, %v7437
          %v7770 = vpack.c.b16 %v7442, %v7438
          %v7771 = vpack.c.b16 %v7443, %v7439
          %v7772 = vpack.c.b16 %v7448, %v7444
          %v7773 = vpack.c.b16 %v7449, %v7445
          %v7774 = vpack.c.b16 %v7450, %v7446
          %v7775 = vpack.c.b16 %v7451, %v7447
          %v7776 = vpack.c.b16 %v7456, %v7452
          %v7777 = vpack.c.b16 %v7457, %v7453
          %v7778 = vpack.c.b16 %v7458, %v7454
          %v7779 = vpack.c.b16 %v7459, %v7455
          %v7780 = vpack.c.b16 %v7464, %v7460
          %v7781 = vpack.c.b16 %v7465, %v7461
          %v7782 = vpack.c.b16 %v7466, %v7462
          %v7783 = vpack.c.b16 %v7467, %v7463
          %v7784 = vpack.c.b16 %v7472, %v7468
          %v7785 = vpack.c.b16 %v7473, %v7469
          %v7786 = vpack.c.b16 %v7474, %v7470
          %v7787 = vpack.c.b16 %v7475, %v7471
          %v7788 = vpack.c.b16 %v7480, %v7476
          %v7789 = vpack.c.b16 %v7481, %v7477
          %v7790 = vpack.c.b16 %v7482, %v7478
          %v7791 = vpack.c.b16 %v7483, %v7479
          %v7792 = vpack.c.b16 %v7488, %v7484
          %v7793 = vpack.c.b16 %v7489, %v7485
          %v7794 = vpack.c.b16 %v7490, %v7486
          %v7795 = vpack.c.b16 %v7491, %v7487
          %v7796 = vpack.c.b16 %v7496, %v7492
          %v7797 = vpack.c.b16 %v7497, %v7493
          %v7798 = vpack.c.b16 %v7498, %v7494
          %v7799 = vpack.c.b16 %v7499, %v7495
          %v7800 = vpack.c.b16 %v7504, %v7500
          %v7801 = vpack.c.b16 %v7505, %v7501
          %v7802 = vpack.c.b16 %v7506, %v7502
          %v7803 = vpack.c.b16 %v7507, %v7503
          %v7804 = vpack.c.b16 %v7512, %v7508
          %v7805 = vpack.c.b16 %v7513, %v7509
          %v7806 = vpack.c.b16 %v7514, %v7510
          %v7807 = vpack.c.b16 %v7515, %v7511
          %v7808 = vpack.c.b16 %v7520, %v7516
          %v7809 = vpack.c.b16 %v7521, %v7517
          %v7810 = vpack.c.b16 %v7522, %v7518
          %v7811 = vpack.c.b16 %v7523, %v7519
          %v7812 = vpack.c.b16 %v7528, %v7524
          %v7813 = vpack.c.b16 %v7529, %v7525
          %v7814 = vpack.c.b16 %v7530, %v7526
          %v7815 = vpack.c.b16 %v7531, %v7527
          %v7816 = vpack.c.b16 %v7536, %v7532
          %v7817 = vpack.c.b16 %v7537, %v7533
          %v7818 = vpack.c.b16 %v7538, %v7534
          %v7819 = vpack.c.b16 %v7539, %v7535
          %v7820 = vpack.c.b16 %v7544, %v7540
          %v7821 = vpack.c.b16 %v7545, %v7541
          %v7822 = vpack.c.b16 %v7546, %v7542
          %v7823 = vpack.c.b16 %v7547, %v7543
          %v7824 = vpack.c.b16 %v7552, %v7548
          %v7825 = vpack.c.b16 %v7553, %v7549
          %v7826 = vpack.c.b16 %v7554, %v7550
          %v7827 = vpack.c.b16 %v7555, %v7551
          %v7828 = vpack.c.b16 %v7560, %v7556
          %v7829 = vpack.c.b16 %v7561, %v7557
          %v7830 = vpack.c.b16 %v7562, %v7558
          %v7831 = vpack.c.b16 %v7563, %v7559
          %v7832 = vpack.c.b16 %v7568, %v7564
          %v7833 = vpack.c.b16 %v7569, %v7565
          %v7834 = vpack.c.b16 %v7570, %v7566
          %v7835 = vpack.c.b16 %v7571, %v7567
          %v7836 = vpack.c.b16 %v7576, %v7572
          %v7837 = vpack.c.b16 %v7577, %v7573
          %v7838 = vpack.c.b16 %v7578, %v7574
          %v7839 = vpack.c.b16 %v7579, %v7575
          %v7840 = vpack.c.b16 %v7584, %v7580
          %v7841 = vpack.c.b16 %v7585, %v7581
          %v7842 = vpack.c.b16 %v7586, %v7582
          %v7843 = vpack.c.b16 %v7587, %v7583
          %8100 = vmatprep.subr.bf16.mxu0 %v7589
          %8101 = vmatpush1.bf16.msra.mxu0 %v7588
          %8102 = vmatprep.subr.bf16.mxu0 %v7593
          %8103 = vmatpush1.bf16.msra.mxu0 %v7592
          %8104 = vmatprep.subr.bf16.mxu0 %v7597
          %8105 = vmatpush1.bf16.msra.mxu0 %v7596
          %8106 = vmatprep.subr.bf16.mxu0 %v7601
          %8107 = vmatpush1.bf16.msra.mxu0 %v7600
          %8108 = vmatprep.subr.bf16.mxu0 %v7605
          %8109 = vmatpush1.bf16.msra.mxu0 %v7604
          %8110 = vmatprep.subr.bf16.mxu0 %v7609
          %8111 = vmatpush1.bf16.msra.mxu0 %v7608
          %8112 = vmatprep.subr.bf16.mxu0 %v7613
          %8113 = vmatpush1.bf16.msra.mxu0 %v7612
          %8114 = vmatprep.subr.bf16.mxu0 %v7617
          %8115 = vmatpush1.bf16.msra.mxu0 %v7616
          %8116 = vmatprep.subr.bf16.mxu0 %v7621
          %8117 = vmatpush1.bf16.msra.mxu0 %v7620
          %8118 = vmatprep.subr.bf16.mxu0 %v7625
          %8119 = vmatpush1.bf16.msra.mxu0 %v7624
          %8120 = vmatprep.subr.bf16.mxu0 %v7629
          %8121 = vmatpush1.bf16.msra.mxu0 %v7628
          %8122 = vmatprep.subr.bf16.mxu0 %v7633
          %8123 = vmatpush1.bf16.msra.mxu0 %v7632
          %8124 = vmatprep.subr.bf16.mxu0 %v7637
          %8125 = vmatpush1.bf16.msra.mxu0 %v7636
          %8126 = vmatprep.subr.bf16.mxu0 %v7641
          %8127 = vmatpush1.bf16.msra.mxu0 %v7640
          %8128 = vmatprep.subr.bf16.mxu0 %v7645
          %8129 = vmatpush1.bf16.msra.mxu0 %v7644
          %8130 = vmatprep.subr.bf16.mxu0 %v7649
          %8131 = vmatpush1.bf16.msra.mxu0 %v7648
          %8132 = vmatprep.mubr.bf16.mxu0 %v6800
          %8133 = vmatmul.mubr.bf16.gmra.mrb[0].mxu0 %v6786
          %v8134 = vpop.f32.mrb[0].mxu0
          %v8135 = vadd.f32 %v6745, %v8134
          %v8136 = vpop.f32.mrb[0].mxu0
          %v8137 = vadd.f32 %v6749, %v8136
          %v8138 = vpop.f32.mrb[0].mxu0
          %v8139 = vpop.f32.mrb[0].mxu0
          %8140 = vdwg.mxu0
          %8141 = vmatprep.subr.bf16.mxu0 %v7653
          %8142 = vmatpush1.bf16.msra.mxu0 %v7652
          %8143 = vmatprep.subr.bf16.mxu0 %v7657
          %8144 = vmatpush1.bf16.msra.mxu0 %v7656
          %8145 = vmatprep.subr.bf16.mxu0 %v7661
          %8146 = vmatpush1.bf16.msra.mxu0 %v7660
          %8147 = vmatprep.subr.bf16.mxu0 %v7665
          %8148 = vmatpush1.bf16.msra.mxu0 %v7664
          %8149 = vmatprep.subr.bf16.mxu0 %v7669
          %8150 = vmatpush1.bf16.msra.mxu0 %v7668
          %8151 = vmatprep.subr.bf16.mxu0 %v7673
          %8152 = vmatpush1.bf16.msra.mxu0 %v7672
          %8153 = vmatprep.subr.bf16.mxu0 %v7677
          %8154 = vmatpush1.bf16.msra.mxu0 %v7676
          %8155 = vmatprep.subr.bf16.mxu0 %v7681
          %8156 = vmatpush1.bf16.msra.mxu0 %v7680
          %8157 = vmatprep.subr.bf16.mxu0 %v7685
          %8158 = vmatpush1.bf16.msra.mxu0 %v7684
          %8159 = vmatprep.subr.bf16.mxu0 %v7689
          %8160 = vmatpush1.bf16.msra.mxu0 %v7688
          %8161 = vmatprep.subr.bf16.mxu0 %v7693
          %8162 = vmatpush1.bf16.msra.mxu0 %v7692
          %8163 = vmatprep.subr.bf16.mxu0 %v7697
          %8164 = vmatpush1.bf16.msra.mxu0 %v7696
          %8165 = vmatprep.subr.bf16.mxu0 %v7701
          %8166 = vmatpush1.bf16.msra.mxu0 %v7700
          %8167 = vmatprep.subr.bf16.mxu0 %v7705
          %8168 = vmatpush1.bf16.msra.mxu0 %v7704
          %8169 = vmatprep.subr.bf16.mxu0 %v7709
          %8170 = vmatpush1.bf16.msra.mxu0 %v7708
          %8171 = vmatprep.subr.bf16.mxu0 %v7713
          %8172 = vmatpush1.bf16.msra.mxu0 %v7712
          %8173 = vmatprep.mubr.bf16.mxu0 %v6810
          %8174 = vmatmul.mubr.bf16.gmra.mrb[0].mxu0 %v6808
          %v8175 = vpop.f32.mrb[0].mxu0
          %v8176 = vadd.f32 %v8135, %v8175
          %v8177 = vpop.f32.mrb[0].mxu0
          %v8178 = vadd.f32 %v8137, %v8177
          %v8179 = vpop.f32.mrb[0].mxu0
          %v8180 = vpop.f32.mrb[0].mxu0
          %8181 = vdwg.mxu0
          %8182 = vmatprep.subr.bf16.mxu0 %v7717
          %8183 = vmatpush1.bf16.msra.mxu0 %v7716
          %8184 = vmatprep.subr.bf16.mxu0 %v7721
          %8185 = vmatpush1.bf16.msra.mxu0 %v7720
          %8186 = vmatprep.subr.bf16.mxu0 %v7725
          %8187 = vmatpush1.bf16.msra.mxu0 %v7724
          %8188 = vmatprep.subr.bf16.mxu0 %v7729
          %8189 = vmatpush1.bf16.msra.mxu0 %v7728
          %8190 = vmatprep.subr.bf16.mxu0 %v7733
          %8191 = vmatpush1.bf16.msra.mxu0 %v7732
          %8192 = vmatprep.subr.bf16.mxu0 %v7737
          %8193 = vmatpush1.bf16.msra.mxu0 %v7736
          %8194 = vmatprep.subr.bf16.mxu0 %v7741
          %8195 = vmatpush1.bf16.msra.mxu0 %v7740
          %8196 = vmatprep.subr.bf16.mxu0 %v7745
          %8197 = vmatpush1.bf16.msra.mxu0 %v7744
          %8198 = vmatprep.subr.bf16.mxu0 %v7749
          %8199 = vmatpush1.bf16.msra.mxu0 %v7748
          %8200 = vmatprep.subr.bf16.mxu0 %v7753
          %8201 = vmatpush1.bf16.msra.mxu0 %v7752
          %8202 = vmatprep.subr.bf16.mxu0 %v7757
          %8203 = vmatpush1.bf16.msra.mxu0 %v7756
          %8204 = vmatprep.subr.bf16.mxu0 %v7761
          %8205 = vmatpush1.bf16.msra.mxu0 %v7760
          %8206 = vmatprep.subr.bf16.mxu0 %v7765
          %8207 = vmatpush1.bf16.msra.mxu0 %v7764
          %8208 = vmatprep.subr.bf16.mxu0 %v7769
          %8209 = vmatpush1.bf16.msra.mxu0 %v7768
          %8210 = vmatprep.subr.bf16.mxu0 %v7773
          %8211 = vmatpush1.bf16.msra.mxu0 %v7772
          %8212 = vmatprep.subr.bf16.mxu0 %v7777
          %8213 = vmatpush1.bf16.msra.mxu0 %v7776
          %8214 = vmatprep.mubr.bf16.mxu0 %v6807
          %8215 = vmatmul.mubr.bf16.gmra.mrb[0].mxu0 %v6793
          %v8216 = vpop.f32.mrb[0].mxu0
          %v8217 = vadd.f32 %v8176, %v8216
          %v8218 = vpop.f32.mrb[0].mxu0
          %v8219 = vadd.f32 %v8178, %v8218
          %v8220 = vpop.f32.mrb[0].mxu0
          %v8221 = vpop.f32.mrb[0].mxu0
          %8222 = vdwg.mxu0
          %8223 = vmatprep.subr.bf16.mxu0 %v7781
          %8224 = vmatpush1.bf16.msra.mxu0 %v7780
          %8225 = vmatprep.subr.bf16.mxu0 %v7785
          %8226 = vmatpush1.bf16.msra.mxu0 %v7784
          %8227 = vmatprep.subr.bf16.mxu0 %v7789
          %8228 = vmatpush1.bf16.msra.mxu0 %v7788
          %8229 = vmatprep.subr.bf16.mxu0 %v7793
          %8230 = vmatpush1.bf16.msra.mxu0 %v7792
          %8231 = vmatprep.subr.bf16.mxu0 %v7797
          %8232 = vmatpush1.bf16.msra.mxu0 %v7796
          %8233 = vmatprep.subr.bf16.mxu0 %v7801
          %8234 = vmatpush1.bf16.msra.mxu0 %v7800
          %8235 = vmatprep.subr.bf16.mxu0 %v7805
          %8236 = vmatpush1.bf16.msra.mxu0 %v7804
          %8237 = vmatprep.subr.bf16.mxu0 %v7809
          %8238 = vmatpush1.bf16.msra.mxu0 %v7808
          %8239 = vmatprep.subr.bf16.mxu0 %v7813
          %8240 = vmatpush1.bf16.msra.mxu0 %v7812
          %8241 = vmatprep.subr.bf16.mxu0 %v7817
          %8242 = vmatpush1.bf16.msra.mxu0 %v7816
          %8243 = vmatprep.subr.bf16.mxu0 %v7821
          %8244 = vmatpush1.bf16.msra.mxu0 %v7820
          %8245 = vmatprep.subr.bf16.mxu0 %v7825
          %8246 = vmatpush1.bf16.msra.mxu0 %v7824
          %8247 = vmatprep.subr.bf16.mxu0 %v7829
          %8248 = vmatpush1.bf16.msra.mxu0 %v7828
          %8249 = vmatprep.subr.bf16.mxu0 %v7833
          %8250 = vmatpush1.bf16.msra.mxu0 %v7832
          %8251 = vmatprep.subr.bf16.mxu0 %v7837
          %8252 = vmatpush1.bf16.msra.mxu0 %v7836
          %8253 = vmatprep.subr.bf16.mxu0 %v7841
          %8254 = vmatpush1.bf16.msra.mxu0 %v7840
          %8255 = vmatprep.mubr.bf16.mxu0 %v6811
          %8256 = vmatmul.mubr.bf16.gmra.mrb[0].mxu0 %v6809
          %v8257 = vpop.f32.mrb[0].mxu0
          %v8258 = vadd.f32 %v8217, %v8257
          %v8259 = vpop.f32.mrb[0].mxu0
          %v8260 = vadd.f32 %v8219, %v8259
          %v8261 = vpop.f32.mrb[0].mxu0
          %v8262 = vpop.f32.mrb[0].mxu0
          %8263 = vdwg.mxu0
          %8264 = vmatprep.subr.bf16.mxu0 %v7591
          %8265 = vmatpush1.bf16.msra.mxu0 %v7590
          %8266 = vmatprep.subr.bf16.mxu0 %v7595
          %8267 = vmatpush1.bf16.msra.mxu0 %v7594
          %8268 = vmatprep.subr.bf16.mxu0 %v7599
          %8269 = vmatpush1.bf16.msra.mxu0 %v7598
          %8270 = vmatprep.subr.bf16.mxu0 %v7603
          %8271 = vmatpush1.bf16.msra.mxu0 %v7602
          %8272 = vmatprep.subr.bf16.mxu0 %v7607
          %8273 = vmatpush1.bf16.msra.mxu0 %v7606
          %8274 = vmatprep.subr.bf16.mxu0 %v7611
          %8275 = vmatpush1.bf16.msra.mxu0 %v7610
          %8276 = vmatprep.subr.bf16.mxu0 %v7615
          %8277 = vmatpush1.bf16.msra.mxu0 %v7614
          %8278 = vmatprep.subr.bf16.mxu0 %v7619
          %8279 = vmatpush1.bf16.msra.mxu0 %v7618
          %8280 = vmatprep.subr.bf16.mxu0 %v7623
          %8281 = vmatpush1.bf16.msra.mxu0 %v7622
          %8282 = vmatprep.subr.bf16.mxu0 %v7627
          %8283 = vmatpush1.bf16.msra.mxu0 %v7626
          %8284 = vmatprep.subr.bf16.mxu0 %v7631
          %8285 = vmatpush1.bf16.msra.mxu0 %v7630
          %8286 = vmatprep.subr.bf16.mxu0 %v7635
          %8287 = vmatpush1.bf16.msra.mxu0 %v7634
          %8288 = vmatprep.subr.bf16.mxu0 %v7639
          %8289 = vmatpush1.bf16.msra.mxu0 %v7638
          %8290 = vmatprep.subr.bf16.mxu0 %v7643
          %8291 = vmatpush1.bf16.msra.mxu0 %v7642
          %8292 = vmatprep.subr.bf16.mxu0 %v7647
          %8293 = vmatpush1.bf16.msra.mxu0 %v7646
          %8294 = vmatprep.subr.bf16.mxu0 %v7651
          %8295 = vmatpush1.bf16.msra.mxu0 %v7650
          %8296 = vmatprep.mubr.bf16.mxu0 %v6800
          %8297 = vmatmul.mubr.bf16.gmra.mrb[0].mxu0 %v6786
          %v8298 = vpop.f32.mrb[0].mxu0
          %v8299 = vadd.f32 %v6753, %v8298
          %v8300 = vpop.f32.mrb[0].mxu0
          %v8301 = vadd.f32 %v6757, %v8300
          %v8302 = vpop.f32.mrb[0].mxu0
          %v8303 = vpop.f32.mrb[0].mxu0
          %8304 = vdwg.mxu0
          %8305 = vmatprep.subr.bf16.mxu0 %v7655
          %8306 = vmatpush1.bf16.msra.mxu0 %v7654
          %8307 = vmatprep.subr.bf16.mxu0 %v7659
          %8308 = vmatpush1.bf16.msra.mxu0 %v7658
          %8309 = vmatprep.subr.bf16.mxu0 %v7663
          %8310 = vmatpush1.bf16.msra.mxu0 %v7662
          %8311 = vmatprep.subr.bf16.mxu0 %v7667
          %8312 = vmatpush1.bf16.msra.mxu0 %v7666
          %8313 = vmatprep.subr.bf16.mxu0 %v7671
          %8314 = vmatpush1.bf16.msra.mxu0 %v7670
          %8315 = vmatprep.subr.bf16.mxu0 %v7675
          %8316 = vmatpush1.bf16.msra.mxu0 %v7674
          %8317 = vmatprep.subr.bf16.mxu0 %v7679
          %8318 = vmatpush1.bf16.msra.mxu0 %v7678
          %8319 = vmatprep.subr.bf16.mxu0 %v7683
          %8320 = vmatpush1.bf16.msra.mxu0 %v7682
          %8321 = vmatprep.subr.bf16.mxu0 %v7687
          %8322 = vmatpush1.bf16.msra.mxu0 %v7686
          %8323 = vmatprep.subr.bf16.mxu0 %v7691
          %8324 = vmatpush1.bf16.msra.mxu0 %v7690
          %8325 = vmatprep.subr.bf16.mxu0 %v7695
          %8326 = vmatpush1.bf16.msra.mxu0 %v7694
          %8327 = vmatprep.subr.bf16.mxu0 %v7699
          %8328 = vmatpush1.bf16.msra.mxu0 %v7698
          %8329 = vmatprep.subr.bf16.mxu0 %v7703
          %8330 = vmatpush1.bf16.msra.mxu0 %v7702
          %8331 = vmatprep.subr.bf16.mxu0 %v7707
          %8332 = vmatpush1.bf16.msra.mxu0 %v7706
          %8333 = vmatprep.subr.bf16.mxu0 %v7711
          %8334 = vmatpush1.bf16.msra.mxu0 %v7710
          %8335 = vmatprep.subr.bf16.mxu0 %v7715
          %8336 = vmatpush1.bf16.msra.mxu0 %v7714
          %8337 = vmatprep.mubr.bf16.mxu0 %v6810
          %8338 = vmatmul.mubr.bf16.gmra.mrb[0].mxu0 %v6808
          %v8339 = vpop.f32.mrb[0].mxu0
          %v8340 = vadd.f32 %v8299, %v8339
          %v8341 = vpop.f32.mrb[0].mxu0
          %v8342 = vadd.f32 %v8301, %v8341
          %v8343 = vpop.f32.mrb[0].mxu0
          %v8344 = vpop.f32.mrb[0].mxu0
          %8345 = vdwg.mxu0
          %8346 = vmatprep.subr.bf16.mxu0 %v7719
          %8347 = vmatpush1.bf16.msra.mxu0 %v7718
          %8348 = vmatprep.subr.bf16.mxu0 %v7723
          %8349 = vmatpush1.bf16.msra.mxu0 %v7722
          %8350 = vmatprep.subr.bf16.mxu0 %v7727
          %8351 = vmatpush1.bf16.msra.mxu0 %v7726
          %8352 = vmatprep.subr.bf16.mxu0 %v7731
          %8353 = vmatpush1.bf16.msra.mxu0 %v7730
          %8354 = vmatprep.subr.bf16.mxu0 %v7735
          %8355 = vmatpush1.bf16.msra.mxu0 %v7734
          %8356 = vmatprep.subr.bf16.mxu0 %v7739
          %8357 = vmatpush1.bf16.msra.mxu0 %v7738
          %8358 = vmatprep.subr.bf16.mxu0 %v7743
          %8359 = vmatpush1.bf16.msra.mxu0 %v7742
          %8360 = vmatprep.subr.bf16.mxu0 %v7747
          %8361 = vmatpush1.bf16.msra.mxu0 %v7746
          %8362 = vmatprep.subr.bf16.mxu0 %v7751
          %8363 = vmatpush1.bf16.msra.mxu0 %v7750
          %8364 = vmatprep.subr.bf16.mxu0 %v7755
          %8365 = vmatpush1.bf16.msra.mxu0 %v7754
          %8366 = vmatprep.subr.bf16.mxu0 %v7759
          %8367 = vmatpush1.bf16.msra.mxu0 %v7758
          %8368 = vmatprep.subr.bf16.mxu0 %v7763
          %8369 = vmatpush1.bf16.msra.mxu0 %v7762
          %8370 = vmatprep.subr.bf16.mxu0 %v7767
          %8371 = vmatpush1.bf16.msra.mxu0 %v7766
          %8372 = vmatprep.subr.bf16.mxu0 %v7771
          %8373 = vmatpush1.bf16.msra.mxu0 %v7770
          %8374 = vmatprep.subr.bf16.mxu0 %v7775
          %8375 = vmatpush1.bf16.msra.mxu0 %v7774
          %8376 = vmatprep.subr.bf16.mxu0 %v7779
          %8377 = vmatpush1.bf16.msra.mxu0 %v7778
          %8378 = vmatprep.mubr.bf16.mxu0 %v6807
          %8379 = vmatmul.mubr.bf16.gmra.mrb[0].mxu0 %v6793
          %v8380 = vpop.f32.mrb[0].mxu0
          %v8381 = vadd.f32 %v8340, %v8380
          %v8382 = vpop.f32.mrb[0].mxu0
          %v8383 = vadd.f32 %v8342, %v8382
          %v8384 = vpop.f32.mrb[0].mxu0
          %v8385 = vpop.f32.mrb[0].mxu0
          %8386 = vdwg.mxu0
          %8387 = vmatprep.subr.bf16.mxu0 %v7783
          %8388 = vmatpush1.bf16.msra.mxu0 %v7782
          %8389 = vmatprep.subr.bf16.mxu0 %v7787
          %8390 = vmatpush1.bf16.msra.mxu0 %v7786
          %8391 = vmatprep.subr.bf16.mxu0 %v7791
          %8392 = vmatpush1.bf16.msra.mxu0 %v7790
          %8393 = vmatprep.subr.bf16.mxu0 %v7795
          %8394 = vmatpush1.bf16.msra.mxu0 %v7794
          %8395 = vmatprep.subr.bf16.mxu0 %v7799
          %8396 = vmatpush1.bf16.msra.mxu0 %v7798
          %8397 = vmatprep.subr.bf16.mxu0 %v7803
          %8398 = vmatpush1.bf16.msra.mxu0 %v7802
          %8399 = vmatprep.subr.bf16.mxu0 %v7807
          %8400 = vmatpush1.bf16.msra.mxu0 %v7806
          %8401 = vmatprep.subr.bf16.mxu0 %v7811
          %8402 = vmatpush1.bf16.msra.mxu0 %v7810
          %8403 = vmatprep.subr.bf16.mxu0 %v7815
          %8404 = vmatpush1.bf16.msra.mxu0 %v7814
          %8405 = vmatprep.subr.bf16.mxu0 %v7819
          %8406 = vmatpush1.bf16.msra.mxu0 %v7818
          %8407 = vmatprep.subr.bf16.mxu0 %v7823
          %8408 = vmatpush1.bf16.msra.mxu0 %v7822
          %8409 = vmatprep.subr.bf16.mxu0 %v7827
          %8410 = vmatpush1.bf16.msra.mxu0 %v7826
          %8411 = vmatprep.subr.bf16.mxu0 %v7831
          %8412 = vmatpush1.bf16.msra.mxu0 %v7830
          %8413 = vmatprep.subr.bf16.mxu0 %v7835
          %8414 = vmatpush1.bf16.msra.mxu0 %v7834
          %8415 = vmatprep.subr.bf16.mxu0 %v7839
          %8416 = vmatpush1.bf16.msra.mxu0 %v7838
          %8417 = vmatprep.subr.bf16.mxu0 %v7843
          %8418 = vmatpush1.bf16.msra.mxu0 %v7842
          %8419 = vmatprep.mubr.bf16.mxu0 %v6811
          %8420 = vmatmul.mubr.bf16.gmra.mrb[0].mxu0 %v6809
          %v8421 = vpop.f32.mrb[0].mxu0
          %v8422 = vadd.f32 %v8381, %v8421
          %v8423 = vpop.f32.mrb[0].mxu0
          %v8424 = vadd.f32 %v8383, %v8423
          %v8425 = vpop.f32.mrb[0].mxu0
          %v8426 = vpop.f32.mrb[0].mxu0
          %8427 = vdwg.mxu0
          %v8428 = vmax.f32 %v8258, 0.0
          %v8429 = vmax.f32 %v8260, 0.0
          %v8430 = vmax.f32 %v8422, 0.0
          %v8431 = vmax.f32 %v8424, 0.0
          %v8432 = vpack.c.bf16 %v8428, %v8428
          %v8433 = vpack.c.bf16 %v8429, %v8429
          %v8434 = vpack.c.bf16 %v8430, %v8430
          %v8435 = vpack.c.bf16 %v8431, %v8431
          %v8436 = vld [vmem:[%s5] sm:$0xf]
          %v8437 = vld [vmem:[%s5 + $0x4] sm:$0xf]
          %v8438 = vld [vmem:[%s5 + $0x8] sm:$0xf]
          %v8439 = vld [vmem:[%s5 + $0xc] sm:$0xf]
          %v8440 = vld [vmem:[%s5 + $0x10] sm:$0xf]
          %v8441 = vld [vmem:[%s5 + $0x14] sm:$0xf]
          %v8442 = vld [vmem:[%s5 + $0x18] sm:$0xf]
          %v8443 = vld [vmem:[%s5 + $0x1c] sm:$0xf]
          %v8444 = vld [vmem:[%s5 + $0x20] sm:$0xf]
          %v8445 = vld [vmem:[%s5 + $0x24] sm:$0xf]
          %v8446 = vld [vmem:[%s5 + $0x28] sm:$0xf]
          %v8447 = vld [vmem:[%s5 + $0x2c] sm:$0xf]
          %v8448 = vld [vmem:[%s5 + $0x30] sm:$0xf]
          %v8449 = vld [vmem:[%s5 + $0x34] sm:$0xf]
          %v8450 = vld [vmem:[%s5 + $0x38] sm:$0xf]
          %v8451 = vld [vmem:[%s5 + $0x3c] sm:$0xf]
          %v8452 = vld [vmem:[%s5 + $0x40] sm:$0xf]
          %v8453 = vld [vmem:[%s5 + $0x44] sm:$0xf]
          %v8454 = vld [vmem:[%s5 + $0x48] sm:$0xf]
          %v8455 = vld [vmem:[%s5 + $0x4c] sm:$0xf]
          %v8456 = vld [vmem:[%s5 + $0x50] sm:$0xf]
          %v8457 = vld [vmem:[%s5 + $0x54] sm:$0xf]
          %v8458 = vld [vmem:[%s5 + $0x58] sm:$0xf]
          %v8459 = vld [vmem:[%s5 + $0x5c] sm:$0xf]
          %v8460 = vld [vmem:[%s5 + $0x60] sm:$0xf]
          %v8461 = vld [vmem:[%s5 + $0x64] sm:$0xf]
          %v8462 = vld [vmem:[%s5 + $0x68] sm:$0xf]
          %v8463 = vld [vmem:[%s5 + $0x6c] sm:$0xf]
          %v8464 = vld [vmem:[%s5 + $0x70] sm:$0xf]
          %v8465 = vld [vmem:[%s5 + $0x74] sm:$0xf]
          %v8466 = vld [vmem:[%s5 + $0x78] sm:$0xf]
          %v8467 = vld [vmem:[%s5 + $0x7c] sm:$0xf]
          %v8468 = vld [vmem:[%s5 + $0x80] sm:$0xf]
          %v8469 = vld [vmem:[%s5 + $0x84] sm:$0xf]
          %v8470 = vld [vmem:[%s5 + $0x88] sm:$0xf]
          %v8471 = vld [vmem:[%s5 + $0x8c] sm:$0xf]
          %v8472 = vld [vmem:[%s5 + $0x90] sm:$0xf]
          %v8473 = vld [vmem:[%s5 + $0x94] sm:$0xf]
          %v8474 = vld [vmem:[%s5 + $0x98] sm:$0xf]
          %v8475 = vld [vmem:[%s5 + $0x9c] sm:$0xf]
          %v8476 = vld [vmem:[%s5 + $0xa0] sm:$0xf]
          %v8477 = vld [vmem:[%s5 + $0xa4] sm:$0xf]
          %v8478 = vld [vmem:[%s5 + $0xa8] sm:$0xf]
          %v8479 = vld [vmem:[%s5 + $0xac] sm:$0xf]
          %v8480 = vld [vmem:[%s5 + $0xb0] sm:$0xf]
          %v8481 = vld [vmem:[%s5 + $0xb4] sm:$0xf]
          %v8482 = vld [vmem:[%s5 + $0xb8] sm:$0xf]
          %v8483 = vld [vmem:[%s5 + $0xbc] sm:$0xf]
          %v8484 = vld [vmem:[%s5 + $0xc0] sm:$0xf]
          %v8485 = vld [vmem:[%s5 + $0xc4] sm:$0xf]
          %v8486 = vld [vmem:[%s5 + $0xc8] sm:$0xf]
          %v8487 = vld [vmem:[%s5 + $0xcc] sm:$0xf]
          %v8488 = vld [vmem:[%s5 + $0xd0] sm:$0xf]
          %v8489 = vld [vmem:[%s5 + $0xd4] sm:$0xf]
          %v8490 = vld [vmem:[%s5 + $0xd8] sm:$0xf]
          %v8491 = vld [vmem:[%s5 + $0xdc] sm:$0xf]
          %v8492 = vld [vmem:[%s5 + $0xe0] sm:$0xf]
          %v8493 = vld [vmem:[%s5 + $0xe4] sm:$0xf]
          %v8494 = vld [vmem:[%s5 + $0xe8] sm:$0xf]
          %v8495 = vld [vmem:[%s5 + $0xec] sm:$0xf]
          %v8496 = vld [vmem:[%s5 + $0xf0] sm:$0xf]
          %v8497 = vld [vmem:[%s5 + $0xf4] sm:$0xf]
          %v8498 = vld [vmem:[%s5 + $0xf8] sm:$0xf]
          %v8499 = vld [vmem:[%s5 + $0xfc] sm:$0xf]
          %v8500 = vld [vmem:[%s6] sm:$0x1]
          %v8502 = vlaneseq
          %v8503 = vshrl.u32 %v8502, 7
          %v8504 = vsub.s32 0, %v8503
          %v8505 = vrot.slane %v8500, %v8504
          %v8571 = vunpack.c.l.b16 %v8436
          %v8572 = vunpack.c.l.b16 %v8437
          %v8573 = vunpack.c.l.b16 %v8438
          %v8574 = vunpack.c.l.b16 %v8439
          %v8575 = vunpack.c.l.b16 %v8440
          %v8576 = vunpack.c.l.b16 %v8441
          %v8577 = vunpack.c.l.b16 %v8442
          %v8578 = vunpack.c.l.b16 %v8443
          %v8579 = vunpack.c.l.b16 %v8444
          %v8580 = vunpack.c.l.b16 %v8445
          %v8581 = vunpack.c.l.b16 %v8446
          %v8582 = vunpack.c.l.b16 %v8447
          %v8583 = vunpack.c.l.b16 %v8448
          %v8584 = vunpack.c.l.b16 %v8449
          %v8585 = vunpack.c.l.b16 %v8450
          %v8586 = vunpack.c.l.b16 %v8451
          %v8587 = vunpack.c.l.b16 %v8452
          %v8588 = vunpack.c.l.b16 %v8453
          %v8589 = vunpack.c.l.b16 %v8454
          %v8590 = vunpack.c.l.b16 %v8455
          %v8591 = vunpack.c.l.b16 %v8456
          %v8592 = vunpack.c.l.b16 %v8457
          %v8593 = vunpack.c.l.b16 %v8458
          %v8594 = vunpack.c.l.b16 %v8459
          %v8595 = vunpack.c.l.b16 %v8460
          %v8596 = vunpack.c.l.b16 %v8461
          %v8597 = vunpack.c.l.b16 %v8462
          %v8598 = vunpack.c.l.b16 %v8463
          %v8599 = vunpack.c.l.b16 %v8464
          %v8600 = vunpack.c.l.b16 %v8465
          %v8601 = vunpack.c.l.b16 %v8466
          %v8602 = vunpack.c.l.b16 %v8467
          %v8603 = vunpack.c.l.b16 %v8468
          %v8604 = vunpack.c.l.b16 %v8469
          %v8605 = vunpack.c.l.b16 %v8470
          %v8606 = vunpack.c.l.b16 %v8471
          %v8607 = vunpack.c.l.b16 %v8472
          %v8608 = vunpack.c.l.b16 %v8473
          %v8609 = vunpack.c.l.b16 %v8474
          %v8610 = vunpack.c.l.b16 %v8475
          %v8611 = vunpack.c.l.b16 %v8476
          %v8612 = vunpack.c.l.b16 %v8477
          %v8613 = vunpack.c.l.b16 %v8478
          %v8614 = vunpack.c.l.b16 %v8479
          %v8615 = vunpack.c.l.b16 %v8480
          %v8616 = vunpack.c.l.b16 %v8481
          %v8617 = vunpack.c.l.b16 %v8482
          %v8618 = vunpack.c.l.b16 %v8483
          %v8619 = vunpack.c.l.b16 %v8484
          %v8620 = vunpack.c.l.b16 %v8485
          %v8621 = vunpack.c.l.b16 %v8486
          %v8622 = vunpack.c.l.b16 %v8487
          %v8623 = vunpack.c.l.b16 %v8488
          %v8624 = vunpack.c.l.b16 %v8489
          %v8625 = vunpack.c.l.b16 %v8490
          %v8626 = vunpack.c.l.b16 %v8491
          %v8627 = vunpack.c.l.b16 %v8492
          %v8628 = vunpack.c.l.b16 %v8493
          %v8629 = vunpack.c.l.b16 %v8494
          %v8630 = vunpack.c.l.b16 %v8495
          %v8631 = vunpack.c.l.b16 %v8496
          %v8632 = vunpack.c.l.b16 %v8497
          %v8633 = vunpack.c.l.b16 %v8498
          %v8634 = vunpack.c.l.b16 %v8499
          %v8635 = vpack.c.b16 %v8572, %v8571
          %v8636 = vpack.c.b16 %v8574, %v8573
          %v8637 = vpack.c.b16 %v8576, %v8575
          %v8638 = vpack.c.b16 %v8578, %v8577
          %v8639 = vpack.c.b16 %v8580, %v8579
          %v8640 = vpack.c.b16 %v8582, %v8581
          %v8641 = vpack.c.b16 %v8584, %v8583
          %v8642 = vpack.c.b16 %v8586, %v8585
          %v8643 = vpack.c.b16 %v8588, %v8587
          %v8644 = vpack.c.b16 %v8590, %v8589
          %v8645 = vpack.c.b16 %v8592, %v8591
          %v8646 = vpack.c.b16 %v8594, %v8593
          %v8647 = vpack.c.b16 %v8596, %v8595
          %v8648 = vpack.c.b16 %v8598, %v8597
          %v8649 = vpack.c.b16 %v8600, %v8599
          %v8650 = vpack.c.b16 %v8602, %v8601
          %v8651 = vpack.c.b16 %v8604, %v8603
          %v8652 = vpack.c.b16 %v8606, %v8605
          %v8653 = vpack.c.b16 %v8608, %v8607
          %v8654 = vpack.c.b16 %v8610, %v8609
          %v8655 = vpack.c.b16 %v8612, %v8611
          %v8656 = vpack.c.b16 %v8614, %v8613
          %v8657 = vpack.c.b16 %v8616, %v8615
          %v8658 = vpack.c.b16 %v8618, %v8617
          %v8659 = vpack.c.b16 %v8620, %v8619
          %v8660 = vpack.c.b16 %v8622, %v8621
          %v8661 = vpack.c.b16 %v8624, %v8623
          %v8662 = vpack.c.b16 %v8626, %v8625
          %v8663 = vpack.c.b16 %v8628, %v8627
          %v8664 = vpack.c.b16 %v8630, %v8629
          %v8665 = vpack.c.b16 %v8632, %v8631
          %v8666 = vpack.c.b16 %v8634, %v8633
          %8699 = vmatprep.subr.bf16.mxu0 0
          %8700 = vmatpush1.bf16.msra.mxu0 %v8635
          %8701 = vmatprep.subr.bf16.mxu0 0
          %8702 = vmatpush1.bf16.msra.mxu0 %v8636
          %8703 = vmatprep.subr.bf16.mxu0 0
          %8704 = vmatpush1.bf16.msra.mxu0 %v8637
          %8705 = vmatprep.subr.bf16.mxu0 0
          %8706 = vmatpush1.bf16.msra.mxu0 %v8638
          %8707 = vmatprep.subr.bf16.mxu0 0
          %8708 = vmatpush1.bf16.msra.mxu0 %v8639
          %8709 = vmatprep.subr.bf16.mxu0 0
          %8710 = vmatpush1.bf16.msra.mxu0 %v8640
          %8711 = vmatprep.subr.bf16.mxu0 0
          %8712 = vmatpush1.bf16.msra.mxu0 %v8641
          %8713 = vmatprep.subr.bf16.mxu0 0
          %8714 = vmatpush1.bf16.msra.mxu0 %v8642
          %8715 = vmatprep.subr.bf16.mxu0 0
          %8716 = vmatpush1.bf16.msra.mxu0 %v8643
          %8717 = vmatprep.subr.bf16.mxu0 0
          %8718 = vmatpush1.bf16.msra.mxu0 %v8644
          %8719 = vmatprep.subr.bf16.mxu0 0
          %8720 = vmatpush1.bf16.msra.mxu0 %v8645
          %8721 = vmatprep.subr.bf16.mxu0 0
          %8722 = vmatpush1.bf16.msra.mxu0 %v8646
          %8723 = vmatprep.subr.bf16.mxu0 0
          %8724 = vmatpush1.bf16.msra.mxu0 %v8647
          %8725 = vmatprep.subr.bf16.mxu0 0
          %8726 = vmatpush1.bf16.msra.mxu0 %v8648
          %8727 = vmatprep.subr.bf16.mxu0 0
          %8728 = vmatpush1.bf16.msra.mxu0 %v8649
          %8729 = vmatprep.subr.bf16.mxu0 0
          %8730 = vmatpush1.bf16.msra.mxu0 %v8650
          %8731 = vmatprep.mubr.bf16.mxu0 %v8433
          %8732 = vmatmul.mubr.bf16.gmra.mrb[0].mxu0 %v8432
          %v8733 = vpop.f32.mrb[0].mxu0
          %v8734 = vadd.f32 %v8505, %v8733
          %v8735 = vpop.f32.mrb[0].mxu0
          %v8736 = vpop.f32.mrb[0].mxu0
          %v8737 = vpop.f32.mrb[0].mxu0
          %8738 = vdwg.mxu0
          %8739 = vmatprep.subr.bf16.mxu0 0
          %8740 = vmatpush1.bf16.msra.mxu0 %v8651
          %8741 = vmatprep.subr.bf16.mxu0 0
          %8742 = vmatpush1.bf16.msra.mxu0 %v8652
          %8743 = vmatprep.subr.bf16.mxu0 0
          %8744 = vmatpush1.bf16.msra.mxu0 %v8653
          %8745 = vmatprep.subr.bf16.mxu0 0
          %8746 = vmatpush1.bf16.msra.mxu0 %v8654
          %8747 = vmatprep.subr.bf16.mxu0 0
          %8748 = vmatpush1.bf16.msra.mxu0 %v8655
          %8749 = vmatprep.subr.bf16.mxu0 0
          %8750 = vmatpush1.bf16.msra.mxu0 %v8656
          %8751 = vmatprep.subr.bf16.mxu0 0
          %8752 = vmatpush1.bf16.msra.mxu0 %v8657
          %8753 = vmatprep.subr.bf16.mxu0 0
          %8754 = vmatpush1.bf16.msra.mxu0 %v8658
          %8755 = vmatprep.subr.bf16.mxu0 0
          %8756 = vmatpush1.bf16.msra.mxu0 %v8659
          %8757 = vmatprep.subr.bf16.mxu0 0
          %8758 = vmatpush1.bf16.msra.mxu0 %v8660
          %8759 = vmatprep.subr.bf16.mxu0 0
          %8760 = vmatpush1.bf16.msra.mxu0 %v8661
          %8761 = vmatprep.subr.bf16.mxu0 0
          %8762 = vmatpush1.bf16.msra.mxu0 %v8662
          %8763 = vmatprep.subr.bf16.mxu0 0
          %8764 = vmatpush1.bf16.msra.mxu0 %v8663
          %8765 = vmatprep.subr.bf16.mxu0 0
          %8766 = vmatpush1.bf16.msra.mxu0 %v8664
          %8767 = vmatprep.subr.bf16.mxu0 0
          %8768 = vmatpush1.bf16.msra.mxu0 %v8665
          %8769 = vmatprep.subr.bf16.mxu0 0
          %8770 = vmatpush1.bf16.msra.mxu0 %v8666
          %8771 = vmatprep.mubr.bf16.mxu0 %v8435
          %8772 = vmatmul.mubr.bf16.gmra.mrb[0].mxu0 %v8434
          %v8773 = vpop.f32.mrb[0].mxu0
          %v8774 = vadd.f32 %v8734, %v8773
          %v8775 = vpop.f32.mrb[0].mxu0
          %v8776 = vpop.f32.mrb[0].mxu0
          %v8777 = vpop.f32.mrb[0].mxu0
          %8778 = vdwg.mxu0
          %8779 = vst [vmem:[#allocation6] sm:$0x3] %v8774
        $region56: #{mnist_2nn_pallas.3} parent=47 // pred_fallthru
          _
        // Predicated region
        $region57: #{mnist_2nn_pallas.3} parent=47 // pred_check
          %p8780 = pneg %p214
        $region58: #{mnist_2nn_pallas.3} parent=47 // pred_check_branch
          %8782 = sbr.rel (%p8780) target = $region60
        $region59: #{mnist_2nn_pallas.3} parent=47 // pred_region
          %s8784 = ssub.s32 32, 32
          %8785 = vsyncadd [#allocation5], %s8784
          %s8786 = smul.addr %s26, 32
          %s8787 = scalar_lea.hbm %s7, %s8786
          %s8789 = sshll.u32 [#allocation6], 4
          %s8790 = int_to_ptr.vmem [resolvable:$true] %s8789
          %8792 = dma.vmem_to_hbm [thread:$0]  %s8790, 32, %s8787, [#allocation5]
        $region60: #{mnist_2nn_pallas.3} parent=47 // pred_fallthru
          _
        // Predicated region
        $region61: #{mnist_2nn_pallas.3} parent=47 // pred_check
          %p8793 = pneg %p214
        $region62: #{mnist_2nn_pallas.3} parent=47 // pred_check_branch
          %8795 = sbr.rel (%p8793) target = $region64
        $region63: #{mnist_2nn_pallas.3} parent=47 // pred_region
          %8796 = dma.done [#allocation5], 32
        $region64: #{mnist_2nn_pallas.3} parent=47 // pred_fallthru
          _
      $region48: #{mnist_2nn_pallas.3} parent=5 // pred_fallthru
        _
      %p8797 = scmp.le.s32.totalorder 2, %s17
      // Predicated region
      $region65: #{mnist_2nn_pallas.3} parent=5 // pred_check
        %p8798 = pneg %p8797
      $region66: #{mnist_2nn_pallas.3} parent=5 // pred_check_branch
        %8800 = sbr.rel (%p8798) target = $region68
      $region67: #{mnist_2nn_pallas.3} parent=5 // pred_region
        %s8801 = ssub.s32 %s17, 2
      $region68: #{mnist_2nn_pallas.3} parent=5 // pred_fallthru
        _
    $region6: #{mnist_2nn_pallas.3} parent=1 // loop_footer
      %s21 = sadd.s32 1, %s17
    $region7: #{mnist_2nn_pallas.3} parent=1 // loop_footer_branch
      %16 = sbr.rel target = $region3
    $region8: #{mnist_2nn_pallas.3} parent=1 // loop_exit
      _
    %8802 = vsyncpa [#allocation4], 1
    %s8803 = scalar_lea.sflag [#allocation4], 1
    %8804 = vsyncpa %s8803, 1
    %8805 = vsyncpa [#allocation5], 1
    %s8806 = scalar_lea.sflag [#allocation5], 1
    %8807 = vsyncpa %s8806, 1

</llo_original>
